<compile_context>
chip_gen: v6e
topology: v6e:2x2x1
jax: 0.10.0
libtpu: 0.0.40
codegen_flags: <defaults>
</compile_context>

<pallas_src>
import functools

import jax
import jax.numpy as jnp
from jax.experimental import pallas as pl
from jax.experimental.pallas import tpu as pltpu


# --------------------- Kernel A: conv(3x3/s2) + pre_linear ---------------------

def _feat_pre_kernel(patches_ref, w_in_ref, b_in_ref, w_pre_ref, b_pre_ref,
                     feat_ref, pre_ref):
    # patches: (tm, 32) bf16 (im2col, zero-padded 27->32); weights bf16, biases f32.
    feat = (jnp.dot(patches_ref[...], w_in_ref[...],
                    preferred_element_type=jnp.float32) + b_in_ref[...])
    feat_ref[...] = feat.astype(feat_ref.dtype)
    pre = (jnp.dot(feat.astype(jnp.bfloat16), w_pre_ref[...],
                   preferred_element_type=jnp.float32) + b_pre_ref[...])
    pre_ref[...] = pre.astype(pre_ref.dtype)


def feat_pre(patches, w_in, b_in, w_pre, b_pre):
    M, Kp = patches.shape
    C = w_in.shape[1]
    tm = M
    for cand in (2048, 1024, 512, 256, 128):
        if M % cand == 0:
            tm = cand
            break
    return pl.pallas_call(
        _feat_pre_kernel,
        out_shape=(jax.ShapeDtypeStruct((M, C), jnp.bfloat16),
                   jax.ShapeDtypeStruct((M, C), jnp.bfloat16)),
        grid=(M // tm,),
        in_specs=[
            pl.BlockSpec((tm, Kp), lambda i: (i, 0)),
            pl.BlockSpec((Kp, C), lambda i: (0, 0)),
            pl.BlockSpec((1, C), lambda i: (0, 0)),
            pl.BlockSpec((C, C), lambda i: (0, 0)),
            pl.BlockSpec((1, C), lambda i: (0, 0)),
        ],
        out_specs=(pl.BlockSpec((tm, C), lambda i: (i, 0)),
                   pl.BlockSpec((tm, C), lambda i: (i, 0))),
        compiler_params=pltpu.CompilerParams(dimension_semantics=("parallel",)),
    )(patches, w_in, b_in, w_pre, b_pre)


# --- Kernel B: param path + affine grid + grid_sample + post + residual + merge ---
# One grid step == one batch element.

def _stt_main_kernel(feat_ref, pre_ref, xflat_ref,
                     w1_ref, b1_ref, w2_ref, b2_ref,
                     gh_ref, bh_ref, wh_ref, bhd_ref,
                     scale_ref, init_ref, bx_ref, by_ref,
                     wpost_ref, bpost_ref, gpm_ref, bpm_ref, wred_ref,
                     o_ref, *, n_trans, Ho, Wo, in_dim):
    HW = Ho * Wo
    Cc = in_dim // n_trans

    # ---- AffineNet param path: Linear -> Linear -> LayerNorm -> Linear ----
    pa = (jnp.dot(xflat_ref[...], w1_ref[...],
                  preferred_element_type=jnp.float32) + b1_ref[...])            # (1, 2C)
    pa = (jnp.dot(pa.astype(jnp.bfloat16), w2_ref[...],
                  preferred_element_type=jnp.float32) + b2_ref[...])            # (1, C)
    mu = jnp.mean(pa, axis=-1, keepdims=True)
    var = jnp.mean((pa - mu) ** 2, axis=-1, keepdims=True)                      # biased (PyTorch LN)
    xn = (pa - mu) * jax.lax.rsqrt(var + 1e-5) * gh_ref[...] + bh_ref[...]
    param = (jnp.dot(xn.astype(jnp.bfloat16), wh_ref[...],
                     preferred_element_type=jnp.float32) + bhd_ref[...])        # (1, 6*n_trans)
    # theta = tanh(param) * scale + identity-init   (per transform chunk of 6)
    theta = jnp.tanh(param) * scale_ref[...] + init_ref[...]                    # (1, 6*n_trans)

    pre = pre_ref[...]          # (HW, C) bf16
    bx = bx_ref[...]            # (HW, 1) target-grid x (align_corners=False pixel centers)
    by = by_ref[...]            # (HW, 1)
    cols = jax.lax.broadcasted_iota(jnp.int32, (HW, HW), 1)   # source-pixel index
    lane = jax.lax.broadcasted_iota(jnp.int32, (1, in_dim), 1)

    # grid_sample each transform's channel chunk; accumulate sampled chunks into one
    # (HW, in_dim) buffer so post_linear is a single fat matmul after the loop.
    sampled = jnp.zeros((HW, in_dim), jnp.float32)
    for t in range(n_trans):                                   # n_trans is small; static unroll
        c0 = 6 * t
        t00 = theta[0:1, c0 + 0:c0 + 1]
        t01 = theta[0:1, c0 + 1:c0 + 2]
        t02 = theta[0:1, c0 + 2:c0 + 3]
        t10 = theta[0:1, c0 + 3:c0 + 4]
        t11 = theta[0:1, c0 + 4:c0 + 5]
        t12 = theta[0:1, c0 + 5:c0 + 6]
        # F.affine_grid (align_corners=False) source coords, per output pixel p.
        gx = t00 * bx + t01 * by + t02                                          # (HW, 1)
        gy = t10 * bx + t11 * by + t12
        ix = ((gx + 1.0) * Wo - 1.0) * 0.5
        iy = ((gy + 1.0) * Ho - 1.0) * 0.5
        x0 = jnp.floor(ix)
        y0 = jnp.floor(iy)
        wx1 = ix - x0
        wx0 = 1.0 - wx1
        wy1 = iy - y0
        wy0 = 1.0 - wy1
        # zeros padding: invalid corners get zero weight (no clipping needed since
        # out-of-range source indices never match a column of `cols`).
        vx0 = (x0 >= 0.0) & (x0 <= Wo - 1.0)
        vx1 = (x0 >= -1.0) & (x0 <= Wo - 2.0)
        vy0 = (y0 >= 0.0) & (y0 <= Ho - 1.0)
        vy1 = (y0 >= -1.0) & (y0 <= Ho - 2.0)
        w00 = jnp.where(vx0 & vy0, wy0 * wx0, 0.0)
        w01 = jnp.where(vx1 & vy0, wy0 * wx1, 0.0)
        w10 = jnp.where(vx0 & vy1, wy1 * wx0, 0.0)
        w11 = jnp.where(vx1 & vy1, wy1 * wx1, 0.0)
        base = y0.astype(jnp.int32) * Wo + x0.astype(jnp.int32)                 # (HW, 1)
        delta = cols - base                                                     # (HW, HW)
        st = (jnp.where(delta == 0, w00, 0.0) +
              jnp.where(delta == 1, w01, 0.0) +
              jnp.where(delta == Wo, w10, 0.0) +
              jnp.where(delta == Wo + 1, w11, 0.0))
        # Mask this transform's channel chunk (avoids sub-128-lane slicing of pre).
        msk = (lane >= t * Cc) & (lane < (t + 1) * Cc)
        pre_t = jnp.where(msk, pre, jnp.zeros_like(pre))                        # (HW, C) bf16
        sampled = sampled + jnp.dot(st.astype(jnp.bfloat16), pre_t,
                                    preferred_element_type=jnp.float32)

    # Single post_linear matmul for all transforms.
    post = (jnp.dot(sampled.astype(jnp.bfloat16), wpost_ref[...],
                    preferred_element_type=jnp.float32) + bpost_ref[...])       # (HW, C)

    # residual with conv features, then PatchMerging (LN + Linear, no bias)
    out = post + feat_ref[...].astype(jnp.float32)
    mu2 = jnp.mean(out, axis=-1, keepdims=True)
    var2 = jnp.mean((out - mu2) ** 2, axis=-1, keepdims=True)
    xn2 = (out - mu2) * jax.lax.rsqrt(var2 + 1e-5) * gpm_ref[...] + bpm_ref[...]
    o_ref[...] = jnp.dot(xn2.astype(jnp.bfloat16), wred_ref[...],
                         preferred_element_type=jnp.float32).astype(o_ref.dtype)


def stt_main(args, *, B, n_trans, Ho, Wo, in_dim, ep):
    HW = Ho * Wo
    C = in_dim
    kern = functools.partial(_stt_main_kernel, n_trans=n_trans,
                             Ho=Ho, Wo=Wo, in_dim=in_dim)
    full = lambda b: (0, 0)
    batched = lambda b: (b, 0)
    in_specs = [
        pl.BlockSpec((HW, C), batched),                        # feat (per batch)
        pl.BlockSpec((HW, C), batched),                        # pre  (per batch)
        pl.BlockSpec((None, 1, HW * C), lambda b: (b, 0, 0)),  # feat flat view (per batch)
        pl.BlockSpec((HW * C, 2 * C), full),                   # w_pt1 (row-permuted)
        pl.BlockSpec((1, 2 * C), full),                        # b_pt1
        pl.BlockSpec((2 * C, C), full),                        # w_pt2
        pl.BlockSpec((1, C), full),                            # b_pt2
        pl.BlockSpec((1, C), full),                            # ln_head gamma
        pl.BlockSpec((1, C), full),                            # ln_head beta
        pl.BlockSpec((C, 6 * n_trans), full),                  # w_head
        pl.BlockSpec((1, 6 * n_trans), full),                  # b_head
        pl.BlockSpec((1, 6 * n_trans), full),                  # scale
        pl.BlockSpec((1, 6 * n_trans), full),                  # identity init
        pl.BlockSpec((HW, 1), full),                           # bx
        pl.BlockSpec((HW, 1), full),                           # by
        pl.BlockSpec((C, C), full),                            # w_post
        pl.BlockSpec((1, C), full),                            # b_post
        pl.BlockSpec((1, C), full),                            # ln_pm gamma
        pl.BlockSpec((1, C), full),                            # ln_pm beta
        pl.BlockSpec((C, ep), full),                           # w_red (lane-padded)
    ]
    return pl.pallas_call(
        kern,
        out_shape=jax.ShapeDtypeStruct((B * HW, ep), jnp.float32),
        grid=(B,),
        in_specs=in_specs,
        out_specs=pl.BlockSpec((HW, ep), batched),
        compiler_params=pltpu.CompilerParams(dimension_semantics=("parallel",)),
    )(*args)


# ------------------------------- JAX glue ----------------------------------

def _im2col_3x3_s2_p1(x):
    # x: (B, C, H, W) NCHW -> patches (B*Ho*Wo, C*9), feature order (c, kh, kw)
    B, C, H, W = x.shape
    Ho, Wo = H // 2, W // 2
    xp = jnp.pad(x, ((0, 0), (0, 0), (1, 1), (1, 1)))
    cols = []
    for kh in range(3):
        for kw in range(3):
            cols.append(xp[:, :, kh:kh + 2 * Ho:2, kw:kw + 2 * Wo:2])   # (B, C, Ho, Wo)
    pat = jnp.stack(cols, axis=2)                                        # (B, C, 9, Ho, Wo)
    pat = pat.transpose(0, 3, 4, 1, 2).reshape(B * Ho * Wo, C * 9)
    return pat


def init_params(key, in_dim, embed_dim, n_trans, num_patches):
    ks = jax.random.split(key, 7)

    def tn(k, shape):  # ~ trunc_normal_(std=0.02); biases zero, LN weight=1 bias=0
        return 0.02 * jax.random.normal(k, shape, jnp.float32)

    hidden = in_dim
    p = {
        'w_input': tn(ks[0], (in_dim, 3, 3, 3)),
        'b_input': jnp.zeros((in_dim,), jnp.float32),
        'w_pt1': tn(ks[1], (in_dim * 2, in_dim * num_patches)),
        'b_pt1': jnp.zeros((in_dim * 2,), jnp.float32),
        'w_pt2': tn(ks[2], (in_dim, in_dim * 2)),
        'b_pt2': jnp.zeros((in_dim,), jnp.float32),
        'ln_head_g': jnp.ones((in_dim,), jnp.float32),
        'ln_head_b': jnp.zeros((in_dim,), jnp.float32),
        'w_head': tn(ks[3], (6 * n_trans, in_dim)),
        'b_head': jnp.zeros((6 * n_trans,), jnp.float32),
        'w_pre': tn(ks[4], (hidden, in_dim, 1, 1)),
        'b_pre': jnp.zeros((hidden,), jnp.float32),
        'w_post': tn(ks[5], (in_dim, hidden, 1, 1)),
        'b_post': jnp.zeros((in_dim,), jnp.float32),
        'ln_pm_g': jnp.ones((in_dim,), jnp.float32),
        'ln_pm_b': jnp.zeros((in_dim,), jnp.float32),
        'w_red': tn(ks[6], (embed_dim, in_dim)),            # Linear(in_dim, embed_dim, bias=False)
        'scales': jnp.zeros((n_trans, 6), jnp.float32),     # init_eps = 0.0
        'init': jnp.array([1., 0., 0., 0., 1., 0.], jnp.float32),
        # NOTE: param_token exists in the PyTorch module but is unused in forward.
    }
    return p


def stt_forward(x, p, in_dim, embed_dim, n_trans):
    B, _, H, W = x.shape
    Ho, Wo = H // 2, W // 2
    HW = Ho * Wo
    hidden = in_dim
    assert in_dim % n_trans == 0, "AffineNet chunking requires in_dim % n_trans == 0"

    # 1) im2col for Conv2d(3, in_dim, 3, stride=2, pad=1), padded 27 -> 32 features.
    patches = _im2col_3x3_s2_p1(x)                                   # (B*HW, 27)
    K = patches.shape[1]
    Kp = ((K + 31) // 32) * 32
    patches = jnp.pad(patches, ((0, 0), (0, Kp - K))).astype(jnp.bfloat16)
    w_in = jnp.pad(p['w_input'].reshape(in_dim, -1).T,
                   ((0, Kp - K), (0, 0))).astype(jnp.bfloat16)       # (32, in_dim)
    b_in = p['b_input'].reshape(1, in_dim)
    w_pre = p['w_pre'].reshape(hidden, in_dim).T.astype(jnp.bfloat16)
    b_pre = p['b_pre'].reshape(1, hidden)

    feat, pre = feat_pre(patches, w_in, b_in, w_pre, b_pre)          # bf16 (B*HW, C) each

    # param_transformer input 'b c h w -> b (c h w)': instead of materializing the
    # transpose, keep feat in (hw, c) order (free bitcast view of the Kernel-A output)
    # and permute w_pt1's rows to (hw, c) order statically in the wrapper.
    xflat = feat.reshape(B, 1, HW * in_dim)
    w1 = (p['w_pt1'].T.reshape(in_dim, HW, 2 * in_dim)
          .transpose(1, 0, 2).reshape(HW * in_dim, 2 * in_dim).astype(jnp.bfloat16))

    # Base sampling grid (align_corners=False pixel centers), as column vectors.
    xs = (2.0 * jnp.arange(Wo, dtype=jnp.float32) + 1.0) / Wo - 1.0
    ys = (2.0 * jnp.arange(Ho, dtype=jnp.float32) + 1.0) / Ho - 1.0
    bx = jnp.tile(xs, Ho).reshape(HW, 1)
    by = jnp.repeat(ys, Wo).reshape(HW, 1)

    scale_row = p['scales'].reshape(1, 6 * n_trans)
    init_row = jnp.tile(p['init'], (n_trans,)).reshape(1, 6 * n_trans)

    # Lane-dense output: pad embed_dim to a multiple of 128, slice after the call.
    ep = ((embed_dim + 127) // 128) * 128
    w_red = jnp.pad(p['w_red'].T,
                    ((0, 0), (0, ep - embed_dim))).astype(jnp.bfloat16)  # (in_dim, ep)

    args = [
        feat, pre, xflat,
        w1, p['b_pt1'].reshape(1, -1),
        p['w_pt2'].T.astype(jnp.bfloat16), p['b_pt2'].reshape(1, -1),
        p['ln_head_g'].reshape(1, -1), p['ln_head_b'].reshape(1, -1),
        p['w_head'].T.astype(jnp.bfloat16), p['b_head'].reshape(1, -1),
        scale_row, init_row, bx, by,
        p['w_post'].reshape(in_dim, hidden).T.astype(jnp.bfloat16),
        p['b_post'].reshape(1, -1),
        p['ln_pm_g'].reshape(1, -1), p['ln_pm_b'].reshape(1, -1),
        w_red,
    ]
    out = stt_main(args, B=B, n_trans=n_trans, Ho=Ho, Wo=Wo,
                   in_dim=in_dim, ep=ep)                             # (B*HW, ep)
    return out[:, :embed_dim].reshape(B, HW, embed_dim)


if __name__ == "__main__":
    key = jax.random.PRNGKey(0)
    kp, kx = jax.random.split(key)

    # Small STT('PE', img_size<224) config: img=16 -> conv output 8x8, num_patches//4 = 64
    B, img_size = 2, 16
    in_dim, embed_dim, n_trans = 8, 16, 4           # in_dim divisible by n_trans (chunking)
    num_patches = (img_size // 2) ** 2

    params = init_params(kp, in_dim, embed_dim, n_trans, num_patches)
    x = jax.random.normal(kx, (B, 3, img_size, img_size), jnp.float32)

    fwd = jax.jit(functools.partial(stt_forward, in_dim=in_dim,
                                    embed_dim=embed_dim, n_trans=n_trans))
    out = jax.block_until_ready(fwd(x, params))
    assert out.shape == (B, num_patches, embed_dim)
    assert bool(jnp.all(jnp.isfinite(out)))
    print("KERNEL_OK")
</pallas_src>

<mosaic_0001>
module attributes {stable_mosaic.version = 11 : i64} {
  func.func @_feat_pre_kernel(%arg0: i32, %arg1: memref<128x32xbf16, #tpu.memory_space<vmem>>, %arg2: memref<32x8xbf16, #tpu.memory_space<vmem>>, %arg3: memref<1x8xf32, #tpu.memory_space<vmem>>, %arg4: memref<8x8xbf16, #tpu.memory_space<vmem>>, %arg5: memref<1x8xf32, #tpu.memory_space<vmem>>, %arg6: memref<128x8xbf16, #tpu.memory_space<vmem>>, %arg7: memref<128x8xbf16, #tpu.memory_space<vmem>>) attributes {dimension_semantics = [#tpu.dimension_semantics<parallel>], iteration_bounds = array<i64: 1>, scalar_prefetch = 0 : i64, scratch_operands = 0 : i64, tpu.core_type = #tpu.core_type<tc>, window_params = [{transform_indices = @transform_0, window_bounds = array<i64: 128, 32>}, {pipeline_mode = #tpu.pipeline_mode<synchronous>, transform_indices = @transform_1, window_bounds = array<i64: 32, 8>}, {pipeline_mode = #tpu.pipeline_mode<synchronous>, transform_indices = @transform_2, window_bounds = array<i64: 1, 8>}, {pipeline_mode = #tpu.pipeline_mode<synchronous>, transform_indices = @transform_3, window_bounds = array<i64: 8, 8>}, {pipeline_mode = #tpu.pipeline_mode<synchronous>, transform_indices = @transform_4, window_bounds = array<i64: 1, 8>}, {transform_indices = @transform_5, window_bounds = array<i64: 128, 8>}, {transform_indices = @transform_6, window_bounds = array<i64: 128, 8>}]} {
    %c0 = arith.constant 0 : index
    %c0_0 = arith.constant 0 : index
    %0 = vector.load %arg1[%c0, %c0_0] : memref<128x32xbf16, #tpu.memory_space<vmem>>, vector<128x32xbf16>
    %c0_1 = arith.constant 0 : index
    %c0_2 = arith.constant 0 : index
    %1 = vector.load %arg2[%c0_1, %c0_2] : memref<32x8xbf16, #tpu.memory_space<vmem>>, vector<32x8xbf16>
    %cst = arith.constant dense<0.000000e+00> : vector<128x8xf32>
    %2 = tpu.matmul %0, %1, %cst {dimension_numbers = #tpu.dot_dimension_numbers<[1], [0], [0], [1], [0, 0, 1, 1], [], []>} : vector<128x32xbf16>, vector<32x8xbf16>, vector<128x8xf32> -> vector<128x8xf32>
    %c0_3 = arith.constant 0 : index
    %c0_4 = arith.constant 0 : index
    %3 = vector.load %arg3[%c0_3, %c0_4] : memref<1x8xf32, #tpu.memory_space<vmem>>, vector<1x8xf32>
    %4 = vector.broadcast %3 : vector<1x8xf32> to vector<128x8xf32>
    %5 = arith.addf %2, %4 : vector<128x8xf32>
    %6 = arith.truncf %5 : vector<128x8xf32> to vector<128x8xbf16>
    %c0_5 = arith.constant 0 : index
    %c0_6 = arith.constant 0 : index
    %7 = vector.load %arg6[%c0_5, %c0_6] : memref<128x8xbf16, #tpu.memory_space<vmem>>, vector<128x8xbf16>
    tpu.vector_store %arg6[%c0_5, %c0_6], %6 {strides = array<i32>} : memref<128x8xbf16, #tpu.memory_space<vmem>>, vector<128x8xbf16>,
    %8 = arith.truncf %5 : vector<128x8xf32> to vector<128x8xbf16>
    %c0_7 = arith.constant 0 : index
    %c0_8 = arith.constant 0 : index
    %9 = vector.load %arg4[%c0_7, %c0_8] : memref<8x8xbf16, #tpu.memory_space<vmem>>, vector<8x8xbf16>
    %cst_9 = arith.constant dense<0.000000e+00> : vector<128x8xf32>
    %10 = tpu.matmul %8, %9, %cst_9 {dimension_numbers = #tpu.dot_dimension_numbers<[1], [0], [0], [1], [0, 0, 1, 1], [], []>} : vector<128x8xbf16>, vector<8x8xbf16>, vector<128x8xf32> -> vector<128x8xf32>
    %c0_10 = arith.constant 0 : index
    %c0_11 = arith.constant 0 : index
    %11 = vector.load %arg5[%c0_10, %c0_11] : memref<1x8xf32, #tpu.memory_space<vmem>>, vector<1x8xf32>
    %12 = vector.broadcast %11 : vector<1x8xf32> to vector<128x8xf32>
    %13 = arith.addf %10, %12 : vector<128x8xf32>
    %14 = arith.truncf %13 : vector<128x8xf32> to vector<128x8xbf16>
    %c0_12 = arith.constant 0 : index
    %c0_13 = arith.constant 0 : index
    %15 = vector.load %arg7[%c0_12, %c0_13] : memref<128x8xbf16, #tpu.memory_space<vmem>>, vector<128x8xbf16>
    tpu.vector_store %arg7[%c0_12, %c0_13], %14 {strides = array<i32>} : memref<128x8xbf16, #tpu.memory_space<vmem>>, vector<128x8xbf16>,
    return
  }
  func.func @transform_0(%arg0: i32) -> (i32, i32) {
    %c0_i32 = arith.constant 0 : i32
    %c0_i32_0 = arith.constant 0 : i32
    return %arg0, %c0_i32 : i32, i32
  }
  func.func @transform_1(%arg0: i32) -> (i32, i32) {
    %c0_i32 = arith.constant 0 : i32
    %c0_i32_0 = arith.constant 0 : i32
    %c0_i32_1 = arith.constant 0 : i32
    return %c0_i32, %c0_i32_0 : i32, i32
  }
  func.func @transform_2(%arg0: i32) -> (i32, i32) {
    %c0_i32 = arith.constant 0 : i32
    %c0_i32_0 = arith.constant 0 : i32
    %c0_i32_1 = arith.constant 0 : i32
    return %c0_i32, %c0_i32_0 : i32, i32
  }
  func.func @transform_3(%arg0: i32) -> (i32, i32) {
    %c0_i32 = arith.constant 0 : i32
    %c0_i32_0 = arith.constant 0 : i32
    %c0_i32_1 = arith.constant 0 : i32
    return %c0_i32, %c0_i32_0 : i32, i32
  }
  func.func @transform_4(%arg0: i32) -> (i32, i32) {
    %c0_i32 = arith.constant 0 : i32
    %c0_i32_0 = arith.constant 0 : i32
    %c0_i32_1 = arith.constant 0 : i32
    return %c0_i32, %c0_i32_0 : i32, i32
  }
  func.func @transform_5(%arg0: i32) -> (i32, i32) {
    %c0_i32 = arith.constant 0 : i32
    %c0_i32_0 = arith.constant 0 : i32
    return %arg0, %c0_i32 : i32, i32
  }
  func.func @transform_6(%arg0: i32) -> (i32, i32) {
    %c0_i32 = arith.constant 0 : i32
    %c0_i32_0 = arith.constant 0 : i32
    return %arg0, %c0_i32 : i32, i32
  }
}

module attributes {stable_mosaic.version = 11 : i64} {
  func.func @_stt_main_kernel(%arg0: i32, %arg1: memref<64x8xbf16, #tpu.memory_space<vmem>>, %arg2: memref<64x8xbf16, #tpu.memory_space<vmem>>, %arg3: memref<1x1x512xbf16, #tpu.memory_space<vmem>>, %arg4: memref<512x16xbf16, #tpu.memory_space<vmem>>, %arg5: memref<1x16xf32, #tpu.memory_space<vmem>>, %arg6: memref<16x8xbf16, #tpu.memory_space<vmem>>, %arg7: memref<1x8xf32, #tpu.memory_space<vmem>>, %arg8: memref<1x8xf32, #tpu.memory_space<vmem>>, %arg9: memref<1x8xf32, #tpu.memory_space<vmem>>, %arg10: memref<8x24xbf16, #tpu.memory_space<vmem>>, %arg11: memref<1x24xf32, #tpu.memory_space<vmem>>, %arg12: memref<1x24xf32, #tpu.memory_space<vmem>>, %arg13: memref<1x24xf32, #tpu.memory_space<vmem>>, %arg14: memref<64x1xf32, #tpu.memory_space<vmem>>, %arg15: memref<64x1xf32, #tpu.memory_space<vmem>>, %arg16: memref<8x8xbf16, #tpu.memory_space<vmem>>, %arg17: memref<1x8xf32, #tpu.memory_space<vmem>>, %arg18: memref<1x8xf32, #tpu.memory_space<vmem>>, %arg19: memref<1x8xf32, #tpu.memory_space<vmem>>, %arg20: memref<8x128xbf16, #tpu.memory_space<vmem>>, %arg21: memref<64x128xf32, #tpu.memory_space<vmem>>) attributes {dimension_semantics = [#tpu.dimension_semantics<parallel>], iteration_bounds = array<i64: 2>, scalar_prefetch = 0 : i64, scratch_operands = 0 : i64, tpu.core_type = #tpu.core_type<tc>, window_params = [{transform_indices = @transform_0, window_bounds = array<i64: 64, 8>}, {transform_indices = @transform_1, window_bounds = array<i64: 64, 8>}, {transform_indices = @transform_2, window_bounds = array<i64: 1, 1, 512>}, {pipeline_mode = #tpu.pipeline_mode<synchronous>, transform_indices = @transform_3, window_bounds = array<i64: 512, 16>}, {pipeline_mode = #tpu.pipeline_mode<synchronous>, transform_indices = @transform_4, window_bounds = array<i64: 1, 16>}, {pipeline_mode = #tpu.pipeline_mode<synchronous>, transform_indices = @transform_5, window_bounds = array<i64: 16, 8>}, {pipeline_mode = #tpu.pipeline_mode<synchronous>, transform_indices = @transform_6, window_bounds = array<i64: 1, 8>}, {pipeline_mode = #tpu.pipeline_mode<synchronous>, transform_indices = @transform_7, window_bounds = array<i64: 1, 8>}, {pipeline_mode = #tpu.pipeline_mode<synchronous>, transform_indices = @transform_8, window_bounds = array<i64: 1, 8>}, {pipeline_mode = #tpu.pipeline_mode<synchronous>, transform_indices = @transform_9, window_bounds = array<i64: 8, 24>}, {pipeline_mode = #tpu.pipeline_mode<synchronous>, transform_indices = @transform_10, window_bounds = array<i64: 1, 24>}, {pipeline_mode = #tpu.pipeline_mode<synchronous>, transform_indices = @transform_11, window_bounds = array<i64: 1, 24>}, {pipeline_mode = #tpu.pipeline_mode<synchronous>, transform_indices = @transform_12, window_bounds = array<i64: 1, 24>}, {pipeline_mode = #tpu.pipeline_mode<synchronous>, transform_indices = @transform_13, window_bounds = array<i64: 64, 1>}, {pipeline_mode = #tpu.pipeline_mode<synchronous>, transform_indices = @transform_14, window_bounds = array<i64: 64, 1>}, {pipeline_mode = #tpu.pipeline_mode<synchronous>, transform_indices = @transform_15, window_bounds = array<i64: 8, 8>}, {pipeline_mode = #tpu.pipeline_mode<synchronous>, transform_indices = @transform_16, window_bounds = array<i64: 1, 8>}, {pipeline_mode = #tpu.pipeline_mode<synchronous>, transform_indices = @transform_17, window_bounds = array<i64: 1, 8>}, {pipeline_mode = #tpu.pipeline_mode<synchronous>, transform_indices = @transform_18, window_bounds = array<i64: 1, 8>}, {pipeline_mode = #tpu.pipeline_mode<synchronous>, transform_indices = @transform_19, window_bounds = array<i64: 8, 128>}, {transform_indices = @transform_20, window_bounds = array<i64: 64, 128>}]} {
    %c0 = arith.constant 0 : index
    %c0_0 = arith.constant 0 : index
    %c0_1 = arith.constant 0 : index
    %0 = vector.load %arg3[%c0, %c0_0, %c0_1] : memref<1x1x512xbf16, #tpu.memory_space<vmem>>, vector<1x1x512xbf16>
    %1 = vector.shape_cast %0 : vector<1x1x512xbf16> to vector<1x512xbf16>
    %c0_2 = arith.constant 0 : index
    %c0_3 = arith.constant 0 : index
    %2 = vector.load %arg4[%c0_2, %c0_3] : memref<512x16xbf16, #tpu.memory_space<vmem>>, vector<512x16xbf16>
    %cst = arith.constant dense<0.000000e+00> : vector<1x16xf32>
    %3 = tpu.matmul %1, %2, %cst {dimension_numbers = #tpu.dot_dimension_numbers<[1], [0], [0], [1], [0, 0, 1, 1], [], []>} : vector<1x512xbf16>, vector<512x16xbf16>, vector<1x16xf32> -> vector<1x16xf32>
    %c0_4 = arith.constant 0 : index
    %c0_5 = arith.constant 0 : index
    %4 = vector.load %arg5[%c0_4, %c0_5] : memref<1x16xf32, #tpu.memory_space<vmem>>, vector<1x16xf32>
    %5 = arith.addf %3, %4 : vector<1x16xf32>
    %6 = arith.truncf %5 : vector<1x16xf32> to vector<1x16xbf16>
    %c0_6 = arith.constant 0 : index
    %c0_7 = arith.constant 0 : index
    %7 = vector.load %arg6[%c0_6, %c0_7] : memref<16x8xbf16, #tpu.memory_space<vmem>>, vector<16x8xbf16>
    %cst_8 = arith.constant dense<0.000000e+00> : vector<1x8xf32>
    %8 = tpu.matmul %6, %7, %cst_8 {dimension_numbers = #tpu.dot_dimension_numbers<[1], [0], [0], [1], [0, 0, 1, 1], [], []>} : vector<1x16xbf16>, vector<16x8xbf16>, vector<1x8xf32> -> vector<1x8xf32>
    %c0_9 = arith.constant 0 : index
    %c0_10 = arith.constant 0 : index
    %9 = vector.load %arg7[%c0_9, %c0_10] : memref<1x8xf32, #tpu.memory_space<vmem>>, vector<1x8xf32>
    %10 = arith.addf %8, %9 : vector<1x8xf32>
    %cst_11 = arith.constant dense<0.000000e+00> : vector<1xf32>
    %11 = vector.multi_reduction <add>, %10, %cst_11 [1] : vector<1x8xf32> to vector<1xf32>
    %12 = vector.shape_cast %11 : vector<1xf32> to vector<1x1xf32>
    %cst_12 = arith.constant 8.000000e+00 : f32
    %13 = vector.broadcast %cst_12 : f32 to vector<1x1xf32>
    %14 = arith.divf %12, %13 : vector<1x1xf32>
    %15 = vector.broadcast %14 : vector<1x1xf32> to vector<1x8xf32>
    %16 = arith.subf %10, %15 : vector<1x8xf32>
    %17 = arith.mulf %16, %16 : vector<1x8xf32>
    %cst_13 = arith.constant dense<0.000000e+00> : vector<1xf32>
    %18 = vector.multi_reduction <add>, %17, %cst_13 [1] : vector<1x8xf32> to vector<1xf32>
    %19 = vector.shape_cast %18 : vector<1xf32> to vector<1x1xf32>
    %cst_14 = arith.constant 8.000000e+00 : f32
    %20 = vector.broadcast %cst_14 : f32 to vector<1x1xf32>
    %21 = arith.divf %19, %20 : vector<1x1xf32>
    %22 = vector.broadcast %14 : vector<1x1xf32> to vector<1x8xf32>
    %23 = arith.subf %10, %22 : vector<1x8xf32>
    %cst_15 = arith.constant 9.99999974E-6 : f32
    %24 = vector.broadcast %cst_15 : f32 to vector<1x1xf32>
    %25 = arith.addf %21, %24 : vector<1x1xf32>
    %26 = math.rsqrt %25 : vector<1x1xf32>
    %27 = vector.broadcast %26 : vector<1x1xf32> to vector<1x8xf32>
    %28 = arith.mulf %23, %27 : vector<1x8xf32>
    %c0_16 = arith.constant 0 : index
    %c0_17 = arith.constant 0 : index
    %29 = vector.load %arg8[%c0_16, %c0_17] : memref<1x8xf32, #tpu.memory_space<vmem>>, vector<1x8xf32>
    %30 = arith.mulf %28, %29 : vector<1x8xf32>
    %c0_18 = arith.constant 0 : index
    %c0_19 = arith.constant 0 : index
    %31 = vector.load %arg9[%c0_18, %c0_19] : memref<1x8xf32, #tpu.memory_space<vmem>>, vector<1x8xf32>
    %32 = arith.addf %30, %31 : vector<1x8xf32>
    %33 = arith.truncf %32 : vector<1x8xf32> to vector<1x8xbf16>
    %c0_20 = arith.constant 0 : index
    %c0_21 = arith.constant 0 : index
    %34 = vector.load %arg10[%c0_20, %c0_21] : memref<8x24xbf16, #tpu.memory_space<vmem>>, vector<8x24xbf16>
    %cst_22 = arith.constant dense<0.000000e+00> : vector<1x24xf32>
    %35 = tpu.matmul %33, %34, %cst_22 {dimension_numbers = #tpu.dot_dimension_numbers<[1], [0], [0], [1], [0, 0, 1, 1], [], []>} : vector<1x8xbf16>, vector<8x24xbf16>, vector<1x24xf32> -> vector<1x24xf32>
    %c0_23 = arith.constant 0 : index
    %c0_24 = arith.constant 0 : index
    %36 = vector.load %arg11[%c0_23, %c0_24] : memref<1x24xf32, #tpu.memory_space<vmem>>, vector<1x24xf32>
    %37 = arith.addf %35, %36 : vector<1x24xf32>
    %38 = math.tanh %37 : vector<1x24xf32>
    %c0_25 = arith.constant 0 : index
    %c0_26 = arith.constant 0 : index
    %39 = vector.load %arg12[%c0_25, %c0_26] : memref<1x24xf32, #tpu.memory_space<vmem>>, vector<1x24xf32>
    %40 = arith.mulf %38, %39 : vector<1x24xf32>
    %c0_27 = arith.constant 0 : index
    %c0_28 = arith.constant 0 : index
    %41 = vector.load %arg13[%c0_27, %c0_28] : memref<1x24xf32, #tpu.memory_space<vmem>>, vector<1x24xf32>
    %42 = arith.addf %40, %41 : vector<1x24xf32>
    %c0_29 = arith.constant 0 : index
    %c0_30 = arith.constant 0 : index
    %43 = vector.load %arg2[%c0_29, %c0_30] : memref<64x8xbf16, #tpu.memory_space<vmem>>, vector<64x8xbf16>
    %c0_31 = arith.constant 0 : index
    %c0_32 = arith.constant 0 : index
    %44 = vector.load %arg14[%c0_31, %c0_32] : memref<64x1xf32, #tpu.memory_space<vmem>>, vector<64x1xf32>
    %c0_33 = arith.constant 0 : index
    %c0_34 = arith.constant 0 : index
    %45 = vector.load %arg15[%c0_33, %c0_34] : memref<64x1xf32, #tpu.memory_space<vmem>>, vector<64x1xf32>
    %46 = tpu.iota {dimensions = array<i32: 1>} : vector<64x64xi32>
    %47 = tpu.iota {dimensions = array<i32: 1>} : vector<1x8xi32>
    %cst_35 = arith.constant 0.000000e+00 : f32
    %48 = vector.broadcast %cst_35 : f32 to vector<64x8xf32>
    %49 = vector.extract_strided_slice %42 {offsets = [0, 0], sizes = [1, 1], strides = [1, 1]} : vector<1x24xf32> to vector<1x1xf32>
    %50 = vector.extract_strided_slice %42 {offsets = [0, 1], sizes = [1, 1], strides = [1, 1]} : vector<1x24xf32> to vector<1x1xf32>
    %51 = vector.extract_strided_slice %42 {offsets = [0, 2], sizes = [1, 1], strides = [1, 1]} : vector<1x24xf32> to vector<1x1xf32>
    %52 = vector.extract_strided_slice %42 {offsets = [0, 3], sizes = [1, 1], strides = [1, 1]} : vector<1x24xf32> to vector<1x1xf32>
    %53 = vector.extract_strided_slice %42 {offsets = [0, 4], sizes = [1, 1], strides = [1, 1]} : vector<1x24xf32> to vector<1x1xf32>
    %54 = vector.extract_strided_slice %42 {offsets = [0, 5], sizes = [1, 1], strides = [1, 1]} : vector<1x24xf32> to vector<1x1xf32>
    %55 = vector.broadcast %49 : vector<1x1xf32> to vector<64x1xf32>
    %56 = arith.mulf %55, %44 : vector<64x1xf32>
    %57 = vector.broadcast %50 : vector<1x1xf32> to vector<64x1xf32>
    %58 = arith.mulf %57, %45 : vector<64x1xf32>
    %59 = arith.addf %56, %58 : vector<64x1xf32>
    %60 = vector.broadcast %51 : vector<1x1xf32> to vector<64x1xf32>
    %61 = arith.addf %59, %60 : vector<64x1xf32>
    %62 = vector.broadcast %52 : vector<1x1xf32> to vector<64x1xf32>
    %63 = arith.mulf %62, %44 : vector<64x1xf32>
    %64 = vector.broadcast %53 : vector<1x1xf32> to vector<64x1xf32>
    %65 = arith.mulf %64, %45 : vector<64x1xf32>
    %66 = arith.addf %63, %65 : vector<64x1xf32>
    %67 = vector.broadcast %54 : vector<1x1xf32> to vector<64x1xf32>
    %68 = arith.addf %66, %67 : vector<64x1xf32>
    %cst_36 = arith.constant 1.000000e+00 : f32
    %69 = vector.broadcast %cst_36 : f32 to vector<64x1xf32>
    %70 = arith.addf %61, %69 : vector<64x1xf32>
    %cst_37 = arith.constant 8.000000e+00 : f32
    %71 = vector.broadcast %cst_37 : f32 to vector<64x1xf32>
    %72 = arith.mulf %70, %71 : vector<64x1xf32>
    %cst_38 = arith.constant 1.000000e+00 : f32
    %73 = vector.broadcast %cst_38 : f32 to vector<64x1xf32>
    %74 = arith.subf %72, %73 : vector<64x1xf32>
    %cst_39 = arith.constant 5.000000e-01 : f32
    %75 = vector.broadcast %cst_39 : f32 to vector<64x1xf32>
    %76 = arith.mulf %74, %75 : vector<64x1xf32>
    %cst_40 = arith.constant 1.000000e+00 : f32
    %77 = vector.broadcast %cst_40 : f32 to vector<64x1xf32>
    %78 = arith.addf %68, %77 : vector<64x1xf32>
    %cst_41 = arith.constant 8.000000e+00 : f32
    %79 = vector.broadcast %cst_41 : f32 to vector<64x1xf32>
    %80 = arith.mulf %78, %79 : vector<64x1xf32>
    %cst_42 = arith.constant 1.000000e+00 : f32
    %81 = vector.broadcast %cst_42 : f32 to vector<64x1xf32>
    %82 = arith.subf %80, %81 : vector<64x1xf32>
    %cst_43 = arith.constant 5.000000e-01 : f32
    %83 = vector.broadcast %cst_43 : f32 to vector<64x1xf32>
    %84 = arith.mulf %82, %83 : vector<64x1xf32>
    %85 = math.floor %76 : vector<64x1xf32>
    %86 = math.floor %84 : vector<64x1xf32>
    %87 = arith.subf %76, %85 : vector<64x1xf32>
    %cst_44 = arith.constant 1.000000e+00 : f32
    %88 = vector.broadcast %cst_44 : f32 to vector<64x1xf32>
    %89 = arith.subf %88, %87 : vector<64x1xf32>
    %90 = arith.subf %84, %86 : vector<64x1xf32>
    %cst_45 = arith.constant 1.000000e+00 : f32
    %91 = vector.broadcast %cst_45 : f32 to vector<64x1xf32>
    %92 = arith.subf %91, %90 : vector<64x1xf32>
    %cst_46 = arith.constant 0.000000e+00 : f32
    %93 = vector.broadcast %cst_46 : f32 to vector<64x1xf32>
    %94 = arith.cmpf oge, %85, %93 : vector<64x1xf32>
    %cst_47 = arith.constant 7.000000e+00 : f32
    %95 = vector.broadcast %cst_47 : f32 to vector<64x1xf32>
    %96 = arith.cmpf ole, %85, %95 : vector<64x1xf32>
    %97 = arith.andi %94, %96 : vector<64x1xi1>
    %cst_48 = arith.constant -1.000000e+00 : f32
    %98 = vector.broadcast %cst_48 : f32 to vector<64x1xf32>
    %99 = arith.cmpf oge, %85, %98 : vector<64x1xf32>
    %cst_49 = arith.constant 6.000000e+00 : f32
    %100 = vector.broadcast %cst_49 : f32 to vector<64x1xf32>
    %101 = arith.cmpf ole, %85, %100 : vector<64x1xf32>
    %102 = arith.andi %99, %101 : vector<64x1xi1>
    %cst_50 = arith.constant 0.000000e+00 : f32
    %103 = vector.broadcast %cst_50 : f32 to vector<64x1xf32>
    %104 = arith.cmpf oge, %86, %103 : vector<64x1xf32>
    %cst_51 = arith.constant 7.000000e+00 : f32
    %105 = vector.broadcast %cst_51 : f32 to vector<64x1xf32>
    %106 = arith.cmpf ole, %86, %105 : vector<64x1xf32>
    %107 = arith.andi %104, %106 : vector<64x1xi1>
    %cst_52 = arith.constant -1.000000e+00 : f32
    %108 = vector.broadcast %cst_52 : f32 to vector<64x1xf32>
    %109 = arith.cmpf oge, %86, %108 : vector<64x1xf32>
    %cst_53 = arith.constant 6.000000e+00 : f32
    %110 = vector.broadcast %cst_53 : f32 to vector<64x1xf32>
    %111 = arith.cmpf ole, %86, %110 : vector<64x1xf32>
    %112 = arith.andi %109, %111 : vector<64x1xi1>
    %113 = arith.andi %97, %107 : vector<64x1xi1>
    %114 = arith.mulf %92, %89 : vector<64x1xf32>
    %cst_54 = arith.constant 0.000000e+00 : f32
    %115 = vector.broadcast %cst_54 : f32 to vector<64x1xf32>
    %116 = arith.select %113, %114, %115 : vector<64x1xi1>, vector<64x1xf32>
    %117 = arith.andi %102, %107 : vector<64x1xi1>
    %118 = arith.mulf %92, %87 : vector<64x1xf32>
    %cst_55 = arith.constant 0.000000e+00 : f32
    %119 = vector.broadcast %cst_55 : f32 to vector<64x1xf32>
    %120 = arith.select %117, %118, %119 : vector<64x1xi1>, vector<64x1xf32>
    %121 = arith.andi %97, %112 : vector<64x1xi1>
    %122 = arith.mulf %90, %89 : vector<64x1xf32>
    %cst_56 = arith.constant 0.000000e+00 : f32
    %123 = vector.broadcast %cst_56 : f32 to vector<64x1xf32>
    %124 = arith.select %121, %122, %123 : vector<64x1xi1>, vector<64x1xf32>
    %125 = arith.andi %102, %112 : vector<64x1xi1>
    %126 = arith.mulf %90, %87 : vector<64x1xf32>
    %cst_57 = arith.constant 0.000000e+00 : f32
    %127 = vector.broadcast %cst_57 : f32 to vector<64x1xf32>
    %128 = arith.select %125, %126, %127 : vector<64x1xi1>, vector<64x1xf32>
    %129 = arith.fptosi %86 : vector<64x1xf32> to vector<64x1xi32>
    %c8_i32 = arith.constant 8 : i32
    %130 = vector.broadcast %c8_i32 : i32 to vector<64x1xi32>
    %131 = arith.muli %129, %130 : vector<64x1xi32>
    %132 = arith.fptosi %85 : vector<64x1xf32> to vector<64x1xi32>
    %133 = arith.addi %131, %132 : vector<64x1xi32>
    %134 = vector.broadcast %133 : vector<64x1xi32> to vector<64x64xi32>
    %135 = arith.subi %46, %134 : vector<64x64xi32>
    %c0_i32 = arith.constant 0 : i32
    %136 = vector.broadcast %c0_i32 : i32 to vector<64x64xi32>
    %137 = arith.cmpi eq, %135, %136 : vector<64x64xi32>
    %cst_58 = arith.constant 0.000000e+00 : f32
    %138 = vector.shape_cast %116 : vector<64x1xf32> to vector<64x1xf32>
    %139 = vector.broadcast %138 : vector<64x1xf32> to vector<64x64xf32>
    %140 = vector.broadcast %cst_58 : f32 to vector<64x64xf32>
    %141 = arith.select %137, %139, %140 : vector<64x64xi1>, vector<64x64xf32>
    %c1_i32 = arith.constant 1 : i32
    %142 = vector.broadcast %c1_i32 : i32 to vector<64x64xi32>
    %143 = arith.cmpi eq, %135, %142 : vector<64x64xi32>
    %cst_59 = arith.constant 0.000000e+00 : f32
    %144 = vector.shape_cast %120 : vector<64x1xf32> to vector<64x1xf32>
    %145 = vector.broadcast %144 : vector<64x1xf32> to vector<64x64xf32>
    %146 = vector.broadcast %cst_59 : f32 to vector<64x64xf32>
    %147 = arith.select %143, %145, %146 : vector<64x64xi1>, vector<64x64xf32>
    %148 = arith.addf %141, %147 : vector<64x64xf32>
    %c8_i32_60 = arith.constant 8 : i32
    %149 = vector.broadcast %c8_i32_60 : i32 to vector<64x64xi32>
    %150 = arith.cmpi eq, %135, %149 : vector<64x64xi32>
    %cst_61 = arith.constant 0.000000e+00 : f32
    %151 = vector.shape_cast %124 : vector<64x1xf32> to vector<64x1xf32>
    %152 = vector.broadcast %151 : vector<64x1xf32> to vector<64x64xf32>
    %153 = vector.broadcast %cst_61 : f32 to vector<64x64xf32>
    %154 = arith.select %150, %152, %153 : vector<64x64xi1>, vector<64x64xf32>
    %155 = arith.addf %148, %154 : vector<64x64xf32>
    %c9_i32 = arith.constant 9 : i32
    %156 = vector.broadcast %c9_i32 : i32 to vector<64x64xi32>
    %157 = arith.cmpi eq, %135, %156 : vector<64x64xi32>
    %cst_62 = arith.constant 0.000000e+00 : f32
    %158 = vector.shape_cast %128 : vector<64x1xf32> to vector<64x1xf32>
    %159 = vector.broadcast %158 : vector<64x1xf32> to vector<64x64xf32>
    %160 = vector.broadcast %cst_62 : f32 to vector<64x64xf32>
    %161 = arith.select %157, %159, %160 : vector<64x64xi1>, vector<64x64xf32>
    %162 = arith.addf %155, %161 : vector<64x64xf32>
    %c0_i32_63 = arith.constant 0 : i32
    %163 = vector.broadcast %c0_i32_63 : i32 to vector<1x8xi32>
    %164 = arith.cmpi sge, %47, %163 : vector<1x8xi32>
    %c2_i32 = arith.constant 2 : i32
    %165 = vector.broadcast %c2_i32 : i32 to vector<1x8xi32>
    %166 = arith.cmpi slt, %47, %165 : vector<1x8xi32>
    %167 = arith.andi %164, %166 : vector<1x8xi1>
    %cst_64 = arith.constant 0.000000e+00 : bf16
    %168 = vector.broadcast %cst_64 : bf16 to vector<64x8xbf16>
    %169 = vector.shape_cast %167 : vector<1x8xi1> to vector<1x8xi1>
    %170 = vector.broadcast %169 : vector<1x8xi1> to vector<64x8xi1>
    %171 = arith.select %170, %43, %168 : vector<64x8xi1>, vector<64x8xbf16>
    %172 = arith.truncf %162 : vector<64x64xf32> to vector<64x64xbf16>
    %cst_65 = arith.constant dense<0.000000e+00> : vector<64x8xf32>
    %173 = tpu.matmul %172, %171, %cst_65 {dimension_numbers = #tpu.dot_dimension_numbers<[1], [0], [0], [1], [0, 0, 1, 1], [], []>} : vector<64x64xbf16>, vector<64x8xbf16>, vector<64x8xf32> -> vector<64x8xf32>
    %174 = arith.addf %48, %173 : vector<64x8xf32>
    %175 = vector.extract_strided_slice %42 {offsets = [0, 6], sizes = [1, 1], strides = [1, 1]} : vector<1x24xf32> to vector<1x1xf32>
    %176 = vector.extract_strided_slice %42 {offsets = [0, 7], sizes = [1, 1], strides = [1, 1]} : vector<1x24xf32> to vector<1x1xf32>
    %177 = vector.extract_strided_slice %42 {offsets = [0, 8], sizes = [1, 1], strides = [1, 1]} : vector<1x24xf32> to vector<1x1xf32>
    %178 = vector.extract_strided_slice %42 {offsets = [0, 9], sizes = [1, 1], strides = [1, 1]} : vector<1x24xf32> to vector<1x1xf32>
    %179 = vector.extract_strided_slice %42 {offsets = [0, 10], sizes = [1, 1], strides = [1, 1]} : vector<1x24xf32> to vector<1x1xf32>
    %180 = vector.extract_strided_slice %42 {offsets = [0, 11], sizes = [1, 1], strides = [1, 1]} : vector<1x24xf32> to vector<1x1xf32>
    %181 = vector.broadcast %175 : vector<1x1xf32> to vector<64x1xf32>
    %182 = arith.mulf %181, %44 : vector<64x1xf32>
    %183 = vector.broadcast %176 : vector<1x1xf32> to vector<64x1xf32>
    %184 = arith.mulf %183, %45 : vector<64x1xf32>
    %185 = arith.addf %182, %184 : vector<64x1xf32>
    %186 = vector.broadcast %177 : vector<1x1xf32> to vector<64x1xf32>
    %187 = arith.addf %185, %186 : vector<64x1xf32>
    %188 = vector.broadcast %178 : vector<1x1xf32> to vector<64x1xf32>
    %189 = arith.mulf %188, %44 : vector<64x1xf32>
    %190 = vector.broadcast %179 : vector<1x1xf32> to vector<64x1xf32>
    %191 = arith.mulf %190, %45 : vector<64x1xf32>
    %192 = arith.addf %189, %191 : vector<64x1xf32>
    %193 = vector.broadcast %180 : vector<1x1xf32> to vector<64x1xf32>
    %194 = arith.addf %192, %193 : vector<64x1xf32>
    %cst_66 = arith.constant 1.000000e+00 : f32
    %195 = vector.broadcast %cst_66 : f32 to vector<64x1xf32>
    %196 = arith.addf %187, %195 : vector<64x1xf32>
    %cst_67 = arith.constant 8.000000e+00 : f32
    %197 = vector.broadcast %cst_67 : f32 to vector<64x1xf32>
    %198 = arith.mulf %196, %197 : vector<64x1xf32>
    %cst_68 = arith.constant 1.000000e+00 : f32
    %199 = vector.broadcast %cst_68 : f32 to vector<64x1xf32>
    %200 = arith.subf %198, %199 : vector<64x1xf32>
    %cst_69 = arith.constant 5.000000e-01 : f32
    %201 = vector.broadcast %cst_69 : f32 to vector<64x1xf32>
    %202 = arith.mulf %200, %201 : vector<64x1xf32>
    %cst_70 = arith.constant 1.000000e+00 : f32
    %203 = vector.broadcast %cst_70 : f32 to vector<64x1xf32>
    %204 = arith.addf %194, %203 : vector<64x1xf32>
    %cst_71 = arith.constant 8.000000e+00 : f32
    %205 = vector.broadcast %cst_71 : f32 to vector<64x1xf32>
    %206 = arith.mulf %204, %205 : vector<64x1xf32>
    %cst_72 = arith.constant 1.000000e+00 : f32
    %207 = vector.broadcast %cst_72 : f32 to vector<64x1xf32>
    %208 = arith.subf %206, %207 : vector<64x1xf32>
    %cst_73 = arith.constant 5.000000e-01 : f32
    %209 = vector.broadcast %cst_73 : f32 to vector<64x1xf32>
    %210 = arith.mulf %208, %209 : vector<64x1xf32>
    %211 = math.floor %202 : vector<64x1xf32>
    %212 = math.floor %210 : vector<64x1xf32>
    %213 = arith.subf %202, %211 : vector<64x1xf32>
    %cst_74 = arith.constant 1.000000e+00 : f32
    %214 = vector.broadcast %cst_74 : f32 to vector<64x1xf32>
    %215 = arith.subf %214, %213 : vector<64x1xf32>
    %216 = arith.subf %210, %212 : vector<64x1xf32>
    %cst_75 = arith.constant 1.000000e+00 : f32
    %217 = vector.broadcast %cst_75 : f32 to vector<64x1xf32>
    %218 = arith.subf %217, %216 : vector<64x1xf32>
    %cst_76 = arith.constant 0.000000e+00 : f32
    %219 = vector.broadcast %cst_76 : f32 to vector<64x1xf32>
    %220 = arith.cmpf oge, %211, %219 : vector<64x1xf32>
    %cst_77 = arith.constant 7.000000e+00 : f32
    %221 = vector.broadcast %cst_77 : f32 to vector<64x1xf32>
    %222 = arith.cmpf ole, %211, %221 : vector<64x1xf32>
    %223 = arith.andi %220, %222 : vector<64x1xi1>
    %cst_78 = arith.constant -1.000000e+00 : f32
    %224 = vector.broadcast %cst_78 : f32 to vector<64x1xf32>
    %225 = arith.cmpf oge, %211, %224 : vector<64x1xf32>
    %cst_79 = arith.constant 6.000000e+00 : f32
    %226 = vector.broadcast %cst_79 : f32 to vector<64x1xf32>
    %227 = arith.cmpf ole, %211, %226 : vector<64x1xf32>
    %228 = arith.andi %225, %227 : vector<64x1xi1>
    %cst_80 = arith.constant 0.000000e+00 : f32
    %229 = vector.broadcast %cst_80 : f32 to vector<64x1xf32>
    %230 = arith.cmpf oge, %212, %229 : vector<64x1xf32>
    %cst_81 = arith.constant 7.000000e+00 : f32
    %231 = vector.broadcast %cst_81 : f32 to vector<64x1xf32>
    %232 = arith.cmpf ole, %212, %231 : vector<64x1xf32>
    %233 = arith.andi %230, %232 : vector<64x1xi1>
    %cst_82 = arith.constant -1.000000e+00 : f32
    %234 = vector.broadcast %cst_82 : f32 to vector<64x1xf32>
    %235 = arith.cmpf oge, %212, %234 : vector<64x1xf32>
    %cst_83 = arith.constant 6.000000e+00 : f32
    %236 = vector.broadcast %cst_83 : f32 to vector<64x1xf32>
    %237 = arith.cmpf ole, %212, %236 : vector<64x1xf32>
    %238 = arith.andi %235, %237 : vector<64x1xi1>
    %239 = arith.andi %223, %233 : vector<64x1xi1>
    %240 = arith.mulf %218, %215 : vector<64x1xf32>
    %cst_84 = arith.constant 0.000000e+00 : f32
    %241 = vector.broadcast %cst_84 : f32 to vector<64x1xf32>
    %242 = arith.select %239, %240, %241 : vector<64x1xi1>, vector<64x1xf32>
    %243 = arith.andi %228, %233 : vector<64x1xi1>
    %244 = arith.mulf %218, %213 : vector<64x1xf32>
    %cst_85 = arith.constant 0.000000e+00 : f32
    %245 = vector.broadcast %cst_85 : f32 to vector<64x1xf32>
    %246 = arith.select %243, %244, %245 : vector<64x1xi1>, vector<64x1xf32>
    %247 = arith.andi %223, %238 : vector<64x1xi1>
    %248 = arith.mulf %216, %215 : vector<64x1xf32>
    %cst_86 = arith.constant 0.000000e+00 : f32
    %249 = vector.broadcast %cst_86 : f32 to vector<64x1xf32>
    %250 = arith.select %247, %248, %249 : vector<64x1xi1>, vector<64x1xf32>
    %251 = arith.andi %228, %238 : vector<64x1xi1>
    %252 = arith.mulf %216, %213 : vector<64x1xf32>
    %cst_87 = arith.constant 0.000000e+00 : f32
    %253 = vector.broadcast %cst_87 : f32 to vector<64x1xf32>
    %254 = arith.select %251, %252, %253 : vector<64x1xi1>, vector<64x1xf32>
    %255 = arith.fptosi %212 : vector<64x1xf32> to vector<64x1xi32>
    %c8_i32_88 = arith.constant 8 : i32
    %256 = vector.broadcast %c8_i32_88 : i32 to vector<64x1xi32>
    %257 = arith.muli %255, %256 : vector<64x1xi32>
    %258 = arith.fptosi %211 : vector<64x1xf32> to vector<64x1xi32>
    %259 = arith.addi %257, %258 : vector<64x1xi32>
    %260 = vector.broadcast %259 : vector<64x1xi32> to vector<64x64xi32>
    %261 = arith.subi %46, %260 : vector<64x64xi32>
    %c0_i32_89 = arith.constant 0 : i32
    %262 = vector.broadcast %c0_i32_89 : i32 to vector<64x64xi32>
    %263 = arith.cmpi eq, %261, %262 : vector<64x64xi32>
    %cst_90 = arith.constant 0.000000e+00 : f32
    %264 = vector.shape_cast %242 : vector<64x1xf32> to vector<64x1xf32>
    %265 = vector.broadcast %264 : vector<64x1xf32> to vector<64x64xf32>
    %266 = vector.broadcast %cst_90 : f32 to vector<64x64xf32>
    %267 = arith.select %263, %265, %266 : vector<64x64xi1>, vector<64x64xf32>
    %c1_i32_91 = arith.constant 1 : i32
    %268 = vector.broadcast %c1_i32_91 : i32 to vector<64x64xi32>
    %269 = arith.cmpi eq, %261, %268 : vector<64x64xi32>
    %cst_92 = arith.constant 0.000000e+00 : f32
    %270 = vector.shape_cast %246 : vector<64x1xf32> to vector<64x1xf32>
    %271 = vector.broadcast %270 : vector<64x1xf32> to vector<64x64xf32>
    %272 = vector.broadcast %cst_92 : f32 to vector<64x64xf32>
    %273 = arith.select %269, %271, %272 : vector<64x64xi1>, vector<64x64xf32>
    %274 = arith.addf %267, %273 : vector<64x64xf32>
    %c8_i32_93 = arith.constant 8 : i32
    %275 = vector.broadcast %c8_i32_93 : i32 to vector<64x64xi32>
    %276 = arith.cmpi eq, %261, %275 : vector<64x64xi32>
    %cst_94 = arith.constant 0.000000e+00 : f32
    %277 = vector.shape_cast %250 : vector<64x1xf32> to vector<64x1xf32>
    %278 = vector.broadcast %277 : vector<64x1xf32> to vector<64x64xf32>
    %279 = vector.broadcast %cst_94 : f32 to vector<64x64xf32>
    %280 = arith.select %276, %278, %279 : vector<64x64xi1>, vector<64x64xf32>
    %281 = arith.addf %274, %280 : vector<64x64xf32>
    %c9_i32_95 = arith.constant 9 : i32
    %282 = vector.broadcast %c9_i32_95 : i32 to vector<64x64xi32>
    %283 = arith.cmpi eq, %261, %282 : vector<64x64xi32>
    %cst_96 = arith.constant 0.000000e+00 : f32
    %284 = vector.shape_cast %254 : vector<64x1xf32> to vector<64x1xf32>
    %285 = vector.broadcast %284 : vector<64x1xf32> to vector<64x64xf32>
    %286 = vector.broadcast %cst_96 : f32 to vector<64x64xf32>
    %287 = arith.select %283, %285, %286 : vector<64x64xi1>, vector<64x64xf32>
    %288 = arith.addf %281, %287 : vector<64x64xf32>
    %c2_i32_97 = arith.constant 2 : i32
    %289 = vector.broadcast %c2_i32_97 : i32 to vector<1x8xi32>
    %290 = arith.cmpi sge, %47, %289 : vector<1x8xi32>
    %c4_i32 = arith.constant 4 : i32
    %291 = vector.broadcast %c4_i32 : i32 to vector<1x8xi32>
    %292 = arith.cmpi slt, %47, %291 : vector<1x8xi32>
    %293 = arith.andi %290, %292 : vector<1x8xi1>
    %cst_98 = arith.constant 0.000000e+00 : bf16
    %294 = vector.broadcast %cst_98 : bf16 to vector<64x8xbf16>
    %295 = vector.shape_cast %293 : vector<1x8xi1> to vector<1x8xi1>
    %296 = vector.broadcast %295 : vector<1x8xi1> to vector<64x8xi1>
    %297 = arith.select %296, %43, %294 : vector<64x8xi1>, vector<64x8xbf16>
    %298 = arith.truncf %288 : vector<64x64xf32> to vector<64x64xbf16>
    %cst_99 = arith.constant dense<0.000000e+00> : vector<64x8xf32>
    %299 = tpu.matmul %298, %297, %cst_99 {dimension_numbers = #tpu.dot_dimension_numbers<[1], [0], [0], [1], [0, 0, 1, 1], [], []>} : vector<64x64xbf16>, vector<64x8xbf16>, vector<64x8xf32> -> vector<64x8xf32>
    %300 = arith.addf %174, %299 : vector<64x8xf32>
    %301 = vector.extract_strided_slice %42 {offsets = [0, 12], sizes = [1, 1], strides = [1, 1]} : vector<1x24xf32> to vector<1x1xf32>
    %302 = vector.extract_strided_slice %42 {offsets = [0, 13], sizes = [1, 1], strides = [1, 1]} : vector<1x24xf32> to vector<1x1xf32>
    %303 = vector.extract_strided_slice %42 {offsets = [0, 14], sizes = [1, 1], strides = [1, 1]} : vector<1x24xf32> to vector<1x1xf32>
    %304 = vector.extract_strided_slice %42 {offsets = [0, 15], sizes = [1, 1], strides = [1, 1]} : vector<1x24xf32> to vector<1x1xf32>
    %305 = vector.extract_strided_slice %42 {offsets = [0, 16], sizes = [1, 1], strides = [1, 1]} : vector<1x24xf32> to vector<1x1xf32>
    %306 = vector.extract_strided_slice %42 {offsets = [0, 17], sizes = [1, 1], strides = [1, 1]} : vector<1x24xf32> to vector<1x1xf32>
    %307 = vector.broadcast %301 : vector<1x1xf32> to vector<64x1xf32>
    %308 = arith.mulf %307, %44 : vector<64x1xf32>
    %309 = vector.broadcast %302 : vector<1x1xf32> to vector<64x1xf32>
    %310 = arith.mulf %309, %45 : vector<64x1xf32>
    %311 = arith.addf %308, %310 : vector<64x1xf32>
    %312 = vector.broadcast %303 : vector<1x1xf32> to vector<64x1xf32>
    %313 = arith.addf %311, %312 : vector<64x1xf32>
    %314 = vector.broadcast %304 : vector<1x1xf32> to vector<64x1xf32>
    %315 = arith.mulf %314, %44 : vector<64x1xf32>
    %316 = vector.broadcast %305 : vector<1x1xf32> to vector<64x1xf32>
    %317 = arith.mulf %316, %45 : vector<64x1xf32>
    %318 = arith.addf %315, %317 : vector<64x1xf32>
    %319 = vector.broadcast %306 : vector<1x1xf32> to vector<64x1xf32>
    %320 = arith.addf %318, %319 : vector<64x1xf32>
    %cst_100 = arith.constant 1.000000e+00 : f32
    %321 = vector.broadcast %cst_100 : f32 to vector<64x1xf32>
    %322 = arith.addf %313, %321 : vector<64x1xf32>
    %cst_101 = arith.constant 8.000000e+00 : f32
    %323 = vector.broadcast %cst_101 : f32 to vector<64x1xf32>
    %324 = arith.mulf %322, %323 : vector<64x1xf32>
    %cst_102 = arith.constant 1.000000e+00 : f32
    %325 = vector.broadcast %cst_102 : f32 to vector<64x1xf32>
    %326 = arith.subf %324, %325 : vector<64x1xf32>
    %cst_103 = arith.constant 5.000000e-01 : f32
    %327 = vector.broadcast %cst_103 : f32 to vector<64x1xf32>
    %328 = arith.mulf %326, %327 : vector<64x1xf32>
    %cst_104 = arith.constant 1.000000e+00 : f32
    %329 = vector.broadcast %cst_104 : f32 to vector<64x1xf32>
    %330 = arith.addf %320, %329 : vector<64x1xf32>
    %cst_105 = arith.constant 8.000000e+00 : f32
    %331 = vector.broadcast %cst_105 : f32 to vector<64x1xf32>
    %332 = arith.mulf %330, %331 : vector<64x1xf32>
    %cst_106 = arith.constant 1.000000e+00 : f32
    %333 = vector.broadcast %cst_106 : f32 to vector<64x1xf32>
    %334 = arith.subf %332, %333 : vector<64x1xf32>
    %cst_107 = arith.constant 5.000000e-01 : f32
    %335 = vector.broadcast %cst_107 : f32 to vector<64x1xf32>
    %336 = arith.mulf %334, %335 : vector<64x1xf32>
    %337 = math.floor %328 : vector<64x1xf32>
    %338 = math.floor %336 : vector<64x1xf32>
    %339 = arith.subf %328, %337 : vector<64x1xf32>
    %cst_108 = arith.constant 1.000000e+00 : f32
    %340 = vector.broadcast %cst_108 : f32 to vector<64x1xf32>
    %341 = arith.subf %340, %339 : vector<64x1xf32>
    %342 = arith.subf %336, %338 : vector<64x1xf32>
    %cst_109 = arith.constant 1.000000e+00 : f32
    %343 = vector.broadcast %cst_109 : f32 to vector<64x1xf32>
    %344 = arith.subf %343, %342 : vector<64x1xf32>
    %cst_110 = arith.constant 0.000000e+00 : f32
    %345 = vector.broadcast %cst_110 : f32 to vector<64x1xf32>
    %346 = arith.cmpf oge, %337, %345 : vector<64x1xf32>
    %cst_111 = arith.constant 7.000000e+00 : f32
    %347 = vector.broadcast %cst_111 : f32 to vector<64x1xf32>
    %348 = arith.cmpf ole, %337, %347 : vector<64x1xf32>
    %349 = arith.andi %346, %348 : vector<64x1xi1>
    %cst_112 = arith.constant -1.000000e+00 : f32
    %350 = vector.broadcast %cst_112 : f32 to vector<64x1xf32>
    %351 = arith.cmpf oge, %337, %350 : vector<64x1xf32>
    %cst_113 = arith.constant 6.000000e+00 : f32
    %352 = vector.broadcast %cst_113 : f32 to vector<64x1xf32>
    %353 = arith.cmpf ole, %337, %352 : vector<64x1xf32>
    %354 = arith.andi %351, %353 : vector<64x1xi1>
    %cst_114 = arith.constant 0.000000e+00 : f32
    %355 = vector.broadcast %cst_114 : f32 to vector<64x1xf32>
    %356 = arith.cmpf oge, %338, %355 : vector<64x1xf32>
    %cst_115 = arith.constant 7.000000e+00 : f32
    %357 = vector.broadcast %cst_115 : f32 to vector<64x1xf32>
    %358 = arith.cmpf ole, %338, %357 : vector<64x1xf32>
    %359 = arith.andi %356, %358 : vector<64x1xi1>
    %cst_116 = arith.constant -1.000000e+00 : f32
    %360 = vector.broadcast %cst_116 : f32 to vector<64x1xf32>
    %361 = arith.cmpf oge, %338, %360 : vector<64x1xf32>
    %cst_117 = arith.constant 6.000000e+00 : f32
    %362 = vector.broadcast %cst_117 : f32 to vector<64x1xf32>
    %363 = arith.cmpf ole, %338, %362 : vector<64x1xf32>
    %364 = arith.andi %361, %363 : vector<64x1xi1>
    %365 = arith.andi %349, %359 : vector<64x1xi1>
    %366 = arith.mulf %344, %341 : vector<64x1xf32>
    %cst_118 = arith.constant 0.000000e+00 : f32
    %367 = vector.broadcast %cst_118 : f32 to vector<64x1xf32>
    %368 = arith.select %365, %366, %367 : vector<64x1xi1>, vector<64x1xf32>
    %369 = arith.andi %354, %359 : vector<64x1xi1>
    %370 = arith.mulf %344, %339 : vector<64x1xf32>
    %cst_119 = arith.constant 0.000000e+00 : f32
    %371 = vector.broadcast %cst_119 : f32 to vector<64x1xf32>
    %372 = arith.select %369, %370, %371 : vector<64x1xi1>, vector<64x1xf32>
    %373 = arith.andi %349, %364 : vector<64x1xi1>
    %374 = arith.mulf %342, %341 : vector<64x1xf32>
    %cst_120 = arith.constant 0.000000e+00 : f32
    %375 = vector.broadcast %cst_120 : f32 to vector<64x1xf32>
    %376 = arith.select %373, %374, %375 : vector<64x1xi1>, vector<64x1xf32>
    %377 = arith.andi %354, %364 : vector<64x1xi1>
    %378 = arith.mulf %342, %339 : vector<64x1xf32>
    %cst_121 = arith.constant 0.000000e+00 : f32
    %379 = vector.broadcast %cst_121 : f32 to vector<64x1xf32>
    %380 = arith.select %377, %378, %379 : vector<64x1xi1>, vector<64x1xf32>
    %381 = arith.fptosi %338 : vector<64x1xf32> to vector<64x1xi32>
    %c8_i32_122 = arith.constant 8 : i32
    %382 = vector.broadcast %c8_i32_122 : i32 to vector<64x1xi32>
    %383 = arith.muli %381, %382 : vector<64x1xi32>
    %384 = arith.fptosi %337 : vector<64x1xf32> to vector<64x1xi32>
    %385 = arith.addi %383, %384 : vector<64x1xi32>
    %386 = vector.broadcast %385 : vector<64x1xi32> to vector<64x64xi32>
    %387 = arith.subi %46, %386 : vector<64x64xi32>
    %c0_i32_123 = arith.constant 0 : i32
    %388 = vector.broadcast %c0_i32_123 : i32 to vector<64x64xi32>
    %389 = arith.cmpi eq, %387, %388 : vector<64x64xi32>
    %cst_124 = arith.constant 0.000000e+00 : f32
    %390 = vector.shape_cast %368 : vector<64x1xf32> to vector<64x1xf32>
    %391 = vector.broadcast %390 : vector<64x1xf32> to vector<64x64xf32>
    %392 = vector.broadcast %cst_124 : f32 to vector<64x64xf32>
    %393 = arith.select %389, %391, %392 : vector<64x64xi1>, vector<64x64xf32>
    %c1_i32_125 = arith.constant 1 : i32
    %394 = vector.broadcast %c1_i32_125 : i32 to vector<64x64xi32>
    %395 = arith.cmpi eq, %387, %394 : vector<64x64xi32>
    %cst_126 = arith.constant 0.000000e+00 : f32
    %396 = vector.shape_cast %372 : vector<64x1xf32> to vector<64x1xf32>
    %397 = vector.broadcast %396 : vector<64x1xf32> to vector<64x64xf32>
    %398 = vector.broadcast %cst_126 : f32 to vector<64x64xf32>
    %399 = arith.select %395, %397, %398 : vector<64x64xi1>, vector<64x64xf32>
    %400 = arith.addf %393, %399 : vector<64x64xf32>
    %c8_i32_127 = arith.constant 8 : i32
    %401 = vector.broadcast %c8_i32_127 : i32 to vector<64x64xi32>
    %402 = arith.cmpi eq, %387, %401 : vector<64x64xi32>
    %cst_128 = arith.constant 0.000000e+00 : f32
    %403 = vector.shape_cast %376 : vector<64x1xf32> to vector<64x1xf32>
    %404 = vector.broadcast %403 : vector<64x1xf32> to vector<64x64xf32>
    %405 = vector.broadcast %cst_128 : f32 to vector<64x64xf32>
    %406 = arith.select %402, %404, %405 : vector<64x64xi1>, vector<64x64xf32>
    %407 = arith.addf %400, %406 : vector<64x64xf32>
    %c9_i32_129 = arith.constant 9 : i32
    %408 = vector.broadcast %c9_i32_129 : i32 to vector<64x64xi32>
    %409 = arith.cmpi eq, %387, %408 : vector<64x64xi32>
    %cst_130 = arith.constant 0.000000e+00 : f32
    %410 = vector.shape_cast %380 : vector<64x1xf32> to vector<64x1xf32>
    %411 = vector.broadcast %410 : vector<64x1xf32> to vector<64x64xf32>
    %412 = vector.broadcast %cst_130 : f32 to vector<64x64xf32>
    %413 = arith.select %409, %411, %412 : vector<64x64xi1>, vector<64x64xf32>
    %414 = arith.addf %407, %413 : vector<64x64xf32>
    %c4_i32_131 = arith.constant 4 : i32
    %415 = vector.broadcast %c4_i32_131 : i32 to vector<1x8xi32>
    %416 = arith.cmpi sge, %47, %415 : vector<1x8xi32>
    %c6_i32 = arith.constant 6 : i32
    %417 = vector.broadcast %c6_i32 : i32 to vector<1x8xi32>
    %418 = arith.cmpi slt, %47, %417 : vector<1x8xi32>
    %419 = arith.andi %416, %418 : vector<1x8xi1>
    %cst_132 = arith.constant 0.000000e+00 : bf16
    %420 = vector.broadcast %cst_132 : bf16 to vector<64x8xbf16>
    %421 = vector.shape_cast %419 : vector<1x8xi1> to vector<1x8xi1>
    %422 = vector.broadcast %421 : vector<1x8xi1> to vector<64x8xi1>
    %423 = arith.select %422, %43, %420 : vector<64x8xi1>, vector<64x8xbf16>
    %424 = arith.truncf %414 : vector<64x64xf32> to vector<64x64xbf16>
    %cst_133 = arith.constant dense<0.000000e+00> : vector<64x8xf32>
    %425 = tpu.matmul %424, %423, %cst_133 {dimension_numbers = #tpu.dot_dimension_numbers<[1], [0], [0], [1], [0, 0, 1, 1], [], []>} : vector<64x64xbf16>, vector<64x8xbf16>, vector<64x8xf32> -> vector<64x8xf32>
    %426 = arith.addf %300, %425 : vector<64x8xf32>
    %427 = vector.extract_strided_slice %42 {offsets = [0, 18], sizes = [1, 1], strides = [1, 1]} : vector<1x24xf32> to vector<1x1xf32>
    %428 = vector.extract_strided_slice %42 {offsets = [0, 19], sizes = [1, 1], strides = [1, 1]} : vector<1x24xf32> to vector<1x1xf32>
    %429 = vector.extract_strided_slice %42 {offsets = [0, 20], sizes = [1, 1], strides = [1, 1]} : vector<1x24xf32> to vector<1x1xf32>
    %430 = vector.extract_strided_slice %42 {offsets = [0, 21], sizes = [1, 1], strides = [1, 1]} : vector<1x24xf32> to vector<1x1xf32>
    %431 = vector.extract_strided_slice %42 {offsets = [0, 22], sizes = [1, 1], strides = [1, 1]} : vector<1x24xf32> to vector<1x1xf32>
    %432 = vector.extract_strided_slice %42 {offsets = [0, 23], sizes = [1, 1], strides = [1, 1]} : vector<1x24xf32> to vector<1x1xf32>
    %433 = vector.broadcast %427 : vector<1x1xf32> to vector<64x1xf32>
    %434 = arith.mulf %433, %44 : vector<64x1xf32>
    %435 = vector.broadcast %428 : vector<1x1xf32> to vector<64x1xf32>
    %436 = arith.mulf %435, %45 : vector<64x1xf32>
    %437 = arith.addf %434, %436 : vector<64x1xf32>
    %438 = vector.broadcast %429 : vector<1x1xf32> to vector<64x1xf32>
    %439 = arith.addf %437, %438 : vector<64x1xf32>
    %440 = vector.broadcast %430 : vector<1x1xf32> to vector<64x1xf32>
    %441 = arith.mulf %440, %44 : vector<64x1xf32>
    %442 = vector.broadcast %431 : vector<1x1xf32> to vector<64x1xf32>
    %443 = arith.mulf %442, %45 : vector<64x1xf32>
    %444 = arith.addf %441, %443 : vector<64x1xf32>
    %445 = vector.broadcast %432 : vector<1x1xf32> to vector<64x1xf32>
    %446 = arith.addf %444, %445 : vector<64x1xf32>
    %cst_134 = arith.constant 1.000000e+00 : f32
    %447 = vector.broadcast %cst_134 : f32 to vector<64x1xf32>
    %448 = arith.addf %439, %447 : vector<64x1xf32>
    %cst_135 = arith.constant 8.000000e+00 : f32
    %449 = vector.broadcast %cst_135 : f32 to vector<64x1xf32>
    %450 = arith.mulf %448, %449 : vector<64x1xf32>
    %cst_136 = arith.constant 1.000000e+00 : f32
    %451 = vector.broadcast %cst_136 : f32 to vector<64x1xf32>
    %452 = arith.subf %450, %451 : vector<64x1xf32>
    %cst_137 = arith.constant 5.000000e-01 : f32
    %453 = vector.broadcast %cst_137 : f32 to vector<64x1xf32>
    %454 = arith.mulf %452, %453 : vector<64x1xf32>
    %cst_138 = arith.constant 1.000000e+00 : f32
    %455 = vector.broadcast %cst_138 : f32 to vector<64x1xf32>
    %456 = arith.addf %446, %455 : vector<64x1xf32>
    %cst_139 = arith.constant 8.000000e+00 : f32
    %457 = vector.broadcast %cst_139 : f32 to vector<64x1xf32>
    %458 = arith.mulf %456, %457 : vector<64x1xf32>
    %cst_140 = arith.constant 1.000000e+00 : f32
    %459 = vector.broadcast %cst_140 : f32 to vector<64x1xf32>
    %460 = arith.subf %458, %459 : vector<64x1xf32>
    %cst_141 = arith.constant 5.000000e-01 : f32
    %461 = vector.broadcast %cst_141 : f32 to vector<64x1xf32>
    %462 = arith.mulf %460, %461 : vector<64x1xf32>
    %463 = math.floor %454 : vector<64x1xf32>
    %464 = math.floor %462 : vector<64x1xf32>
    %465 = arith.subf %454, %463 : vector<64x1xf32>
    %cst_142 = arith.constant 1.000000e+00 : f32
    %466 = vector.broadcast %cst_142 : f32 to vector<64x1xf32>
    %467 = arith.subf %466, %465 : vector<64x1xf32>
    %468 = arith.subf %462, %464 : vector<64x1xf32>
    %cst_143 = arith.constant 1.000000e+00 : f32
    %469 = vector.broadcast %cst_143 : f32 to vector<64x1xf32>
    %470 = arith.subf %469, %468 : vector<64x1xf32>
    %cst_144 = arith.constant 0.000000e+00 : f32
    %471 = vector.broadcast %cst_144 : f32 to vector<64x1xf32>
    %472 = arith.cmpf oge, %463, %471 : vector<64x1xf32>
    %cst_145 = arith.constant 7.000000e+00 : f32
    %473 = vector.broadcast %cst_145 : f32 to vector<64x1xf32>
    %474 = arith.cmpf ole, %463, %473 : vector<64x1xf32>
    %475 = arith.andi %472, %474 : vector<64x1xi1>
    %cst_146 = arith.constant -1.000000e+00 : f32
    %476 = vector.broadcast %cst_146 : f32 to vector<64x1xf32>
    %477 = arith.cmpf oge, %463, %476 : vector<64x1xf32>
    %cst_147 = arith.constant 6.000000e+00 : f32
    %478 = vector.broadcast %cst_147 : f32 to vector<64x1xf32>
    %479 = arith.cmpf ole, %463, %478 : vector<64x1xf32>
    %480 = arith.andi %477, %479 : vector<64x1xi1>
    %cst_148 = arith.constant 0.000000e+00 : f32
    %481 = vector.broadcast %cst_148 : f32 to vector<64x1xf32>
    %482 = arith.cmpf oge, %464, %481 : vector<64x1xf32>
    %cst_149 = arith.constant 7.000000e+00 : f32
    %483 = vector.broadcast %cst_149 : f32 to vector<64x1xf32>
    %484 = arith.cmpf ole, %464, %483 : vector<64x1xf32>
    %485 = arith.andi %482, %484 : vector<64x1xi1>
    %cst_150 = arith.constant -1.000000e+00 : f32
    %486 = vector.broadcast %cst_150 : f32 to vector<64x1xf32>
    %487 = arith.cmpf oge, %464, %486 : vector<64x1xf32>
    %cst_151 = arith.constant 6.000000e+00 : f32
    %488 = vector.broadcast %cst_151 : f32 to vector<64x1xf32>
    %489 = arith.cmpf ole, %464, %488 : vector<64x1xf32>
    %490 = arith.andi %487, %489 : vector<64x1xi1>
    %491 = arith.andi %475, %485 : vector<64x1xi1>
    %492 = arith.mulf %470, %467 : vector<64x1xf32>
    %cst_152 = arith.constant 0.000000e+00 : f32
    %493 = vector.broadcast %cst_152 : f32 to vector<64x1xf32>
    %494 = arith.select %491, %492, %493 : vector<64x1xi1>, vector<64x1xf32>
    %495 = arith.andi %480, %485 : vector<64x1xi1>
    %496 = arith.mulf %470, %465 : vector<64x1xf32>
    %cst_153 = arith.constant 0.000000e+00 : f32
    %497 = vector.broadcast %cst_153 : f32 to vector<64x1xf32>
    %498 = arith.select %495, %496, %497 : vector<64x1xi1>, vector<64x1xf32>
    %499 = arith.andi %475, %490 : vector<64x1xi1>
    %500 = arith.mulf %468, %467 : vector<64x1xf32>
    %cst_154 = arith.constant 0.000000e+00 : f32
    %501 = vector.broadcast %cst_154 : f32 to vector<64x1xf32>
    %502 = arith.select %499, %500, %501 : vector<64x1xi1>, vector<64x1xf32>
    %503 = arith.andi %480, %490 : vector<64x1xi1>
    %504 = arith.mulf %468, %465 : vector<64x1xf32>
    %cst_155 = arith.constant 0.000000e+00 : f32
    %505 = vector.broadcast %cst_155 : f32 to vector<64x1xf32>
    %506 = arith.select %503, %504, %505 : vector<64x1xi1>, vector<64x1xf32>
    %507 = arith.fptosi %464 : vector<64x1xf32> to vector<64x1xi32>
    %c8_i32_156 = arith.constant 8 : i32
    %508 = vector.broadcast %c8_i32_156 : i32 to vector<64x1xi32>
    %509 = arith.muli %507, %508 : vector<64x1xi32>
    %510 = arith.fptosi %463 : vector<64x1xf32> to vector<64x1xi32>
    %511 = arith.addi %509, %510 : vector<64x1xi32>
    %512 = vector.broadcast %511 : vector<64x1xi32> to vector<64x64xi32>
    %513 = arith.subi %46, %512 : vector<64x64xi32>
    %c0_i32_157 = arith.constant 0 : i32
    %514 = vector.broadcast %c0_i32_157 : i32 to vector<64x64xi32>
    %515 = arith.cmpi eq, %513, %514 : vector<64x64xi32>
    %cst_158 = arith.constant 0.000000e+00 : f32
    %516 = vector.shape_cast %494 : vector<64x1xf32> to vector<64x1xf32>
    %517 = vector.broadcast %516 : vector<64x1xf32> to vector<64x64xf32>
    %518 = vector.broadcast %cst_158 : f32 to vector<64x64xf32>
    %519 = arith.select %515, %517, %518 : vector<64x64xi1>, vector<64x64xf32>
    %c1_i32_159 = arith.constant 1 : i32
    %520 = vector.broadcast %c1_i32_159 : i32 to vector<64x64xi32>
    %521 = arith.cmpi eq, %513, %520 : vector<64x64xi32>
    %cst_160 = arith.constant 0.000000e+00 : f32
    %522 = vector.shape_cast %498 : vector<64x1xf32> to vector<64x1xf32>
    %523 = vector.broadcast %522 : vector<64x1xf32> to vector<64x64xf32>
    %524 = vector.broadcast %cst_160 : f32 to vector<64x64xf32>
    %525 = arith.select %521, %523, %524 : vector<64x64xi1>, vector<64x64xf32>
    %526 = arith.addf %519, %525 : vector<64x64xf32>
    %c8_i32_161 = arith.constant 8 : i32
    %527 = vector.broadcast %c8_i32_161 : i32 to vector<64x64xi32>
    %528 = arith.cmpi eq, %513, %527 : vector<64x64xi32>
    %cst_162 = arith.constant 0.000000e+00 : f32
    %529 = vector.shape_cast %502 : vector<64x1xf32> to vector<64x1xf32>
    %530 = vector.broadcast %529 : vector<64x1xf32> to vector<64x64xf32>
    %531 = vector.broadcast %cst_162 : f32 to vector<64x64xf32>
    %532 = arith.select %528, %530, %531 : vector<64x64xi1>, vector<64x64xf32>
    %533 = arith.addf %526, %532 : vector<64x64xf32>
    %c9_i32_163 = arith.constant 9 : i32
    %534 = vector.broadcast %c9_i32_163 : i32 to vector<64x64xi32>
    %535 = arith.cmpi eq, %513, %534 : vector<64x64xi32>
    %cst_164 = arith.constant 0.000000e+00 : f32
    %536 = vector.shape_cast %506 : vector<64x1xf32> to vector<64x1xf32>
    %537 = vector.broadcast %536 : vector<64x1xf32> to vector<64x64xf32>
    %538 = vector.broadcast %cst_164 : f32 to vector<64x64xf32>
    %539 = arith.select %535, %537, %538 : vector<64x64xi1>, vector<64x64xf32>
    %540 = arith.addf %533, %539 : vector<64x64xf32>
    %c6_i32_165 = arith.constant 6 : i32
    %541 = vector.broadcast %c6_i32_165 : i32 to vector<1x8xi32>
    %542 = arith.cmpi sge, %47, %541 : vector<1x8xi32>
    %c8_i32_166 = arith.constant 8 : i32
    %543 = vector.broadcast %c8_i32_166 : i32 to vector<1x8xi32>
    %544 = arith.cmpi slt, %47, %543 : vector<1x8xi32>
    %545 = arith.andi %542, %544 : vector<1x8xi1>
    %cst_167 = arith.constant 0.000000e+00 : bf16
    %546 = vector.broadcast %cst_167 : bf16 to vector<64x8xbf16>
    %547 = vector.shape_cast %545 : vector<1x8xi1> to vector<1x8xi1>
    %548 = vector.broadcast %547 : vector<1x8xi1> to vector<64x8xi1>
    %549 = arith.select %548, %43, %546 : vector<64x8xi1>, vector<64x8xbf16>
    %550 = arith.truncf %540 : vector<64x64xf32> to vector<64x64xbf16>
    %cst_168 = arith.constant dense<0.000000e+00> : vector<64x8xf32>
    %551 = tpu.matmul %550, %549, %cst_168 {dimension_numbers = #tpu.dot_dimension_numbers<[1], [0], [0], [1], [0, 0, 1, 1], [], []>} : vector<64x64xbf16>, vector<64x8xbf16>, vector<64x8xf32> -> vector<64x8xf32>
    %552 = arith.addf %426, %551 : vector<64x8xf32>
    %553 = arith.truncf %552 : vector<64x8xf32> to vector<64x8xbf16>
    %c0_169 = arith.constant 0 : index
    %c0_170 = arith.constant 0 : index
    %554 = vector.load %arg16[%c0_169, %c0_170] : memref<8x8xbf16, #tpu.memory_space<vmem>>, vector<8x8xbf16>
    %cst_171 = arith.constant dense<0.000000e+00> : vector<64x8xf32>
    %555 = tpu.matmul %553, %554, %cst_171 {dimension_numbers = #tpu.dot_dimension_numbers<[1], [0], [0], [1], [0, 0, 1, 1], [], []>} : vector<64x8xbf16>, vector<8x8xbf16>, vector<64x8xf32> -> vector<64x8xf32>
    %c0_172 = arith.constant 0 : index
    %c0_173 = arith.constant 0 : index
    %556 = vector.load %arg17[%c0_172, %c0_173] : memref<1x8xf32, #tpu.memory_space<vmem>>, vector<1x8xf32>
    %557 = vector.broadcast %556 : vector<1x8xf32> to vector<64x8xf32>
    %558 = arith.addf %555, %557 : vector<64x8xf32>
    %c0_174 = arith.constant 0 : index
    %c0_175 = arith.constant 0 : index
    %559 = vector.load %arg1[%c0_174, %c0_175] : memref<64x8xbf16, #tpu.memory_space<vmem>>, vector<64x8xbf16>
    %560 = arith.extf %559 : vector<64x8xbf16> to vector<64x8xf32>
    %561 = arith.addf %558, %560 : vector<64x8xf32>
    %cst_176 = arith.constant dense<0.000000e+00> : vector<64xf32>
    %562 = vector.multi_reduction <add>, %561, %cst_176 [1] : vector<64x8xf32> to vector<64xf32>
    %563 = vector.shape_cast %562 : vector<64xf32> to vector<64x1xf32>
    %cst_177 = arith.constant 8.000000e+00 : f32
    %564 = vector.broadcast %cst_177 : f32 to vector<64x1xf32>
    %565 = arith.divf %563, %564 : vector<64x1xf32>
    %566 = vector.broadcast %565 : vector<64x1xf32> to vector<64x8xf32>
    %567 = arith.subf %561, %566 : vector<64x8xf32>
    %568 = arith.mulf %567, %567 : vector<64x8xf32>
    %cst_178 = arith.constant dense<0.000000e+00> : vector<64xf32>
    %569 = vector.multi_reduction <add>, %568, %cst_178 [1] : vector<64x8xf32> to vector<64xf32>
    %570 = vector.shape_cast %569 : vector<64xf32> to vector<64x1xf32>
    %cst_179 = arith.constant 8.000000e+00 : f32
    %571 = vector.broadcast %cst_179 : f32 to vector<64x1xf32>
    %572 = arith.divf %570, %571 : vector<64x1xf32>
    %573 = vector.broadcast %565 : vector<64x1xf32> to vector<64x8xf32>
    %574 = arith.subf %561, %573 : vector<64x8xf32>
    %cst_180 = arith.constant 9.99999974E-6 : f32
    %575 = vector.broadcast %cst_180 : f32 to vector<64x1xf32>
    %576 = arith.addf %572, %575 : vector<64x1xf32>
    %577 = math.rsqrt %576 : vector<64x1xf32>
    %578 = vector.broadcast %577 : vector<64x1xf32> to vector<64x8xf32>
    %579 = arith.mulf %574, %578 : vector<64x8xf32>
    %c0_181 = arith.constant 0 : index
    %c0_182 = arith.constant 0 : index
    %580 = vector.load %arg18[%c0_181, %c0_182] : memref<1x8xf32, #tpu.memory_space<vmem>>, vector<1x8xf32>
    %581 = vector.broadcast %580 : vector<1x8xf32> to vector<64x8xf32>
    %582 = arith.mulf %579, %581 : vector<64x8xf32>
    %c0_183 = arith.constant 0 : index
    %c0_184 = arith.constant 0 : index
    %583 = vector.load %arg19[%c0_183, %c0_184] : memref<1x8xf32, #tpu.memory_space<vmem>>, vector<1x8xf32>
    %584 = vector.broadcast %583 : vector<1x8xf32> to vector<64x8xf32>
    %585 = arith.addf %582, %584 : vector<64x8xf32>
    %586 = arith.truncf %585 : vector<64x8xf32> to vector<64x8xbf16>
    %c0_185 = arith.constant 0 : index
    %c0_186 = arith.constant 0 : index
    %587 = vector.load %arg20[%c0_185, %c0_186] : memref<8x128xbf16, #tpu.memory_space<vmem>>, vector<8x128xbf16>
    %cst_187 = arith.constant dense<0.000000e+00> : vector<64x128xf32>
    %588 = tpu.matmul %586, %587, %cst_187 {dimension_numbers = #tpu.dot_dimension_numbers<[1], [0], [0], [1], [0, 0, 1, 1], [], []>} : vector<64x8xbf16>, vector<8x128xbf16>, vector<64x128xf32> -> vector<64x128xf32>
    %c0_188 = arith.constant 0 : index
    %c0_189 = arith.constant 0 : index
    %589 = vector.load %arg21[%c0_188, %c0_189] : memref<64x128xf32, #tpu.memory_space<vmem>>, vector<64x128xf32>
    tpu.vector_store %arg21[%c0_188, %c0_189], %588 {strides = array<i32>} : memref<64x128xf32, #tpu.memory_space<vmem>>, vector<64x128xf32>,
    return
  }
  func.func @transform_0(%arg0: i32) -> (i32, i32) {
    %c0_i32 = arith.constant 0 : i32
    %c0_i32_0 = arith.constant 0 : i32
    return %arg0, %c0_i32 : i32, i32
  }
  func.func @transform_1(%arg0: i32) -> (i32, i32) {
    %c0_i32 = arith.constant 0 : i32
    %c0_i32_0 = arith.constant 0 : i32
    return %arg0, %c0_i32 : i32, i32
  }
  func.func @transform_2(%arg0: i32) -> (i32, i32, i32) {
    %c0_i32 = arith.constant 0 : i32
    %c0_i32_0 = arith.constant 0 : i32
    %c0_i32_1 = arith.constant 0 : i32
    return %arg0, %c0_i32, %c0_i32_0 : i32, i32, i32
  }
  func.func @transform_3(%arg0: i32) -> (i32, i32) {
    %c0_i32 = arith.constant 0 : i32
    %c0_i32_0 = arith.constant 0 : i32
    %c0_i32_1 = arith.constant 0 : i32
    return %c0_i32, %c0_i32_0 : i32, i32
  }
  func.func @transform_4(%arg0: i32) -> (i32, i32) {
    %c0_i32 = arith.constant 0 : i32
    %c0_i32_0 = arith.constant 0 : i32
    %c0_i32_1 = arith.constant 0 : i32
    return %c0_i32, %c0_i32_0 : i32, i32
  }
  func.func @transform_5(%arg0: i32) -> (i32, i32) {
    %c0_i32 = arith.constant 0 : i32
    %c0_i32_0 = arith.constant 0 : i32
    %c0_i32_1 = arith.constant 0 : i32
    return %c0_i32, %c0_i32_0 : i32, i32
  }
  func.func @transform_6(%arg0: i32) -> (i32, i32) {
    %c0_i32 = arith.constant 0 : i32
    %c0_i32_0 = arith.constant 0 : i32
    %c0_i32_1 = arith.constant 0 : i32
    return %c0_i32, %c0_i32_0 : i32, i32
  }
  func.func @transform_7(%arg0: i32) -> (i32, i32) {
    %c0_i32 = arith.constant 0 : i32
    %c0_i32_0 = arith.constant 0 : i32
    %c0_i32_1 = arith.constant 0 : i32
    return %c0_i32, %c0_i32_0 : i32, i32
  }
  func.func @transform_8(%arg0: i32) -> (i32, i32) {
    %c0_i32 = arith.constant 0 : i32
    %c0_i32_0 = arith.constant 0 : i32
    %c0_i32_1 = arith.constant 0 : i32
    return %c0_i32, %c0_i32_0 : i32, i32
  }
  func.func @transform_9(%arg0: i32) -> (i32, i32) {
    %c0_i32 = arith.constant 0 : i32
    %c0_i32_0 = arith.constant 0 : i32
    %c0_i32_1 = arith.constant 0 : i32
    return %c0_i32, %c0_i32_0 : i32, i32
  }
  func.func @transform_10(%arg0: i32) -> (i32, i32) {
    %c0_i32 = arith.constant 0 : i32
    %c0_i32_0 = arith.constant 0 : i32
    %c0_i32_1 = arith.constant 0 : i32
    return %c0_i32, %c0_i32_0 : i32, i32
  }
  func.func @transform_11(%arg0: i32) -> (i32, i32) {
    %c0_i32 = arith.constant 0 : i32
    %c0_i32_0 = arith.constant 0 : i32
    %c0_i32_1 = arith.constant 0 : i32
    return %c0_i32, %c0_i32_0 : i32, i32
  }
  func.func @transform_12(%arg0: i32) -> (i32, i32) {
    %c0_i32 = arith.constant 0 : i32
    %c0_i32_0 = arith.constant 0 : i32
    %c0_i32_1 = arith.constant 0 : i32
    return %c0_i32, %c0_i32_0 : i32, i32
  }
  func.func @transform_13(%arg0: i32) -> (i32, i32) {
    %c0_i32 = arith.constant 0 : i32
    %c0_i32_0 = arith.constant 0 : i32
    %c0_i32_1 = arith.constant 0 : i32
    return %c0_i32, %c0_i32_0 : i32, i32
  }
  func.func @transform_14(%arg0: i32) -> (i32, i32) {
    %c0_i32 = arith.constant 0 : i32
    %c0_i32_0 = arith.constant 0 : i32
    %c0_i32_1 = arith.constant 0 : i32
    return %c0_i32, %c0_i32_0 : i32, i32
  }
  func.func @transform_15(%arg0: i32) -> (i32, i32) {
    %c0_i32 = arith.constant 0 : i32
    %c0_i32_0 = arith.constant 0 : i32
    %c0_i32_1 = arith.constant 0 : i32
    return %c0_i32, %c0_i32_0 : i32, i32
  }
  func.func @transform_16(%arg0: i32) -> (i32, i32) {
    %c0_i32 = arith.constant 0 : i32
    %c0_i32_0 = arith.constant 0 : i32
    %c0_i32_1 = arith.constant 0 : i32
    return %c0_i32, %c0_i32_0 : i32, i32
  }
  func.func @transform_17(%arg0: i32) -> (i32, i32) {
    %c0_i32 = arith.constant 0 : i32
    %c0_i32_0 = arith.constant 0 : i32
    %c0_i32_1 = arith.constant 0 : i32
    return %c0_i32, %c0_i32_0 : i32, i32
  }
  func.func @transform_18(%arg0: i32) -> (i32, i32) {
    %c0_i32 = arith.constant 0 : i32
    %c0_i32_0 = arith.constant 0 : i32
    %c0_i32_1 = arith.constant 0 : i32
    return %c0_i32, %c0_i32_0 : i32, i32
  }
  func.func @transform_19(%arg0: i32) -> (i32, i32) {
    %c0_i32 = arith.constant 0 : i32
    %c0_i32_0 = arith.constant 0 : i32
    %c0_i32_1 = arith.constant 0 : i32
    return %c0_i32, %c0_i32_0 : i32, i32
  }
  func.func @transform_20(%arg0: i32) -> (i32, i32) {
    %c0_i32 = arith.constant 0 : i32
    %c0_i32_0 = arith.constant 0 : i32
    return %arg0, %c0_i32 : i32, i32
  }
}

</mosaic_0001>

<llo_original>
// kernel: tile.13
$region0: #{tile.13}
  #allocation0 [shape = 's32[1]{0}', space=sflag, size = 0x4, scoped, tag = 'scoped memory for tile.13']
  %s0 = inlined_call_operand.vmem [shape: f32[8], index: 0, kind: input, shape index: {}]
  %s1 = inlined_call_operand.vmem [shape: f32[8,8], index: 1, kind: output, shape index: {}]
  // Predicated region
  $region2: #{tile.13} parent=0 // pred_check
    _
  $region3: #{tile.13} parent=0 // pred_check_branch
    %3 = sbr.rel (0) target = $region5
  $region4: #{tile.13} parent=0 // pred_region
    _
  $region5: #{tile.13} parent=0 // pred_fallthru
    _
  %v4 = vld [vmem:[%s0] ss:$0 sm:$0xff]
  %5 = vst [vmem:[%s1] sm:$0xff] %v4

// kernel: tile.18
$region0: #{tile.18}
  #allocation0 [shape = 's32[1]{0}', space=sflag, size = 0x4, scoped, tag = 'scoped memory for tile.18']
  %s0 = inlined_call_operand.vmem [shape: f32[6], index: 0, kind: input, shape index: {}]
  %s1 = inlined_call_operand.vmem [shape: f32[4,6], index: 1, kind: output, shape index: {}]
  // Predicated region
  $region2: #{tile.18} parent=0 // pred_check
    _
  $region3: #{tile.18} parent=0 // pred_check_branch
    %3 = sbr.rel (0) target = $region5
  $region4: #{tile.18} parent=0 // pred_region
    _
  $region5: #{tile.18} parent=0 // pred_fallthru
    _
  %v4 = vld [vmem:[%s0] ss:$0 sm:$0xff]
  %5 = vst [vmem:[%s1] sm:$0xf] %v4

// kernel: tile.19
$region0: #{tile.19}
  %s0 = inlined_call_operand.vmem [shape: f32[4,6], index: 0, kind: input, shape index: {}]
  %s1 = inlined_call_operand.vmem [shape: f32[1,24], index: 1, kind: output, shape index: {}]
  $region1: #{tile.19} parent=0
    #allocation0 [shape = 'u8[4096]{0}', space=vmem, size = 0x1000, scoped, tag = 'scoped mem for output reshape']
    #allocation1 [shape = 'u8[4096]{0}', space=vmem, size = 0x1000, scoped, tag = 'scoped mem for input reshape']
    %s3 = sshll.u32 1, 4
    %s4 = ssub.s32 %s3, 1
    %v5 = vld [vmem:[%s0] sm:%s4]
    %6 = vst [vmem:[#allocation1] sm:%s4] %v5
    %v7 = vld [vmem:[#allocation1] sm:$0x1]
    %vm8 = vcmask 48128
    %9 = vst.msk [vmem:[#allocation0] sm:$0x1] %vm8, %v7
    %s10 = scalar_lea.vmem [#allocation1], 3
    %v11 = vld [vmem:[%s10] sm:$0x1]
    %12 = vrot.lane.b32.xlu0 %v11, 18
    %v13 = vpop.permute.xlu0 %12
    %vm14 = vcmask 195728
    %15 = vst.msk [vmem:[#allocation0] sm:$0x1] %vm14, %v13
    %s16 = scalar_lea.vmem [#allocation1], 2
    %v17 = vld [vmem:[%s16] sm:$0x1]
    %18 = vrot.lane.b32.xlu0 %v17, 12
    %v19 = vpop.permute.xlu0 %18
    %vm20 = vcmask 146528
    %21 = vst.msk [vmem:[#allocation0] sm:$0x1] %vm20, %v19
    %s22 = scalar_lea.vmem [#allocation1], 1
    %v23 = vld [vmem:[%s22] sm:$0x1]
    %24 = vrot.lane.b32.xlu0 %v23, 6
    %v25 = vpop.permute.xlu0 %24
    %vm26 = vcmask 97328
    %27 = vst.msk [vmem:[#allocation0] sm:$0x1] %vm26, %v25
    %s29 = sshll.u32 1, 1
    %s30 = ssub.s32 %s29, 1
    %v32 = vld [vmem:[#allocation0] sm:%s30]
    %s33 = sshll.u32 1, 1
    %s34 = ssub.s32 %s33, 1
    %35 = vst [vmem:[%s1] sm:%s34] %v32

// kernel: stt_forward.2
$region0: #{stt_forward.2}
  #allocation0 [shape = 'u32[]', space=smem, size = 0x4, offset = 0x4, fixed_abs, tag = 'smem constant byte address 0x4 - core index']
  #allocation1 [shape = 'u32[144,128]{1,0:T(1,128)}', space=vmem, size = 0x12000, scoped, tag = 'internal scratch']
  %s0 = inlined_call_operand.vmem [shape: bf16[128,32], index: 0, kind: input, shape index: {}]
  %s1 = inlined_call_operand.vmem [shape: bf16[32,8], index: 1, kind: input, shape index: {}]
  %s2 = inlined_call_operand.vmem [shape: f32[1,8], index: 2, kind: input, shape index: {}]
  %s3 = inlined_call_operand.vmem [shape: bf16[8,8], index: 3, kind: input, shape index: {}]
  %s4 = inlined_call_operand.vmem [shape: f32[1,8], index: 4, kind: input, shape index: {}]
  %s5 = inlined_call_operand.vmem [shape: bf16[128,8], index: 5, kind: output, shape index: {0}]
  %s6 = inlined_call_operand.vmem [shape: bf16[128,8], index: 6, kind: output, shape index: {1}]
  %7 = xla_tuple %s5, %s6
  %s8 = sld [smem:[#allocation0]]
  $region38: #{stt_forward.2} parent=0
    _
  %s10 = ssub.s32 1, %s8
  %s11 = scalar_select 0, %s10, %s8
  // Predicated region
  $region2: #{stt_forward.2} parent=0 // pred_check
    _
  $region3: #{stt_forward.2} parent=0 // pred_check_branch
    %13 = sbr.rel (0) target = $region5
  $region4: #{stt_forward.2} parent=0 // pred_region
    _
  $region5: #{stt_forward.2} parent=0 // pred_fallthru
    _
  // Predicated region
  $region6: #{stt_forward.2} parent=0 // pred_check
    _
  $region7: #{stt_forward.2} parent=0 // pred_check_branch
    %15 = sbr.rel (0) target = $region9
  $region8: #{stt_forward.2} parent=0 // pred_region
    _
  $region9: #{stt_forward.2} parent=0 // pred_fallthru
    _
  // Predicated region
  $region10: #{stt_forward.2} parent=0 // pred_check
    _
  $region11: #{stt_forward.2} parent=0 // pred_check_branch
    %17 = sbr.rel (0) target = $region13
  $region12: #{stt_forward.2} parent=0 // pred_region
    _
  $region13: #{stt_forward.2} parent=0 // pred_fallthru
    _
  // Predicated region
  $region14: #{stt_forward.2} parent=0 // pred_check
    _
  $region15: #{stt_forward.2} parent=0 // pred_check_branch
    %19 = sbr.rel (0) target = $region17
  $region16: #{stt_forward.2} parent=0 // pred_region
    _
  $region17: #{stt_forward.2} parent=0 // pred_fallthru
    _
  // Predicated region
  $region18: #{stt_forward.2} parent=0 // pred_check
    _
  $region19: #{stt_forward.2} parent=0 // pred_check_branch
    %21 = sbr.rel (0) target = $region21
  $region20: #{stt_forward.2} parent=0 // pred_region
    _
  $region21: #{stt_forward.2} parent=0 // pred_fallthru
    _
  %v23 = vld [vmem:[%s0] sm:$0xf]
  %v24 = vld [vmem:[%s0 + $0x4] sm:$0xf]
  %v25 = vld [vmem:[%s0 + $0x8] sm:$0xf]
  %v26 = vld [vmem:[%s0 + $0xc] sm:$0xf]
  %v27 = vld [vmem:[%s0 + $0x10] sm:$0xf]
  %v28 = vld [vmem:[%s0 + $0x14] sm:$0xf]
  %v29 = vld [vmem:[%s0 + $0x18] sm:$0xf]
  %v30 = vld [vmem:[%s0 + $0x1c] sm:$0xf]
  %v31 = vld [vmem:[%s0 + $0x20] sm:$0xf]
  %v32 = vld [vmem:[%s0 + $0x24] sm:$0xf]
  %v33 = vld [vmem:[%s0 + $0x28] sm:$0xf]
  %v34 = vld [vmem:[%s0 + $0x2c] sm:$0xf]
  %v35 = vld [vmem:[%s0 + $0x30] sm:$0xf]
  %v36 = vld [vmem:[%s0 + $0x34] sm:$0xf]
  %v37 = vld [vmem:[%s0 + $0x38] sm:$0xf]
  %v38 = vld [vmem:[%s0 + $0x3c] sm:$0xf]
  %v39 = vld [vmem:[%s1] sm:$0xf]
  %v40 = vld [vmem:[%s1 + $0x4] sm:$0xf]
  %v41 = vld [vmem:[%s1 + $0x8] sm:$0xf]
  %v42 = vld [vmem:[%s1 + $0xc] sm:$0xf]
  %v43 = vld [vmem:[%s2] sm:$0x1]
  %v45 = vlaneseq
  %v46 = vshrl.u32 %v45, 7
  %v47 = vsub.s32 0, %v46
  %v48 = vrot.slane %v43, %v47
  %v66 = vunpack.c.l.b16 %v23
  %v67 = vunpack.c.l.b16 %v24
  %v68 = vunpack.c.l.b16 %v25
  %v69 = vunpack.c.l.b16 %v26
  %v70 = vunpack.c.l.b16 %v27
  %v71 = vunpack.c.l.b16 %v28
  %v72 = vunpack.c.l.b16 %v29
  %v73 = vunpack.c.l.b16 %v30
  %v74 = vunpack.c.l.b16 %v31
  %v75 = vunpack.c.l.b16 %v32
  %v76 = vunpack.c.l.b16 %v33
  %v77 = vunpack.c.l.b16 %v34
  %v78 = vunpack.c.l.b16 %v35
  %v79 = vunpack.c.l.b16 %v36
  %v80 = vunpack.c.l.b16 %v37
  %v81 = vunpack.c.l.b16 %v38
  %v82 = vpack.c.b16 %v67, %v66
  %v83 = vpack.c.b16 %v69, %v68
  %v84 = vpack.c.b16 %v71, %v70
  %v85 = vpack.c.b16 %v73, %v72
  %v86 = vpack.c.b16 %v75, %v74
  %v87 = vpack.c.b16 %v77, %v76
  %v88 = vpack.c.b16 %v79, %v78
  %v89 = vpack.c.b16 %v81, %v80
  %v94 = vunpack.c.l.b16 %v39
  %v95 = vunpack.c.l.b16 %v40
  %v96 = vunpack.c.l.b16 %v41
  %v97 = vunpack.c.l.b16 %v42
  %v98 = vpack.c.b16 %v95, %v94
  %v99 = vpack.c.b16 %v97, %v96
  %vm102 = vcmask 261120
  %v104 = vsel %vm102, %v82, 0
  %v107 = vsel %vm102, %v83, 0
  %v110 = vsel %vm102, %v84, 0
  %v113 = vsel %vm102, %v85, 0
  %v116 = vsel %vm102, %v86, 0
  %v119 = vsel %vm102, %v87, 0
  %v122 = vsel %vm102, %v88, 0
  %v125 = vsel %vm102, %v89, 0
  %127 = vmatprep.subr.bf16.mxu0 0
  %128 = vmatpush1.bf16.msra.mxu0 0
  %129 = vmatprep.subr.bf16.mxu0 0
  %130 = vmatpush1.bf16.msra.mxu0 0
  %131 = vmatprep.subr.bf16.mxu0 0
  %132 = vmatpush1.bf16.msra.mxu0 0
  %133 = vmatprep.subr.bf16.mxu0 0
  %134 = vmatpush1.bf16.msra.mxu0 0
  %135 = vmatprep.subr.bf16.mxu0 0
  %136 = vmatpush1.bf16.msra.mxu0 0
  %137 = vmatprep.subr.bf16.mxu0 0
  %138 = vmatpush1.bf16.msra.mxu0 0
  %139 = vmatprep.subr.bf16.mxu0 0
  %140 = vmatpush1.bf16.msra.mxu0 %v99
  %141 = vmatprep.subr.bf16.mxu0 0
  %142 = vmatpush1.bf16.msra.mxu0 %v98
  %143 = vmatprep.subr.bf16.mxu0 0
  %144 = vmatpush2.bf16.msra.mxu0 0
  %145 = vmatprep.subr.bf16.mxu0 0
  %146 = vmatpush2.bf16.msra.mxu0 0
  %147 = vmatprep.subr.bf16.mxu0 0
  %148 = vmatpush2.bf16.msra.mxu0 0
  %149 = vmatprep.subr.bf16.mxu0 0
  %150 = vmatpush2.bf16.msra.mxu0 0
  %151 = vmatprep.subr.bf16.mxu0 0
  %152 = vmatpush2.bf16.msra.mxu0 0
  %153 = vmatprep.subr.bf16.mxu0 0
  %154 = vmatpush2.bf16.msra.mxu0 0
  %155 = vmatprep.subr.bf16.mxu0 0
  %156 = vmatpush2.bf16.msra.mxu0 0
  %157 = vmatprep.subr.bf16.mxu0 0
  %158 = vmatpush2.bf16.msra.mxu0 0
  %159 = vmatprep.mubr.bf16.mxu0 0
  %160 = vmatmul.mubr.bf16.gmra.mxu0 %v104
  %v161 = vpop.f32.mrf.mxu0
  %v162 = vadd.f32 %v48, %v161
  %v163 = vpop.f32.mrf.mxu0
  %v164 = vpop.f32.mrf.mxu0
  %v165 = vadd.f32 %v48, %v164
  %v166 = vpop.f32.mrf.mxu0
  %167 = vmatprep.mubr.bf16.mxu0 0
  %168 = vmatmul.mubr.bf16.gmra.mxu0 %v107
  %v169 = vpop.f32.mrf.mxu0
  %v170 = vadd.f32 %v48, %v169
  %v171 = vpop.f32.mrf.mxu0
  %v172 = vpop.f32.mrf.mxu0
  %v173 = vadd.f32 %v48, %v172
  %v174 = vpop.f32.mrf.mxu0
  %175 = vmatprep.mubr.bf16.mxu0 0
  %176 = vmatmul.mubr.bf16.gmra.mxu0 %v110
  %v177 = vpop.f32.mrf.mxu0
  %v178 = vadd.f32 %v48, %v177
  %v179 = vpop.f32.mrf.mxu0
  %v180 = vpop.f32.mrf.mxu0
  %v181 = vadd.f32 %v48, %v180
  %v182 = vpop.f32.mrf.mxu0
  %183 = vmatprep.mubr.bf16.mxu0 0
  %184 = vmatmul.mubr.bf16.gmra.mxu0 %v113
  %v185 = vpop.f32.mrf.mxu0
  %v186 = vadd.f32 %v48, %v185
  %v187 = vpop.f32.mrf.mxu0
  %v188 = vpop.f32.mrf.mxu0
  %v189 = vadd.f32 %v48, %v188
  %v190 = vpop.f32.mrf.mxu0
  %191 = vmatprep.mubr.bf16.mxu0 0
  %192 = vmatmul.mubr.bf16.gmra.mxu0 %v116
  %v193 = vpop.f32.mrf.mxu0
  %v194 = vadd.f32 %v48, %v193
  %v195 = vpop.f32.mrf.mxu0
  %v196 = vpop.f32.mrf.mxu0
  %v197 = vadd.f32 %v48, %v196
  %v198 = vpop.f32.mrf.mxu0
  %199 = vmatprep.mubr.bf16.mxu0 0
  %200 = vmatmul.mubr.bf16.gmra.mxu0 %v119
  %v201 = vpop.f32.mrf.mxu0
  %v202 = vadd.f32 %v48, %v201
  %v203 = vpop.f32.mrf.mxu0
  %v204 = vpop.f32.mrf.mxu0
  %v205 = vadd.f32 %v48, %v204
  %v206 = vpop.f32.mrf.mxu0
  %207 = vmatprep.mubr.bf16.mxu0 0
  %208 = vmatmul.mubr.bf16.gmra.mxu0 %v122
  %v209 = vpop.f32.mrf.mxu0
  %v210 = vadd.f32 %v48, %v209
  %v211 = vpop.f32.mrf.mxu0
  %v212 = vpop.f32.mrf.mxu0
  %v213 = vadd.f32 %v48, %v212
  %v214 = vpop.f32.mrf.mxu0
  %215 = vmatprep.mubr.bf16.mxu0 0
  %216 = vmatmul.mubr.bf16.gmra.mxu0 %v125
  %v217 = vpop.f32.mrf.mxu0
  %v218 = vadd.f32 %v48, %v217
  %v219 = vpop.f32.mrf.mxu0
  %v220 = vpop.f32.mrf.mxu0
  %v221 = vadd.f32 %v48, %v220
  %v222 = vpop.f32.mrf.mxu0
  %223 = vdwg.mxu0
  %v224 = vpack.c.bf16 %v165, %v162
  %v225 = vpack.c.bf16 %v173, %v170
  %v226 = vpack.c.bf16 %v181, %v178
  %v227 = vpack.c.bf16 %v189, %v186
  %v228 = vpack.c.bf16 %v197, %v194
  %v229 = vpack.c.bf16 %v205, %v202
  %v230 = vpack.c.bf16 %v213, %v210
  %v231 = vpack.c.bf16 %v221, %v218
  %v240 = vunpack.c.l.b16 %v224
  %v241 = vunpack.c.h.b16 %v224
  %v242 = vunpack.c.l.b16 %v225
  %v243 = vunpack.c.h.b16 %v225
  %v244 = vunpack.c.l.b16 %v226
  %v245 = vunpack.c.h.b16 %v226
  %v246 = vunpack.c.l.b16 %v227
  %v247 = vunpack.c.h.b16 %v227
  %v248 = vunpack.c.l.b16 %v228
  %v249 = vunpack.c.h.b16 %v228
  %v250 = vunpack.c.l.b16 %v229
  %v251 = vunpack.c.h.b16 %v229
  %v252 = vunpack.c.l.b16 %v230
  %v253 = vunpack.c.h.b16 %v230
  %v254 = vunpack.c.l.b16 %v231
  %v255 = vunpack.c.h.b16 %v231
  %v256 = vpack.c.b16 %v240, %v240
  %v257 = vpack.c.b16 %v241, %v241
  %v258 = vpack.c.b16 %v242, %v242
  %v259 = vpack.c.b16 %v243, %v243
  %v260 = vpack.c.b16 %v244, %v244
  %v261 = vpack.c.b16 %v245, %v245
  %v262 = vpack.c.b16 %v246, %v246
  %v263 = vpack.c.b16 %v247, %v247
  %v264 = vpack.c.b16 %v248, %v248
  %v265 = vpack.c.b16 %v249, %v249
  %v266 = vpack.c.b16 %v250, %v250
  %v267 = vpack.c.b16 %v251, %v251
  %v268 = vpack.c.b16 %v252, %v252
  %v269 = vpack.c.b16 %v253, %v253
  %v270 = vpack.c.b16 %v254, %v254
  %v271 = vpack.c.b16 %v255, %v255
  %vm288 = vcmask 60416
  %289 = vst.msk [vmem:[%s5] sm:$0xf] %vm288, %v256
  %290 = vst.msk [vmem:[%s5 + $0x4] sm:$0xf] %vm288, %v257
  %291 = vst.msk [vmem:[%s5 + $0x8] sm:$0xf] %vm288, %v258
  %292 = vst.msk [vmem:[%s5 + $0xc] sm:$0xf] %vm288, %v259
  %293 = vst.msk [vmem:[%s5 + $0x10] sm:$0xf] %vm288, %v260
  %294 = vst.msk [vmem:[%s5 + $0x14] sm:$0xf] %vm288, %v261
  %295 = vst.msk [vmem:[%s5 + $0x18] sm:$0xf] %vm288, %v262
  %296 = vst.msk [vmem:[%s5 + $0x1c] sm:$0xf] %vm288, %v263
  %297 = vst.msk [vmem:[%s5 + $0x20] sm:$0xf] %vm288, %v264
  %298 = vst.msk [vmem:[%s5 + $0x24] sm:$0xf] %vm288, %v265
  %299 = vst.msk [vmem:[%s5 + $0x28] sm:$0xf] %vm288, %v266
  %300 = vst.msk [vmem:[%s5 + $0x2c] sm:$0xf] %vm288, %v267
  %301 = vst.msk [vmem:[%s5 + $0x30] sm:$0xf] %vm288, %v268
  %302 = vst.msk [vmem:[%s5 + $0x34] sm:$0xf] %vm288, %v269
  %303 = vst.msk [vmem:[%s5 + $0x38] sm:$0xf] %vm288, %v270
  %304 = vst.msk [vmem:[%s5 + $0x3c] sm:$0xf] %vm288, %v271
  %v305 = vld [vmem:[%s3] sm:$0xf]
  %v306 = vld [vmem:[%s4] sm:$0x1]
  %v308 = vlaneseq
  %v309 = vshrl.u32 %v308, 7
  %v310 = vsub.s32 0, %v309
  %v311 = vrot.slane %v306, %v310
  %vm313 = vcmask 64512
  %v315 = vsel %vm313, %v224, 0
  %v318 = vsel %vm313, %v225, 0
  %v321 = vsel %vm313, %v226, 0
  %v324 = vsel %vm313, %v227, 0
  %v327 = vsel %vm313, %v228, 0
  %v330 = vsel %vm313, %v229, 0
  %v333 = vsel %vm313, %v230, 0
  %v336 = vsel %vm313, %v231, 0
  %vm338 = vcmask 1043456
  %v340 = vsel %vm338, %v305, 0
  %342 = vmatprep.subr.bf16.mxu0 0
  %343 = vmatpush1.bf16.msra.mxu0 0
  %344 = vmatprep.subr.bf16.mxu0 0
  %345 = vmatpush1.bf16.msra.mxu0 0
  %346 = vmatprep.subr.bf16.mxu0 0
  %347 = vmatpush1.bf16.msra.mxu0 0
  %348 = vmatprep.subr.bf16.mxu0 0
  %349 = vmatpush1.bf16.msra.mxu0 0
  %350 = vmatprep.subr.bf16.mxu0 0
  %351 = vmatpush1.bf16.msra.mxu0 0
  %352 = vmatprep.subr.bf16.mxu0 0
  %353 = vmatpush1.bf16.msra.mxu0 0
  %354 = vmatprep.subr.bf16.mxu0 0
  %355 = vmatpush1.bf16.msra.mxu0 0
  %356 = vmatprep.subr.bf16.mxu0 0
  %357 = vmatpush1.bf16.msra.mxu0 %v340
  %358 = vmatprep.subr.bf16.mxu0 0
  %359 = vmatpush2.bf16.msra.mxu0 0
  %360 = vmatprep.subr.bf16.mxu0 0
  %361 = vmatpush2.bf16.msra.mxu0 0
  %362 = vmatprep.subr.bf16.mxu0 0
  %363 = vmatpush2.bf16.msra.mxu0 0
  %364 = vmatprep.subr.bf16.mxu0 0
  %365 = vmatpush2.bf16.msra.mxu0 0
  %366 = vmatprep.subr.bf16.mxu0 0
  %367 = vmatpush2.bf16.msra.mxu0 0
  %368 = vmatprep.subr.bf16.mxu0 0
  %369 = vmatpush2.bf16.msra.mxu0 0
  %370 = vmatprep.subr.bf16.mxu0 0
  %371 = vmatpush2.bf16.msra.mxu0 0
  %372 = vmatprep.subr.bf16.mxu0 0
  %373 = vmatpush2.bf16.msra.mxu0 0
  %374 = vmatprep.mubr.bf16.mxu0 0
  %375 = vmatmul.mubr.bf16.gmra.mxu0 %v315
  %v376 = vpop.f32.mrf.mxu0
  %v377 = vadd.f32 %v311, %v376
  %v378 = vpop.f32.mrf.mxu0
  %v379 = vpop.f32.mrf.mxu0
  %v380 = vadd.f32 %v311, %v379
  %v381 = vpop.f32.mrf.mxu0
  %382 = vmatprep.mubr.bf16.mxu0 0
  %383 = vmatmul.mubr.bf16.gmra.mxu0 %v318
  %v384 = vpop.f32.mrf.mxu0
  %v385 = vadd.f32 %v311, %v384
  %v386 = vpop.f32.mrf.mxu0
  %v387 = vpop.f32.mrf.mxu0
  %v388 = vadd.f32 %v311, %v387
  %v389 = vpop.f32.mrf.mxu0
  %390 = vmatprep.mubr.bf16.mxu0 0
  %391 = vmatmul.mubr.bf16.gmra.mxu0 %v321
  %v392 = vpop.f32.mrf.mxu0
  %v393 = vadd.f32 %v311, %v392
  %v394 = vpop.f32.mrf.mxu0
  %v395 = vpop.f32.mrf.mxu0
  %v396 = vadd.f32 %v311, %v395
  %v397 = vpop.f32.mrf.mxu0
  %398 = vmatprep.mubr.bf16.mxu0 0
  %399 = vmatmul.mubr.bf16.gmra.mxu0 %v324
  %v400 = vpop.f32.mrf.mxu0
  %v401 = vadd.f32 %v311, %v400
  %v402 = vpop.f32.mrf.mxu0
  %v403 = vpop.f32.mrf.mxu0
  %v404 = vadd.f32 %v311, %v403
  %v405 = vpop.f32.mrf.mxu0
  %406 = vmatprep.mubr.bf16.mxu0 0
  %407 = vmatmul.mubr.bf16.gmra.mxu0 %v327
  %v408 = vpop.f32.mrf.mxu0
  %v409 = vadd.f32 %v311, %v408
  %v410 = vpop.f32.mrf.mxu0
  %v411 = vpop.f32.mrf.mxu0
  %v412 = vadd.f32 %v311, %v411
  %v413 = vpop.f32.mrf.mxu0
  %414 = vmatprep.mubr.bf16.mxu0 0
  %415 = vmatmul.mubr.bf16.gmra.mxu0 %v330
  %v416 = vpop.f32.mrf.mxu0
  %v417 = vadd.f32 %v311, %v416
  %v418 = vpop.f32.mrf.mxu0
  %v419 = vpop.f32.mrf.mxu0
  %v420 = vadd.f32 %v311, %v419
  %v421 = vpop.f32.mrf.mxu0
  %422 = vmatprep.mubr.bf16.mxu0 0
  %423 = vmatmul.mubr.bf16.gmra.mxu0 %v333
  %v424 = vpop.f32.mrf.mxu0
  %v425 = vadd.f32 %v311, %v424
  %v426 = vpop.f32.mrf.mxu0
  %v427 = vpop.f32.mrf.mxu0
  %v428 = vadd.f32 %v311, %v427
  %v429 = vpop.f32.mrf.mxu0
  %430 = vmatprep.mubr.bf16.mxu0 0
  %431 = vmatmul.mubr.bf16.gmra.mxu0 %v336
  %v432 = vpop.f32.mrf.mxu0
  %v433 = vadd.f32 %v311, %v432
  %v434 = vpop.f32.mrf.mxu0
  %v435 = vpop.f32.mrf.mxu0
  %v436 = vadd.f32 %v311, %v435
  %v437 = vpop.f32.mrf.mxu0
  %438 = vdwg.mxu0
  %v439 = vpack.c.bf16 %v380, %v377
  %v440 = vpack.c.bf16 %v388, %v385
  %v441 = vpack.c.bf16 %v396, %v393
  %v442 = vpack.c.bf16 %v404, %v401
  %v443 = vpack.c.bf16 %v412, %v409
  %v444 = vpack.c.bf16 %v420, %v417
  %v445 = vpack.c.bf16 %v428, %v425
  %v446 = vpack.c.bf16 %v436, %v433
  %v455 = vunpack.c.l.b16 %v439
  %v456 = vunpack.c.h.b16 %v439
  %v457 = vunpack.c.l.b16 %v440
  %v458 = vunpack.c.h.b16 %v440
  %v459 = vunpack.c.l.b16 %v441
  %v460 = vunpack.c.h.b16 %v441
  %v461 = vunpack.c.l.b16 %v442
  %v462 = vunpack.c.h.b16 %v442
  %v463 = vunpack.c.l.b16 %v443
  %v464 = vunpack.c.h.b16 %v443
  %v465 = vunpack.c.l.b16 %v444
  %v466 = vunpack.c.h.b16 %v444
  %v467 = vunpack.c.l.b16 %v445
  %v468 = vunpack.c.h.b16 %v445
  %v469 = vunpack.c.l.b16 %v446
  %v470 = vunpack.c.h.b16 %v446
  %v471 = vpack.c.b16 %v455, %v455
  %v472 = vpack.c.b16 %v456, %v456
  %v473 = vpack.c.b16 %v457, %v457
  %v474 = vpack.c.b16 %v458, %v458
  %v475 = vpack.c.b16 %v459, %v459
  %v476 = vpack.c.b16 %v460, %v460
  %v477 = vpack.c.b16 %v461, %v461
  %v478 = vpack.c.b16 %v462, %v462
  %v479 = vpack.c.b16 %v463, %v463
  %v480 = vpack.c.b16 %v464, %v464
  %v481 = vpack.c.b16 %v465, %v465
  %v482 = vpack.c.b16 %v466, %v466
  %v483 = vpack.c.b16 %v467, %v467
  %v484 = vpack.c.b16 %v468, %v468
  %v485 = vpack.c.b16 %v469, %v469
  %v486 = vpack.c.b16 %v470, %v470
  %503 = vst.msk [vmem:[%s6] sm:$0xf] %vm288, %v471
  %504 = vst.msk [vmem:[%s6 + $0x4] sm:$0xf] %vm288, %v472
  %505 = vst.msk [vmem:[%s6 + $0x8] sm:$0xf] %vm288, %v473
  %506 = vst.msk [vmem:[%s6 + $0xc] sm:$0xf] %vm288, %v474
  %507 = vst.msk [vmem:[%s6 + $0x10] sm:$0xf] %vm288, %v475
  %508 = vst.msk [vmem:[%s6 + $0x14] sm:$0xf] %vm288, %v476
  %509 = vst.msk [vmem:[%s6 + $0x18] sm:$0xf] %vm288, %v477
  %510 = vst.msk [vmem:[%s6 + $0x1c] sm:$0xf] %vm288, %v478
  %511 = vst.msk [vmem:[%s6 + $0x20] sm:$0xf] %vm288, %v479
  %512 = vst.msk [vmem:[%s6 + $0x24] sm:$0xf] %vm288, %v480
  %513 = vst.msk [vmem:[%s6 + $0x28] sm:$0xf] %vm288, %v481
  %514 = vst.msk [vmem:[%s6 + $0x2c] sm:$0xf] %vm288, %v482
  %515 = vst.msk [vmem:[%s6 + $0x30] sm:$0xf] %vm288, %v483
  %516 = vst.msk [vmem:[%s6 + $0x34] sm:$0xf] %vm288, %v484
  %517 = vst.msk [vmem:[%s6 + $0x38] sm:$0xf] %vm288, %v485
  %518 = vst.msk [vmem:[%s6 + $0x3c] sm:$0xf] %vm288, %v486
  // Predicated region
  $region22: #{stt_forward.2} parent=0 // pred_check
    _
  $region23: #{stt_forward.2} parent=0 // pred_check_branch
    %520 = sbr.rel (0) target = $region25
  $region24: #{stt_forward.2} parent=0 // pred_region
    _
  $region25: #{stt_forward.2} parent=0 // pred_fallthru
    _
  // Predicated region
  $region26: #{stt_forward.2} parent=0 // pred_check
    _
  $region27: #{stt_forward.2} parent=0 // pred_check_branch
    %522 = sbr.rel (0) target = $region29
  $region28: #{stt_forward.2} parent=0 // pred_region
    _
  $region29: #{stt_forward.2} parent=0 // pred_fallthru
    _
  // Predicated region
  $region30: #{stt_forward.2} parent=0 // pred_check
    _
  $region31: #{stt_forward.2} parent=0 // pred_check_branch
    %524 = sbr.rel (0) target = $region33
  $region32: #{stt_forward.2} parent=0 // pred_region
    _
  $region33: #{stt_forward.2} parent=0 // pred_fallthru
    _
  // Predicated region
  $region34: #{stt_forward.2} parent=0 // pred_check
    _
  $region35: #{stt_forward.2} parent=0 // pred_check_branch
    %526 = sbr.rel (0) target = $region37
  $region36: #{stt_forward.2} parent=0 // pred_region
    _
  $region37: #{stt_forward.2} parent=0 // pred_fallthru
    _

// kernel: stt_forward.3
$region0: #{stt_forward.3}
  #allocation0 [shape = 'u32[]', space=smem, size = 0x4, offset = 0x4, fixed_abs, tag = 'smem constant byte address 0x4 - core index']
  #allocation1 [shape = 'u32[144,128]{1,0:T(1,128)}', space=vmem, size = 0x12000, scoped, tag = 'internal scratch']
  %s0 = inlined_call_operand.vmem [shape: bf16[128,8], index: 0, kind: input, shape index: {}]
  %s1 = inlined_call_operand.vmem [shape: bf16[128,8], index: 1, kind: input, shape index: {}]
  %s2 = inlined_call_operand.vmem [shape: bf16[2,1,512], index: 2, kind: input, shape index: {}]
  %s3 = inlined_call_operand.vmem [shape: bf16[512,16], index: 3, kind: input, shape index: {}]
  %s4 = inlined_call_operand.vmem [shape: f32[1,16], index: 4, kind: input, shape index: {}]
  %s5 = inlined_call_operand.vmem [shape: bf16[16,8], index: 5, kind: input, shape index: {}]
  %s6 = inlined_call_operand.vmem [shape: f32[1,8], index: 6, kind: input, shape index: {}]
  %s7 = inlined_call_operand.vmem [shape: f32[1,8], index: 7, kind: input, shape index: {}]
  %s8 = inlined_call_operand.vmem [shape: f32[1,8], index: 8, kind: input, shape index: {}]
  %s9 = inlined_call_operand.vmem [shape: bf16[8,24], index: 9, kind: input, shape index: {}]
  %s10 = inlined_call_operand.vmem [shape: f32[1,24], index: 10, kind: input, shape index: {}]
  %s11 = inlined_call_operand.vmem [shape: f32[1,24], index: 11, kind: input, shape index: {}]
  %s12 = inlined_call_operand.vmem [shape: f32[1,24], index: 12, kind: input, shape index: {}]
  %s13 = inlined_call_operand.vmem [shape: f32[64,1], index: 13, kind: input, shape index: {}]
  %s14 = inlined_call_operand.vmem [shape: f32[64,1], index: 14, kind: input, shape index: {}]
  %s15 = inlined_call_operand.vmem [shape: bf16[8,8], index: 15, kind: input, shape index: {}]
  %s16 = inlined_call_operand.vmem [shape: f32[1,8], index: 16, kind: input, shape index: {}]
  %s17 = inlined_call_operand.vmem [shape: f32[1,8], index: 17, kind: input, shape index: {}]
  %s18 = inlined_call_operand.vmem [shape: f32[1,8], index: 18, kind: input, shape index: {}]
  %s19 = inlined_call_operand.vmem [shape: bf16[8,128], index: 19, kind: input, shape index: {}]
  %s20 = inlined_call_operand.vmem [shape: f32[128,128], index: 20, kind: output, shape index: {}]
  %s21 = sld [smem:[#allocation0]]
  $region113: #{stt_forward.3} parent=0
    _
  %s23 = ssub.s32 1, %s21
  %s24 = scalar_select 0, %s23, %s21
  loop: start=0, step=1, limit=4
  $region2: #{stt_forward.3} parent=0 // loop_pre_header
    _
  $region3: #{stt_forward.3} parent=0 // loop_header
    %s26 = sphi 0, %s30
    %p27 = scmp.ge.s32.totalorder %s26, 4
    %s36 = sphi 0, %s38
    %s39 = sphi 0, %s36
    %s40 = sphi 0, %s39
    %s56 = sphi 0, %s40
    %s62 = sphi 0, %s64
    %s65 = sphi 0, %s62
    %s66 = sphi 0, %s65
    %s82 = sphi 0, %s66
    %s88 = sphi 0, %s90
    %s91 = sphi 0, %s88
    %s92 = sphi 0, %s91
    %s108 = sphi 0, %s92
    %s112 = sphi 0, %s112
    %s114 = sphi 0, %s112
    %s115 = sphi 0, %s114
    %s129 = sphi 0, %s115
    %s133 = sphi 0, %s133
    %s135 = sphi 0, %s133
    %s136 = sphi 0, %s135
    %s150 = sphi 0, %s136
    %s154 = sphi 0, %s154
    %s156 = sphi 0, %s154
    %s157 = sphi 0, %s156
    %s171 = sphi 0, %s157
    %s175 = sphi 0, %s175
    %s177 = sphi 0, %s175
    %s178 = sphi 0, %s177
    %s192 = sphi 0, %s178
    %s196 = sphi 0, %s196
    %s198 = sphi 0, %s196
    %s199 = sphi 0, %s198
    %s213 = sphi 0, %s199
    %s217 = sphi 0, %s217
    %s219 = sphi 0, %s217
    %s220 = sphi 0, %s219
    %s234 = sphi 0, %s220
    %s238 = sphi 0, %s238
    %s240 = sphi 0, %s238
    %s241 = sphi 0, %s240
    %s255 = sphi 0, %s241
    %s259 = sphi 0, %s259
    %s261 = sphi 0, %s259
    %s262 = sphi 0, %s261
    %s276 = sphi 0, %s262
    %s280 = sphi 0, %s280
    %s282 = sphi 0, %s280
    %s283 = sphi 0, %s282
    %s297 = sphi 0, %s283
    %s301 = sphi 0, %s301
    %s303 = sphi 0, %s301
    %s304 = sphi 0, %s303
    %s318 = sphi 0, %s304
    %s322 = sphi 0, %s322
    %s324 = sphi 0, %s322
    %s325 = sphi 0, %s324
    %s339 = sphi 0, %s325
    %s343 = sphi 0, %s343
    %s345 = sphi 0, %s343
    %s346 = sphi 0, %s345
    %s360 = sphi 0, %s346
    %s364 = sphi 0, %s364
    %s366 = sphi 0, %s364
    %s367 = sphi 0, %s366
    %s381 = sphi 0, %s367
    %s385 = sphi 0, %s385
    %s387 = sphi 0, %s385
    %s388 = sphi 0, %s387
    %s402 = sphi 0, %s388
    %s406 = sphi 0, %s406
    %s408 = sphi 0, %s406
    %s409 = sphi 0, %s408
    %s423 = sphi 0, %s409
    %s427 = sphi 0, %s427
    %s429 = sphi 0, %s427
    %s430 = sphi 0, %s429
    %s444 = sphi 0, %s430
    %s448 = sphi 0, %s448
    %s450 = sphi 0, %s448
    %s451 = sphi 0, %s450
    %s465 = sphi 0, %s451
    %s471 = sphi 0, %s473
    %s474 = sphi 0, %s471
    %s475 = sphi 0, %s474
    %s491 = sphi 0, %s475
  $region4: #{stt_forward.3} parent=0 // loop_header_branch
    %29 = sbr.rel (%p27) target = $region8
  $region5: #{stt_forward.3} parent=0 // loop_body
    %s31 = ssub.s32 %s26, 1
    %s32 = ssub.s32 %s26, 2
    %s33 = sadd.s32 %s26, 1
    %s34 = ssub.s32 %s26, %s33
    %p35 = scmp.eq.s32.totalorder %s34, 0
    %s37 = sadd.s32 %s36, 1
    %s38 = scalar_select %p35, %s36, %s37
    %p41 = pneg %p35
    %p42 = scmp.eq.s32.totalorder %s26, 1
    %p43 = por %p41, %p42
    %p44 = scmp.ne.s32.totalorder %s36, %s39
    %p45 = scmp.eq.s32.totalorder %s26, 0
    %p46 = por %p44, %p45
    %p47 = scmp.ne.s32.totalorder %s36, %s39
    %p48 = scmp.eq.s32.totalorder %s31, 1
    %p49 = por %p47, %p48
    %p50 = scmp.ne.s32.totalorder %s39, %s40
    %p51 = scmp.eq.s32.totalorder %s31, 0
    %p52 = por %p50, %p51
    %p53 = scmp.ne.s32.totalorder %s39, %s40
    %p54 = scmp.eq.s32.totalorder %s32, 1
    %p55 = por %p53, %p54
    %p57 = scmp.ne.s32.totalorder %s40, %s56
    %p58 = scmp.eq.s32.totalorder %s32, 0
    %p59 = por %p57, %p58
    %s60 = ssub.s32 %s26, %s33
    %p61 = scmp.eq.s32.totalorder %s60, 0
    %s63 = sadd.s32 %s62, 1
    %s64 = scalar_select %p61, %s62, %s63
    %p67 = pneg %p61
    %p68 = scmp.eq.s32.totalorder %s26, 1
    %p69 = por %p67, %p68
    %p70 = scmp.ne.s32.totalorder %s62, %s65
    %p71 = scmp.eq.s32.totalorder %s26, 0
    %p72 = por %p70, %p71
    %p73 = scmp.ne.s32.totalorder %s62, %s65
    %p74 = scmp.eq.s32.totalorder %s31, 1
    %p75 = por %p73, %p74
    %p76 = scmp.ne.s32.totalorder %s65, %s66
    %p77 = scmp.eq.s32.totalorder %s31, 0
    %p78 = por %p76, %p77
    %p79 = scmp.ne.s32.totalorder %s65, %s66
    %p80 = scmp.eq.s32.totalorder %s32, 1
    %p81 = por %p79, %p80
    %p83 = scmp.ne.s32.totalorder %s66, %s82
    %p84 = scmp.eq.s32.totalorder %s32, 0
    %p85 = por %p83, %p84
    %s86 = ssub.s32 %s26, %s33
    %p87 = scmp.eq.s32.totalorder %s86, 0
    %s89 = sadd.s32 %s88, 1
    %s90 = scalar_select %p87, %s88, %s89
    %p93 = pneg %p87
    %p94 = scmp.eq.s32.totalorder %s26, 1
    %p95 = por %p93, %p94
    %p96 = scmp.ne.s32.totalorder %s88, %s91
    %p97 = scmp.eq.s32.totalorder %s26, 0
    %p98 = por %p96, %p97
    %p99 = scmp.ne.s32.totalorder %s88, %s91
    %p100 = scmp.eq.s32.totalorder %s31, 1
    %p101 = por %p99, %p100
    %p102 = scmp.ne.s32.totalorder %s91, %s92
    %p103 = scmp.eq.s32.totalorder %s31, 0
    %p104 = por %p102, %p103
    %p105 = scmp.ne.s32.totalorder %s91, %s92
    %p106 = scmp.eq.s32.totalorder %s32, 1
    %p107 = por %p105, %p106
    %p109 = scmp.ne.s32.totalorder %s92, %s108
    %p110 = scmp.eq.s32.totalorder %s32, 0
    %p111 = por %p109, %p110
    %s113 = sadd.s32 %s112, 1
    %p116 = scmp.eq.s32.totalorder %s26, 1
    %p117 = scmp.ne.s32.totalorder %s112, %s114
    %p118 = scmp.eq.s32.totalorder %s26, 0
    %p119 = por %p117, %p118
    %p120 = scmp.ne.s32.totalorder %s112, %s114
    %p121 = scmp.eq.s32.totalorder %s31, 1
    %p122 = por %p120, %p121
    %p123 = scmp.ne.s32.totalorder %s114, %s115
    %p124 = scmp.eq.s32.totalorder %s31, 0
    %p125 = por %p123, %p124
    %p126 = scmp.ne.s32.totalorder %s114, %s115
    %p127 = scmp.eq.s32.totalorder %s32, 1
    %p128 = por %p126, %p127
    %p130 = scmp.ne.s32.totalorder %s115, %s129
    %p131 = scmp.eq.s32.totalorder %s32, 0
    %p132 = por %p130, %p131
    %s134 = sadd.s32 %s133, 1
    %p137 = scmp.eq.s32.totalorder %s26, 1
    %p138 = scmp.ne.s32.totalorder %s133, %s135
    %p139 = scmp.eq.s32.totalorder %s26, 0
    %p140 = por %p138, %p139
    %p141 = scmp.ne.s32.totalorder %s133, %s135
    %p142 = scmp.eq.s32.totalorder %s31, 1
    %p143 = por %p141, %p142
    %p144 = scmp.ne.s32.totalorder %s135, %s136
    %p145 = scmp.eq.s32.totalorder %s31, 0
    %p146 = por %p144, %p145
    %p147 = scmp.ne.s32.totalorder %s135, %s136
    %p148 = scmp.eq.s32.totalorder %s32, 1
    %p149 = por %p147, %p148
    %p151 = scmp.ne.s32.totalorder %s136, %s150
    %p152 = scmp.eq.s32.totalorder %s32, 0
    %p153 = por %p151, %p152
    %s155 = sadd.s32 %s154, 1
    %p158 = scmp.eq.s32.totalorder %s26, 1
    %p159 = scmp.ne.s32.totalorder %s154, %s156
    %p160 = scmp.eq.s32.totalorder %s26, 0
    %p161 = por %p159, %p160
    %p162 = scmp.ne.s32.totalorder %s154, %s156
    %p163 = scmp.eq.s32.totalorder %s31, 1
    %p164 = por %p162, %p163
    %p165 = scmp.ne.s32.totalorder %s156, %s157
    %p166 = scmp.eq.s32.totalorder %s31, 0
    %p167 = por %p165, %p166
    %p168 = scmp.ne.s32.totalorder %s156, %s157
    %p169 = scmp.eq.s32.totalorder %s32, 1
    %p170 = por %p168, %p169
    %p172 = scmp.ne.s32.totalorder %s157, %s171
    %p173 = scmp.eq.s32.totalorder %s32, 0
    %p174 = por %p172, %p173
    %s176 = sadd.s32 %s175, 1
    %p179 = scmp.eq.s32.totalorder %s26, 1
    %p180 = scmp.ne.s32.totalorder %s175, %s177
    %p181 = scmp.eq.s32.totalorder %s26, 0
    %p182 = por %p180, %p181
    %p183 = scmp.ne.s32.totalorder %s175, %s177
    %p184 = scmp.eq.s32.totalorder %s31, 1
    %p185 = por %p183, %p184
    %p186 = scmp.ne.s32.totalorder %s177, %s178
    %p187 = scmp.eq.s32.totalorder %s31, 0
    %p188 = por %p186, %p187
    %p189 = scmp.ne.s32.totalorder %s177, %s178
    %p190 = scmp.eq.s32.totalorder %s32, 1
    %p191 = por %p189, %p190
    %p193 = scmp.ne.s32.totalorder %s178, %s192
    %p194 = scmp.eq.s32.totalorder %s32, 0
    %p195 = por %p193, %p194
    %s197 = sadd.s32 %s196, 1
    %p200 = scmp.eq.s32.totalorder %s26, 1
    %p201 = scmp.ne.s32.totalorder %s196, %s198
    %p202 = scmp.eq.s32.totalorder %s26, 0
    %p203 = por %p201, %p202
    %p204 = scmp.ne.s32.totalorder %s196, %s198
    %p205 = scmp.eq.s32.totalorder %s31, 1
    %p206 = por %p204, %p205
    %p207 = scmp.ne.s32.totalorder %s198, %s199
    %p208 = scmp.eq.s32.totalorder %s31, 0
    %p209 = por %p207, %p208
    %p210 = scmp.ne.s32.totalorder %s198, %s199
    %p211 = scmp.eq.s32.totalorder %s32, 1
    %p212 = por %p210, %p211
    %p214 = scmp.ne.s32.totalorder %s199, %s213
    %p215 = scmp.eq.s32.totalorder %s32, 0
    %p216 = por %p214, %p215
    %s218 = sadd.s32 %s217, 1
    %p221 = scmp.eq.s32.totalorder %s26, 1
    %p222 = scmp.ne.s32.totalorder %s217, %s219
    %p223 = scmp.eq.s32.totalorder %s26, 0
    %p224 = por %p222, %p223
    %p225 = scmp.ne.s32.totalorder %s217, %s219
    %p226 = scmp.eq.s32.totalorder %s31, 1
    %p227 = por %p225, %p226
    %p228 = scmp.ne.s32.totalorder %s219, %s220
    %p229 = scmp.eq.s32.totalorder %s31, 0
    %p230 = por %p228, %p229
    %p231 = scmp.ne.s32.totalorder %s219, %s220
    %p232 = scmp.eq.s32.totalorder %s32, 1
    %p233 = por %p231, %p232
    %p235 = scmp.ne.s32.totalorder %s220, %s234
    %p236 = scmp.eq.s32.totalorder %s32, 0
    %p237 = por %p235, %p236
    %s239 = sadd.s32 %s238, 1
    %p242 = scmp.eq.s32.totalorder %s26, 1
    %p243 = scmp.ne.s32.totalorder %s238, %s240
    %p244 = scmp.eq.s32.totalorder %s26, 0
    %p245 = por %p243, %p244
    %p246 = scmp.ne.s32.totalorder %s238, %s240
    %p247 = scmp.eq.s32.totalorder %s31, 1
    %p248 = por %p246, %p247
    %p249 = scmp.ne.s32.totalorder %s240, %s241
    %p250 = scmp.eq.s32.totalorder %s31, 0
    %p251 = por %p249, %p250
    %p252 = scmp.ne.s32.totalorder %s240, %s241
    %p253 = scmp.eq.s32.totalorder %s32, 1
    %p254 = por %p252, %p253
    %p256 = scmp.ne.s32.totalorder %s241, %s255
    %p257 = scmp.eq.s32.totalorder %s32, 0
    %p258 = por %p256, %p257
    %s260 = sadd.s32 %s259, 1
    %p263 = scmp.eq.s32.totalorder %s26, 1
    %p264 = scmp.ne.s32.totalorder %s259, %s261
    %p265 = scmp.eq.s32.totalorder %s26, 0
    %p266 = por %p264, %p265
    %p267 = scmp.ne.s32.totalorder %s259, %s261
    %p268 = scmp.eq.s32.totalorder %s31, 1
    %p269 = por %p267, %p268
    %p270 = scmp.ne.s32.totalorder %s261, %s262
    %p271 = scmp.eq.s32.totalorder %s31, 0
    %p272 = por %p270, %p271
    %p273 = scmp.ne.s32.totalorder %s261, %s262
    %p274 = scmp.eq.s32.totalorder %s32, 1
    %p275 = por %p273, %p274
    %p277 = scmp.ne.s32.totalorder %s262, %s276
    %p278 = scmp.eq.s32.totalorder %s32, 0
    %p279 = por %p277, %p278
    %s281 = sadd.s32 %s280, 1
    %p284 = scmp.eq.s32.totalorder %s26, 1
    %p285 = scmp.ne.s32.totalorder %s280, %s282
    %p286 = scmp.eq.s32.totalorder %s26, 0
    %p287 = por %p285, %p286
    %p288 = scmp.ne.s32.totalorder %s280, %s282
    %p289 = scmp.eq.s32.totalorder %s31, 1
    %p290 = por %p288, %p289
    %p291 = scmp.ne.s32.totalorder %s282, %s283
    %p292 = scmp.eq.s32.totalorder %s31, 0
    %p293 = por %p291, %p292
    %p294 = scmp.ne.s32.totalorder %s282, %s283
    %p295 = scmp.eq.s32.totalorder %s32, 1
    %p296 = por %p294, %p295
    %p298 = scmp.ne.s32.totalorder %s283, %s297
    %p299 = scmp.eq.s32.totalorder %s32, 0
    %p300 = por %p298, %p299
    %s302 = sadd.s32 %s301, 1
    %p305 = scmp.eq.s32.totalorder %s26, 1
    %p306 = scmp.ne.s32.totalorder %s301, %s303
    %p307 = scmp.eq.s32.totalorder %s26, 0
    %p308 = por %p306, %p307
    %p309 = scmp.ne.s32.totalorder %s301, %s303
    %p310 = scmp.eq.s32.totalorder %s31, 1
    %p311 = por %p309, %p310
    %p312 = scmp.ne.s32.totalorder %s303, %s304
    %p313 = scmp.eq.s32.totalorder %s31, 0
    %p314 = por %p312, %p313
    %p315 = scmp.ne.s32.totalorder %s303, %s304
    %p316 = scmp.eq.s32.totalorder %s32, 1
    %p317 = por %p315, %p316
    %p319 = scmp.ne.s32.totalorder %s304, %s318
    %p320 = scmp.eq.s32.totalorder %s32, 0
    %p321 = por %p319, %p320
    %s323 = sadd.s32 %s322, 1
    %p326 = scmp.eq.s32.totalorder %s26, 1
    %p327 = scmp.ne.s32.totalorder %s322, %s324
    %p328 = scmp.eq.s32.totalorder %s26, 0
    %p329 = por %p327, %p328
    %p330 = scmp.ne.s32.totalorder %s322, %s324
    %p331 = scmp.eq.s32.totalorder %s31, 1
    %p332 = por %p330, %p331
    %p333 = scmp.ne.s32.totalorder %s324, %s325
    %p334 = scmp.eq.s32.totalorder %s31, 0
    %p335 = por %p333, %p334
    %p336 = scmp.ne.s32.totalorder %s324, %s325
    %p337 = scmp.eq.s32.totalorder %s32, 1
    %p338 = por %p336, %p337
    %p340 = scmp.ne.s32.totalorder %s325, %s339
    %p341 = scmp.eq.s32.totalorder %s32, 0
    %p342 = por %p340, %p341
    %s344 = sadd.s32 %s343, 1
    %p347 = scmp.eq.s32.totalorder %s26, 1
    %p348 = scmp.ne.s32.totalorder %s343, %s345
    %p349 = scmp.eq.s32.totalorder %s26, 0
    %p350 = por %p348, %p349
    %p351 = scmp.ne.s32.totalorder %s343, %s345
    %p352 = scmp.eq.s32.totalorder %s31, 1
    %p353 = por %p351, %p352
    %p354 = scmp.ne.s32.totalorder %s345, %s346
    %p355 = scmp.eq.s32.totalorder %s31, 0
    %p356 = por %p354, %p355
    %p357 = scmp.ne.s32.totalorder %s345, %s346
    %p358 = scmp.eq.s32.totalorder %s32, 1
    %p359 = por %p357, %p358
    %p361 = scmp.ne.s32.totalorder %s346, %s360
    %p362 = scmp.eq.s32.totalorder %s32, 0
    %p363 = por %p361, %p362
    %s365 = sadd.s32 %s364, 1
    %p368 = scmp.eq.s32.totalorder %s26, 1
    %p369 = scmp.ne.s32.totalorder %s364, %s366
    %p370 = scmp.eq.s32.totalorder %s26, 0
    %p371 = por %p369, %p370
    %p372 = scmp.ne.s32.totalorder %s364, %s366
    %p373 = scmp.eq.s32.totalorder %s31, 1
    %p374 = por %p372, %p373
    %p375 = scmp.ne.s32.totalorder %s366, %s367
    %p376 = scmp.eq.s32.totalorder %s31, 0
    %p377 = por %p375, %p376
    %p378 = scmp.ne.s32.totalorder %s366, %s367
    %p379 = scmp.eq.s32.totalorder %s32, 1
    %p380 = por %p378, %p379
    %p382 = scmp.ne.s32.totalorder %s367, %s381
    %p383 = scmp.eq.s32.totalorder %s32, 0
    %p384 = por %p382, %p383
    %s386 = sadd.s32 %s385, 1
    %p389 = scmp.eq.s32.totalorder %s26, 1
    %p390 = scmp.ne.s32.totalorder %s385, %s387
    %p391 = scmp.eq.s32.totalorder %s26, 0
    %p392 = por %p390, %p391
    %p393 = scmp.ne.s32.totalorder %s385, %s387
    %p394 = scmp.eq.s32.totalorder %s31, 1
    %p395 = por %p393, %p394
    %p396 = scmp.ne.s32.totalorder %s387, %s388
    %p397 = scmp.eq.s32.totalorder %s31, 0
    %p398 = por %p396, %p397
    %p399 = scmp.ne.s32.totalorder %s387, %s388
    %p400 = scmp.eq.s32.totalorder %s32, 1
    %p401 = por %p399, %p400
    %p403 = scmp.ne.s32.totalorder %s388, %s402
    %p404 = scmp.eq.s32.totalorder %s32, 0
    %p405 = por %p403, %p404
    %s407 = sadd.s32 %s406, 1
    %p410 = scmp.eq.s32.totalorder %s26, 1
    %p411 = scmp.ne.s32.totalorder %s406, %s408
    %p412 = scmp.eq.s32.totalorder %s26, 0
    %p413 = por %p411, %p412
    %p414 = scmp.ne.s32.totalorder %s406, %s408
    %p415 = scmp.eq.s32.totalorder %s31, 1
    %p416 = por %p414, %p415
    %p417 = scmp.ne.s32.totalorder %s408, %s409
    %p418 = scmp.eq.s32.totalorder %s31, 0
    %p419 = por %p417, %p418
    %p420 = scmp.ne.s32.totalorder %s408, %s409
    %p421 = scmp.eq.s32.totalorder %s32, 1
    %p422 = por %p420, %p421
    %p424 = scmp.ne.s32.totalorder %s409, %s423
    %p425 = scmp.eq.s32.totalorder %s32, 0
    %p426 = por %p424, %p425
    %s428 = sadd.s32 %s427, 1
    %p431 = scmp.eq.s32.totalorder %s26, 1
    %p432 = scmp.ne.s32.totalorder %s427, %s429
    %p433 = scmp.eq.s32.totalorder %s26, 0
    %p434 = por %p432, %p433
    %p435 = scmp.ne.s32.totalorder %s427, %s429
    %p436 = scmp.eq.s32.totalorder %s31, 1
    %p437 = por %p435, %p436
    %p438 = scmp.ne.s32.totalorder %s429, %s430
    %p439 = scmp.eq.s32.totalorder %s31, 0
    %p440 = por %p438, %p439
    %p441 = scmp.ne.s32.totalorder %s429, %s430
    %p442 = scmp.eq.s32.totalorder %s32, 1
    %p443 = por %p441, %p442
    %p445 = scmp.ne.s32.totalorder %s430, %s444
    %p446 = scmp.eq.s32.totalorder %s32, 0
    %p447 = por %p445, %p446
    %s449 = sadd.s32 %s448, 1
    %p452 = scmp.eq.s32.totalorder %s26, 1
    %p453 = scmp.ne.s32.totalorder %s448, %s450
    %p454 = scmp.eq.s32.totalorder %s26, 0
    %p455 = por %p453, %p454
    %p456 = scmp.ne.s32.totalorder %s448, %s450
    %p457 = scmp.eq.s32.totalorder %s31, 1
    %p458 = por %p456, %p457
    %p459 = scmp.ne.s32.totalorder %s450, %s451
    %p460 = scmp.eq.s32.totalorder %s31, 0
    %p461 = por %p459, %p460
    %p462 = scmp.ne.s32.totalorder %s450, %s451
    %p463 = scmp.eq.s32.totalorder %s32, 1
    %p464 = por %p462, %p463
    %p466 = scmp.ne.s32.totalorder %s451, %s465
    %p467 = scmp.eq.s32.totalorder %s32, 0
    %p468 = por %p466, %p467
    %s469 = ssub.s32 %s26, %s33
    %p470 = scmp.eq.s32.totalorder %s469, 0
    %s472 = sadd.s32 %s471, 1
    %s473 = scalar_select %p470, %s471, %s472
    %p476 = pneg %p470
    %p477 = scmp.eq.s32.totalorder %s26, 1
    %p478 = por %p476, %p477
    %p479 = scmp.ne.s32.totalorder %s471, %s474
    %p480 = scmp.eq.s32.totalorder %s26, 0
    %p481 = por %p479, %p480
    %p482 = scmp.ne.s32.totalorder %s471, %s474
    %p483 = scmp.eq.s32.totalorder %s31, 1
    %p484 = por %p482, %p483
    %p485 = scmp.ne.s32.totalorder %s474, %s475
    %p486 = scmp.eq.s32.totalorder %s31, 0
    %p487 = por %p485, %p486
    %p488 = scmp.ne.s32.totalorder %s474, %s475
    %p489 = scmp.eq.s32.totalorder %s32, 1
    %p490 = por %p488, %p489
    %p492 = scmp.ne.s32.totalorder %s475, %s491
    %p493 = scmp.eq.s32.totalorder %s32, 0
    %p494 = por %p492, %p493
    %p495 = scmp.le.s32.totalorder 1, %s26
    %p496 = scmp.lt.s32.totalorder %s26, 3
    %p497 = pnand %p495, %p496
    %p498 = pneg %p497
    // Predicated region
    $region9: #{stt_forward.3} parent=5 // pred_check
      _
    $region10: #{stt_forward.3} parent=5 // pred_check_branch
      %500 = sbr.rel (%p497) target = $region12
    $region11: #{stt_forward.3} parent=5 // pred_region
      %s501 = ssub.s32 %s26, 1
      // Predicated region
      $region13: #{stt_forward.3} parent=11 // pred_check
        %p502 = pneg %p125
      $region14: #{stt_forward.3} parent=11 // pred_check_branch
        %504 = sbr.rel (%p502) target = $region16
      $region15: #{stt_forward.3} parent=11 // pred_region
        _
      $region16: #{stt_forward.3} parent=11 // pred_fallthru
        _
      // Predicated region
      $region17: #{stt_forward.3} parent=11 // pred_check
        %p505 = pneg %p146
      $region18: #{stt_forward.3} parent=11 // pred_check_branch
        %507 = sbr.rel (%p505) target = $region20
      $region19: #{stt_forward.3} parent=11 // pred_region
        _
      $region20: #{stt_forward.3} parent=11 // pred_fallthru
        _
      // Predicated region
      $region21: #{stt_forward.3} parent=11 // pred_check
        %p508 = pneg %p167
      $region22: #{stt_forward.3} parent=11 // pred_check_branch
        %510 = sbr.rel (%p508) target = $region24
      $region23: #{stt_forward.3} parent=11 // pred_region
        _
      $region24: #{stt_forward.3} parent=11 // pred_fallthru
        _
      // Predicated region
      $region25: #{stt_forward.3} parent=11 // pred_check
        %p511 = pneg %p188
      $region26: #{stt_forward.3} parent=11 // pred_check_branch
        %513 = sbr.rel (%p511) target = $region28
      $region27: #{stt_forward.3} parent=11 // pred_region
        _
      $region28: #{stt_forward.3} parent=11 // pred_fallthru
        _
      // Predicated region
      $region29: #{stt_forward.3} parent=11 // pred_check
        %p514 = pneg %p209
      $region30: #{stt_forward.3} parent=11 // pred_check_branch
        %516 = sbr.rel (%p514) target = $region32
      $region31: #{stt_forward.3} parent=11 // pred_region
        _
      $region32: #{stt_forward.3} parent=11 // pred_fallthru
        _
      // Predicated region
      $region33: #{stt_forward.3} parent=11 // pred_check
        %p517 = pneg %p230
      $region34: #{stt_forward.3} parent=11 // pred_check_branch
        %519 = sbr.rel (%p517) target = $region36
      $region35: #{stt_forward.3} parent=11 // pred_region
        _
      $region36: #{stt_forward.3} parent=11 // pred_fallthru
        _
      // Predicated region
      $region37: #{stt_forward.3} parent=11 // pred_check
        %p520 = pneg %p251
      $region38: #{stt_forward.3} parent=11 // pred_check_branch
        %522 = sbr.rel (%p520) target = $region40
      $region39: #{stt_forward.3} parent=11 // pred_region
        _
      $region40: #{stt_forward.3} parent=11 // pred_fallthru
        _
      // Predicated region
      $region41: #{stt_forward.3} parent=11 // pred_check
        %p523 = pneg %p272
      $region42: #{stt_forward.3} parent=11 // pred_check_branch
        %525 = sbr.rel (%p523) target = $region44
      $region43: #{stt_forward.3} parent=11 // pred_region
        _
      $region44: #{stt_forward.3} parent=11 // pred_fallthru
        _
      // Predicated region
      $region45: #{stt_forward.3} parent=11 // pred_check
        %p526 = pneg %p293
      $region46: #{stt_forward.3} parent=11 // pred_check_branch
        %528 = sbr.rel (%p526) target = $region48
      $region47: #{stt_forward.3} parent=11 // pred_region
        _
      $region48: #{stt_forward.3} parent=11 // pred_fallthru
        _
      // Predicated region
      $region49: #{stt_forward.3} parent=11 // pred_check
        %p529 = pneg %p314
      $region50: #{stt_forward.3} parent=11 // pred_check_branch
        %531 = sbr.rel (%p529) target = $region52
      $region51: #{stt_forward.3} parent=11 // pred_region
        _
      $region52: #{stt_forward.3} parent=11 // pred_fallthru
        _
      // Predicated region
      $region53: #{stt_forward.3} parent=11 // pred_check
        %p532 = pneg %p335
      $region54: #{stt_forward.3} parent=11 // pred_check_branch
        %534 = sbr.rel (%p532) target = $region56
      $region55: #{stt_forward.3} parent=11 // pred_region
        _
      $region56: #{stt_forward.3} parent=11 // pred_fallthru
        _
      // Predicated region
      $region57: #{stt_forward.3} parent=11 // pred_check
        %p535 = pneg %p356
      $region58: #{stt_forward.3} parent=11 // pred_check_branch
        %537 = sbr.rel (%p535) target = $region60
      $region59: #{stt_forward.3} parent=11 // pred_region
        _
      $region60: #{stt_forward.3} parent=11 // pred_fallthru
        _
      // Predicated region
      $region61: #{stt_forward.3} parent=11 // pred_check
        %p538 = pneg %p377
      $region62: #{stt_forward.3} parent=11 // pred_check_branch
        %540 = sbr.rel (%p538) target = $region64
      $region63: #{stt_forward.3} parent=11 // pred_region
        _
      $region64: #{stt_forward.3} parent=11 // pred_fallthru
        _
      // Predicated region
      $region65: #{stt_forward.3} parent=11 // pred_check
        %p541 = pneg %p398
      $region66: #{stt_forward.3} parent=11 // pred_check_branch
        %543 = sbr.rel (%p541) target = $region68
      $region67: #{stt_forward.3} parent=11 // pred_region
        _
      $region68: #{stt_forward.3} parent=11 // pred_fallthru
        _
      // Predicated region
      $region69: #{stt_forward.3} parent=11 // pred_check
        %p544 = pneg %p419
      $region70: #{stt_forward.3} parent=11 // pred_check_branch
        %546 = sbr.rel (%p544) target = $region72
      $region71: #{stt_forward.3} parent=11 // pred_region
        _
      $region72: #{stt_forward.3} parent=11 // pred_fallthru
        _
      // Predicated region
      $region73: #{stt_forward.3} parent=11 // pred_check
        %p547 = pneg %p440
      $region74: #{stt_forward.3} parent=11 // pred_check_branch
        %549 = sbr.rel (%p547) target = $region76
      $region75: #{stt_forward.3} parent=11 // pred_region
        _
      $region76: #{stt_forward.3} parent=11 // pred_fallthru
        _
      // Predicated region
      $region77: #{stt_forward.3} parent=11 // pred_check
        %p550 = pneg %p461
      $region78: #{stt_forward.3} parent=11 // pred_check_branch
        %552 = sbr.rel (%p550) target = $region80
      $region79: #{stt_forward.3} parent=11 // pred_region
        _
      $region80: #{stt_forward.3} parent=11 // pred_fallthru
        _
    $region12: #{stt_forward.3} parent=5 // pred_fallthru
      _
    %p553 = scmp.lt.s32.totalorder %s26, 2
    // Predicated region
    $region81: #{stt_forward.3} parent=5 // pred_check
      %p554 = pneg %p553
    $region82: #{stt_forward.3} parent=5 // pred_check_branch
      %556 = sbr.rel (%p554) target = $region84
    $region83: #{stt_forward.3} parent=5 // pred_region
      // Predicated region
      $region85: #{stt_forward.3} parent=83 // pred_check
        %p557 = pneg %p46
      $region86: #{stt_forward.3} parent=83 // pred_check_branch
        %559 = sbr.rel (%p557) target = $region88
      $region87: #{stt_forward.3} parent=83 // pred_region
        %s560 = smul.u32 8, %s26
        %p561 = scmp.lt.s32.totalorder %s560, 15
        %s562 = scalar_select %p561, %s560, 15
        %s563 = smul.addr %s562, 4
        %s564 = scalar_lea.vmem %s0, %s563
        %s565 = smul.u32 8, %s26
      $region88: #{stt_forward.3} parent=83 // pred_fallthru
        _
      // Predicated region
      $region89: #{stt_forward.3} parent=83 // pred_check
        %p566 = pneg %p72
      $region90: #{stt_forward.3} parent=83 // pred_check_branch
        %568 = sbr.rel (%p566) target = $region92
      $region91: #{stt_forward.3} parent=83 // pred_region
        %s569 = smul.u32 8, %s26
        %p570 = scmp.lt.s32.totalorder %s569, 15
        %s571 = scalar_select %p570, %s569, 15
        %s572 = smul.addr %s571, 4
        %s573 = scalar_lea.vmem %s1, %s572
        %s574 = smul.u32 8, %s26
      $region92: #{stt_forward.3} parent=83 // pred_fallthru
        _
      // Predicated region
      $region93: #{stt_forward.3} parent=83 // pred_check
        %p575 = pneg %p98
      $region94: #{stt_forward.3} parent=83 // pred_check_branch
        %577 = sbr.rel (%p575) target = $region96
      $region95: #{stt_forward.3} parent=83 // pred_region
        %p578 = scmp.lt.s32.totalorder %s26, 1
        %s579 = scalar_select %p578, %s26, 1
        %s580 = smul.addr %s579, 4
        %s581 = scalar_lea.vmem %s2, %s580
      $region96: #{stt_forward.3} parent=83 // pred_fallthru
        _
    $region84: #{stt_forward.3} parent=5 // pred_fallthru
      _
    %p582 = scmp.le.s32.totalorder 1, %s26
    %p583 = scmp.lt.s32.totalorder %s26, 3
    %p584 = pnand %p582, %p583
    %p585 = pneg %p584
    // Predicated region
    $region97: #{stt_forward.3} parent=5 // pred_check
      _
    $region98: #{stt_forward.3} parent=5 // pred_check_branch
      %587 = sbr.rel (%p584) target = $region100
    $region99: #{stt_forward.3} parent=5 // pred_region
      %s588 = ssub.s32 %s26, 1
      %s589 = smul.u32 8, %s31
      %p590 = scmp.lt.s32.totalorder %s589, 15
      %s591 = scalar_select %p590, %s589, 15
      %s592 = smul.addr %s591, 4
      %s593 = scalar_lea.vmem %s0, %s592
      %p594 = pneg %p52
      %p595 = pneg %p49
      %s596 = smul.u32 8, %s31
      %p597 = scmp.lt.s32.totalorder %s596, 15
      %s598 = scalar_select %p597, %s596, 15
      %s599 = smul.addr %s598, 4
      %s600 = scalar_lea.vmem %s1, %s599
      %p601 = pneg %p78
      %p602 = pneg %p75
      %p603 = scmp.lt.s32.totalorder %s31, 1
      %s604 = scalar_select %p603, %s31, 1
      %s605 = smul.addr %s604, 4
      %s606 = scalar_lea.vmem %s2, %s605
      %p607 = pneg %p104
      %p608 = pneg %p101
      %p609 = pneg %p125
      %p610 = pneg %p122
      %p611 = pneg %p146
      %p612 = pneg %p143
      %p613 = pneg %p167
      %p614 = pneg %p164
      %p615 = pneg %p188
      %p616 = pneg %p185
      %p617 = pneg %p209
      %p618 = pneg %p206
      %p619 = pneg %p230
      %p620 = pneg %p227
      %p621 = pneg %p251
      %p622 = pneg %p248
      %p623 = pneg %p272
      %p624 = pneg %p269
      %p625 = pneg %p293
      %p626 = pneg %p290
      %p627 = pneg %p314
      %p628 = pneg %p311
      %p629 = pneg %p335
      %p630 = pneg %p332
      %p631 = pneg %p356
      %p632 = pneg %p353
      %p633 = pneg %p377
      %p634 = pneg %p374
      %p635 = pneg %p398
      %p636 = pneg %p395
      %p637 = pneg %p419
      %p638 = pneg %p416
      %p639 = pneg %p440
      %p640 = pneg %p437
      %p641 = pneg %p461
      %p642 = pneg %p458
      %p643 = pneg %p487
      %p644 = pneg %p484
      %s645 = smul.u32 8, %s31
      %p646 = scmp.lt.s32.totalorder %s645, 15
      %s647 = scalar_select %p646, %s645, 15
      %s648 = smul.addr %s647, 8
      %s649 = scalar_lea.vmem %s20, %s648
      %s650 = smul.u32 8, %s31
      %p651 = scmp.lt.s32.totalorder %s650, 15
      %s652 = scalar_select %p651, %s650, 15
      %s653 = smul.addr %s652, 4
      %s654 = scalar_lea.vmem %s0, %s653
      %s655 = smul.u32 8, %s31
      %s656 = smul.u32 8, %s31
      %p657 = scmp.lt.s32.totalorder %s656, 15
      %s658 = scalar_select %p657, %s656, 15
      %s659 = smul.addr %s658, 4
      %s660 = scalar_lea.vmem %s1, %s659
      %s661 = smul.u32 8, %s31
      %p662 = scmp.lt.s32.totalorder %s31, 1
      %s663 = scalar_select %p662, %s31, 1
      %s664 = smul.addr %s663, 4
      %s665 = scalar_lea.vmem %s2, %s664
      %s666 = smul.u32 8, %s31
      %p667 = scmp.lt.s32.totalorder %s666, 15
      %s668 = scalar_select %p667, %s666, 15
      %s669 = smul.addr %s668, 8
      %s670 = scalar_lea.vmem %s20, %s669
      %s671 = smul.u32 8, %s31
      %v673 = vld [vmem:[%s665] sm:$0xf]
      %v674 = vld [vmem:[%s3] sm:$0xf]
      %v675 = vld [vmem:[%s3 + $0x4] sm:$0xf]
      %v676 = vld [vmem:[%s3 + $0x8] sm:$0xf]
      %v677 = vld [vmem:[%s3 + $0xc] sm:$0xf]
      %v678 = vld [vmem:[%s3 + $0x10] sm:$0xf]
      %v679 = vld [vmem:[%s3 + $0x14] sm:$0xf]
      %v680 = vld [vmem:[%s3 + $0x18] sm:$0xf]
      %v681 = vld [vmem:[%s3 + $0x1c] sm:$0xf]
      %v682 = vld [vmem:[%s3 + $0x20] sm:$0xf]
      %v683 = vld [vmem:[%s3 + $0x24] sm:$0xf]
      %v684 = vld [vmem:[%s3 + $0x28] sm:$0xf]
      %v685 = vld [vmem:[%s3 + $0x2c] sm:$0xf]
      %v686 = vld [vmem:[%s3 + $0x30] sm:$0xf]
      %v687 = vld [vmem:[%s3 + $0x34] sm:$0xf]
      %v688 = vld [vmem:[%s3 + $0x38] sm:$0xf]
      %v689 = vld [vmem:[%s3 + $0x3c] sm:$0xf]
      %v690 = vld [vmem:[%s3 + $0x40] sm:$0xf]
      %v691 = vld [vmem:[%s3 + $0x44] sm:$0xf]
      %v692 = vld [vmem:[%s3 + $0x48] sm:$0xf]
      %v693 = vld [vmem:[%s3 + $0x4c] sm:$0xf]
      %v694 = vld [vmem:[%s3 + $0x50] sm:$0xf]
      %v695 = vld [vmem:[%s3 + $0x54] sm:$0xf]
      %v696 = vld [vmem:[%s3 + $0x58] sm:$0xf]
      %v697 = vld [vmem:[%s3 + $0x5c] sm:$0xf]
      %v698 = vld [vmem:[%s3 + $0x60] sm:$0xf]
      %v699 = vld [vmem:[%s3 + $0x64] sm:$0xf]
      %v700 = vld [vmem:[%s3 + $0x68] sm:$0xf]
      %v701 = vld [vmem:[%s3 + $0x6c] sm:$0xf]
      %v702 = vld [vmem:[%s3 + $0x70] sm:$0xf]
      %v703 = vld [vmem:[%s3 + $0x74] sm:$0xf]
      %v704 = vld [vmem:[%s3 + $0x78] sm:$0xf]
      %v705 = vld [vmem:[%s3 + $0x7c] sm:$0xf]
      %v706 = vld [vmem:[%s3 + $0x80] sm:$0xf]
      %v707 = vld [vmem:[%s3 + $0x84] sm:$0xf]
      %v708 = vld [vmem:[%s3 + $0x88] sm:$0xf]
      %v709 = vld [vmem:[%s3 + $0x8c] sm:$0xf]
      %v710 = vld [vmem:[%s3 + $0x90] sm:$0xf]
      %v711 = vld [vmem:[%s3 + $0x94] sm:$0xf]
      %v712 = vld [vmem:[%s3 + $0x98] sm:$0xf]
      %v713 = vld [vmem:[%s3 + $0x9c] sm:$0xf]
      %v714 = vld [vmem:[%s3 + $0xa0] sm:$0xf]
      %v715 = vld [vmem:[%s3 + $0xa4] sm:$0xf]
      %v716 = vld [vmem:[%s3 + $0xa8] sm:$0xf]
      %v717 = vld [vmem:[%s3 + $0xac] sm:$0xf]
      %v718 = vld [vmem:[%s3 + $0xb0] sm:$0xf]
      %v719 = vld [vmem:[%s3 + $0xb4] sm:$0xf]
      %v720 = vld [vmem:[%s3 + $0xb8] sm:$0xf]
      %v721 = vld [vmem:[%s3 + $0xbc] sm:$0xf]
      %v722 = vld [vmem:[%s3 + $0xc0] sm:$0xf]
      %v723 = vld [vmem:[%s3 + $0xc4] sm:$0xf]
      %v724 = vld [vmem:[%s3 + $0xc8] sm:$0xf]
      %v725 = vld [vmem:[%s3 + $0xcc] sm:$0xf]
      %v726 = vld [vmem:[%s3 + $0xd0] sm:$0xf]
      %v727 = vld [vmem:[%s3 + $0xd4] sm:$0xf]
      %v728 = vld [vmem:[%s3 + $0xd8] sm:$0xf]
      %v729 = vld [vmem:[%s3 + $0xdc] sm:$0xf]
      %v730 = vld [vmem:[%s3 + $0xe0] sm:$0xf]
      %v731 = vld [vmem:[%s3 + $0xe4] sm:$0xf]
      %v732 = vld [vmem:[%s3 + $0xe8] sm:$0xf]
      %v733 = vld [vmem:[%s3 + $0xec] sm:$0xf]
      %v734 = vld [vmem:[%s3 + $0xf0] sm:$0xf]
      %v735 = vld [vmem:[%s3 + $0xf4] sm:$0xf]
      %v736 = vld [vmem:[%s3 + $0xf8] sm:$0xf]
      %v737 = vld [vmem:[%s3 + $0xfc] sm:$0xf]
      %v738 = vld [vmem:[%s4] sm:$0x1]
      %v741 = vunpack.c.l.s4 1966171168
      %v742 = vunpack.c.0.s8 %v741
      %v743 = vlaneseq
      %v744 = vshrl.u32 %v743, 7
      %v745 = vsub.s32 %v742, %v744
      %v746 = vrot.slane %v673, %v745
      %v747 = vcombine.high %v746, %v746
      %v749 = vunpack.c.l.s4 1966171168
      %v750 = vunpack.c.0.s8 %v749
      %v751 = vlaneseq
      %v752 = vshrl.u32 %v751, 7
      %v753 = vsub.s32 %v750, %v752
      %v754 = vrot.slane %v746, %v753
      %v756 = vunpack.c.l.s4 1966171168
      %v757 = vunpack.c.0.s8 %v756
      %v758 = vlaneseq
      %v759 = vshrl.u32 %v758, 7
      %v760 = vsub.s32 %v757, %v759
      %v761 = vrot.slane %v747, %v760
      %v762 = vcombine.high %v754, %v754
      %v763 = vcombine.high %v761, %v761
      %v832 = vunpack.c.l.b16 %v674
      %v833 = vunpack.c.l.b16 %v675
      %v834 = vunpack.c.l.b16 %v676
      %v835 = vunpack.c.l.b16 %v677
      %v836 = vunpack.c.l.b16 %v678
      %v837 = vunpack.c.l.b16 %v679
      %v838 = vunpack.c.l.b16 %v680
      %v839 = vunpack.c.l.b16 %v681
      %v840 = vunpack.c.l.b16 %v682
      %v841 = vunpack.c.l.b16 %v683
      %v842 = vunpack.c.l.b16 %v684
      %v843 = vunpack.c.l.b16 %v685
      %v844 = vunpack.c.l.b16 %v686
      %v845 = vunpack.c.l.b16 %v687
      %v846 = vunpack.c.l.b16 %v688
      %v847 = vunpack.c.l.b16 %v689
      %v848 = vunpack.c.l.b16 %v690
      %v849 = vunpack.c.l.b16 %v691
      %v850 = vunpack.c.l.b16 %v692
      %v851 = vunpack.c.l.b16 %v693
      %v852 = vunpack.c.l.b16 %v694
      %v853 = vunpack.c.l.b16 %v695
      %v854 = vunpack.c.l.b16 %v696
      %v855 = vunpack.c.l.b16 %v697
      %v856 = vunpack.c.l.b16 %v698
      %v857 = vunpack.c.l.b16 %v699
      %v858 = vunpack.c.l.b16 %v700
      %v859 = vunpack.c.l.b16 %v701
      %v860 = vunpack.c.l.b16 %v702
      %v861 = vunpack.c.l.b16 %v703
      %v862 = vunpack.c.l.b16 %v704
      %v863 = vunpack.c.l.b16 %v705
      %v864 = vunpack.c.l.b16 %v706
      %v865 = vunpack.c.l.b16 %v707
      %v866 = vunpack.c.l.b16 %v708
      %v867 = vunpack.c.l.b16 %v709
      %v868 = vunpack.c.l.b16 %v710
      %v869 = vunpack.c.l.b16 %v711
      %v870 = vunpack.c.l.b16 %v712
      %v871 = vunpack.c.l.b16 %v713
      %v872 = vunpack.c.l.b16 %v714
      %v873 = vunpack.c.l.b16 %v715
      %v874 = vunpack.c.l.b16 %v716
      %v875 = vunpack.c.l.b16 %v717
      %v876 = vunpack.c.l.b16 %v718
      %v877 = vunpack.c.l.b16 %v719
      %v878 = vunpack.c.l.b16 %v720
      %v879 = vunpack.c.l.b16 %v721
      %v880 = vunpack.c.l.b16 %v722
      %v881 = vunpack.c.l.b16 %v723
      %v882 = vunpack.c.l.b16 %v724
      %v883 = vunpack.c.l.b16 %v725
      %v884 = vunpack.c.l.b16 %v726
      %v885 = vunpack.c.l.b16 %v727
      %v886 = vunpack.c.l.b16 %v728
      %v887 = vunpack.c.l.b16 %v729
      %v888 = vunpack.c.l.b16 %v730
      %v889 = vunpack.c.l.b16 %v731
      %v890 = vunpack.c.l.b16 %v732
      %v891 = vunpack.c.l.b16 %v733
      %v892 = vunpack.c.l.b16 %v734
      %v893 = vunpack.c.l.b16 %v735
      %v894 = vunpack.c.l.b16 %v736
      %v895 = vunpack.c.l.b16 %v737
      %v896 = vpack.c.b16 %v833, %v832
      %v897 = vpack.c.b16 %v835, %v834
      %v898 = vpack.c.b16 %v837, %v836
      %v899 = vpack.c.b16 %v839, %v838
      %v900 = vpack.c.b16 %v841, %v840
      %v901 = vpack.c.b16 %v843, %v842
      %v902 = vpack.c.b16 %v845, %v844
      %v903 = vpack.c.b16 %v847, %v846
      %v904 = vpack.c.b16 %v849, %v848
      %v905 = vpack.c.b16 %v851, %v850
      %v906 = vpack.c.b16 %v853, %v852
      %v907 = vpack.c.b16 %v855, %v854
      %v908 = vpack.c.b16 %v857, %v856
      %v909 = vpack.c.b16 %v859, %v858
      %v910 = vpack.c.b16 %v861, %v860
      %v911 = vpack.c.b16 %v863, %v862
      %v912 = vpack.c.b16 %v865, %v864
      %v913 = vpack.c.b16 %v867, %v866
      %v914 = vpack.c.b16 %v869, %v868
      %v915 = vpack.c.b16 %v871, %v870
      %v916 = vpack.c.b16 %v873, %v872
      %v917 = vpack.c.b16 %v875, %v874
      %v918 = vpack.c.b16 %v877, %v876
      %v919 = vpack.c.b16 %v879, %v878
      %v920 = vpack.c.b16 %v881, %v880
      %v921 = vpack.c.b16 %v883, %v882
      %v922 = vpack.c.b16 %v885, %v884
      %v923 = vpack.c.b16 %v887, %v886
      %v924 = vpack.c.b16 %v889, %v888
      %v925 = vpack.c.b16 %v891, %v890
      %v926 = vpack.c.b16 %v893, %v892
      %v927 = vpack.c.b16 %v895, %v894
      %960 = vmatprep.subr.bf16.mxu0 0
      %961 = vmatpush1.bf16.msra.mxu0 %v903
      %962 = vmatprep.subr.bf16.mxu0 0
      %963 = vmatpush1.bf16.msra.mxu0 %v902
      %964 = vmatprep.subr.bf16.mxu0 0
      %965 = vmatpush1.bf16.msra.mxu0 %v901
      %966 = vmatprep.subr.bf16.mxu0 0
      %967 = vmatpush1.bf16.msra.mxu0 %v900
      %968 = vmatprep.subr.bf16.mxu0 0
      %969 = vmatpush1.bf16.msra.mxu0 %v899
      %970 = vmatprep.subr.bf16.mxu0 0
      %971 = vmatpush1.bf16.msra.mxu0 %v898
      %972 = vmatprep.subr.bf16.mxu0 0
      %973 = vmatpush1.bf16.msra.mxu0 %v897
      %974 = vmatprep.subr.bf16.mxu0 0
      %975 = vmatpush1.bf16.msra.mxu0 %v896
      %976 = vmatprep.subr.bf16.mxu0 0
      %977 = vmatpush2.bf16.msra.mxu0 %v911
      %978 = vmatprep.subr.bf16.mxu0 0
      %979 = vmatpush2.bf16.msra.mxu0 %v910
      %980 = vmatprep.subr.bf16.mxu0 0
      %981 = vmatpush2.bf16.msra.mxu0 %v909
      %982 = vmatprep.subr.bf16.mxu0 0
      %983 = vmatpush2.bf16.msra.mxu0 %v908
      %984 = vmatprep.subr.bf16.mxu0 0
      %985 = vmatpush2.bf16.msra.mxu0 %v907
      %986 = vmatprep.subr.bf16.mxu0 0
      %987 = vmatpush2.bf16.msra.mxu0 %v906
      %988 = vmatprep.subr.bf16.mxu0 0
      %989 = vmatpush2.bf16.msra.mxu0 %v905
      %990 = vmatprep.subr.bf16.mxu0 0
      %991 = vmatpush2.bf16.msra.mxu0 %v904
      %992 = vmatprep.mubr.bf16.mxu0 %v761
      %993 = vmatmul.mubr.bf16.gmra.mxu0 %v754
      %v994 = vpop.f32.mrf.mxu0
      %v995 = vadd.f32 %v738, %v994
      %v996 = vpop.f32.mrf.mxu0
      %v997 = vpop.f32.mrf.mxu0
      %v998 = vpop.f32.mrf.mxu0
      %999 = vdwg.mxu0
      %1000 = vmatprep.subr.bf16.mxu0 0
      %1001 = vmatpush1.bf16.msra.mxu0 %v919
      %1002 = vmatprep.subr.bf16.mxu0 0
      %1003 = vmatpush1.bf16.msra.mxu0 %v918
      %1004 = vmatprep.subr.bf16.mxu0 0
      %1005 = vmatpush1.bf16.msra.mxu0 %v917
      %1006 = vmatprep.subr.bf16.mxu0 0
      %1007 = vmatpush1.bf16.msra.mxu0 %v916
      %1008 = vmatprep.subr.bf16.mxu0 0
      %1009 = vmatpush1.bf16.msra.mxu0 %v915
      %1010 = vmatprep.subr.bf16.mxu0 0
      %1011 = vmatpush1.bf16.msra.mxu0 %v914
      %1012 = vmatprep.subr.bf16.mxu0 0
      %1013 = vmatpush1.bf16.msra.mxu0 %v913
      %1014 = vmatprep.subr.bf16.mxu0 0
      %1015 = vmatpush1.bf16.msra.mxu0 %v912
      %1016 = vmatprep.subr.bf16.mxu0 0
      %1017 = vmatpush2.bf16.msra.mxu0 %v927
      %1018 = vmatprep.subr.bf16.mxu0 0
      %1019 = vmatpush2.bf16.msra.mxu0 %v926
      %1020 = vmatprep.subr.bf16.mxu0 0
      %1021 = vmatpush2.bf16.msra.mxu0 %v925
      %1022 = vmatprep.subr.bf16.mxu0 0
      %1023 = vmatpush2.bf16.msra.mxu0 %v924
      %1024 = vmatprep.subr.bf16.mxu0 0
      %1025 = vmatpush2.bf16.msra.mxu0 %v923
      %1026 = vmatprep.subr.bf16.mxu0 0
      %1027 = vmatpush2.bf16.msra.mxu0 %v922
      %1028 = vmatprep.subr.bf16.mxu0 0
      %1029 = vmatpush2.bf16.msra.mxu0 %v921
      %1030 = vmatprep.subr.bf16.mxu0 0
      %1031 = vmatpush2.bf16.msra.mxu0 %v920
      %1032 = vmatprep.mubr.bf16.mxu0 %v763
      %1033 = vmatmul.mubr.bf16.gmra.mxu0 %v762
      %v1034 = vpop.f32.mrf.mxu0
      %v1035 = vadd.f32 %v995, %v1034
      %v1036 = vpop.f32.mrf.mxu0
      %v1037 = vpop.f32.mrf.mxu0
      %v1038 = vpop.f32.mrf.mxu0
      %1039 = vdwg.mxu0
      %v1040 = vpack.c.bf16 %v1035, %v1035
      %v1041 = vld [vmem:[%s5] sm:$0xf]
      %v1042 = vld [vmem:[%s5 + $0x4] sm:$0xf]
      %v1043 = vld [vmem:[%s6] sm:$0x1]
      %v1046 = vunpack.c.l.b16 %v1041
      %v1047 = vunpack.c.l.b16 %v1042
      %v1048 = vpack.c.b16 %v1047, %v1046
      %vm1050 = vcmask 130048
      %v1052 = vsel %vm1050, %v1040, 0
      %1054 = vmatprep.subr.bf16.mxu0 0
      %1055 = vmatpush1.bf16.msra.mxu0 0
      %1056 = vmatprep.subr.bf16.mxu0 0
      %1057 = vmatpush1.bf16.msra.mxu0 0
      %1058 = vmatprep.subr.bf16.mxu0 0
      %1059 = vmatpush1.bf16.msra.mxu0 0
      %1060 = vmatprep.subr.bf16.mxu0 0
      %1061 = vmatpush1.bf16.msra.mxu0 0
      %1062 = vmatprep.subr.bf16.mxu0 0
      %1063 = vmatpush1.bf16.msra.mxu0 0
      %1064 = vmatprep.subr.bf16.mxu0 0
      %1065 = vmatpush1.bf16.msra.mxu0 0
      %1066 = vmatprep.subr.bf16.mxu0 0
      %1067 = vmatpush1.bf16.msra.mxu0 0
      %1068 = vmatprep.subr.bf16.mxu0 0
      %1069 = vmatpush1.bf16.msra.mxu0 %v1048
      %1070 = vmatprep.subr.bf16.mxu0 0
      %1071 = vmatpush2.bf16.msra.mxu0 0
      %1072 = vmatprep.subr.bf16.mxu0 0
      %1073 = vmatpush2.bf16.msra.mxu0 0
      %1074 = vmatprep.subr.bf16.mxu0 0
      %1075 = vmatpush2.bf16.msra.mxu0 0
      %1076 = vmatprep.subr.bf16.mxu0 0
      %1077 = vmatpush2.bf16.msra.mxu0 0
      %1078 = vmatprep.subr.bf16.mxu0 0
      %1079 = vmatpush2.bf16.msra.mxu0 0
      %1080 = vmatprep.subr.bf16.mxu0 0
      %1081 = vmatpush2.bf16.msra.mxu0 0
      %1082 = vmatprep.subr.bf16.mxu0 0
      %1083 = vmatpush2.bf16.msra.mxu0 0
      %1084 = vmatprep.subr.bf16.mxu0 0
      %1085 = vmatpush2.bf16.msra.mxu0 0
      %1086 = vmatprep.mubr.bf16.mxu0 0
      %1087 = vmatmul.mubr.bf16.gmra.mxu0 %v1052
      %v1088 = vpop.f32.mrf.mxu0
      %v1089 = vadd.f32 %v1043, %v1088
      %v1090 = vpop.f32.mrf.mxu0
      %v1091 = vpop.f32.mrf.mxu0
      %v1092 = vpop.f32.mrf.mxu0
      %1093 = vdwg.mxu0
      %vm1094 = vcmask 57344
      %v1095 = vsel %vm1094, %v1089, 0.0
      %1096 = vadd.xlane.f32.xlu0 %v1095
      %v1097 = vpop.xlane.xlu0 %1096
      %v1098 = vrcp.pop 8.0
      %v1099 = vmul.f32 %v1097, %v1098
      %v1100 = vsub.f32 %v1089, %v1099
      %v1101 = vmul.f32 %v1100, %v1100
      %v1102 = vsel %vm1094, %v1101, 0.0
      %1103 = vadd.xlane.f32.xlu0 %v1102
      %v1104 = vpop.xlane.xlu0 %1103
      %v1105 = vmul.f32 %v1104, %v1098
      %v1106 = vadd.f32 %v1105, 1e-05
      %v1107 = vrsqrt.pop %v1106
      %v1108 = vmul.f32 %v1100, %v1107
      %v1109 = vld [vmem:[%s7] sm:$0x1]
      %v1110 = vmul.f32 %v1108, %v1109
      %v1111 = vld [vmem:[%s8] sm:$0x1]
      %v1112 = vadd.f32 %v1110, %v1111
      %v1113 = vpack.c.bf16 %v1112, %v1112
      %v1114 = vld [vmem:[%s9] sm:$0xf]
      %v1115 = vld [vmem:[%s10] sm:$0x1]
      %vm1116 = vcmask 64512
      %v1118 = vsel %vm1116, %v1113, 0
      %vm1120 = vcmask 1043456
      %v1122 = vsel %vm1120, %v1114, 0
      %1124 = vmatprep.subr.bf16.mxu0 0
      %1125 = vmatpush1.bf16.msra.mxu0 0
      %1126 = vmatprep.subr.bf16.mxu0 0
      %1127 = vmatpush1.bf16.msra.mxu0 0
      %1128 = vmatprep.subr.bf16.mxu0 0
      %1129 = vmatpush1.bf16.msra.mxu0 0
      %1130 = vmatprep.subr.bf16.mxu0 0
      %1131 = vmatpush1.bf16.msra.mxu0 0
      %1132 = vmatprep.subr.bf16.mxu0 0
      %1133 = vmatpush1.bf16.msra.mxu0 0
      %1134 = vmatprep.subr.bf16.mxu0 0
      %1135 = vmatpush1.bf16.msra.mxu0 0
      %1136 = vmatprep.subr.bf16.mxu0 0
      %1137 = vmatpush1.bf16.msra.mxu0 0
      %1138 = vmatprep.subr.bf16.mxu0 0
      %1139 = vmatpush1.bf16.msra.mxu0 %v1122
      %1140 = vmatprep.subr.bf16.mxu0 0
      %1141 = vmatpush2.bf16.msra.mxu0 0
      %1142 = vmatprep.subr.bf16.mxu0 0
      %1143 = vmatpush2.bf16.msra.mxu0 0
      %1144 = vmatprep.subr.bf16.mxu0 0
      %1145 = vmatpush2.bf16.msra.mxu0 0
      %1146 = vmatprep.subr.bf16.mxu0 0
      %1147 = vmatpush2.bf16.msra.mxu0 0
      %1148 = vmatprep.subr.bf16.mxu0 0
      %1149 = vmatpush2.bf16.msra.mxu0 0
      %1150 = vmatprep.subr.bf16.mxu0 0
      %1151 = vmatpush2.bf16.msra.mxu0 0
      %1152 = vmatprep.subr.bf16.mxu0 0
      %1153 = vmatpush2.bf16.msra.mxu0 0
      %1154 = vmatprep.subr.bf16.mxu0 0
      %1155 = vmatpush2.bf16.msra.mxu0 0
      %1156 = vmatprep.mubr.bf16.mxu0 0
      %1157 = vmatmul.mubr.bf16.gmra.mxu0 %v1118
      %v1158 = vpop.f32.mrf.mxu0
      %v1159 = vadd.f32 %v1115, %v1158
      %v1160 = vpop.f32.mrf.mxu0
      %v1161 = vpop.f32.mrf.mxu0
      %v1162 = vpop.f32.mrf.mxu0
      %1163 = vdwg.mxu0
      %v1164 = vtanh.pop %v1159
      %v1165 = vld [vmem:[%s11] sm:$0x1]
      %v1166 = vmul.f32 %v1164, %v1165
      %v1167 = vld [vmem:[%s12] sm:$0x1]
      %v1168 = vadd.f32 %v1166, %v1167
      %v1169 = vld [vmem:[%s660] sm:$0xf]
      %v1170 = vld [vmem:[%s660 + $0x4] sm:$0xf]
      %v1171 = vld [vmem:[%s660 + $0x8] sm:$0xf]
      %v1172 = vld [vmem:[%s660 + $0xc] sm:$0xf]
      %v1173 = vld [vmem:[%s660 + $0x10] sm:$0xf]
      %v1174 = vld [vmem:[%s660 + $0x14] sm:$0xf]
      %v1175 = vld [vmem:[%s660 + $0x18] sm:$0xf]
      %v1176 = vld [vmem:[%s660 + $0x1c] sm:$0xf]
      %v1177 = vld [vmem:[%s13] sm:$0xff]
      %v1178 = vld [vmem:[%s13 + $0x8] sm:$0xff]
      %v1179 = vld [vmem:[%s13 + $0x10] sm:$0xff]
      %v1180 = vld [vmem:[%s13 + $0x18] sm:$0xff]
      %v1181 = vld [vmem:[%s13 + $0x20] sm:$0xff]
      %v1182 = vld [vmem:[%s13 + $0x28] sm:$0xff]
      %v1183 = vld [vmem:[%s13 + $0x30] sm:$0xff]
      %v1184 = vld [vmem:[%s13 + $0x38] sm:$0xff]
      %v1185 = vld [vmem:[%s14] sm:$0xff]
      %v1186 = vld [vmem:[%s14 + $0x8] sm:$0xff]
      %v1187 = vld [vmem:[%s14 + $0x10] sm:$0xff]
      %v1188 = vld [vmem:[%s14 + $0x18] sm:$0xff]
      %v1189 = vld [vmem:[%s14 + $0x20] sm:$0xff]
      %v1190 = vld [vmem:[%s14 + $0x28] sm:$0xff]
      %v1191 = vld [vmem:[%s14 + $0x30] sm:$0xff]
      %v1192 = vld [vmem:[%s14 + $0x38] sm:$0xff]
      %v1193 = vlaneseq
      %v1194 = vand.u32 %v1193, 127
      %v1195 = vlaneseq
      %v1196 = vshrl.u32 %v1195, 7
      %v1197 = vsub.s32 0, %v1196
      %v1198 = vrot.slane %v1168, %v1197
      %v1199 = vmul.f32 %v1198, %v1177
      %v1200 = vmul.f32 %v1198, %v1178
      %v1201 = vmul.f32 %v1198, %v1179
      %v1202 = vmul.f32 %v1198, %v1180
      %v1203 = vmul.f32 %v1198, %v1181
      %v1204 = vmul.f32 %v1198, %v1182
      %v1205 = vmul.f32 %v1198, %v1183
      %v1206 = vmul.f32 %v1198, %v1184
      %1215 = vrot.lane.b32.xlu0 %v1185, 1
      %v1216 = vpop.permute.xlu0 %1215
      %1217 = vrot.lane.b32.xlu0 %v1186, 1
      %v1218 = vpop.permute.xlu0 %1217
      %1219 = vrot.lane.b32.xlu0 %v1187, 1
      %v1220 = vpop.permute.xlu0 %1219
      %1221 = vrot.lane.b32.xlu0 %v1188, 1
      %v1222 = vpop.permute.xlu0 %1221
      %1223 = vrot.lane.b32.xlu0 %v1189, 1
      %v1224 = vpop.permute.xlu0 %1223
      %1225 = vrot.lane.b32.xlu0 %v1190, 1
      %v1226 = vpop.permute.xlu0 %1225
      %1227 = vrot.lane.b32.xlu0 %v1191, 1
      %v1228 = vpop.permute.xlu0 %1227
      %1229 = vrot.lane.b32.xlu0 %v1192, 1
      %v1230 = vpop.permute.xlu0 %1229
      %v1239 = vmul.f32 %v1198, %v1216
      %v1240 = vmul.f32 %v1198, %v1218
      %v1241 = vmul.f32 %v1198, %v1220
      %v1242 = vmul.f32 %v1198, %v1222
      %v1243 = vmul.f32 %v1198, %v1224
      %v1244 = vmul.f32 %v1198, %v1226
      %v1245 = vmul.f32 %v1198, %v1228
      %v1246 = vmul.f32 %v1198, %v1230
      %1255 = vrot.lane.b32.xlu0 %v1239, 127
      %v1256 = vpop.permute.xlu0 %1255
      %1257 = vrot.lane.b32.xlu0 %v1240, 127
      %v1258 = vpop.permute.xlu0 %1257
      %1259 = vrot.lane.b32.xlu0 %v1241, 127
      %v1260 = vpop.permute.xlu0 %1259
      %1261 = vrot.lane.b32.xlu0 %v1242, 127
      %v1262 = vpop.permute.xlu0 %1261
      %1263 = vrot.lane.b32.xlu0 %v1243, 127
      %v1264 = vpop.permute.xlu0 %1263
      %1265 = vrot.lane.b32.xlu0 %v1244, 127
      %v1266 = vpop.permute.xlu0 %1265
      %1267 = vrot.lane.b32.xlu0 %v1245, 127
      %v1268 = vpop.permute.xlu0 %1267
      %1269 = vrot.lane.b32.xlu0 %v1246, 127
      %v1270 = vpop.permute.xlu0 %1269
      %v1279 = vadd.f32 %v1199, %v1256
      %v1280 = vadd.f32 %v1200, %v1258
      %v1281 = vadd.f32 %v1201, %v1260
      %v1282 = vadd.f32 %v1202, %v1262
      %v1283 = vadd.f32 %v1203, %v1264
      %v1284 = vadd.f32 %v1204, %v1266
      %v1285 = vadd.f32 %v1205, %v1268
      %v1286 = vadd.f32 %v1206, %v1270
      %1288 = vrot.lane.b32.xlu0 %v1198, 126
      %v1289 = vpop.permute.xlu0 %1288
      %v1291 = vadd.f32 %v1279, %v1289
      %v1292 = vadd.f32 %v1280, %v1289
      %v1293 = vadd.f32 %v1281, %v1289
      %v1294 = vadd.f32 %v1282, %v1289
      %v1295 = vadd.f32 %v1283, %v1289
      %v1296 = vadd.f32 %v1284, %v1289
      %v1297 = vadd.f32 %v1285, %v1289
      %v1298 = vadd.f32 %v1286, %v1289
      %1307 = vrot.lane.b32.xlu0 %v1177, 3
      %v1308 = vpop.permute.xlu0 %1307
      %1309 = vrot.lane.b32.xlu0 %v1178, 3
      %v1310 = vpop.permute.xlu0 %1309
      %1311 = vrot.lane.b32.xlu0 %v1179, 3
      %v1312 = vpop.permute.xlu0 %1311
      %1313 = vrot.lane.b32.xlu0 %v1180, 3
      %v1314 = vpop.permute.xlu0 %1313
      %1315 = vrot.lane.b32.xlu0 %v1181, 3
      %v1316 = vpop.permute.xlu0 %1315
      %1317 = vrot.lane.b32.xlu0 %v1182, 3
      %v1318 = vpop.permute.xlu0 %1317
      %1319 = vrot.lane.b32.xlu0 %v1183, 3
      %v1320 = vpop.permute.xlu0 %1319
      %1321 = vrot.lane.b32.xlu0 %v1184, 3
      %v1322 = vpop.permute.xlu0 %1321
      %v1331 = vmul.f32 %v1198, %v1308
      %v1332 = vmul.f32 %v1198, %v1310
      %v1333 = vmul.f32 %v1198, %v1312
      %v1334 = vmul.f32 %v1198, %v1314
      %v1335 = vmul.f32 %v1198, %v1316
      %v1336 = vmul.f32 %v1198, %v1318
      %v1337 = vmul.f32 %v1198, %v1320
      %v1338 = vmul.f32 %v1198, %v1322
      %1339 = vrot.lane.b32.xlu0 %v1185, 4
      %v1340 = vpop.permute.xlu0 %1339
      %1341 = vrot.lane.b32.xlu0 %v1186, 4
      %v1342 = vpop.permute.xlu0 %1341
      %1343 = vrot.lane.b32.xlu0 %v1187, 4
      %v1344 = vpop.permute.xlu0 %1343
      %1345 = vrot.lane.b32.xlu0 %v1188, 4
      %v1346 = vpop.permute.xlu0 %1345
      %1347 = vrot.lane.b32.xlu0 %v1189, 4
      %v1348 = vpop.permute.xlu0 %1347
      %1349 = vrot.lane.b32.xlu0 %v1190, 4
      %v1350 = vpop.permute.xlu0 %1349
      %1351 = vrot.lane.b32.xlu0 %v1191, 4
      %v1352 = vpop.permute.xlu0 %1351
      %1353 = vrot.lane.b32.xlu0 %v1192, 4
      %v1354 = vpop.permute.xlu0 %1353
      %v1363 = vmul.f32 %v1198, %v1340
      %v1364 = vmul.f32 %v1198, %v1342
      %v1365 = vmul.f32 %v1198, %v1344
      %v1366 = vmul.f32 %v1198, %v1346
      %v1367 = vmul.f32 %v1198, %v1348
      %v1368 = vmul.f32 %v1198, %v1350
      %v1369 = vmul.f32 %v1198, %v1352
      %v1370 = vmul.f32 %v1198, %v1354
      %1379 = vrot.lane.b32.xlu0 %v1363, 127
      %v1380 = vpop.permute.xlu0 %1379
      %1381 = vrot.lane.b32.xlu0 %v1364, 127
      %v1382 = vpop.permute.xlu0 %1381
      %1383 = vrot.lane.b32.xlu0 %v1365, 127
      %v1384 = vpop.permute.xlu0 %1383
      %1385 = vrot.lane.b32.xlu0 %v1366, 127
      %v1386 = vpop.permute.xlu0 %1385
      %1387 = vrot.lane.b32.xlu0 %v1367, 127
      %v1388 = vpop.permute.xlu0 %1387
      %1389 = vrot.lane.b32.xlu0 %v1368, 127
      %v1390 = vpop.permute.xlu0 %1389
      %1391 = vrot.lane.b32.xlu0 %v1369, 127
      %v1392 = vpop.permute.xlu0 %1391
      %1393 = vrot.lane.b32.xlu0 %v1370, 127
      %v1394 = vpop.permute.xlu0 %1393
      %v1403 = vadd.f32 %v1331, %v1380
      %v1404 = vadd.f32 %v1332, %v1382
      %v1405 = vadd.f32 %v1333, %v1384
      %v1406 = vadd.f32 %v1334, %v1386
      %v1407 = vadd.f32 %v1335, %v1388
      %v1408 = vadd.f32 %v1336, %v1390
      %v1409 = vadd.f32 %v1337, %v1392
      %v1410 = vadd.f32 %v1338, %v1394
      %v1411 = vadd.f32 %v1403, %v1289
      %v1412 = vadd.f32 %v1404, %v1289
      %v1413 = vadd.f32 %v1405, %v1289
      %v1414 = vadd.f32 %v1406, %v1289
      %v1415 = vadd.f32 %v1407, %v1289
      %v1416 = vadd.f32 %v1408, %v1289
      %v1417 = vadd.f32 %v1409, %v1289
      %v1418 = vadd.f32 %v1410, %v1289
      %v1419 = vadd.f32 %v1291, 1.0
      %v1420 = vadd.f32 %v1292, 1.0
      %v1421 = vadd.f32 %v1293, 1.0
      %v1422 = vadd.f32 %v1294, 1.0
      %v1423 = vadd.f32 %v1295, 1.0
      %v1424 = vadd.f32 %v1296, 1.0
      %v1425 = vadd.f32 %v1297, 1.0
      %v1426 = vadd.f32 %v1298, 1.0
      %v1427 = vmul.f32 %v1419, 8.0
      %v1428 = vmul.f32 %v1420, 8.0
      %v1429 = vmul.f32 %v1421, 8.0
      %v1430 = vmul.f32 %v1422, 8.0
      %v1431 = vmul.f32 %v1423, 8.0
      %v1432 = vmul.f32 %v1424, 8.0
      %v1433 = vmul.f32 %v1425, 8.0
      %v1434 = vmul.f32 %v1426, 8.0
      %v1435 = vsub.f32 %v1427, 1.0
      %v1436 = vsub.f32 %v1428, 1.0
      %v1437 = vsub.f32 %v1429, 1.0
      %v1438 = vsub.f32 %v1430, 1.0
      %v1439 = vsub.f32 %v1431, 1.0
      %v1440 = vsub.f32 %v1432, 1.0
      %v1441 = vsub.f32 %v1433, 1.0
      %v1442 = vsub.f32 %v1434, 1.0
      %v1443 = vmul.f32 %v1435, 0.5
      %v1444 = vmul.f32 %v1436, 0.5
      %v1445 = vmul.f32 %v1437, 0.5
      %v1446 = vmul.f32 %v1438, 0.5
      %v1447 = vmul.f32 %v1439, 0.5
      %v1448 = vmul.f32 %v1440, 0.5
      %v1449 = vmul.f32 %v1441, 0.5
      %v1450 = vmul.f32 %v1442, 0.5
      %v1451 = vadd.f32 %v1411, 1.0
      %v1452 = vadd.f32 %v1412, 1.0
      %v1453 = vadd.f32 %v1413, 1.0
      %v1454 = vadd.f32 %v1414, 1.0
      %v1455 = vadd.f32 %v1415, 1.0
      %v1456 = vadd.f32 %v1416, 1.0
      %v1457 = vadd.f32 %v1417, 1.0
      %v1458 = vadd.f32 %v1418, 1.0
      %v1459 = vmul.f32 %v1451, 8.0
      %v1460 = vmul.f32 %v1452, 8.0
      %v1461 = vmul.f32 %v1453, 8.0
      %v1462 = vmul.f32 %v1454, 8.0
      %v1463 = vmul.f32 %v1455, 8.0
      %v1464 = vmul.f32 %v1456, 8.0
      %v1465 = vmul.f32 %v1457, 8.0
      %v1466 = vmul.f32 %v1458, 8.0
      %v1467 = vsub.f32 %v1459, 1.0
      %v1468 = vsub.f32 %v1460, 1.0
      %v1469 = vsub.f32 %v1461, 1.0
      %v1470 = vsub.f32 %v1462, 1.0
      %v1471 = vsub.f32 %v1463, 1.0
      %v1472 = vsub.f32 %v1464, 1.0
      %v1473 = vsub.f32 %v1465, 1.0
      %v1474 = vsub.f32 %v1466, 1.0
      %v1475 = vmul.f32 %v1467, 0.5
      %v1476 = vmul.f32 %v1468, 0.5
      %v1477 = vmul.f32 %v1469, 0.5
      %v1478 = vmul.f32 %v1470, 0.5
      %v1479 = vmul.f32 %v1471, 0.5
      %v1480 = vmul.f32 %v1472, 0.5
      %v1481 = vmul.f32 %v1473, 0.5
      %v1482 = vmul.f32 %v1474, 0.5
      %v1483 = vfloor.f32 %v1443
      %v1484 = vfloor.f32 %v1444
      %v1485 = vfloor.f32 %v1445
      %v1486 = vfloor.f32 %v1446
      %v1487 = vfloor.f32 %v1447
      %v1488 = vfloor.f32 %v1448
      %v1489 = vfloor.f32 %v1449
      %v1490 = vfloor.f32 %v1450
      %v1491 = vfloor.f32 %v1475
      %v1492 = vfloor.f32 %v1476
      %v1493 = vfloor.f32 %v1477
      %v1494 = vfloor.f32 %v1478
      %v1495 = vfloor.f32 %v1479
      %v1496 = vfloor.f32 %v1480
      %v1497 = vfloor.f32 %v1481
      %v1498 = vfloor.f32 %v1482
      %v1499 = vsub.f32 %v1443, %v1483
      %v1500 = vsub.f32 %v1444, %v1484
      %v1501 = vsub.f32 %v1445, %v1485
      %v1502 = vsub.f32 %v1446, %v1486
      %v1503 = vsub.f32 %v1447, %v1487
      %v1504 = vsub.f32 %v1448, %v1488
      %v1505 = vsub.f32 %v1449, %v1489
      %v1506 = vsub.f32 %v1450, %v1490
      %v1507 = vsub.f32 1.0, %v1499
      %v1508 = vsub.f32 1.0, %v1500
      %v1509 = vsub.f32 1.0, %v1501
      %v1510 = vsub.f32 1.0, %v1502
      %v1511 = vsub.f32 1.0, %v1503
      %v1512 = vsub.f32 1.0, %v1504
      %v1513 = vsub.f32 1.0, %v1505
      %v1514 = vsub.f32 1.0, %v1506
      %v1515 = vsub.f32 %v1475, %v1491
      %v1516 = vsub.f32 %v1476, %v1492
      %v1517 = vsub.f32 %v1477, %v1493
      %v1518 = vsub.f32 %v1478, %v1494
      %v1519 = vsub.f32 %v1479, %v1495
      %v1520 = vsub.f32 %v1480, %v1496
      %v1521 = vsub.f32 %v1481, %v1497
      %v1522 = vsub.f32 %v1482, %v1498
      %v1523 = vsub.f32 1.0, %v1515
      %v1524 = vsub.f32 1.0, %v1516
      %v1525 = vsub.f32 1.0, %v1517
      %v1526 = vsub.f32 1.0, %v1518
      %v1527 = vsub.f32 1.0, %v1519
      %v1528 = vsub.f32 1.0, %v1520
      %v1529 = vsub.f32 1.0, %v1521
      %v1530 = vsub.f32 1.0, %v1522
      %vm1531 = vcmp.ge.f32.partialorder %v1483, 0.0
      %vm1532 = vcmp.ge.f32.partialorder %v1484, 0.0
      %vm1533 = vcmp.ge.f32.partialorder %v1485, 0.0
      %vm1534 = vcmp.ge.f32.partialorder %v1486, 0.0
      %vm1535 = vcmp.ge.f32.partialorder %v1487, 0.0
      %vm1536 = vcmp.ge.f32.partialorder %v1488, 0.0
      %vm1537 = vcmp.ge.f32.partialorder %v1489, 0.0
      %vm1538 = vcmp.ge.f32.partialorder %v1490, 0.0
      %vm1539 = vcmp.le.f32.partialorder %v1483, 7.0
      %vm1540 = vcmp.le.f32.partialorder %v1484, 7.0
      %vm1541 = vcmp.le.f32.partialorder %v1485, 7.0
      %vm1542 = vcmp.le.f32.partialorder %v1486, 7.0
      %vm1543 = vcmp.le.f32.partialorder %v1487, 7.0
      %vm1544 = vcmp.le.f32.partialorder %v1488, 7.0
      %vm1545 = vcmp.le.f32.partialorder %v1489, 7.0
      %vm1546 = vcmp.le.f32.partialorder %v1490, 7.0
      %vm1547 = vmand %vm1531, %vm1539
      %vm1548 = vmand %vm1532, %vm1540
      %vm1549 = vmand %vm1533, %vm1541
      %vm1550 = vmand %vm1534, %vm1542
      %vm1551 = vmand %vm1535, %vm1543
      %vm1552 = vmand %vm1536, %vm1544
      %vm1553 = vmand %vm1537, %vm1545
      %vm1554 = vmand %vm1538, %vm1546
      %vm1555 = vcmp.ge.f32.partialorder %v1483, -1.0
      %vm1556 = vcmp.ge.f32.partialorder %v1484, -1.0
      %vm1557 = vcmp.ge.f32.partialorder %v1485, -1.0
      %vm1558 = vcmp.ge.f32.partialorder %v1486, -1.0
      %vm1559 = vcmp.ge.f32.partialorder %v1487, -1.0
      %vm1560 = vcmp.ge.f32.partialorder %v1488, -1.0
      %vm1561 = vcmp.ge.f32.partialorder %v1489, -1.0
      %vm1562 = vcmp.ge.f32.partialorder %v1490, -1.0
      %vm1563 = vcmp.le.f32.partialorder %v1483, 6.0
      %vm1564 = vcmp.le.f32.partialorder %v1484, 6.0
      %vm1565 = vcmp.le.f32.partialorder %v1485, 6.0
      %vm1566 = vcmp.le.f32.partialorder %v1486, 6.0
      %vm1567 = vcmp.le.f32.partialorder %v1487, 6.0
      %vm1568 = vcmp.le.f32.partialorder %v1488, 6.0
      %vm1569 = vcmp.le.f32.partialorder %v1489, 6.0
      %vm1570 = vcmp.le.f32.partialorder %v1490, 6.0
      %vm1571 = vmand %vm1555, %vm1563
      %vm1572 = vmand %vm1556, %vm1564
      %vm1573 = vmand %vm1557, %vm1565
      %vm1574 = vmand %vm1558, %vm1566
      %vm1575 = vmand %vm1559, %vm1567
      %vm1576 = vmand %vm1560, %vm1568
      %vm1577 = vmand %vm1561, %vm1569
      %vm1578 = vmand %vm1562, %vm1570
      %vm1579 = vcmp.ge.f32.partialorder %v1491, 0.0
      %vm1580 = vcmp.ge.f32.partialorder %v1492, 0.0
      %vm1581 = vcmp.ge.f32.partialorder %v1493, 0.0
      %vm1582 = vcmp.ge.f32.partialorder %v1494, 0.0
      %vm1583 = vcmp.ge.f32.partialorder %v1495, 0.0
      %vm1584 = vcmp.ge.f32.partialorder %v1496, 0.0
      %vm1585 = vcmp.ge.f32.partialorder %v1497, 0.0
      %vm1586 = vcmp.ge.f32.partialorder %v1498, 0.0
      %vm1587 = vcmp.le.f32.partialorder %v1491, 7.0
      %vm1588 = vcmp.le.f32.partialorder %v1492, 7.0
      %vm1589 = vcmp.le.f32.partialorder %v1493, 7.0
      %vm1590 = vcmp.le.f32.partialorder %v1494, 7.0
      %vm1591 = vcmp.le.f32.partialorder %v1495, 7.0
      %vm1592 = vcmp.le.f32.partialorder %v1496, 7.0
      %vm1593 = vcmp.le.f32.partialorder %v1497, 7.0
      %vm1594 = vcmp.le.f32.partialorder %v1498, 7.0
      %vm1595 = vmand %vm1579, %vm1587
      %vm1596 = vmand %vm1580, %vm1588
      %vm1597 = vmand %vm1581, %vm1589
      %vm1598 = vmand %vm1582, %vm1590
      %vm1599 = vmand %vm1583, %vm1591
      %vm1600 = vmand %vm1584, %vm1592
      %vm1601 = vmand %vm1585, %vm1593
      %vm1602 = vmand %vm1586, %vm1594
      %vm1603 = vcmp.ge.f32.partialorder %v1491, -1.0
      %vm1604 = vcmp.ge.f32.partialorder %v1492, -1.0
      %vm1605 = vcmp.ge.f32.partialorder %v1493, -1.0
      %vm1606 = vcmp.ge.f32.partialorder %v1494, -1.0
      %vm1607 = vcmp.ge.f32.partialorder %v1495, -1.0
      %vm1608 = vcmp.ge.f32.partialorder %v1496, -1.0
      %vm1609 = vcmp.ge.f32.partialorder %v1497, -1.0
      %vm1610 = vcmp.ge.f32.partialorder %v1498, -1.0
      %vm1611 = vcmp.le.f32.partialorder %v1491, 6.0
      %vm1612 = vcmp.le.f32.partialorder %v1492, 6.0
      %vm1613 = vcmp.le.f32.partialorder %v1493, 6.0
      %vm1614 = vcmp.le.f32.partialorder %v1494, 6.0
      %vm1615 = vcmp.le.f32.partialorder %v1495, 6.0
      %vm1616 = vcmp.le.f32.partialorder %v1496, 6.0
      %vm1617 = vcmp.le.f32.partialorder %v1497, 6.0
      %vm1618 = vcmp.le.f32.partialorder %v1498, 6.0
      %vm1619 = vmand %vm1603, %vm1611
      %vm1620 = vmand %vm1604, %vm1612
      %vm1621 = vmand %vm1605, %vm1613
      %vm1622 = vmand %vm1606, %vm1614
      %vm1623 = vmand %vm1607, %vm1615
      %vm1624 = vmand %vm1608, %vm1616
      %vm1625 = vmand %vm1609, %vm1617
      %vm1626 = vmand %vm1610, %vm1618
      %v1627 = vsel %vm1595, 1, 0
      %v1628 = vsel %vm1596, 1, 0
      %v1629 = vsel %vm1597, 1, 0
      %v1630 = vsel %vm1598, 1, 0
      %v1631 = vsel %vm1599, 1, 0
      %v1632 = vsel %vm1600, 1, 0
      %v1633 = vsel %vm1601, 1, 0
      %v1634 = vsel %vm1602, 1, 0
      %1635 = vrot.lane.b32.xlu0 %v1627, 125
      %v1636 = vpop.permute.xlu0 %1635
      %1637 = vrot.lane.b32.xlu0 %v1628, 125
      %v1638 = vpop.permute.xlu0 %1637
      %1639 = vrot.lane.b32.xlu0 %v1629, 125
      %v1640 = vpop.permute.xlu0 %1639
      %1641 = vrot.lane.b32.xlu0 %v1630, 125
      %v1642 = vpop.permute.xlu0 %1641
      %1643 = vrot.lane.b32.xlu0 %v1631, 125
      %v1644 = vpop.permute.xlu0 %1643
      %1645 = vrot.lane.b32.xlu0 %v1632, 125
      %v1646 = vpop.permute.xlu0 %1645
      %1647 = vrot.lane.b32.xlu0 %v1633, 125
      %v1648 = vpop.permute.xlu0 %1647
      %1649 = vrot.lane.b32.xlu0 %v1634, 125
      %v1650 = vpop.permute.xlu0 %1649
      %vm1651 = vcmp.ne.s32.totalorder %v1636, 0
      %vm1652 = vcmp.ne.s32.totalorder %v1638, 0
      %vm1653 = vcmp.ne.s32.totalorder %v1640, 0
      %vm1654 = vcmp.ne.s32.totalorder %v1642, 0
      %vm1655 = vcmp.ne.s32.totalorder %v1644, 0
      %vm1656 = vcmp.ne.s32.totalorder %v1646, 0
      %vm1657 = vcmp.ne.s32.totalorder %v1648, 0
      %vm1658 = vcmp.ne.s32.totalorder %v1650, 0
      %vm1659 = vmand %vm1547, %vm1651
      %vm1660 = vmand %vm1548, %vm1652
      %vm1661 = vmand %vm1549, %vm1653
      %vm1662 = vmand %vm1550, %vm1654
      %vm1663 = vmand %vm1551, %vm1655
      %vm1664 = vmand %vm1552, %vm1656
      %vm1665 = vmand %vm1553, %vm1657
      %vm1666 = vmand %vm1554, %vm1658
      %1675 = vrot.lane.b32.xlu0 %v1507, 3
      %v1676 = vpop.permute.xlu0 %1675
      %1677 = vrot.lane.b32.xlu0 %v1508, 3
      %v1678 = vpop.permute.xlu0 %1677
      %1679 = vrot.lane.b32.xlu0 %v1509, 3
      %v1680 = vpop.permute.xlu0 %1679
      %1681 = vrot.lane.b32.xlu0 %v1510, 3
      %v1682 = vpop.permute.xlu0 %1681
      %1683 = vrot.lane.b32.xlu0 %v1511, 3
      %v1684 = vpop.permute.xlu0 %1683
      %1685 = vrot.lane.b32.xlu0 %v1512, 3
      %v1686 = vpop.permute.xlu0 %1685
      %1687 = vrot.lane.b32.xlu0 %v1513, 3
      %v1688 = vpop.permute.xlu0 %1687
      %1689 = vrot.lane.b32.xlu0 %v1514, 3
      %v1690 = vpop.permute.xlu0 %1689
      %v1699 = vmul.f32 %v1523, %v1676
      %v1700 = vmul.f32 %v1524, %v1678
      %v1701 = vmul.f32 %v1525, %v1680
      %v1702 = vmul.f32 %v1526, %v1682
      %v1703 = vmul.f32 %v1527, %v1684
      %v1704 = vmul.f32 %v1528, %v1686
      %v1705 = vmul.f32 %v1529, %v1688
      %v1706 = vmul.f32 %v1530, %v1690
      %1715 = vrot.lane.b32.xlu0 %v1699, 125
      %v1716 = vpop.permute.xlu0 %1715
      %1717 = vrot.lane.b32.xlu0 %v1700, 125
      %v1718 = vpop.permute.xlu0 %1717
      %1719 = vrot.lane.b32.xlu0 %v1701, 125
      %v1720 = vpop.permute.xlu0 %1719
      %1721 = vrot.lane.b32.xlu0 %v1702, 125
      %v1722 = vpop.permute.xlu0 %1721
      %1723 = vrot.lane.b32.xlu0 %v1703, 125
      %v1724 = vpop.permute.xlu0 %1723
      %1725 = vrot.lane.b32.xlu0 %v1704, 125
      %v1726 = vpop.permute.xlu0 %1725
      %1727 = vrot.lane.b32.xlu0 %v1705, 125
      %v1728 = vpop.permute.xlu0 %1727
      %1729 = vrot.lane.b32.xlu0 %v1706, 125
      %v1730 = vpop.permute.xlu0 %1729
      %v1739 = vsel %vm1659, %v1716, 0.0
      %v1740 = vsel %vm1660, %v1718, 0.0
      %v1741 = vsel %vm1661, %v1720, 0.0
      %v1742 = vsel %vm1662, %v1722, 0.0
      %v1743 = vsel %vm1663, %v1724, 0.0
      %v1744 = vsel %vm1664, %v1726, 0.0
      %v1745 = vsel %vm1665, %v1728, 0.0
      %v1746 = vsel %vm1666, %v1730, 0.0
      %vm1747 = vmand %vm1571, %vm1651
      %vm1748 = vmand %vm1572, %vm1652
      %vm1749 = vmand %vm1573, %vm1653
      %vm1750 = vmand %vm1574, %vm1654
      %vm1751 = vmand %vm1575, %vm1655
      %vm1752 = vmand %vm1576, %vm1656
      %vm1753 = vmand %vm1577, %vm1657
      %vm1754 = vmand %vm1578, %vm1658
      %1763 = vrot.lane.b32.xlu0 %v1499, 3
      %v1764 = vpop.permute.xlu0 %1763
      %1765 = vrot.lane.b32.xlu0 %v1500, 3
      %v1766 = vpop.permute.xlu0 %1765
      %1767 = vrot.lane.b32.xlu0 %v1501, 3
      %v1768 = vpop.permute.xlu0 %1767
      %1769 = vrot.lane.b32.xlu0 %v1502, 3
      %v1770 = vpop.permute.xlu0 %1769
      %1771 = vrot.lane.b32.xlu0 %v1503, 3
      %v1772 = vpop.permute.xlu0 %1771
      %1773 = vrot.lane.b32.xlu0 %v1504, 3
      %v1774 = vpop.permute.xlu0 %1773
      %1775 = vrot.lane.b32.xlu0 %v1505, 3
      %v1776 = vpop.permute.xlu0 %1775
      %1777 = vrot.lane.b32.xlu0 %v1506, 3
      %v1778 = vpop.permute.xlu0 %1777
      %v1787 = vmul.f32 %v1523, %v1764
      %v1788 = vmul.f32 %v1524, %v1766
      %v1789 = vmul.f32 %v1525, %v1768
      %v1790 = vmul.f32 %v1526, %v1770
      %v1791 = vmul.f32 %v1527, %v1772
      %v1792 = vmul.f32 %v1528, %v1774
      %v1793 = vmul.f32 %v1529, %v1776
      %v1794 = vmul.f32 %v1530, %v1778
      %1803 = vrot.lane.b32.xlu0 %v1787, 125
      %v1804 = vpop.permute.xlu0 %1803
      %1805 = vrot.lane.b32.xlu0 %v1788, 125
      %v1806 = vpop.permute.xlu0 %1805
      %1807 = vrot.lane.b32.xlu0 %v1789, 125
      %v1808 = vpop.permute.xlu0 %1807
      %1809 = vrot.lane.b32.xlu0 %v1790, 125
      %v1810 = vpop.permute.xlu0 %1809
      %1811 = vrot.lane.b32.xlu0 %v1791, 125
      %v1812 = vpop.permute.xlu0 %1811
      %1813 = vrot.lane.b32.xlu0 %v1792, 125
      %v1814 = vpop.permute.xlu0 %1813
      %1815 = vrot.lane.b32.xlu0 %v1793, 125
      %v1816 = vpop.permute.xlu0 %1815
      %1817 = vrot.lane.b32.xlu0 %v1794, 125
      %v1818 = vpop.permute.xlu0 %1817
      %v1827 = vsel %vm1747, %v1804, 0.0
      %v1828 = vsel %vm1748, %v1806, 0.0
      %v1829 = vsel %vm1749, %v1808, 0.0
      %v1830 = vsel %vm1750, %v1810, 0.0
      %v1831 = vsel %vm1751, %v1812, 0.0
      %v1832 = vsel %vm1752, %v1814, 0.0
      %v1833 = vsel %vm1753, %v1816, 0.0
      %v1834 = vsel %vm1754, %v1818, 0.0
      %v1835 = vsel %vm1619, 1, 0
      %v1836 = vsel %vm1620, 1, 0
      %v1837 = vsel %vm1621, 1, 0
      %v1838 = vsel %vm1622, 1, 0
      %v1839 = vsel %vm1623, 1, 0
      %v1840 = vsel %vm1624, 1, 0
      %v1841 = vsel %vm1625, 1, 0
      %v1842 = vsel %vm1626, 1, 0
      %1843 = vrot.lane.b32.xlu0 %v1835, 125
      %v1844 = vpop.permute.xlu0 %1843
      %1845 = vrot.lane.b32.xlu0 %v1836, 125
      %v1846 = vpop.permute.xlu0 %1845
      %1847 = vrot.lane.b32.xlu0 %v1837, 125
      %v1848 = vpop.permute.xlu0 %1847
      %1849 = vrot.lane.b32.xlu0 %v1838, 125
      %v1850 = vpop.permute.xlu0 %1849
      %1851 = vrot.lane.b32.xlu0 %v1839, 125
      %v1852 = vpop.permute.xlu0 %1851
      %1853 = vrot.lane.b32.xlu0 %v1840, 125
      %v1854 = vpop.permute.xlu0 %1853
      %1855 = vrot.lane.b32.xlu0 %v1841, 125
      %v1856 = vpop.permute.xlu0 %1855
      %1857 = vrot.lane.b32.xlu0 %v1842, 125
      %v1858 = vpop.permute.xlu0 %1857
      %vm1859 = vcmp.ne.s32.totalorder %v1844, 0
      %vm1860 = vcmp.ne.s32.totalorder %v1846, 0
      %vm1861 = vcmp.ne.s32.totalorder %v1848, 0
      %vm1862 = vcmp.ne.s32.totalorder %v1850, 0
      %vm1863 = vcmp.ne.s32.totalorder %v1852, 0
      %vm1864 = vcmp.ne.s32.totalorder %v1854, 0
      %vm1865 = vcmp.ne.s32.totalorder %v1856, 0
      %vm1866 = vcmp.ne.s32.totalorder %v1858, 0
      %vm1867 = vmand %vm1547, %vm1859
      %vm1868 = vmand %vm1548, %vm1860
      %vm1869 = vmand %vm1549, %vm1861
      %vm1870 = vmand %vm1550, %vm1862
      %vm1871 = vmand %vm1551, %vm1863
      %vm1872 = vmand %vm1552, %vm1864
      %vm1873 = vmand %vm1553, %vm1865
      %vm1874 = vmand %vm1554, %vm1866
      %v1875 = vmul.f32 %v1515, %v1676
      %v1876 = vmul.f32 %v1516, %v1678
      %v1877 = vmul.f32 %v1517, %v1680
      %v1878 = vmul.f32 %v1518, %v1682
      %v1879 = vmul.f32 %v1519, %v1684
      %v1880 = vmul.f32 %v1520, %v1686
      %v1881 = vmul.f32 %v1521, %v1688
      %v1882 = vmul.f32 %v1522, %v1690
      %1891 = vrot.lane.b32.xlu0 %v1875, 125
      %v1892 = vpop.permute.xlu0 %1891
      %1893 = vrot.lane.b32.xlu0 %v1876, 125
      %v1894 = vpop.permute.xlu0 %1893
      %1895 = vrot.lane.b32.xlu0 %v1877, 125
      %v1896 = vpop.permute.xlu0 %1895
      %1897 = vrot.lane.b32.xlu0 %v1878, 125
      %v1898 = vpop.permute.xlu0 %1897
      %1899 = vrot.lane.b32.xlu0 %v1879, 125
      %v1900 = vpop.permute.xlu0 %1899
      %1901 = vrot.lane.b32.xlu0 %v1880, 125
      %v1902 = vpop.permute.xlu0 %1901
      %1903 = vrot.lane.b32.xlu0 %v1881, 125
      %v1904 = vpop.permute.xlu0 %1903
      %1905 = vrot.lane.b32.xlu0 %v1882, 125
      %v1906 = vpop.permute.xlu0 %1905
      %v1915 = vsel %vm1867, %v1892, 0.0
      %v1916 = vsel %vm1868, %v1894, 0.0
      %v1917 = vsel %vm1869, %v1896, 0.0
      %v1918 = vsel %vm1870, %v1898, 0.0
      %v1919 = vsel %vm1871, %v1900, 0.0
      %v1920 = vsel %vm1872, %v1902, 0.0
      %v1921 = vsel %vm1873, %v1904, 0.0
      %v1922 = vsel %vm1874, %v1906, 0.0
      %vm1923 = vmand %vm1571, %vm1859
      %vm1924 = vmand %vm1572, %vm1860
      %vm1925 = vmand %vm1573, %vm1861
      %vm1926 = vmand %vm1574, %vm1862
      %vm1927 = vmand %vm1575, %vm1863
      %vm1928 = vmand %vm1576, %vm1864
      %vm1929 = vmand %vm1577, %vm1865
      %vm1930 = vmand %vm1578, %vm1866
      %v1931 = vmul.f32 %v1515, %v1764
      %v1932 = vmul.f32 %v1516, %v1766
      %v1933 = vmul.f32 %v1517, %v1768
      %v1934 = vmul.f32 %v1518, %v1770
      %v1935 = vmul.f32 %v1519, %v1772
      %v1936 = vmul.f32 %v1520, %v1774
      %v1937 = vmul.f32 %v1521, %v1776
      %v1938 = vmul.f32 %v1522, %v1778
      %1947 = vrot.lane.b32.xlu0 %v1931, 125
      %v1948 = vpop.permute.xlu0 %1947
      %1949 = vrot.lane.b32.xlu0 %v1932, 125
      %v1950 = vpop.permute.xlu0 %1949
      %1951 = vrot.lane.b32.xlu0 %v1933, 125
      %v1952 = vpop.permute.xlu0 %1951
      %1953 = vrot.lane.b32.xlu0 %v1934, 125
      %v1954 = vpop.permute.xlu0 %1953
      %1955 = vrot.lane.b32.xlu0 %v1935, 125
      %v1956 = vpop.permute.xlu0 %1955
      %1957 = vrot.lane.b32.xlu0 %v1936, 125
      %v1958 = vpop.permute.xlu0 %1957
      %1959 = vrot.lane.b32.xlu0 %v1937, 125
      %v1960 = vpop.permute.xlu0 %1959
      %1961 = vrot.lane.b32.xlu0 %v1938, 125
      %v1962 = vpop.permute.xlu0 %1961
      %v1971 = vsel %vm1923, %v1948, 0.0
      %v1972 = vsel %vm1924, %v1950, 0.0
      %v1973 = vsel %vm1925, %v1952, 0.0
      %v1974 = vsel %vm1926, %v1954, 0.0
      %v1975 = vsel %vm1927, %v1956, 0.0
      %v1976 = vsel %vm1928, %v1958, 0.0
      %v1977 = vsel %vm1929, %v1960, 0.0
      %v1978 = vsel %vm1930, %v1962, 0.0
      %v1979 = vcvt.f32.s32.to.zero.pseudo %v1491
      %v1980 = vcvt.f32.s32.to.zero.pseudo %v1492
      %v1981 = vcvt.f32.s32.to.zero.pseudo %v1493
      %v1982 = vcvt.f32.s32.to.zero.pseudo %v1494
      %v1983 = vcvt.f32.s32.to.zero.pseudo %v1495
      %v1984 = vcvt.f32.s32.to.zero.pseudo %v1496
      %v1985 = vcvt.f32.s32.to.zero.pseudo %v1497
      %v1986 = vcvt.f32.s32.to.zero.pseudo %v1498
      %v1987 = vmul.u32 %v1979, 8
      %v1988 = vmul.u32 %v1980, 8
      %v1989 = vmul.u32 %v1981, 8
      %v1990 = vmul.u32 %v1982, 8
      %v1991 = vmul.u32 %v1983, 8
      %v1992 = vmul.u32 %v1984, 8
      %v1993 = vmul.u32 %v1985, 8
      %v1994 = vmul.u32 %v1986, 8
      %v1995 = vcvt.f32.s32.to.zero.pseudo %v1483
      %v1996 = vcvt.f32.s32.to.zero.pseudo %v1484
      %v1997 = vcvt.f32.s32.to.zero.pseudo %v1485
      %v1998 = vcvt.f32.s32.to.zero.pseudo %v1486
      %v1999 = vcvt.f32.s32.to.zero.pseudo %v1487
      %v2000 = vcvt.f32.s32.to.zero.pseudo %v1488
      %v2001 = vcvt.f32.s32.to.zero.pseudo %v1489
      %v2002 = vcvt.f32.s32.to.zero.pseudo %v1490
      %2003 = vrot.lane.b32.xlu0 %v1995, 3
      %v2004 = vpop.permute.xlu0 %2003
      %2005 = vrot.lane.b32.xlu0 %v1996, 3
      %v2006 = vpop.permute.xlu0 %2005
      %2007 = vrot.lane.b32.xlu0 %v1997, 3
      %v2008 = vpop.permute.xlu0 %2007
      %2009 = vrot.lane.b32.xlu0 %v1998, 3
      %v2010 = vpop.permute.xlu0 %2009
      %2011 = vrot.lane.b32.xlu0 %v1999, 3
      %v2012 = vpop.permute.xlu0 %2011
      %2013 = vrot.lane.b32.xlu0 %v2000, 3
      %v2014 = vpop.permute.xlu0 %2013
      %2015 = vrot.lane.b32.xlu0 %v2001, 3
      %v2016 = vpop.permute.xlu0 %2015
      %2017 = vrot.lane.b32.xlu0 %v2002, 3
      %v2018 = vpop.permute.xlu0 %2017
      %v2019 = vadd.s32 %v1987, %v2004
      %v2020 = vadd.s32 %v1988, %v2006
      %v2021 = vadd.s32 %v1989, %v2008
      %v2022 = vadd.s32 %v1990, %v2010
      %v2023 = vadd.s32 %v1991, %v2012
      %v2024 = vadd.s32 %v1992, %v2014
      %v2025 = vadd.s32 %v1993, %v2016
      %v2026 = vadd.s32 %v1994, %v2018
      %2027 = vset.pattern.permute.xlu0 3
      %2028 = vperm.xlu0 %2027, %v2019
      %v2029 = vpop.permute.xlu0 %2028
      %2030 = vset.pattern.permute.xlu0 3
      %2031 = vperm.xlu0 %2030, %v2020
      %v2032 = vpop.permute.xlu0 %2031
      %2033 = vset.pattern.permute.xlu0 3
      %2034 = vperm.xlu0 %2033, %v2021
      %v2035 = vpop.permute.xlu0 %2034
      %2036 = vset.pattern.permute.xlu0 3
      %2037 = vperm.xlu0 %2036, %v2022
      %v2038 = vpop.permute.xlu0 %2037
      %2039 = vset.pattern.permute.xlu0 3
      %2040 = vperm.xlu0 %2039, %v2023
      %v2041 = vpop.permute.xlu0 %2040
      %2042 = vset.pattern.permute.xlu0 3
      %2043 = vperm.xlu0 %2042, %v2024
      %v2044 = vpop.permute.xlu0 %2043
      %2045 = vset.pattern.permute.xlu0 3
      %2046 = vperm.xlu0 %2045, %v2025
      %v2047 = vpop.permute.xlu0 %2046
      %2048 = vset.pattern.permute.xlu0 3
      %2049 = vperm.xlu0 %2048, %v2026
      %v2050 = vpop.permute.xlu0 %2049
      %v2051 = vsub.s32 %v1194, %v2029
      %v2052 = vsub.s32 %v1194, %v2032
      %v2053 = vsub.s32 %v1194, %v2035
      %v2054 = vsub.s32 %v1194, %v2038
      %v2055 = vsub.s32 %v1194, %v2041
      %v2056 = vsub.s32 %v1194, %v2044
      %v2057 = vsub.s32 %v1194, %v2047
      %v2058 = vsub.s32 %v1194, %v2050
      %vm2059 = vcmp.eq.s32.totalorder %v2051, 0
      %vm2060 = vcmp.eq.s32.totalorder %v2052, 0
      %vm2061 = vcmp.eq.s32.totalorder %v2053, 0
      %vm2062 = vcmp.eq.s32.totalorder %v2054, 0
      %vm2063 = vcmp.eq.s32.totalorder %v2055, 0
      %vm2064 = vcmp.eq.s32.totalorder %v2056, 0
      %vm2065 = vcmp.eq.s32.totalorder %v2057, 0
      %vm2066 = vcmp.eq.s32.totalorder %v2058, 0
      %2068 = vset.pattern.permute.xlu0 0
      %2069 = vperm.xlu0 %2068, %v1739
      %v2070 = vpop.permute.xlu0 %2069
      %2073 = vset.pattern.permute.xlu0 0
      %2074 = vperm.xlu0 %2073, %v1740
      %v2075 = vpop.permute.xlu0 %2074
      %2078 = vset.pattern.permute.xlu0 0
      %2079 = vperm.xlu0 %2078, %v1741
      %v2080 = vpop.permute.xlu0 %2079
      %2083 = vset.pattern.permute.xlu0 0
      %2084 = vperm.xlu0 %2083, %v1742
      %v2085 = vpop.permute.xlu0 %2084
      %2088 = vset.pattern.permute.xlu0 0
      %2089 = vperm.xlu0 %2088, %v1743
      %v2090 = vpop.permute.xlu0 %2089
      %2093 = vset.pattern.permute.xlu0 0
      %2094 = vperm.xlu0 %2093, %v1744
      %v2095 = vpop.permute.xlu0 %2094
      %2098 = vset.pattern.permute.xlu0 0
      %2099 = vperm.xlu0 %2098, %v1745
      %v2100 = vpop.permute.xlu0 %2099
      %2103 = vset.pattern.permute.xlu0 0
      %2104 = vperm.xlu0 %2103, %v1746
      %v2105 = vpop.permute.xlu0 %2104
      %v2107 = vsel %vm2059, %v2070, 0.0
      %v2108 = vsel %vm2060, %v2075, 0.0
      %v2109 = vsel %vm2061, %v2080, 0.0
      %v2110 = vsel %vm2062, %v2085, 0.0
      %v2111 = vsel %vm2063, %v2090, 0.0
      %v2112 = vsel %vm2064, %v2095, 0.0
      %v2113 = vsel %vm2065, %v2100, 0.0
      %v2114 = vsel %vm2066, %v2105, 0.0
      %vm2115 = vcmp.eq.s32.totalorder %v2051, 1
      %vm2116 = vcmp.eq.s32.totalorder %v2052, 1
      %vm2117 = vcmp.eq.s32.totalorder %v2053, 1
      %vm2118 = vcmp.eq.s32.totalorder %v2054, 1
      %vm2119 = vcmp.eq.s32.totalorder %v2055, 1
      %vm2120 = vcmp.eq.s32.totalorder %v2056, 1
      %vm2121 = vcmp.eq.s32.totalorder %v2057, 1
      %vm2122 = vcmp.eq.s32.totalorder %v2058, 1
      %2124 = vset.pattern.permute.xlu0 0
      %2125 = vperm.xlu0 %2124, %v1827
      %v2126 = vpop.permute.xlu0 %2125
      %2129 = vset.pattern.permute.xlu0 0
      %2130 = vperm.xlu0 %2129, %v1828
      %v2131 = vpop.permute.xlu0 %2130
      %2134 = vset.pattern.permute.xlu0 0
      %2135 = vperm.xlu0 %2134, %v1829
      %v2136 = vpop.permute.xlu0 %2135
      %2139 = vset.pattern.permute.xlu0 0
      %2140 = vperm.xlu0 %2139, %v1830
      %v2141 = vpop.permute.xlu0 %2140
      %2144 = vset.pattern.permute.xlu0 0
      %2145 = vperm.xlu0 %2144, %v1831
      %v2146 = vpop.permute.xlu0 %2145
      %2149 = vset.pattern.permute.xlu0 0
      %2150 = vperm.xlu0 %2149, %v1832
      %v2151 = vpop.permute.xlu0 %2150
      %2154 = vset.pattern.permute.xlu0 0
      %2155 = vperm.xlu0 %2154, %v1833
      %v2156 = vpop.permute.xlu0 %2155
      %2159 = vset.pattern.permute.xlu0 0
      %2160 = vperm.xlu0 %2159, %v1834
      %v2161 = vpop.permute.xlu0 %2160
      %v2163 = vsel %vm2115, %v2126, 0.0
      %v2164 = vsel %vm2116, %v2131, 0.0
      %v2165 = vsel %vm2117, %v2136, 0.0
      %v2166 = vsel %vm2118, %v2141, 0.0
      %v2167 = vsel %vm2119, %v2146, 0.0
      %v2168 = vsel %vm2120, %v2151, 0.0
      %v2169 = vsel %vm2121, %v2156, 0.0
      %v2170 = vsel %vm2122, %v2161, 0.0
      %v2171 = vadd.f32 %v2107, %v2163
      %v2172 = vadd.f32 %v2108, %v2164
      %v2173 = vadd.f32 %v2109, %v2165
      %v2174 = vadd.f32 %v2110, %v2166
      %v2175 = vadd.f32 %v2111, %v2167
      %v2176 = vadd.f32 %v2112, %v2168
      %v2177 = vadd.f32 %v2113, %v2169
      %v2178 = vadd.f32 %v2114, %v2170
      %vm2179 = vcmp.eq.s32.totalorder %v2051, 8
      %vm2180 = vcmp.eq.s32.totalorder %v2052, 8
      %vm2181 = vcmp.eq.s32.totalorder %v2053, 8
      %vm2182 = vcmp.eq.s32.totalorder %v2054, 8
      %vm2183 = vcmp.eq.s32.totalorder %v2055, 8
      %vm2184 = vcmp.eq.s32.totalorder %v2056, 8
      %vm2185 = vcmp.eq.s32.totalorder %v2057, 8
      %vm2186 = vcmp.eq.s32.totalorder %v2058, 8
      %2188 = vset.pattern.permute.xlu0 0
      %2189 = vperm.xlu0 %2188, %v1915
      %v2190 = vpop.permute.xlu0 %2189
      %2193 = vset.pattern.permute.xlu0 0
      %2194 = vperm.xlu0 %2193, %v1916
      %v2195 = vpop.permute.xlu0 %2194
      %2198 = vset.pattern.permute.xlu0 0
      %2199 = vperm.xlu0 %2198, %v1917
      %v2200 = vpop.permute.xlu0 %2199
      %2203 = vset.pattern.permute.xlu0 0
      %2204 = vperm.xlu0 %2203, %v1918
      %v2205 = vpop.permute.xlu0 %2204
      %2208 = vset.pattern.permute.xlu0 0
      %2209 = vperm.xlu0 %2208, %v1919
      %v2210 = vpop.permute.xlu0 %2209
      %2213 = vset.pattern.permute.xlu0 0
      %2214 = vperm.xlu0 %2213, %v1920
      %v2215 = vpop.permute.xlu0 %2214
      %2218 = vset.pattern.permute.xlu0 0
      %2219 = vperm.xlu0 %2218, %v1921
      %v2220 = vpop.permute.xlu0 %2219
      %2223 = vset.pattern.permute.xlu0 0
      %2224 = vperm.xlu0 %2223, %v1922
      %v2225 = vpop.permute.xlu0 %2224
      %v2227 = vsel %vm2179, %v2190, 0.0
      %v2228 = vsel %vm2180, %v2195, 0.0
      %v2229 = vsel %vm2181, %v2200, 0.0
      %v2230 = vsel %vm2182, %v2205, 0.0
      %v2231 = vsel %vm2183, %v2210, 0.0
      %v2232 = vsel %vm2184, %v2215, 0.0
      %v2233 = vsel %vm2185, %v2220, 0.0
      %v2234 = vsel %vm2186, %v2225, 0.0
      %v2235 = vadd.f32 %v2171, %v2227
      %v2236 = vadd.f32 %v2172, %v2228
      %v2237 = vadd.f32 %v2173, %v2229
      %v2238 = vadd.f32 %v2174, %v2230
      %v2239 = vadd.f32 %v2175, %v2231
      %v2240 = vadd.f32 %v2176, %v2232
      %v2241 = vadd.f32 %v2177, %v2233
      %v2242 = vadd.f32 %v2178, %v2234
      %vm2243 = vcmp.eq.s32.totalorder %v2051, 9
      %vm2244 = vcmp.eq.s32.totalorder %v2052, 9
      %vm2245 = vcmp.eq.s32.totalorder %v2053, 9
      %vm2246 = vcmp.eq.s32.totalorder %v2054, 9
      %vm2247 = vcmp.eq.s32.totalorder %v2055, 9
      %vm2248 = vcmp.eq.s32.totalorder %v2056, 9
      %vm2249 = vcmp.eq.s32.totalorder %v2057, 9
      %vm2250 = vcmp.eq.s32.totalorder %v2058, 9
      %2252 = vset.pattern.permute.xlu0 0
      %2253 = vperm.xlu0 %2252, %v1971
      %v2254 = vpop.permute.xlu0 %2253
      %2257 = vset.pattern.permute.xlu0 0
      %2258 = vperm.xlu0 %2257, %v1972
      %v2259 = vpop.permute.xlu0 %2258
      %2262 = vset.pattern.permute.xlu0 0
      %2263 = vperm.xlu0 %2262, %v1973
      %v2264 = vpop.permute.xlu0 %2263
      %2267 = vset.pattern.permute.xlu0 0
      %2268 = vperm.xlu0 %2267, %v1974
      %v2269 = vpop.permute.xlu0 %2268
      %2272 = vset.pattern.permute.xlu0 0
      %2273 = vperm.xlu0 %2272, %v1975
      %v2274 = vpop.permute.xlu0 %2273
      %2277 = vset.pattern.permute.xlu0 0
      %2278 = vperm.xlu0 %2277, %v1976
      %v2279 = vpop.permute.xlu0 %2278
      %2282 = vset.pattern.permute.xlu0 0
      %2283 = vperm.xlu0 %2282, %v1977
      %v2284 = vpop.permute.xlu0 %2283
      %2287 = vset.pattern.permute.xlu0 0
      %2288 = vperm.xlu0 %2287, %v1978
      %v2289 = vpop.permute.xlu0 %2288
      %v2291 = vsel %vm2243, %v2254, 0.0
      %v2292 = vsel %vm2244, %v2259, 0.0
      %v2293 = vsel %vm2245, %v2264, 0.0
      %v2294 = vsel %vm2246, %v2269, 0.0
      %v2295 = vsel %vm2247, %v2274, 0.0
      %v2296 = vsel %vm2248, %v2279, 0.0
      %v2297 = vsel %vm2249, %v2284, 0.0
      %v2298 = vsel %vm2250, %v2289, 0.0
      %v2299 = vadd.f32 %v2235, %v2291
      %v2300 = vadd.f32 %v2236, %v2292
      %v2301 = vadd.f32 %v2237, %v2293
      %v2302 = vadd.f32 %v2238, %v2294
      %v2303 = vadd.f32 %v2239, %v2295
      %v2304 = vadd.f32 %v2240, %v2296
      %v2305 = vadd.f32 %v2241, %v2297
      %v2306 = vadd.f32 %v2242, %v2298
      %vm2307 = vcmp.ge.s32.totalorder %v1194, 0
      %vm2308 = vcmp.lt.s32.totalorder %v1194, 2
      %vm2309 = vmand %vm2307, %vm2308
      %v2310 = vsel %vm2309, 1, 0
      %vm2311 = vcmp.eq.s32.totalorder %v2310, 1
      %vm2312 = vmpackc.low %vm2311, %vm2311
      %v2313 = vsel %vm2312, %v1169, 0
      %v2314 = vsel %vm2312, %v1170, 0
      %v2315 = vsel %vm2312, %v1171, 0
      %v2316 = vsel %vm2312, %v1172, 0
      %v2317 = vsel %vm2312, %v1173, 0
      %v2318 = vsel %vm2312, %v1174, 0
      %v2319 = vsel %vm2312, %v1175, 0
      %v2320 = vsel %vm2312, %v1176, 0
      %v2321 = vpack.c.bf16 %v2300, %v2299
      %v2322 = vpack.c.bf16 %v2302, %v2301
      %v2323 = vpack.c.bf16 %v2304, %v2303
      %v2324 = vpack.c.bf16 %v2306, %v2305
      %2325 = vrot.lane.b32.xlu0 %v1177, 6
      %v2326 = vpop.permute.xlu0 %2325
      %2327 = vrot.lane.b32.xlu0 %v1178, 6
      %v2328 = vpop.permute.xlu0 %2327
      %2329 = vrot.lane.b32.xlu0 %v1179, 6
      %v2330 = vpop.permute.xlu0 %2329
      %2331 = vrot.lane.b32.xlu0 %v1180, 6
      %v2332 = vpop.permute.xlu0 %2331
      %2333 = vrot.lane.b32.xlu0 %v1181, 6
      %v2334 = vpop.permute.xlu0 %2333
      %2335 = vrot.lane.b32.xlu0 %v1182, 6
      %v2336 = vpop.permute.xlu0 %2335
      %2337 = vrot.lane.b32.xlu0 %v1183, 6
      %v2338 = vpop.permute.xlu0 %2337
      %2339 = vrot.lane.b32.xlu0 %v1184, 6
      %v2340 = vpop.permute.xlu0 %2339
      %v2349 = vmul.f32 %v1198, %v2326
      %v2350 = vmul.f32 %v1198, %v2328
      %v2351 = vmul.f32 %v1198, %v2330
      %v2352 = vmul.f32 %v1198, %v2332
      %v2353 = vmul.f32 %v1198, %v2334
      %v2354 = vmul.f32 %v1198, %v2336
      %v2355 = vmul.f32 %v1198, %v2338
      %v2356 = vmul.f32 %v1198, %v2340
      %2357 = vrot.lane.b32.xlu0 %v1185, 7
      %v2358 = vpop.permute.xlu0 %2357
      %2359 = vrot.lane.b32.xlu0 %v1186, 7
      %v2360 = vpop.permute.xlu0 %2359
      %2361 = vrot.lane.b32.xlu0 %v1187, 7
      %v2362 = vpop.permute.xlu0 %2361
      %2363 = vrot.lane.b32.xlu0 %v1188, 7
      %v2364 = vpop.permute.xlu0 %2363
      %2365 = vrot.lane.b32.xlu0 %v1189, 7
      %v2366 = vpop.permute.xlu0 %2365
      %2367 = vrot.lane.b32.xlu0 %v1190, 7
      %v2368 = vpop.permute.xlu0 %2367
      %2369 = vrot.lane.b32.xlu0 %v1191, 7
      %v2370 = vpop.permute.xlu0 %2369
      %2371 = vrot.lane.b32.xlu0 %v1192, 7
      %v2372 = vpop.permute.xlu0 %2371
      %v2381 = vmul.f32 %v1198, %v2358
      %v2382 = vmul.f32 %v1198, %v2360
      %v2383 = vmul.f32 %v1198, %v2362
      %v2384 = vmul.f32 %v1198, %v2364
      %v2385 = vmul.f32 %v1198, %v2366
      %v2386 = vmul.f32 %v1198, %v2368
      %v2387 = vmul.f32 %v1198, %v2370
      %v2388 = vmul.f32 %v1198, %v2372
      %2397 = vrot.lane.b32.xlu0 %v2381, 127
      %v2398 = vpop.permute.xlu0 %2397
      %2399 = vrot.lane.b32.xlu0 %v2382, 127
      %v2400 = vpop.permute.xlu0 %2399
      %2401 = vrot.lane.b32.xlu0 %v2383, 127
      %v2402 = vpop.permute.xlu0 %2401
      %2403 = vrot.lane.b32.xlu0 %v2384, 127
      %v2404 = vpop.permute.xlu0 %2403
      %2405 = vrot.lane.b32.xlu0 %v2385, 127
      %v2406 = vpop.permute.xlu0 %2405
      %2407 = vrot.lane.b32.xlu0 %v2386, 127
      %v2408 = vpop.permute.xlu0 %2407
      %2409 = vrot.lane.b32.xlu0 %v2387, 127
      %v2410 = vpop.permute.xlu0 %2409
      %2411 = vrot.lane.b32.xlu0 %v2388, 127
      %v2412 = vpop.permute.xlu0 %2411
      %v2421 = vadd.f32 %v2349, %v2398
      %v2422 = vadd.f32 %v2350, %v2400
      %v2423 = vadd.f32 %v2351, %v2402
      %v2424 = vadd.f32 %v2352, %v2404
      %v2425 = vadd.f32 %v2353, %v2406
      %v2426 = vadd.f32 %v2354, %v2408
      %v2427 = vadd.f32 %v2355, %v2410
      %v2428 = vadd.f32 %v2356, %v2412
      %v2429 = vadd.f32 %v2421, %v1289
      %v2430 = vadd.f32 %v2422, %v1289
      %v2431 = vadd.f32 %v2423, %v1289
      %v2432 = vadd.f32 %v2424, %v1289
      %v2433 = vadd.f32 %v2425, %v1289
      %v2434 = vadd.f32 %v2426, %v1289
      %v2435 = vadd.f32 %v2427, %v1289
      %v2436 = vadd.f32 %v2428, %v1289
      %2437 = vrot.lane.b32.xlu0 %v1177, 9
      %v2438 = vpop.permute.xlu0 %2437
      %2439 = vrot.lane.b32.xlu0 %v1178, 9
      %v2440 = vpop.permute.xlu0 %2439
      %2441 = vrot.lane.b32.xlu0 %v1179, 9
      %v2442 = vpop.permute.xlu0 %2441
      %2443 = vrot.lane.b32.xlu0 %v1180, 9
      %v2444 = vpop.permute.xlu0 %2443
      %2445 = vrot.lane.b32.xlu0 %v1181, 9
      %v2446 = vpop.permute.xlu0 %2445
      %2447 = vrot.lane.b32.xlu0 %v1182, 9
      %v2448 = vpop.permute.xlu0 %2447
      %2449 = vrot.lane.b32.xlu0 %v1183, 9
      %v2450 = vpop.permute.xlu0 %2449
      %2451 = vrot.lane.b32.xlu0 %v1184, 9
      %v2452 = vpop.permute.xlu0 %2451
      %v2461 = vmul.f32 %v1198, %v2438
      %v2462 = vmul.f32 %v1198, %v2440
      %v2463 = vmul.f32 %v1198, %v2442
      %v2464 = vmul.f32 %v1198, %v2444
      %v2465 = vmul.f32 %v1198, %v2446
      %v2466 = vmul.f32 %v1198, %v2448
      %v2467 = vmul.f32 %v1198, %v2450
      %v2468 = vmul.f32 %v1198, %v2452
      %2469 = vrot.lane.b32.xlu0 %v1185, 10
      %v2470 = vpop.permute.xlu0 %2469
      %2471 = vrot.lane.b32.xlu0 %v1186, 10
      %v2472 = vpop.permute.xlu0 %2471
      %2473 = vrot.lane.b32.xlu0 %v1187, 10
      %v2474 = vpop.permute.xlu0 %2473
      %2475 = vrot.lane.b32.xlu0 %v1188, 10
      %v2476 = vpop.permute.xlu0 %2475
      %2477 = vrot.lane.b32.xlu0 %v1189, 10
      %v2478 = vpop.permute.xlu0 %2477
      %2479 = vrot.lane.b32.xlu0 %v1190, 10
      %v2480 = vpop.permute.xlu0 %2479
      %2481 = vrot.lane.b32.xlu0 %v1191, 10
      %v2482 = vpop.permute.xlu0 %2481
      %2483 = vrot.lane.b32.xlu0 %v1192, 10
      %v2484 = vpop.permute.xlu0 %2483
      %v2493 = vmul.f32 %v1198, %v2470
      %v2494 = vmul.f32 %v1198, %v2472
      %v2495 = vmul.f32 %v1198, %v2474
      %v2496 = vmul.f32 %v1198, %v2476
      %v2497 = vmul.f32 %v1198, %v2478
      %v2498 = vmul.f32 %v1198, %v2480
      %v2499 = vmul.f32 %v1198, %v2482
      %v2500 = vmul.f32 %v1198, %v2484
      %2509 = vrot.lane.b32.xlu0 %v2493, 127
      %v2510 = vpop.permute.xlu0 %2509
      %2511 = vrot.lane.b32.xlu0 %v2494, 127
      %v2512 = vpop.permute.xlu0 %2511
      %2513 = vrot.lane.b32.xlu0 %v2495, 127
      %v2514 = vpop.permute.xlu0 %2513
      %2515 = vrot.lane.b32.xlu0 %v2496, 127
      %v2516 = vpop.permute.xlu0 %2515
      %2517 = vrot.lane.b32.xlu0 %v2497, 127
      %v2518 = vpop.permute.xlu0 %2517
      %2519 = vrot.lane.b32.xlu0 %v2498, 127
      %v2520 = vpop.permute.xlu0 %2519
      %2521 = vrot.lane.b32.xlu0 %v2499, 127
      %v2522 = vpop.permute.xlu0 %2521
      %2523 = vrot.lane.b32.xlu0 %v2500, 127
      %v2524 = vpop.permute.xlu0 %2523
      %v2533 = vadd.f32 %v2461, %v2510
      %v2534 = vadd.f32 %v2462, %v2512
      %v2535 = vadd.f32 %v2463, %v2514
      %v2536 = vadd.f32 %v2464, %v2516
      %v2537 = vadd.f32 %v2465, %v2518
      %v2538 = vadd.f32 %v2466, %v2520
      %v2539 = vadd.f32 %v2467, %v2522
      %v2540 = vadd.f32 %v2468, %v2524
      %v2541 = vadd.f32 %v2533, %v1289
      %v2542 = vadd.f32 %v2534, %v1289
      %v2543 = vadd.f32 %v2535, %v1289
      %v2544 = vadd.f32 %v2536, %v1289
      %v2545 = vadd.f32 %v2537, %v1289
      %v2546 = vadd.f32 %v2538, %v1289
      %v2547 = vadd.f32 %v2539, %v1289
      %v2548 = vadd.f32 %v2540, %v1289
      %v2549 = vadd.f32 %v2429, 1.0
      %v2550 = vadd.f32 %v2430, 1.0
      %v2551 = vadd.f32 %v2431, 1.0
      %v2552 = vadd.f32 %v2432, 1.0
      %v2553 = vadd.f32 %v2433, 1.0
      %v2554 = vadd.f32 %v2434, 1.0
      %v2555 = vadd.f32 %v2435, 1.0
      %v2556 = vadd.f32 %v2436, 1.0
      %v2557 = vmul.f32 %v2549, 8.0
      %v2558 = vmul.f32 %v2550, 8.0
      %v2559 = vmul.f32 %v2551, 8.0
      %v2560 = vmul.f32 %v2552, 8.0
      %v2561 = vmul.f32 %v2553, 8.0
      %v2562 = vmul.f32 %v2554, 8.0
      %v2563 = vmul.f32 %v2555, 8.0
      %v2564 = vmul.f32 %v2556, 8.0
      %v2565 = vsub.f32 %v2557, 1.0
      %v2566 = vsub.f32 %v2558, 1.0
      %v2567 = vsub.f32 %v2559, 1.0
      %v2568 = vsub.f32 %v2560, 1.0
      %v2569 = vsub.f32 %v2561, 1.0
      %v2570 = vsub.f32 %v2562, 1.0
      %v2571 = vsub.f32 %v2563, 1.0
      %v2572 = vsub.f32 %v2564, 1.0
      %v2573 = vmul.f32 %v2565, 0.5
      %v2574 = vmul.f32 %v2566, 0.5
      %v2575 = vmul.f32 %v2567, 0.5
      %v2576 = vmul.f32 %v2568, 0.5
      %v2577 = vmul.f32 %v2569, 0.5
      %v2578 = vmul.f32 %v2570, 0.5
      %v2579 = vmul.f32 %v2571, 0.5
      %v2580 = vmul.f32 %v2572, 0.5
      %v2581 = vadd.f32 %v2541, 1.0
      %v2582 = vadd.f32 %v2542, 1.0
      %v2583 = vadd.f32 %v2543, 1.0
      %v2584 = vadd.f32 %v2544, 1.0
      %v2585 = vadd.f32 %v2545, 1.0
      %v2586 = vadd.f32 %v2546, 1.0
      %v2587 = vadd.f32 %v2547, 1.0
      %v2588 = vadd.f32 %v2548, 1.0
      %v2589 = vmul.f32 %v2581, 8.0
      %v2590 = vmul.f32 %v2582, 8.0
      %v2591 = vmul.f32 %v2583, 8.0
      %v2592 = vmul.f32 %v2584, 8.0
      %v2593 = vmul.f32 %v2585, 8.0
      %v2594 = vmul.f32 %v2586, 8.0
      %v2595 = vmul.f32 %v2587, 8.0
      %v2596 = vmul.f32 %v2588, 8.0
      %v2597 = vsub.f32 %v2589, 1.0
      %v2598 = vsub.f32 %v2590, 1.0
      %v2599 = vsub.f32 %v2591, 1.0
      %v2600 = vsub.f32 %v2592, 1.0
      %v2601 = vsub.f32 %v2593, 1.0
      %v2602 = vsub.f32 %v2594, 1.0
      %v2603 = vsub.f32 %v2595, 1.0
      %v2604 = vsub.f32 %v2596, 1.0
      %v2605 = vmul.f32 %v2597, 0.5
      %v2606 = vmul.f32 %v2598, 0.5
      %v2607 = vmul.f32 %v2599, 0.5
      %v2608 = vmul.f32 %v2600, 0.5
      %v2609 = vmul.f32 %v2601, 0.5
      %v2610 = vmul.f32 %v2602, 0.5
      %v2611 = vmul.f32 %v2603, 0.5
      %v2612 = vmul.f32 %v2604, 0.5
      %v2613 = vfloor.f32 %v2573
      %v2614 = vfloor.f32 %v2574
      %v2615 = vfloor.f32 %v2575
      %v2616 = vfloor.f32 %v2576
      %v2617 = vfloor.f32 %v2577
      %v2618 = vfloor.f32 %v2578
      %v2619 = vfloor.f32 %v2579
      %v2620 = vfloor.f32 %v2580
      %v2621 = vfloor.f32 %v2605
      %v2622 = vfloor.f32 %v2606
      %v2623 = vfloor.f32 %v2607
      %v2624 = vfloor.f32 %v2608
      %v2625 = vfloor.f32 %v2609
      %v2626 = vfloor.f32 %v2610
      %v2627 = vfloor.f32 %v2611
      %v2628 = vfloor.f32 %v2612
      %v2629 = vsub.f32 %v2573, %v2613
      %v2630 = vsub.f32 %v2574, %v2614
      %v2631 = vsub.f32 %v2575, %v2615
      %v2632 = vsub.f32 %v2576, %v2616
      %v2633 = vsub.f32 %v2577, %v2617
      %v2634 = vsub.f32 %v2578, %v2618
      %v2635 = vsub.f32 %v2579, %v2619
      %v2636 = vsub.f32 %v2580, %v2620
      %v2637 = vsub.f32 1.0, %v2629
      %v2638 = vsub.f32 1.0, %v2630
      %v2639 = vsub.f32 1.0, %v2631
      %v2640 = vsub.f32 1.0, %v2632
      %v2641 = vsub.f32 1.0, %v2633
      %v2642 = vsub.f32 1.0, %v2634
      %v2643 = vsub.f32 1.0, %v2635
      %v2644 = vsub.f32 1.0, %v2636
      %v2645 = vsub.f32 %v2605, %v2621
      %v2646 = vsub.f32 %v2606, %v2622
      %v2647 = vsub.f32 %v2607, %v2623
      %v2648 = vsub.f32 %v2608, %v2624
      %v2649 = vsub.f32 %v2609, %v2625
      %v2650 = vsub.f32 %v2610, %v2626
      %v2651 = vsub.f32 %v2611, %v2627
      %v2652 = vsub.f32 %v2612, %v2628
      %v2653 = vsub.f32 1.0, %v2645
      %v2654 = vsub.f32 1.0, %v2646
      %v2655 = vsub.f32 1.0, %v2647
      %v2656 = vsub.f32 1.0, %v2648
      %v2657 = vsub.f32 1.0, %v2649
      %v2658 = vsub.f32 1.0, %v2650
      %v2659 = vsub.f32 1.0, %v2651
      %v2660 = vsub.f32 1.0, %v2652
      %vm2661 = vcmp.ge.f32.partialorder %v2613, 0.0
      %vm2662 = vcmp.ge.f32.partialorder %v2614, 0.0
      %vm2663 = vcmp.ge.f32.partialorder %v2615, 0.0
      %vm2664 = vcmp.ge.f32.partialorder %v2616, 0.0
      %vm2665 = vcmp.ge.f32.partialorder %v2617, 0.0
      %vm2666 = vcmp.ge.f32.partialorder %v2618, 0.0
      %vm2667 = vcmp.ge.f32.partialorder %v2619, 0.0
      %vm2668 = vcmp.ge.f32.partialorder %v2620, 0.0
      %vm2669 = vcmp.le.f32.partialorder %v2613, 7.0
      %vm2670 = vcmp.le.f32.partialorder %v2614, 7.0
      %vm2671 = vcmp.le.f32.partialorder %v2615, 7.0
      %vm2672 = vcmp.le.f32.partialorder %v2616, 7.0
      %vm2673 = vcmp.le.f32.partialorder %v2617, 7.0
      %vm2674 = vcmp.le.f32.partialorder %v2618, 7.0
      %vm2675 = vcmp.le.f32.partialorder %v2619, 7.0
      %vm2676 = vcmp.le.f32.partialorder %v2620, 7.0
      %vm2677 = vmand %vm2661, %vm2669
      %vm2678 = vmand %vm2662, %vm2670
      %vm2679 = vmand %vm2663, %vm2671
      %vm2680 = vmand %vm2664, %vm2672
      %vm2681 = vmand %vm2665, %vm2673
      %vm2682 = vmand %vm2666, %vm2674
      %vm2683 = vmand %vm2667, %vm2675
      %vm2684 = vmand %vm2668, %vm2676
      %vm2685 = vcmp.ge.f32.partialorder %v2613, -1.0
      %vm2686 = vcmp.ge.f32.partialorder %v2614, -1.0
      %vm2687 = vcmp.ge.f32.partialorder %v2615, -1.0
      %vm2688 = vcmp.ge.f32.partialorder %v2616, -1.0
      %vm2689 = vcmp.ge.f32.partialorder %v2617, -1.0
      %vm2690 = vcmp.ge.f32.partialorder %v2618, -1.0
      %vm2691 = vcmp.ge.f32.partialorder %v2619, -1.0
      %vm2692 = vcmp.ge.f32.partialorder %v2620, -1.0
      %vm2693 = vcmp.le.f32.partialorder %v2613, 6.0
      %vm2694 = vcmp.le.f32.partialorder %v2614, 6.0
      %vm2695 = vcmp.le.f32.partialorder %v2615, 6.0
      %vm2696 = vcmp.le.f32.partialorder %v2616, 6.0
      %vm2697 = vcmp.le.f32.partialorder %v2617, 6.0
      %vm2698 = vcmp.le.f32.partialorder %v2618, 6.0
      %vm2699 = vcmp.le.f32.partialorder %v2619, 6.0
      %vm2700 = vcmp.le.f32.partialorder %v2620, 6.0
      %vm2701 = vmand %vm2685, %vm2693
      %vm2702 = vmand %vm2686, %vm2694
      %vm2703 = vmand %vm2687, %vm2695
      %vm2704 = vmand %vm2688, %vm2696
      %vm2705 = vmand %vm2689, %vm2697
      %vm2706 = vmand %vm2690, %vm2698
      %vm2707 = vmand %vm2691, %vm2699
      %vm2708 = vmand %vm2692, %vm2700
      %vm2709 = vcmp.ge.f32.partialorder %v2621, 0.0
      %vm2710 = vcmp.ge.f32.partialorder %v2622, 0.0
      %vm2711 = vcmp.ge.f32.partialorder %v2623, 0.0
      %vm2712 = vcmp.ge.f32.partialorder %v2624, 0.0
      %vm2713 = vcmp.ge.f32.partialorder %v2625, 0.0
      %vm2714 = vcmp.ge.f32.partialorder %v2626, 0.0
      %vm2715 = vcmp.ge.f32.partialorder %v2627, 0.0
      %vm2716 = vcmp.ge.f32.partialorder %v2628, 0.0
      %vm2717 = vcmp.le.f32.partialorder %v2621, 7.0
      %vm2718 = vcmp.le.f32.partialorder %v2622, 7.0
      %vm2719 = vcmp.le.f32.partialorder %v2623, 7.0
      %vm2720 = vcmp.le.f32.partialorder %v2624, 7.0
      %vm2721 = vcmp.le.f32.partialorder %v2625, 7.0
      %vm2722 = vcmp.le.f32.partialorder %v2626, 7.0
      %vm2723 = vcmp.le.f32.partialorder %v2627, 7.0
      %vm2724 = vcmp.le.f32.partialorder %v2628, 7.0
      %vm2725 = vmand %vm2709, %vm2717
      %vm2726 = vmand %vm2710, %vm2718
      %vm2727 = vmand %vm2711, %vm2719
      %vm2728 = vmand %vm2712, %vm2720
      %vm2729 = vmand %vm2713, %vm2721
      %vm2730 = vmand %vm2714, %vm2722
      %vm2731 = vmand %vm2715, %vm2723
      %vm2732 = vmand %vm2716, %vm2724
      %vm2733 = vcmp.ge.f32.partialorder %v2621, -1.0
      %vm2734 = vcmp.ge.f32.partialorder %v2622, -1.0
      %vm2735 = vcmp.ge.f32.partialorder %v2623, -1.0
      %vm2736 = vcmp.ge.f32.partialorder %v2624, -1.0
      %vm2737 = vcmp.ge.f32.partialorder %v2625, -1.0
      %vm2738 = vcmp.ge.f32.partialorder %v2626, -1.0
      %vm2739 = vcmp.ge.f32.partialorder %v2627, -1.0
      %vm2740 = vcmp.ge.f32.partialorder %v2628, -1.0
      %vm2741 = vcmp.le.f32.partialorder %v2621, 6.0
      %vm2742 = vcmp.le.f32.partialorder %v2622, 6.0
      %vm2743 = vcmp.le.f32.partialorder %v2623, 6.0
      %vm2744 = vcmp.le.f32.partialorder %v2624, 6.0
      %vm2745 = vcmp.le.f32.partialorder %v2625, 6.0
      %vm2746 = vcmp.le.f32.partialorder %v2626, 6.0
      %vm2747 = vcmp.le.f32.partialorder %v2627, 6.0
      %vm2748 = vcmp.le.f32.partialorder %v2628, 6.0
      %vm2749 = vmand %vm2733, %vm2741
      %vm2750 = vmand %vm2734, %vm2742
      %vm2751 = vmand %vm2735, %vm2743
      %vm2752 = vmand %vm2736, %vm2744
      %vm2753 = vmand %vm2737, %vm2745
      %vm2754 = vmand %vm2738, %vm2746
      %vm2755 = vmand %vm2739, %vm2747
      %vm2756 = vmand %vm2740, %vm2748
      %v2757 = vsel %vm2725, 1, 0
      %v2758 = vsel %vm2726, 1, 0
      %v2759 = vsel %vm2727, 1, 0
      %v2760 = vsel %vm2728, 1, 0
      %v2761 = vsel %vm2729, 1, 0
      %v2762 = vsel %vm2730, 1, 0
      %v2763 = vsel %vm2731, 1, 0
      %v2764 = vsel %vm2732, 1, 0
      %2765 = vrot.lane.b32.xlu0 %v2757, 125
      %v2766 = vpop.permute.xlu0 %2765
      %2767 = vrot.lane.b32.xlu0 %v2758, 125
      %v2768 = vpop.permute.xlu0 %2767
      %2769 = vrot.lane.b32.xlu0 %v2759, 125
      %v2770 = vpop.permute.xlu0 %2769
      %2771 = vrot.lane.b32.xlu0 %v2760, 125
      %v2772 = vpop.permute.xlu0 %2771
      %2773 = vrot.lane.b32.xlu0 %v2761, 125
      %v2774 = vpop.permute.xlu0 %2773
      %2775 = vrot.lane.b32.xlu0 %v2762, 125
      %v2776 = vpop.permute.xlu0 %2775
      %2777 = vrot.lane.b32.xlu0 %v2763, 125
      %v2778 = vpop.permute.xlu0 %2777
      %2779 = vrot.lane.b32.xlu0 %v2764, 125
      %v2780 = vpop.permute.xlu0 %2779
      %vm2781 = vcmp.ne.s32.totalorder %v2766, 0
      %vm2782 = vcmp.ne.s32.totalorder %v2768, 0
      %vm2783 = vcmp.ne.s32.totalorder %v2770, 0
      %vm2784 = vcmp.ne.s32.totalorder %v2772, 0
      %vm2785 = vcmp.ne.s32.totalorder %v2774, 0
      %vm2786 = vcmp.ne.s32.totalorder %v2776, 0
      %vm2787 = vcmp.ne.s32.totalorder %v2778, 0
      %vm2788 = vcmp.ne.s32.totalorder %v2780, 0
      %vm2789 = vmand %vm2677, %vm2781
      %vm2790 = vmand %vm2678, %vm2782
      %vm2791 = vmand %vm2679, %vm2783
      %vm2792 = vmand %vm2680, %vm2784
      %vm2793 = vmand %vm2681, %vm2785
      %vm2794 = vmand %vm2682, %vm2786
      %vm2795 = vmand %vm2683, %vm2787
      %vm2796 = vmand %vm2684, %vm2788
      %2805 = vrot.lane.b32.xlu0 %v2637, 3
      %v2806 = vpop.permute.xlu0 %2805
      %2807 = vrot.lane.b32.xlu0 %v2638, 3
      %v2808 = vpop.permute.xlu0 %2807
      %2809 = vrot.lane.b32.xlu0 %v2639, 3
      %v2810 = vpop.permute.xlu0 %2809
      %2811 = vrot.lane.b32.xlu0 %v2640, 3
      %v2812 = vpop.permute.xlu0 %2811
      %2813 = vrot.lane.b32.xlu0 %v2641, 3
      %v2814 = vpop.permute.xlu0 %2813
      %2815 = vrot.lane.b32.xlu0 %v2642, 3
      %v2816 = vpop.permute.xlu0 %2815
      %2817 = vrot.lane.b32.xlu0 %v2643, 3
      %v2818 = vpop.permute.xlu0 %2817
      %2819 = vrot.lane.b32.xlu0 %v2644, 3
      %v2820 = vpop.permute.xlu0 %2819
      %v2829 = vmul.f32 %v2653, %v2806
      %v2830 = vmul.f32 %v2654, %v2808
      %v2831 = vmul.f32 %v2655, %v2810
      %v2832 = vmul.f32 %v2656, %v2812
      %v2833 = vmul.f32 %v2657, %v2814
      %v2834 = vmul.f32 %v2658, %v2816
      %v2835 = vmul.f32 %v2659, %v2818
      %v2836 = vmul.f32 %v2660, %v2820
      %2845 = vrot.lane.b32.xlu0 %v2829, 125
      %v2846 = vpop.permute.xlu0 %2845
      %2847 = vrot.lane.b32.xlu0 %v2830, 125
      %v2848 = vpop.permute.xlu0 %2847
      %2849 = vrot.lane.b32.xlu0 %v2831, 125
      %v2850 = vpop.permute.xlu0 %2849
      %2851 = vrot.lane.b32.xlu0 %v2832, 125
      %v2852 = vpop.permute.xlu0 %2851
      %2853 = vrot.lane.b32.xlu0 %v2833, 125
      %v2854 = vpop.permute.xlu0 %2853
      %2855 = vrot.lane.b32.xlu0 %v2834, 125
      %v2856 = vpop.permute.xlu0 %2855
      %2857 = vrot.lane.b32.xlu0 %v2835, 125
      %v2858 = vpop.permute.xlu0 %2857
      %2859 = vrot.lane.b32.xlu0 %v2836, 125
      %v2860 = vpop.permute.xlu0 %2859
      %v2869 = vsel %vm2789, %v2846, 0.0
      %v2870 = vsel %vm2790, %v2848, 0.0
      %v2871 = vsel %vm2791, %v2850, 0.0
      %v2872 = vsel %vm2792, %v2852, 0.0
      %v2873 = vsel %vm2793, %v2854, 0.0
      %v2874 = vsel %vm2794, %v2856, 0.0
      %v2875 = vsel %vm2795, %v2858, 0.0
      %v2876 = vsel %vm2796, %v2860, 0.0
      %vm2877 = vmand %vm2701, %vm2781
      %vm2878 = vmand %vm2702, %vm2782
      %vm2879 = vmand %vm2703, %vm2783
      %vm2880 = vmand %vm2704, %vm2784
      %vm2881 = vmand %vm2705, %vm2785
      %vm2882 = vmand %vm2706, %vm2786
      %vm2883 = vmand %vm2707, %vm2787
      %vm2884 = vmand %vm2708, %vm2788
      %2893 = vrot.lane.b32.xlu0 %v2629, 3
      %v2894 = vpop.permute.xlu0 %2893
      %2895 = vrot.lane.b32.xlu0 %v2630, 3
      %v2896 = vpop.permute.xlu0 %2895
      %2897 = vrot.lane.b32.xlu0 %v2631, 3
      %v2898 = vpop.permute.xlu0 %2897
      %2899 = vrot.lane.b32.xlu0 %v2632, 3
      %v2900 = vpop.permute.xlu0 %2899
      %2901 = vrot.lane.b32.xlu0 %v2633, 3
      %v2902 = vpop.permute.xlu0 %2901
      %2903 = vrot.lane.b32.xlu0 %v2634, 3
      %v2904 = vpop.permute.xlu0 %2903
      %2905 = vrot.lane.b32.xlu0 %v2635, 3
      %v2906 = vpop.permute.xlu0 %2905
      %2907 = vrot.lane.b32.xlu0 %v2636, 3
      %v2908 = vpop.permute.xlu0 %2907
      %v2917 = vmul.f32 %v2653, %v2894
      %v2918 = vmul.f32 %v2654, %v2896
      %v2919 = vmul.f32 %v2655, %v2898
      %v2920 = vmul.f32 %v2656, %v2900
      %v2921 = vmul.f32 %v2657, %v2902
      %v2922 = vmul.f32 %v2658, %v2904
      %v2923 = vmul.f32 %v2659, %v2906
      %v2924 = vmul.f32 %v2660, %v2908
      %2933 = vrot.lane.b32.xlu0 %v2917, 125
      %v2934 = vpop.permute.xlu0 %2933
      %2935 = vrot.lane.b32.xlu0 %v2918, 125
      %v2936 = vpop.permute.xlu0 %2935
      %2937 = vrot.lane.b32.xlu0 %v2919, 125
      %v2938 = vpop.permute.xlu0 %2937
      %2939 = vrot.lane.b32.xlu0 %v2920, 125
      %v2940 = vpop.permute.xlu0 %2939
      %2941 = vrot.lane.b32.xlu0 %v2921, 125
      %v2942 = vpop.permute.xlu0 %2941
      %2943 = vrot.lane.b32.xlu0 %v2922, 125
      %v2944 = vpop.permute.xlu0 %2943
      %2945 = vrot.lane.b32.xlu0 %v2923, 125
      %v2946 = vpop.permute.xlu0 %2945
      %2947 = vrot.lane.b32.xlu0 %v2924, 125
      %v2948 = vpop.permute.xlu0 %2947
      %v2957 = vsel %vm2877, %v2934, 0.0
      %v2958 = vsel %vm2878, %v2936, 0.0
      %v2959 = vsel %vm2879, %v2938, 0.0
      %v2960 = vsel %vm2880, %v2940, 0.0
      %v2961 = vsel %vm2881, %v2942, 0.0
      %v2962 = vsel %vm2882, %v2944, 0.0
      %v2963 = vsel %vm2883, %v2946, 0.0
      %v2964 = vsel %vm2884, %v2948, 0.0
      %v2965 = vsel %vm2749, 1, 0
      %v2966 = vsel %vm2750, 1, 0
      %v2967 = vsel %vm2751, 1, 0
      %v2968 = vsel %vm2752, 1, 0
      %v2969 = vsel %vm2753, 1, 0
      %v2970 = vsel %vm2754, 1, 0
      %v2971 = vsel %vm2755, 1, 0
      %v2972 = vsel %vm2756, 1, 0
      %2973 = vrot.lane.b32.xlu0 %v2965, 125
      %v2974 = vpop.permute.xlu0 %2973
      %2975 = vrot.lane.b32.xlu0 %v2966, 125
      %v2976 = vpop.permute.xlu0 %2975
      %2977 = vrot.lane.b32.xlu0 %v2967, 125
      %v2978 = vpop.permute.xlu0 %2977
      %2979 = vrot.lane.b32.xlu0 %v2968, 125
      %v2980 = vpop.permute.xlu0 %2979
      %2981 = vrot.lane.b32.xlu0 %v2969, 125
      %v2982 = vpop.permute.xlu0 %2981
      %2983 = vrot.lane.b32.xlu0 %v2970, 125
      %v2984 = vpop.permute.xlu0 %2983
      %2985 = vrot.lane.b32.xlu0 %v2971, 125
      %v2986 = vpop.permute.xlu0 %2985
      %2987 = vrot.lane.b32.xlu0 %v2972, 125
      %v2988 = vpop.permute.xlu0 %2987
      %vm2989 = vcmp.ne.s32.totalorder %v2974, 0
      %vm2990 = vcmp.ne.s32.totalorder %v2976, 0
      %vm2991 = vcmp.ne.s32.totalorder %v2978, 0
      %vm2992 = vcmp.ne.s32.totalorder %v2980, 0
      %vm2993 = vcmp.ne.s32.totalorder %v2982, 0
      %vm2994 = vcmp.ne.s32.totalorder %v2984, 0
      %vm2995 = vcmp.ne.s32.totalorder %v2986, 0
      %vm2996 = vcmp.ne.s32.totalorder %v2988, 0
      %vm2997 = vmand %vm2677, %vm2989
      %vm2998 = vmand %vm2678, %vm2990
      %vm2999 = vmand %vm2679, %vm2991
      %vm3000 = vmand %vm2680, %vm2992
      %vm3001 = vmand %vm2681, %vm2993
      %vm3002 = vmand %vm2682, %vm2994
      %vm3003 = vmand %vm2683, %vm2995
      %vm3004 = vmand %vm2684, %vm2996
      %v3005 = vmul.f32 %v2645, %v2806
      %v3006 = vmul.f32 %v2646, %v2808
      %v3007 = vmul.f32 %v2647, %v2810
      %v3008 = vmul.f32 %v2648, %v2812
      %v3009 = vmul.f32 %v2649, %v2814
      %v3010 = vmul.f32 %v2650, %v2816
      %v3011 = vmul.f32 %v2651, %v2818
      %v3012 = vmul.f32 %v2652, %v2820
      %3021 = vrot.lane.b32.xlu0 %v3005, 125
      %v3022 = vpop.permute.xlu0 %3021
      %3023 = vrot.lane.b32.xlu0 %v3006, 125
      %v3024 = vpop.permute.xlu0 %3023
      %3025 = vrot.lane.b32.xlu0 %v3007, 125
      %v3026 = vpop.permute.xlu0 %3025
      %3027 = vrot.lane.b32.xlu0 %v3008, 125
      %v3028 = vpop.permute.xlu0 %3027
      %3029 = vrot.lane.b32.xlu0 %v3009, 125
      %v3030 = vpop.permute.xlu0 %3029
      %3031 = vrot.lane.b32.xlu0 %v3010, 125
      %v3032 = vpop.permute.xlu0 %3031
      %3033 = vrot.lane.b32.xlu0 %v3011, 125
      %v3034 = vpop.permute.xlu0 %3033
      %3035 = vrot.lane.b32.xlu0 %v3012, 125
      %v3036 = vpop.permute.xlu0 %3035
      %v3045 = vsel %vm2997, %v3022, 0.0
      %v3046 = vsel %vm2998, %v3024, 0.0
      %v3047 = vsel %vm2999, %v3026, 0.0
      %v3048 = vsel %vm3000, %v3028, 0.0
      %v3049 = vsel %vm3001, %v3030, 0.0
      %v3050 = vsel %vm3002, %v3032, 0.0
      %v3051 = vsel %vm3003, %v3034, 0.0
      %v3052 = vsel %vm3004, %v3036, 0.0
      %vm3053 = vmand %vm2701, %vm2989
      %vm3054 = vmand %vm2702, %vm2990
      %vm3055 = vmand %vm2703, %vm2991
      %vm3056 = vmand %vm2704, %vm2992
      %vm3057 = vmand %vm2705, %vm2993
      %vm3058 = vmand %vm2706, %vm2994
      %vm3059 = vmand %vm2707, %vm2995
      %vm3060 = vmand %vm2708, %vm2996
      %v3061 = vmul.f32 %v2645, %v2894
      %v3062 = vmul.f32 %v2646, %v2896
      %v3063 = vmul.f32 %v2647, %v2898
      %v3064 = vmul.f32 %v2648, %v2900
      %v3065 = vmul.f32 %v2649, %v2902
      %v3066 = vmul.f32 %v2650, %v2904
      %v3067 = vmul.f32 %v2651, %v2906
      %v3068 = vmul.f32 %v2652, %v2908
      %3077 = vrot.lane.b32.xlu0 %v3061, 125
      %v3078 = vpop.permute.xlu0 %3077
      %3079 = vrot.lane.b32.xlu0 %v3062, 125
      %v3080 = vpop.permute.xlu0 %3079
      %3081 = vrot.lane.b32.xlu0 %v3063, 125
      %v3082 = vpop.permute.xlu0 %3081
      %3083 = vrot.lane.b32.xlu0 %v3064, 125
      %v3084 = vpop.permute.xlu0 %3083
      %3085 = vrot.lane.b32.xlu0 %v3065, 125
      %v3086 = vpop.permute.xlu0 %3085
      %3087 = vrot.lane.b32.xlu0 %v3066, 125
      %v3088 = vpop.permute.xlu0 %3087
      %3089 = vrot.lane.b32.xlu0 %v3067, 125
      %v3090 = vpop.permute.xlu0 %3089
      %3091 = vrot.lane.b32.xlu0 %v3068, 125
      %v3092 = vpop.permute.xlu0 %3091
      %v3101 = vsel %vm3053, %v3078, 0.0
      %v3102 = vsel %vm3054, %v3080, 0.0
      %v3103 = vsel %vm3055, %v3082, 0.0
      %v3104 = vsel %vm3056, %v3084, 0.0
      %v3105 = vsel %vm3057, %v3086, 0.0
      %v3106 = vsel %vm3058, %v3088, 0.0
      %v3107 = vsel %vm3059, %v3090, 0.0
      %v3108 = vsel %vm3060, %v3092, 0.0
      %v3109 = vcvt.f32.s32.to.zero.pseudo %v2621
      %v3110 = vcvt.f32.s32.to.zero.pseudo %v2622
      %v3111 = vcvt.f32.s32.to.zero.pseudo %v2623
      %v3112 = vcvt.f32.s32.to.zero.pseudo %v2624
      %v3113 = vcvt.f32.s32.to.zero.pseudo %v2625
      %v3114 = vcvt.f32.s32.to.zero.pseudo %v2626
      %v3115 = vcvt.f32.s32.to.zero.pseudo %v2627
      %v3116 = vcvt.f32.s32.to.zero.pseudo %v2628
      %v3117 = vmul.u32 %v3109, 8
      %v3118 = vmul.u32 %v3110, 8
      %v3119 = vmul.u32 %v3111, 8
      %v3120 = vmul.u32 %v3112, 8
      %v3121 = vmul.u32 %v3113, 8
      %v3122 = vmul.u32 %v3114, 8
      %v3123 = vmul.u32 %v3115, 8
      %v3124 = vmul.u32 %v3116, 8
      %v3125 = vcvt.f32.s32.to.zero.pseudo %v2613
      %v3126 = vcvt.f32.s32.to.zero.pseudo %v2614
      %v3127 = vcvt.f32.s32.to.zero.pseudo %v2615
      %v3128 = vcvt.f32.s32.to.zero.pseudo %v2616
      %v3129 = vcvt.f32.s32.to.zero.pseudo %v2617
      %v3130 = vcvt.f32.s32.to.zero.pseudo %v2618
      %v3131 = vcvt.f32.s32.to.zero.pseudo %v2619
      %v3132 = vcvt.f32.s32.to.zero.pseudo %v2620
      %3133 = vrot.lane.b32.xlu0 %v3125, 3
      %v3134 = vpop.permute.xlu0 %3133
      %3135 = vrot.lane.b32.xlu0 %v3126, 3
      %v3136 = vpop.permute.xlu0 %3135
      %3137 = vrot.lane.b32.xlu0 %v3127, 3
      %v3138 = vpop.permute.xlu0 %3137
      %3139 = vrot.lane.b32.xlu0 %v3128, 3
      %v3140 = vpop.permute.xlu0 %3139
      %3141 = vrot.lane.b32.xlu0 %v3129, 3
      %v3142 = vpop.permute.xlu0 %3141
      %3143 = vrot.lane.b32.xlu0 %v3130, 3
      %v3144 = vpop.permute.xlu0 %3143
      %3145 = vrot.lane.b32.xlu0 %v3131, 3
      %v3146 = vpop.permute.xlu0 %3145
      %3147 = vrot.lane.b32.xlu0 %v3132, 3
      %v3148 = vpop.permute.xlu0 %3147
      %v3149 = vadd.s32 %v3117, %v3134
      %v3150 = vadd.s32 %v3118, %v3136
      %v3151 = vadd.s32 %v3119, %v3138
      %v3152 = vadd.s32 %v3120, %v3140
      %v3153 = vadd.s32 %v3121, %v3142
      %v3154 = vadd.s32 %v3122, %v3144
      %v3155 = vadd.s32 %v3123, %v3146
      %v3156 = vadd.s32 %v3124, %v3148
      %3157 = vset.pattern.permute.xlu0 9
      %3158 = vperm.xlu0 %3157, %v3149
      %v3159 = vpop.permute.xlu0 %3158
      %3160 = vset.pattern.permute.xlu0 9
      %3161 = vperm.xlu0 %3160, %v3150
      %v3162 = vpop.permute.xlu0 %3161
      %3163 = vset.pattern.permute.xlu0 9
      %3164 = vperm.xlu0 %3163, %v3151
      %v3165 = vpop.permute.xlu0 %3164
      %3166 = vset.pattern.permute.xlu0 9
      %3167 = vperm.xlu0 %3166, %v3152
      %v3168 = vpop.permute.xlu0 %3167
      %3169 = vset.pattern.permute.xlu0 9
      %3170 = vperm.xlu0 %3169, %v3153
      %v3171 = vpop.permute.xlu0 %3170
      %3172 = vset.pattern.permute.xlu0 9
      %3173 = vperm.xlu0 %3172, %v3154
      %v3174 = vpop.permute.xlu0 %3173
      %3175 = vset.pattern.permute.xlu0 9
      %3176 = vperm.xlu0 %3175, %v3155
      %v3177 = vpop.permute.xlu0 %3176
      %3178 = vset.pattern.permute.xlu0 9
      %3179 = vperm.xlu0 %3178, %v3156
      %v3180 = vpop.permute.xlu0 %3179
      %v3181 = vsub.s32 %v1194, %v3159
      %v3182 = vsub.s32 %v1194, %v3162
      %v3183 = vsub.s32 %v1194, %v3165
      %v3184 = vsub.s32 %v1194, %v3168
      %v3185 = vsub.s32 %v1194, %v3171
      %v3186 = vsub.s32 %v1194, %v3174
      %v3187 = vsub.s32 %v1194, %v3177
      %v3188 = vsub.s32 %v1194, %v3180
      %vm3189 = vcmp.eq.s32.totalorder %v3181, 0
      %vm3190 = vcmp.eq.s32.totalorder %v3182, 0
      %vm3191 = vcmp.eq.s32.totalorder %v3183, 0
      %vm3192 = vcmp.eq.s32.totalorder %v3184, 0
      %vm3193 = vcmp.eq.s32.totalorder %v3185, 0
      %vm3194 = vcmp.eq.s32.totalorder %v3186, 0
      %vm3195 = vcmp.eq.s32.totalorder %v3187, 0
      %vm3196 = vcmp.eq.s32.totalorder %v3188, 0
      %3198 = vset.pattern.permute.xlu0 6
      %3199 = vperm.xlu0 %3198, %v2869
      %v3200 = vpop.permute.xlu0 %3199
      %3203 = vset.pattern.permute.xlu0 6
      %3204 = vperm.xlu0 %3203, %v2870
      %v3205 = vpop.permute.xlu0 %3204
      %3208 = vset.pattern.permute.xlu0 6
      %3209 = vperm.xlu0 %3208, %v2871
      %v3210 = vpop.permute.xlu0 %3209
      %3213 = vset.pattern.permute.xlu0 6
      %3214 = vperm.xlu0 %3213, %v2872
      %v3215 = vpop.permute.xlu0 %3214
      %3218 = vset.pattern.permute.xlu0 6
      %3219 = vperm.xlu0 %3218, %v2873
      %v3220 = vpop.permute.xlu0 %3219
      %3223 = vset.pattern.permute.xlu0 6
      %3224 = vperm.xlu0 %3223, %v2874
      %v3225 = vpop.permute.xlu0 %3224
      %3228 = vset.pattern.permute.xlu0 6
      %3229 = vperm.xlu0 %3228, %v2875
      %v3230 = vpop.permute.xlu0 %3229
      %3233 = vset.pattern.permute.xlu0 6
      %3234 = vperm.xlu0 %3233, %v2876
      %v3235 = vpop.permute.xlu0 %3234
      %v3237 = vsel %vm3189, %v3200, 0.0
      %v3238 = vsel %vm3190, %v3205, 0.0
      %v3239 = vsel %vm3191, %v3210, 0.0
      %v3240 = vsel %vm3192, %v3215, 0.0
      %v3241 = vsel %vm3193, %v3220, 0.0
      %v3242 = vsel %vm3194, %v3225, 0.0
      %v3243 = vsel %vm3195, %v3230, 0.0
      %v3244 = vsel %vm3196, %v3235, 0.0
      %vm3245 = vcmp.eq.s32.totalorder %v3181, 1
      %vm3246 = vcmp.eq.s32.totalorder %v3182, 1
      %vm3247 = vcmp.eq.s32.totalorder %v3183, 1
      %vm3248 = vcmp.eq.s32.totalorder %v3184, 1
      %vm3249 = vcmp.eq.s32.totalorder %v3185, 1
      %vm3250 = vcmp.eq.s32.totalorder %v3186, 1
      %vm3251 = vcmp.eq.s32.totalorder %v3187, 1
      %vm3252 = vcmp.eq.s32.totalorder %v3188, 1
      %3254 = vset.pattern.permute.xlu0 6
      %3255 = vperm.xlu0 %3254, %v2957
      %v3256 = vpop.permute.xlu0 %3255
      %3259 = vset.pattern.permute.xlu0 6
      %3260 = vperm.xlu0 %3259, %v2958
      %v3261 = vpop.permute.xlu0 %3260
      %3264 = vset.pattern.permute.xlu0 6
      %3265 = vperm.xlu0 %3264, %v2959
      %v3266 = vpop.permute.xlu0 %3265
      %3269 = vset.pattern.permute.xlu0 6
      %3270 = vperm.xlu0 %3269, %v2960
      %v3271 = vpop.permute.xlu0 %3270
      %3274 = vset.pattern.permute.xlu0 6
      %3275 = vperm.xlu0 %3274, %v2961
      %v3276 = vpop.permute.xlu0 %3275
      %3279 = vset.pattern.permute.xlu0 6
      %3280 = vperm.xlu0 %3279, %v2962
      %v3281 = vpop.permute.xlu0 %3280
      %3284 = vset.pattern.permute.xlu0 6
      %3285 = vperm.xlu0 %3284, %v2963
      %v3286 = vpop.permute.xlu0 %3285
      %3289 = vset.pattern.permute.xlu0 6
      %3290 = vperm.xlu0 %3289, %v2964
      %v3291 = vpop.permute.xlu0 %3290
      %v3293 = vsel %vm3245, %v3256, 0.0
      %v3294 = vsel %vm3246, %v3261, 0.0
      %v3295 = vsel %vm3247, %v3266, 0.0
      %v3296 = vsel %vm3248, %v3271, 0.0
      %v3297 = vsel %vm3249, %v3276, 0.0
      %v3298 = vsel %vm3250, %v3281, 0.0
      %v3299 = vsel %vm3251, %v3286, 0.0
      %v3300 = vsel %vm3252, %v3291, 0.0
      %v3301 = vadd.f32 %v3237, %v3293
      %v3302 = vadd.f32 %v3238, %v3294
      %v3303 = vadd.f32 %v3239, %v3295
      %v3304 = vadd.f32 %v3240, %v3296
      %v3305 = vadd.f32 %v3241, %v3297
      %v3306 = vadd.f32 %v3242, %v3298
      %v3307 = vadd.f32 %v3243, %v3299
      %v3308 = vadd.f32 %v3244, %v3300
      %vm3309 = vcmp.eq.s32.totalorder %v3181, 8
      %vm3310 = vcmp.eq.s32.totalorder %v3182, 8
      %vm3311 = vcmp.eq.s32.totalorder %v3183, 8
      %vm3312 = vcmp.eq.s32.totalorder %v3184, 8
      %vm3313 = vcmp.eq.s32.totalorder %v3185, 8
      %vm3314 = vcmp.eq.s32.totalorder %v3186, 8
      %vm3315 = vcmp.eq.s32.totalorder %v3187, 8
      %vm3316 = vcmp.eq.s32.totalorder %v3188, 8
      %3318 = vset.pattern.permute.xlu0 6
      %3319 = vperm.xlu0 %3318, %v3045
      %v3320 = vpop.permute.xlu0 %3319
      %3323 = vset.pattern.permute.xlu0 6
      %3324 = vperm.xlu0 %3323, %v3046
      %v3325 = vpop.permute.xlu0 %3324
      %3328 = vset.pattern.permute.xlu0 6
      %3329 = vperm.xlu0 %3328, %v3047
      %v3330 = vpop.permute.xlu0 %3329
      %3333 = vset.pattern.permute.xlu0 6
      %3334 = vperm.xlu0 %3333, %v3048
      %v3335 = vpop.permute.xlu0 %3334
      %3338 = vset.pattern.permute.xlu0 6
      %3339 = vperm.xlu0 %3338, %v3049
      %v3340 = vpop.permute.xlu0 %3339
      %3343 = vset.pattern.permute.xlu0 6
      %3344 = vperm.xlu0 %3343, %v3050
      %v3345 = vpop.permute.xlu0 %3344
      %3348 = vset.pattern.permute.xlu0 6
      %3349 = vperm.xlu0 %3348, %v3051
      %v3350 = vpop.permute.xlu0 %3349
      %3353 = vset.pattern.permute.xlu0 6
      %3354 = vperm.xlu0 %3353, %v3052
      %v3355 = vpop.permute.xlu0 %3354
      %v3357 = vsel %vm3309, %v3320, 0.0
      %v3358 = vsel %vm3310, %v3325, 0.0
      %v3359 = vsel %vm3311, %v3330, 0.0
      %v3360 = vsel %vm3312, %v3335, 0.0
      %v3361 = vsel %vm3313, %v3340, 0.0
      %v3362 = vsel %vm3314, %v3345, 0.0
      %v3363 = vsel %vm3315, %v3350, 0.0
      %v3364 = vsel %vm3316, %v3355, 0.0
      %v3365 = vadd.f32 %v3301, %v3357
      %v3366 = vadd.f32 %v3302, %v3358
      %v3367 = vadd.f32 %v3303, %v3359
      %v3368 = vadd.f32 %v3304, %v3360
      %v3369 = vadd.f32 %v3305, %v3361
      %v3370 = vadd.f32 %v3306, %v3362
      %v3371 = vadd.f32 %v3307, %v3363
      %v3372 = vadd.f32 %v3308, %v3364
      %vm3373 = vcmp.eq.s32.totalorder %v3181, 9
      %vm3374 = vcmp.eq.s32.totalorder %v3182, 9
      %vm3375 = vcmp.eq.s32.totalorder %v3183, 9
      %vm3376 = vcmp.eq.s32.totalorder %v3184, 9
      %vm3377 = vcmp.eq.s32.totalorder %v3185, 9
      %vm3378 = vcmp.eq.s32.totalorder %v3186, 9
      %vm3379 = vcmp.eq.s32.totalorder %v3187, 9
      %vm3380 = vcmp.eq.s32.totalorder %v3188, 9
      %3382 = vset.pattern.permute.xlu0 6
      %3383 = vperm.xlu0 %3382, %v3101
      %v3384 = vpop.permute.xlu0 %3383
      %3387 = vset.pattern.permute.xlu0 6
      %3388 = vperm.xlu0 %3387, %v3102
      %v3389 = vpop.permute.xlu0 %3388
      %3392 = vset.pattern.permute.xlu0 6
      %3393 = vperm.xlu0 %3392, %v3103
      %v3394 = vpop.permute.xlu0 %3393
      %3397 = vset.pattern.permute.xlu0 6
      %3398 = vperm.xlu0 %3397, %v3104
      %v3399 = vpop.permute.xlu0 %3398
      %3402 = vset.pattern.permute.xlu0 6
      %3403 = vperm.xlu0 %3402, %v3105
      %v3404 = vpop.permute.xlu0 %3403
      %3407 = vset.pattern.permute.xlu0 6
      %3408 = vperm.xlu0 %3407, %v3106
      %v3409 = vpop.permute.xlu0 %3408
      %3412 = vset.pattern.permute.xlu0 6
      %3413 = vperm.xlu0 %3412, %v3107
      %v3414 = vpop.permute.xlu0 %3413
      %3417 = vset.pattern.permute.xlu0 6
      %3418 = vperm.xlu0 %3417, %v3108
      %v3419 = vpop.permute.xlu0 %3418
      %v3421 = vsel %vm3373, %v3384, 0.0
      %v3422 = vsel %vm3374, %v3389, 0.0
      %v3423 = vsel %vm3375, %v3394, 0.0
      %v3424 = vsel %vm3376, %v3399, 0.0
      %v3425 = vsel %vm3377, %v3404, 0.0
      %v3426 = vsel %vm3378, %v3409, 0.0
      %v3427 = vsel %vm3379, %v3414, 0.0
      %v3428 = vsel %vm3380, %v3419, 0.0
      %v3429 = vadd.f32 %v3365, %v3421
      %v3430 = vadd.f32 %v3366, %v3422
      %v3431 = vadd.f32 %v3367, %v3423
      %v3432 = vadd.f32 %v3368, %v3424
      %v3433 = vadd.f32 %v3369, %v3425
      %v3434 = vadd.f32 %v3370, %v3426
      %v3435 = vadd.f32 %v3371, %v3427
      %v3436 = vadd.f32 %v3372, %v3428
      %vm3437 = vcmp.ge.s32.totalorder %v1194, 2
      %vm3438 = vcmp.lt.s32.totalorder %v1194, 4
      %vm3439 = vmand %vm3437, %vm3438
      %v3440 = vsel %vm3439, 1, 0
      %vm3441 = vcmp.eq.s32.totalorder %v3440, 1
      %vm3442 = vmpackc.low %vm3441, %vm3441
      %v3443 = vsel %vm3442, %v1169, 0
      %v3444 = vsel %vm3442, %v1170, 0
      %v3445 = vsel %vm3442, %v1171, 0
      %v3446 = vsel %vm3442, %v1172, 0
      %v3447 = vsel %vm3442, %v1173, 0
      %v3448 = vsel %vm3442, %v1174, 0
      %v3449 = vsel %vm3442, %v1175, 0
      %v3450 = vsel %vm3442, %v1176, 0
      %v3451 = vpack.c.bf16 %v3430, %v3429
      %v3452 = vpack.c.bf16 %v3432, %v3431
      %v3453 = vpack.c.bf16 %v3434, %v3433
      %v3454 = vpack.c.bf16 %v3436, %v3435
      %v3463 = vunpack.c.l.b16 %v3443
      %v3464 = vunpack.c.l.b16 %v3444
      %v3465 = vunpack.c.l.b16 %v3445
      %v3466 = vunpack.c.l.b16 %v3446
      %v3467 = vunpack.c.l.b16 %v3447
      %v3468 = vunpack.c.l.b16 %v3448
      %v3469 = vunpack.c.l.b16 %v3449
      %v3470 = vunpack.c.l.b16 %v3450
      %v3471 = vpack.c.b16 %v3464, %v3463
      %v3472 = vpack.c.b16 %v3466, %v3465
      %v3473 = vpack.c.b16 %v3468, %v3467
      %v3474 = vpack.c.b16 %v3470, %v3469
      %vm3479 = vcmask 523264
      %v3481 = vsel %vm3479, %v3451, 0
      %v3484 = vsel %vm3479, %v3452, 0
      %v3487 = vsel %vm3479, %v3453, 0
      %v3490 = vsel %vm3479, %v3454, 0
      %3492 = vmatprep.subr.bf16.mxu0 0
      %3493 = vmatpush1.bf16.msra.mxu0 0
      %3494 = vmatprep.subr.bf16.mxu0 0
      %3495 = vmatpush1.bf16.msra.mxu0 0
      %3496 = vmatprep.subr.bf16.mxu0 0
      %3497 = vmatpush1.bf16.msra.mxu0 0
      %3498 = vmatprep.subr.bf16.mxu0 0
      %3499 = vmatpush1.bf16.msra.mxu0 0
      %3500 = vmatprep.subr.bf16.mxu0 0
      %3501 = vmatpush1.bf16.msra.mxu0 %v3474
      %3502 = vmatprep.subr.bf16.mxu0 0
      %3503 = vmatpush1.bf16.msra.mxu0 %v3473
      %3504 = vmatprep.subr.bf16.mxu0 0
      %3505 = vmatpush1.bf16.msra.mxu0 %v3472
      %3506 = vmatprep.subr.bf16.mxu0 0
      %3507 = vmatpush1.bf16.msra.mxu0 %v3471
      %3508 = vmatprep.subr.bf16.mxu0 0
      %3509 = vmatpush2.bf16.msra.mxu0 0
      %3510 = vmatprep.subr.bf16.mxu0 0
      %3511 = vmatpush2.bf16.msra.mxu0 0
      %3512 = vmatprep.subr.bf16.mxu0 0
      %3513 = vmatpush2.bf16.msra.mxu0 0
      %3514 = vmatprep.subr.bf16.mxu0 0
      %3515 = vmatpush2.bf16.msra.mxu0 0
      %3516 = vmatprep.subr.bf16.mxu0 0
      %3517 = vmatpush2.bf16.msra.mxu0 0
      %3518 = vmatprep.subr.bf16.mxu0 0
      %3519 = vmatpush2.bf16.msra.mxu0 0
      %3520 = vmatprep.subr.bf16.mxu0 0
      %3521 = vmatpush2.bf16.msra.mxu0 0
      %3522 = vmatprep.subr.bf16.mxu0 0
      %3523 = vmatpush2.bf16.msra.mxu0 0
      %3524 = vmatprep.mubr.bf16.mxu0 0
      %3525 = vmatmul.mubr.bf16.gmra.mxu0 %v3481
      %v3526 = vpop.f32.mrf.mxu0
      %v3527 = vadd.f32 0.0, %v3526
      %v3528 = vpop.f32.mrf.mxu0
      %v3529 = vpop.f32.mrf.mxu0
      %v3530 = vadd.f32 0.0, %v3529
      %v3531 = vpop.f32.mrf.mxu0
      %3532 = vmatprep.mubr.bf16.mxu0 0
      %3533 = vmatmul.mubr.bf16.gmra.mxu0 %v3484
      %v3534 = vpop.f32.mrf.mxu0
      %v3535 = vadd.f32 0.0, %v3534
      %v3536 = vpop.f32.mrf.mxu0
      %v3537 = vpop.f32.mrf.mxu0
      %v3538 = vadd.f32 0.0, %v3537
      %v3539 = vpop.f32.mrf.mxu0
      %3540 = vmatprep.mubr.bf16.mxu0 0
      %3541 = vmatmul.mubr.bf16.gmra.mxu0 %v3487
      %v3542 = vpop.f32.mrf.mxu0
      %v3543 = vadd.f32 0.0, %v3542
      %v3544 = vpop.f32.mrf.mxu0
      %v3545 = vpop.f32.mrf.mxu0
      %v3546 = vadd.f32 0.0, %v3545
      %v3547 = vpop.f32.mrf.mxu0
      %3548 = vmatprep.mubr.bf16.mxu0 0
      %3549 = vmatmul.mubr.bf16.gmra.mxu0 %v3490
      %v3550 = vpop.f32.mrf.mxu0
      %v3551 = vadd.f32 0.0, %v3550
      %v3552 = vpop.f32.mrf.mxu0
      %v3553 = vpop.f32.mrf.mxu0
      %v3554 = vadd.f32 0.0, %v3553
      %v3555 = vpop.f32.mrf.mxu0
      %3556 = vdwg.mxu0
      %v3565 = vunpack.c.l.b16 %v2313
      %v3566 = vunpack.c.l.b16 %v2314
      %v3567 = vunpack.c.l.b16 %v2315
      %v3568 = vunpack.c.l.b16 %v2316
      %v3569 = vunpack.c.l.b16 %v2317
      %v3570 = vunpack.c.l.b16 %v2318
      %v3571 = vunpack.c.l.b16 %v2319
      %v3572 = vunpack.c.l.b16 %v2320
      %v3573 = vpack.c.b16 %v3566, %v3565
      %v3574 = vpack.c.b16 %v3568, %v3567
      %v3575 = vpack.c.b16 %v3570, %v3569
      %v3576 = vpack.c.b16 %v3572, %v3571
      %v3582 = vsel %vm3479, %v2321, 0
      %v3585 = vsel %vm3479, %v2322, 0
      %v3588 = vsel %vm3479, %v2323, 0
      %v3591 = vsel %vm3479, %v2324, 0
      %3593 = vmatprep.subr.bf16.mxu0 0
      %3594 = vmatpush1.bf16.msra.mxu0 0
      %3595 = vmatprep.subr.bf16.mxu0 0
      %3596 = vmatpush1.bf16.msra.mxu0 0
      %3597 = vmatprep.subr.bf16.mxu0 0
      %3598 = vmatpush1.bf16.msra.mxu0 0
      %3599 = vmatprep.subr.bf16.mxu0 0
      %3600 = vmatpush1.bf16.msra.mxu0 0
      %3601 = vmatprep.subr.bf16.mxu0 0
      %3602 = vmatpush1.bf16.msra.mxu0 %v3576
      %3603 = vmatprep.subr.bf16.mxu0 0
      %3604 = vmatpush1.bf16.msra.mxu0 %v3575
      %3605 = vmatprep.subr.bf16.mxu0 0
      %3606 = vmatpush1.bf16.msra.mxu0 %v3574
      %3607 = vmatprep.subr.bf16.mxu0 0
      %3608 = vmatpush1.bf16.msra.mxu0 %v3573
      %3609 = vmatprep.subr.bf16.mxu0 0
      %3610 = vmatpush2.bf16.msra.mxu0 0
      %3611 = vmatprep.subr.bf16.mxu0 0
      %3612 = vmatpush2.bf16.msra.mxu0 0
      %3613 = vmatprep.subr.bf16.mxu0 0
      %3614 = vmatpush2.bf16.msra.mxu0 0
      %3615 = vmatprep.subr.bf16.mxu0 0
      %3616 = vmatpush2.bf16.msra.mxu0 0
      %3617 = vmatprep.subr.bf16.mxu0 0
      %3618 = vmatpush2.bf16.msra.mxu0 0
      %3619 = vmatprep.subr.bf16.mxu0 0
      %3620 = vmatpush2.bf16.msra.mxu0 0
      %3621 = vmatprep.subr.bf16.mxu0 0
      %3622 = vmatpush2.bf16.msra.mxu0 0
      %3623 = vmatprep.subr.bf16.mxu0 0
      %3624 = vmatpush2.bf16.msra.mxu0 0
      %3625 = vmatprep.mubr.bf16.mxu0 0
      %3626 = vmatmul.mubr.bf16.gmra.mxu0 %v3582
      %v3627 = vpop.f32.mrf.mxu0
      %v3628 = vadd.f32 %v3527, %v3627
      %v3629 = vpop.f32.mrf.mxu0
      %v3630 = vpop.f32.mrf.mxu0
      %v3631 = vadd.f32 %v3530, %v3630
      %v3632 = vpop.f32.mrf.mxu0
      %3633 = vmatprep.mubr.bf16.mxu0 0
      %3634 = vmatmul.mubr.bf16.gmra.mxu0 %v3585
      %v3635 = vpop.f32.mrf.mxu0
      %v3636 = vadd.f32 %v3535, %v3635
      %v3637 = vpop.f32.mrf.mxu0
      %v3638 = vpop.f32.mrf.mxu0
      %v3639 = vadd.f32 %v3538, %v3638
      %v3640 = vpop.f32.mrf.mxu0
      %3641 = vmatprep.mubr.bf16.mxu0 0
      %3642 = vmatmul.mubr.bf16.gmra.mxu0 %v3588
      %v3643 = vpop.f32.mrf.mxu0
      %v3644 = vadd.f32 %v3543, %v3643
      %v3645 = vpop.f32.mrf.mxu0
      %v3646 = vpop.f32.mrf.mxu0
      %v3647 = vadd.f32 %v3546, %v3646
      %v3648 = vpop.f32.mrf.mxu0
      %3649 = vmatprep.mubr.bf16.mxu0 0
      %3650 = vmatmul.mubr.bf16.gmra.mxu0 %v3591
      %v3651 = vpop.f32.mrf.mxu0
      %v3652 = vadd.f32 %v3551, %v3651
      %v3653 = vpop.f32.mrf.mxu0
      %v3654 = vpop.f32.mrf.mxu0
      %v3655 = vadd.f32 %v3554, %v3654
      %v3656 = vpop.f32.mrf.mxu0
      %3657 = vdwg.mxu0
      %3658 = vrot.lane.b32.xlu0 %v1177, 12
      %v3659 = vpop.permute.xlu0 %3658
      %3660 = vrot.lane.b32.xlu0 %v1178, 12
      %v3661 = vpop.permute.xlu0 %3660
      %3662 = vrot.lane.b32.xlu0 %v1179, 12
      %v3663 = vpop.permute.xlu0 %3662
      %3664 = vrot.lane.b32.xlu0 %v1180, 12
      %v3665 = vpop.permute.xlu0 %3664
      %3666 = vrot.lane.b32.xlu0 %v1181, 12
      %v3667 = vpop.permute.xlu0 %3666
      %3668 = vrot.lane.b32.xlu0 %v1182, 12
      %v3669 = vpop.permute.xlu0 %3668
      %3670 = vrot.lane.b32.xlu0 %v1183, 12
      %v3671 = vpop.permute.xlu0 %3670
      %3672 = vrot.lane.b32.xlu0 %v1184, 12
      %v3673 = vpop.permute.xlu0 %3672
      %v3682 = vmul.f32 %v1198, %v3659
      %v3683 = vmul.f32 %v1198, %v3661
      %v3684 = vmul.f32 %v1198, %v3663
      %v3685 = vmul.f32 %v1198, %v3665
      %v3686 = vmul.f32 %v1198, %v3667
      %v3687 = vmul.f32 %v1198, %v3669
      %v3688 = vmul.f32 %v1198, %v3671
      %v3689 = vmul.f32 %v1198, %v3673
      %3690 = vrot.lane.b32.xlu0 %v1185, 13
      %v3691 = vpop.permute.xlu0 %3690
      %3692 = vrot.lane.b32.xlu0 %v1186, 13
      %v3693 = vpop.permute.xlu0 %3692
      %3694 = vrot.lane.b32.xlu0 %v1187, 13
      %v3695 = vpop.permute.xlu0 %3694
      %3696 = vrot.lane.b32.xlu0 %v1188, 13
      %v3697 = vpop.permute.xlu0 %3696
      %3698 = vrot.lane.b32.xlu0 %v1189, 13
      %v3699 = vpop.permute.xlu0 %3698
      %3700 = vrot.lane.b32.xlu0 %v1190, 13
      %v3701 = vpop.permute.xlu0 %3700
      %3702 = vrot.lane.b32.xlu0 %v1191, 13
      %v3703 = vpop.permute.xlu0 %3702
      %3704 = vrot.lane.b32.xlu0 %v1192, 13
      %v3705 = vpop.permute.xlu0 %3704
      %v3714 = vmul.f32 %v1198, %v3691
      %v3715 = vmul.f32 %v1198, %v3693
      %v3716 = vmul.f32 %v1198, %v3695
      %v3717 = vmul.f32 %v1198, %v3697
      %v3718 = vmul.f32 %v1198, %v3699
      %v3719 = vmul.f32 %v1198, %v3701
      %v3720 = vmul.f32 %v1198, %v3703
      %v3721 = vmul.f32 %v1198, %v3705
      %3730 = vrot.lane.b32.xlu0 %v3714, 127
      %v3731 = vpop.permute.xlu0 %3730
      %3732 = vrot.lane.b32.xlu0 %v3715, 127
      %v3733 = vpop.permute.xlu0 %3732
      %3734 = vrot.lane.b32.xlu0 %v3716, 127
      %v3735 = vpop.permute.xlu0 %3734
      %3736 = vrot.lane.b32.xlu0 %v3717, 127
      %v3737 = vpop.permute.xlu0 %3736
      %3738 = vrot.lane.b32.xlu0 %v3718, 127
      %v3739 = vpop.permute.xlu0 %3738
      %3740 = vrot.lane.b32.xlu0 %v3719, 127
      %v3741 = vpop.permute.xlu0 %3740
      %3742 = vrot.lane.b32.xlu0 %v3720, 127
      %v3743 = vpop.permute.xlu0 %3742
      %3744 = vrot.lane.b32.xlu0 %v3721, 127
      %v3745 = vpop.permute.xlu0 %3744
      %v3754 = vadd.f32 %v3682, %v3731
      %v3755 = vadd.f32 %v3683, %v3733
      %v3756 = vadd.f32 %v3684, %v3735
      %v3757 = vadd.f32 %v3685, %v3737
      %v3758 = vadd.f32 %v3686, %v3739
      %v3759 = vadd.f32 %v3687, %v3741
      %v3760 = vadd.f32 %v3688, %v3743
      %v3761 = vadd.f32 %v3689, %v3745
      %v3762 = vadd.f32 %v3754, %v1289
      %v3763 = vadd.f32 %v3755, %v1289
      %v3764 = vadd.f32 %v3756, %v1289
      %v3765 = vadd.f32 %v3757, %v1289
      %v3766 = vadd.f32 %v3758, %v1289
      %v3767 = vadd.f32 %v3759, %v1289
      %v3768 = vadd.f32 %v3760, %v1289
      %v3769 = vadd.f32 %v3761, %v1289
      %3770 = vrot.lane.b32.xlu0 %v1177, 15
      %v3771 = vpop.permute.xlu0 %3770
      %3772 = vrot.lane.b32.xlu0 %v1178, 15
      %v3773 = vpop.permute.xlu0 %3772
      %3774 = vrot.lane.b32.xlu0 %v1179, 15
      %v3775 = vpop.permute.xlu0 %3774
      %3776 = vrot.lane.b32.xlu0 %v1180, 15
      %v3777 = vpop.permute.xlu0 %3776
      %3778 = vrot.lane.b32.xlu0 %v1181, 15
      %v3779 = vpop.permute.xlu0 %3778
      %3780 = vrot.lane.b32.xlu0 %v1182, 15
      %v3781 = vpop.permute.xlu0 %3780
      %3782 = vrot.lane.b32.xlu0 %v1183, 15
      %v3783 = vpop.permute.xlu0 %3782
      %3784 = vrot.lane.b32.xlu0 %v1184, 15
      %v3785 = vpop.permute.xlu0 %3784
      %v3794 = vmul.f32 %v1198, %v3771
      %v3795 = vmul.f32 %v1198, %v3773
      %v3796 = vmul.f32 %v1198, %v3775
      %v3797 = vmul.f32 %v1198, %v3777
      %v3798 = vmul.f32 %v1198, %v3779
      %v3799 = vmul.f32 %v1198, %v3781
      %v3800 = vmul.f32 %v1198, %v3783
      %v3801 = vmul.f32 %v1198, %v3785
      %3802 = vrot.lane.b32.xlu0 %v1185, 16
      %v3803 = vpop.permute.xlu0 %3802
      %3804 = vrot.lane.b32.xlu0 %v1186, 16
      %v3805 = vpop.permute.xlu0 %3804
      %3806 = vrot.lane.b32.xlu0 %v1187, 16
      %v3807 = vpop.permute.xlu0 %3806
      %3808 = vrot.lane.b32.xlu0 %v1188, 16
      %v3809 = vpop.permute.xlu0 %3808
      %3810 = vrot.lane.b32.xlu0 %v1189, 16
      %v3811 = vpop.permute.xlu0 %3810
      %3812 = vrot.lane.b32.xlu0 %v1190, 16
      %v3813 = vpop.permute.xlu0 %3812
      %3814 = vrot.lane.b32.xlu0 %v1191, 16
      %v3815 = vpop.permute.xlu0 %3814
      %3816 = vrot.lane.b32.xlu0 %v1192, 16
      %v3817 = vpop.permute.xlu0 %3816
      %v3826 = vmul.f32 %v1198, %v3803
      %v3827 = vmul.f32 %v1198, %v3805
      %v3828 = vmul.f32 %v1198, %v3807
      %v3829 = vmul.f32 %v1198, %v3809
      %v3830 = vmul.f32 %v1198, %v3811
      %v3831 = vmul.f32 %v1198, %v3813
      %v3832 = vmul.f32 %v1198, %v3815
      %v3833 = vmul.f32 %v1198, %v3817
      %3842 = vrot.lane.b32.xlu0 %v3826, 127
      %v3843 = vpop.permute.xlu0 %3842
      %3844 = vrot.lane.b32.xlu0 %v3827, 127
      %v3845 = vpop.permute.xlu0 %3844
      %3846 = vrot.lane.b32.xlu0 %v3828, 127
      %v3847 = vpop.permute.xlu0 %3846
      %3848 = vrot.lane.b32.xlu0 %v3829, 127
      %v3849 = vpop.permute.xlu0 %3848
      %3850 = vrot.lane.b32.xlu0 %v3830, 127
      %v3851 = vpop.permute.xlu0 %3850
      %3852 = vrot.lane.b32.xlu0 %v3831, 127
      %v3853 = vpop.permute.xlu0 %3852
      %3854 = vrot.lane.b32.xlu0 %v3832, 127
      %v3855 = vpop.permute.xlu0 %3854
      %3856 = vrot.lane.b32.xlu0 %v3833, 127
      %v3857 = vpop.permute.xlu0 %3856
      %v3866 = vadd.f32 %v3794, %v3843
      %v3867 = vadd.f32 %v3795, %v3845
      %v3868 = vadd.f32 %v3796, %v3847
      %v3869 = vadd.f32 %v3797, %v3849
      %v3870 = vadd.f32 %v3798, %v3851
      %v3871 = vadd.f32 %v3799, %v3853
      %v3872 = vadd.f32 %v3800, %v3855
      %v3873 = vadd.f32 %v3801, %v3857
      %v3874 = vadd.f32 %v3866, %v1289
      %v3875 = vadd.f32 %v3867, %v1289
      %v3876 = vadd.f32 %v3868, %v1289
      %v3877 = vadd.f32 %v3869, %v1289
      %v3878 = vadd.f32 %v3870, %v1289
      %v3879 = vadd.f32 %v3871, %v1289
      %v3880 = vadd.f32 %v3872, %v1289
      %v3881 = vadd.f32 %v3873, %v1289
      %v3882 = vadd.f32 %v3762, 1.0
      %v3883 = vadd.f32 %v3763, 1.0
      %v3884 = vadd.f32 %v3764, 1.0
      %v3885 = vadd.f32 %v3765, 1.0
      %v3886 = vadd.f32 %v3766, 1.0
      %v3887 = vadd.f32 %v3767, 1.0
      %v3888 = vadd.f32 %v3768, 1.0
      %v3889 = vadd.f32 %v3769, 1.0
      %v3890 = vmul.f32 %v3882, 8.0
      %v3891 = vmul.f32 %v3883, 8.0
      %v3892 = vmul.f32 %v3884, 8.0
      %v3893 = vmul.f32 %v3885, 8.0
      %v3894 = vmul.f32 %v3886, 8.0
      %v3895 = vmul.f32 %v3887, 8.0
      %v3896 = vmul.f32 %v3888, 8.0
      %v3897 = vmul.f32 %v3889, 8.0
      %v3898 = vsub.f32 %v3890, 1.0
      %v3899 = vsub.f32 %v3891, 1.0
      %v3900 = vsub.f32 %v3892, 1.0
      %v3901 = vsub.f32 %v3893, 1.0
      %v3902 = vsub.f32 %v3894, 1.0
      %v3903 = vsub.f32 %v3895, 1.0
      %v3904 = vsub.f32 %v3896, 1.0
      %v3905 = vsub.f32 %v3897, 1.0
      %v3906 = vmul.f32 %v3898, 0.5
      %v3907 = vmul.f32 %v3899, 0.5
      %v3908 = vmul.f32 %v3900, 0.5
      %v3909 = vmul.f32 %v3901, 0.5
      %v3910 = vmul.f32 %v3902, 0.5
      %v3911 = vmul.f32 %v3903, 0.5
      %v3912 = vmul.f32 %v3904, 0.5
      %v3913 = vmul.f32 %v3905, 0.5
      %v3914 = vadd.f32 %v3874, 1.0
      %v3915 = vadd.f32 %v3875, 1.0
      %v3916 = vadd.f32 %v3876, 1.0
      %v3917 = vadd.f32 %v3877, 1.0
      %v3918 = vadd.f32 %v3878, 1.0
      %v3919 = vadd.f32 %v3879, 1.0
      %v3920 = vadd.f32 %v3880, 1.0
      %v3921 = vadd.f32 %v3881, 1.0
      %v3922 = vmul.f32 %v3914, 8.0
      %v3923 = vmul.f32 %v3915, 8.0
      %v3924 = vmul.f32 %v3916, 8.0
      %v3925 = vmul.f32 %v3917, 8.0
      %v3926 = vmul.f32 %v3918, 8.0
      %v3927 = vmul.f32 %v3919, 8.0
      %v3928 = vmul.f32 %v3920, 8.0
      %v3929 = vmul.f32 %v3921, 8.0
      %v3930 = vsub.f32 %v3922, 1.0
      %v3931 = vsub.f32 %v3923, 1.0
      %v3932 = vsub.f32 %v3924, 1.0
      %v3933 = vsub.f32 %v3925, 1.0
      %v3934 = vsub.f32 %v3926, 1.0
      %v3935 = vsub.f32 %v3927, 1.0
      %v3936 = vsub.f32 %v3928, 1.0
      %v3937 = vsub.f32 %v3929, 1.0
      %v3938 = vmul.f32 %v3930, 0.5
      %v3939 = vmul.f32 %v3931, 0.5
      %v3940 = vmul.f32 %v3932, 0.5
      %v3941 = vmul.f32 %v3933, 0.5
      %v3942 = vmul.f32 %v3934, 0.5
      %v3943 = vmul.f32 %v3935, 0.5
      %v3944 = vmul.f32 %v3936, 0.5
      %v3945 = vmul.f32 %v3937, 0.5
      %v3946 = vfloor.f32 %v3906
      %v3947 = vfloor.f32 %v3907
      %v3948 = vfloor.f32 %v3908
      %v3949 = vfloor.f32 %v3909
      %v3950 = vfloor.f32 %v3910
      %v3951 = vfloor.f32 %v3911
      %v3952 = vfloor.f32 %v3912
      %v3953 = vfloor.f32 %v3913
      %v3954 = vfloor.f32 %v3938
      %v3955 = vfloor.f32 %v3939
      %v3956 = vfloor.f32 %v3940
      %v3957 = vfloor.f32 %v3941
      %v3958 = vfloor.f32 %v3942
      %v3959 = vfloor.f32 %v3943
      %v3960 = vfloor.f32 %v3944
      %v3961 = vfloor.f32 %v3945
      %v3962 = vsub.f32 %v3906, %v3946
      %v3963 = vsub.f32 %v3907, %v3947
      %v3964 = vsub.f32 %v3908, %v3948
      %v3965 = vsub.f32 %v3909, %v3949
      %v3966 = vsub.f32 %v3910, %v3950
      %v3967 = vsub.f32 %v3911, %v3951
      %v3968 = vsub.f32 %v3912, %v3952
      %v3969 = vsub.f32 %v3913, %v3953
      %v3970 = vsub.f32 1.0, %v3962
      %v3971 = vsub.f32 1.0, %v3963
      %v3972 = vsub.f32 1.0, %v3964
      %v3973 = vsub.f32 1.0, %v3965
      %v3974 = vsub.f32 1.0, %v3966
      %v3975 = vsub.f32 1.0, %v3967
      %v3976 = vsub.f32 1.0, %v3968
      %v3977 = vsub.f32 1.0, %v3969
      %v3978 = vsub.f32 %v3938, %v3954
      %v3979 = vsub.f32 %v3939, %v3955
      %v3980 = vsub.f32 %v3940, %v3956
      %v3981 = vsub.f32 %v3941, %v3957
      %v3982 = vsub.f32 %v3942, %v3958
      %v3983 = vsub.f32 %v3943, %v3959
      %v3984 = vsub.f32 %v3944, %v3960
      %v3985 = vsub.f32 %v3945, %v3961
      %v3986 = vsub.f32 1.0, %v3978
      %v3987 = vsub.f32 1.0, %v3979
      %v3988 = vsub.f32 1.0, %v3980
      %v3989 = vsub.f32 1.0, %v3981
      %v3990 = vsub.f32 1.0, %v3982
      %v3991 = vsub.f32 1.0, %v3983
      %v3992 = vsub.f32 1.0, %v3984
      %v3993 = vsub.f32 1.0, %v3985
      %vm3994 = vcmp.ge.f32.partialorder %v3946, 0.0
      %vm3995 = vcmp.ge.f32.partialorder %v3947, 0.0
      %vm3996 = vcmp.ge.f32.partialorder %v3948, 0.0
      %vm3997 = vcmp.ge.f32.partialorder %v3949, 0.0
      %vm3998 = vcmp.ge.f32.partialorder %v3950, 0.0
      %vm3999 = vcmp.ge.f32.partialorder %v3951, 0.0
      %vm4000 = vcmp.ge.f32.partialorder %v3952, 0.0
      %vm4001 = vcmp.ge.f32.partialorder %v3953, 0.0
      %vm4002 = vcmp.le.f32.partialorder %v3946, 7.0
      %vm4003 = vcmp.le.f32.partialorder %v3947, 7.0
      %vm4004 = vcmp.le.f32.partialorder %v3948, 7.0
      %vm4005 = vcmp.le.f32.partialorder %v3949, 7.0
      %vm4006 = vcmp.le.f32.partialorder %v3950, 7.0
      %vm4007 = vcmp.le.f32.partialorder %v3951, 7.0
      %vm4008 = vcmp.le.f32.partialorder %v3952, 7.0
      %vm4009 = vcmp.le.f32.partialorder %v3953, 7.0
      %vm4010 = vmand %vm3994, %vm4002
      %vm4011 = vmand %vm3995, %vm4003
      %vm4012 = vmand %vm3996, %vm4004
      %vm4013 = vmand %vm3997, %vm4005
      %vm4014 = vmand %vm3998, %vm4006
      %vm4015 = vmand %vm3999, %vm4007
      %vm4016 = vmand %vm4000, %vm4008
      %vm4017 = vmand %vm4001, %vm4009
      %vm4018 = vcmp.ge.f32.partialorder %v3946, -1.0
      %vm4019 = vcmp.ge.f32.partialorder %v3947, -1.0
      %vm4020 = vcmp.ge.f32.partialorder %v3948, -1.0
      %vm4021 = vcmp.ge.f32.partialorder %v3949, -1.0
      %vm4022 = vcmp.ge.f32.partialorder %v3950, -1.0
      %vm4023 = vcmp.ge.f32.partialorder %v3951, -1.0
      %vm4024 = vcmp.ge.f32.partialorder %v3952, -1.0
      %vm4025 = vcmp.ge.f32.partialorder %v3953, -1.0
      %vm4026 = vcmp.le.f32.partialorder %v3946, 6.0
      %vm4027 = vcmp.le.f32.partialorder %v3947, 6.0
      %vm4028 = vcmp.le.f32.partialorder %v3948, 6.0
      %vm4029 = vcmp.le.f32.partialorder %v3949, 6.0
      %vm4030 = vcmp.le.f32.partialorder %v3950, 6.0
      %vm4031 = vcmp.le.f32.partialorder %v3951, 6.0
      %vm4032 = vcmp.le.f32.partialorder %v3952, 6.0
      %vm4033 = vcmp.le.f32.partialorder %v3953, 6.0
      %vm4034 = vmand %vm4018, %vm4026
      %vm4035 = vmand %vm4019, %vm4027
      %vm4036 = vmand %vm4020, %vm4028
      %vm4037 = vmand %vm4021, %vm4029
      %vm4038 = vmand %vm4022, %vm4030
      %vm4039 = vmand %vm4023, %vm4031
      %vm4040 = vmand %vm4024, %vm4032
      %vm4041 = vmand %vm4025, %vm4033
      %vm4042 = vcmp.ge.f32.partialorder %v3954, 0.0
      %vm4043 = vcmp.ge.f32.partialorder %v3955, 0.0
      %vm4044 = vcmp.ge.f32.partialorder %v3956, 0.0
      %vm4045 = vcmp.ge.f32.partialorder %v3957, 0.0
      %vm4046 = vcmp.ge.f32.partialorder %v3958, 0.0
      %vm4047 = vcmp.ge.f32.partialorder %v3959, 0.0
      %vm4048 = vcmp.ge.f32.partialorder %v3960, 0.0
      %vm4049 = vcmp.ge.f32.partialorder %v3961, 0.0
      %vm4050 = vcmp.le.f32.partialorder %v3954, 7.0
      %vm4051 = vcmp.le.f32.partialorder %v3955, 7.0
      %vm4052 = vcmp.le.f32.partialorder %v3956, 7.0
      %vm4053 = vcmp.le.f32.partialorder %v3957, 7.0
      %vm4054 = vcmp.le.f32.partialorder %v3958, 7.0
      %vm4055 = vcmp.le.f32.partialorder %v3959, 7.0
      %vm4056 = vcmp.le.f32.partialorder %v3960, 7.0
      %vm4057 = vcmp.le.f32.partialorder %v3961, 7.0
      %vm4058 = vmand %vm4042, %vm4050
      %vm4059 = vmand %vm4043, %vm4051
      %vm4060 = vmand %vm4044, %vm4052
      %vm4061 = vmand %vm4045, %vm4053
      %vm4062 = vmand %vm4046, %vm4054
      %vm4063 = vmand %vm4047, %vm4055
      %vm4064 = vmand %vm4048, %vm4056
      %vm4065 = vmand %vm4049, %vm4057
      %vm4066 = vcmp.ge.f32.partialorder %v3954, -1.0
      %vm4067 = vcmp.ge.f32.partialorder %v3955, -1.0
      %vm4068 = vcmp.ge.f32.partialorder %v3956, -1.0
      %vm4069 = vcmp.ge.f32.partialorder %v3957, -1.0
      %vm4070 = vcmp.ge.f32.partialorder %v3958, -1.0
      %vm4071 = vcmp.ge.f32.partialorder %v3959, -1.0
      %vm4072 = vcmp.ge.f32.partialorder %v3960, -1.0
      %vm4073 = vcmp.ge.f32.partialorder %v3961, -1.0
      %vm4074 = vcmp.le.f32.partialorder %v3954, 6.0
      %vm4075 = vcmp.le.f32.partialorder %v3955, 6.0
      %vm4076 = vcmp.le.f32.partialorder %v3956, 6.0
      %vm4077 = vcmp.le.f32.partialorder %v3957, 6.0
      %vm4078 = vcmp.le.f32.partialorder %v3958, 6.0
      %vm4079 = vcmp.le.f32.partialorder %v3959, 6.0
      %vm4080 = vcmp.le.f32.partialorder %v3960, 6.0
      %vm4081 = vcmp.le.f32.partialorder %v3961, 6.0
      %vm4082 = vmand %vm4066, %vm4074
      %vm4083 = vmand %vm4067, %vm4075
      %vm4084 = vmand %vm4068, %vm4076
      %vm4085 = vmand %vm4069, %vm4077
      %vm4086 = vmand %vm4070, %vm4078
      %vm4087 = vmand %vm4071, %vm4079
      %vm4088 = vmand %vm4072, %vm4080
      %vm4089 = vmand %vm4073, %vm4081
      %v4090 = vsel %vm4058, 1, 0
      %v4091 = vsel %vm4059, 1, 0
      %v4092 = vsel %vm4060, 1, 0
      %v4093 = vsel %vm4061, 1, 0
      %v4094 = vsel %vm4062, 1, 0
      %v4095 = vsel %vm4063, 1, 0
      %v4096 = vsel %vm4064, 1, 0
      %v4097 = vsel %vm4065, 1, 0
      %4098 = vrot.lane.b32.xlu0 %v4090, 125
      %v4099 = vpop.permute.xlu0 %4098
      %4100 = vrot.lane.b32.xlu0 %v4091, 125
      %v4101 = vpop.permute.xlu0 %4100
      %4102 = vrot.lane.b32.xlu0 %v4092, 125
      %v4103 = vpop.permute.xlu0 %4102
      %4104 = vrot.lane.b32.xlu0 %v4093, 125
      %v4105 = vpop.permute.xlu0 %4104
      %4106 = vrot.lane.b32.xlu0 %v4094, 125
      %v4107 = vpop.permute.xlu0 %4106
      %4108 = vrot.lane.b32.xlu0 %v4095, 125
      %v4109 = vpop.permute.xlu0 %4108
      %4110 = vrot.lane.b32.xlu0 %v4096, 125
      %v4111 = vpop.permute.xlu0 %4110
      %4112 = vrot.lane.b32.xlu0 %v4097, 125
      %v4113 = vpop.permute.xlu0 %4112
      %vm4114 = vcmp.ne.s32.totalorder %v4099, 0
      %vm4115 = vcmp.ne.s32.totalorder %v4101, 0
      %vm4116 = vcmp.ne.s32.totalorder %v4103, 0
      %vm4117 = vcmp.ne.s32.totalorder %v4105, 0
      %vm4118 = vcmp.ne.s32.totalorder %v4107, 0
      %vm4119 = vcmp.ne.s32.totalorder %v4109, 0
      %vm4120 = vcmp.ne.s32.totalorder %v4111, 0
      %vm4121 = vcmp.ne.s32.totalorder %v4113, 0
      %vm4122 = vmand %vm4010, %vm4114
      %vm4123 = vmand %vm4011, %vm4115
      %vm4124 = vmand %vm4012, %vm4116
      %vm4125 = vmand %vm4013, %vm4117
      %vm4126 = vmand %vm4014, %vm4118
      %vm4127 = vmand %vm4015, %vm4119
      %vm4128 = vmand %vm4016, %vm4120
      %vm4129 = vmand %vm4017, %vm4121
      %4138 = vrot.lane.b32.xlu0 %v3970, 3
      %v4139 = vpop.permute.xlu0 %4138
      %4140 = vrot.lane.b32.xlu0 %v3971, 3
      %v4141 = vpop.permute.xlu0 %4140
      %4142 = vrot.lane.b32.xlu0 %v3972, 3
      %v4143 = vpop.permute.xlu0 %4142
      %4144 = vrot.lane.b32.xlu0 %v3973, 3
      %v4145 = vpop.permute.xlu0 %4144
      %4146 = vrot.lane.b32.xlu0 %v3974, 3
      %v4147 = vpop.permute.xlu0 %4146
      %4148 = vrot.lane.b32.xlu0 %v3975, 3
      %v4149 = vpop.permute.xlu0 %4148
      %4150 = vrot.lane.b32.xlu0 %v3976, 3
      %v4151 = vpop.permute.xlu0 %4150
      %4152 = vrot.lane.b32.xlu0 %v3977, 3
      %v4153 = vpop.permute.xlu0 %4152
      %v4162 = vmul.f32 %v3986, %v4139
      %v4163 = vmul.f32 %v3987, %v4141
      %v4164 = vmul.f32 %v3988, %v4143
      %v4165 = vmul.f32 %v3989, %v4145
      %v4166 = vmul.f32 %v3990, %v4147
      %v4167 = vmul.f32 %v3991, %v4149
      %v4168 = vmul.f32 %v3992, %v4151
      %v4169 = vmul.f32 %v3993, %v4153
      %4178 = vrot.lane.b32.xlu0 %v4162, 125
      %v4179 = vpop.permute.xlu0 %4178
      %4180 = vrot.lane.b32.xlu0 %v4163, 125
      %v4181 = vpop.permute.xlu0 %4180
      %4182 = vrot.lane.b32.xlu0 %v4164, 125
      %v4183 = vpop.permute.xlu0 %4182
      %4184 = vrot.lane.b32.xlu0 %v4165, 125
      %v4185 = vpop.permute.xlu0 %4184
      %4186 = vrot.lane.b32.xlu0 %v4166, 125
      %v4187 = vpop.permute.xlu0 %4186
      %4188 = vrot.lane.b32.xlu0 %v4167, 125
      %v4189 = vpop.permute.xlu0 %4188
      %4190 = vrot.lane.b32.xlu0 %v4168, 125
      %v4191 = vpop.permute.xlu0 %4190
      %4192 = vrot.lane.b32.xlu0 %v4169, 125
      %v4193 = vpop.permute.xlu0 %4192
      %v4202 = vsel %vm4122, %v4179, 0.0
      %v4203 = vsel %vm4123, %v4181, 0.0
      %v4204 = vsel %vm4124, %v4183, 0.0
      %v4205 = vsel %vm4125, %v4185, 0.0
      %v4206 = vsel %vm4126, %v4187, 0.0
      %v4207 = vsel %vm4127, %v4189, 0.0
      %v4208 = vsel %vm4128, %v4191, 0.0
      %v4209 = vsel %vm4129, %v4193, 0.0
      %vm4210 = vmand %vm4034, %vm4114
      %vm4211 = vmand %vm4035, %vm4115
      %vm4212 = vmand %vm4036, %vm4116
      %vm4213 = vmand %vm4037, %vm4117
      %vm4214 = vmand %vm4038, %vm4118
      %vm4215 = vmand %vm4039, %vm4119
      %vm4216 = vmand %vm4040, %vm4120
      %vm4217 = vmand %vm4041, %vm4121
      %4226 = vrot.lane.b32.xlu0 %v3962, 3
      %v4227 = vpop.permute.xlu0 %4226
      %4228 = vrot.lane.b32.xlu0 %v3963, 3
      %v4229 = vpop.permute.xlu0 %4228
      %4230 = vrot.lane.b32.xlu0 %v3964, 3
      %v4231 = vpop.permute.xlu0 %4230
      %4232 = vrot.lane.b32.xlu0 %v3965, 3
      %v4233 = vpop.permute.xlu0 %4232
      %4234 = vrot.lane.b32.xlu0 %v3966, 3
      %v4235 = vpop.permute.xlu0 %4234
      %4236 = vrot.lane.b32.xlu0 %v3967, 3
      %v4237 = vpop.permute.xlu0 %4236
      %4238 = vrot.lane.b32.xlu0 %v3968, 3
      %v4239 = vpop.permute.xlu0 %4238
      %4240 = vrot.lane.b32.xlu0 %v3969, 3
      %v4241 = vpop.permute.xlu0 %4240
      %v4250 = vmul.f32 %v3986, %v4227
      %v4251 = vmul.f32 %v3987, %v4229
      %v4252 = vmul.f32 %v3988, %v4231
      %v4253 = vmul.f32 %v3989, %v4233
      %v4254 = vmul.f32 %v3990, %v4235
      %v4255 = vmul.f32 %v3991, %v4237
      %v4256 = vmul.f32 %v3992, %v4239
      %v4257 = vmul.f32 %v3993, %v4241
      %4266 = vrot.lane.b32.xlu0 %v4250, 125
      %v4267 = vpop.permute.xlu0 %4266
      %4268 = vrot.lane.b32.xlu0 %v4251, 125
      %v4269 = vpop.permute.xlu0 %4268
      %4270 = vrot.lane.b32.xlu0 %v4252, 125
      %v4271 = vpop.permute.xlu0 %4270
      %4272 = vrot.lane.b32.xlu0 %v4253, 125
      %v4273 = vpop.permute.xlu0 %4272
      %4274 = vrot.lane.b32.xlu0 %v4254, 125
      %v4275 = vpop.permute.xlu0 %4274
      %4276 = vrot.lane.b32.xlu0 %v4255, 125
      %v4277 = vpop.permute.xlu0 %4276
      %4278 = vrot.lane.b32.xlu0 %v4256, 125
      %v4279 = vpop.permute.xlu0 %4278
      %4280 = vrot.lane.b32.xlu0 %v4257, 125
      %v4281 = vpop.permute.xlu0 %4280
      %v4290 = vsel %vm4210, %v4267, 0.0
      %v4291 = vsel %vm4211, %v4269, 0.0
      %v4292 = vsel %vm4212, %v4271, 0.0
      %v4293 = vsel %vm4213, %v4273, 0.0
      %v4294 = vsel %vm4214, %v4275, 0.0
      %v4295 = vsel %vm4215, %v4277, 0.0
      %v4296 = vsel %vm4216, %v4279, 0.0
      %v4297 = vsel %vm4217, %v4281, 0.0
      %v4298 = vsel %vm4082, 1, 0
      %v4299 = vsel %vm4083, 1, 0
      %v4300 = vsel %vm4084, 1, 0
      %v4301 = vsel %vm4085, 1, 0
      %v4302 = vsel %vm4086, 1, 0
      %v4303 = vsel %vm4087, 1, 0
      %v4304 = vsel %vm4088, 1, 0
      %v4305 = vsel %vm4089, 1, 0
      %4306 = vrot.lane.b32.xlu0 %v4298, 125
      %v4307 = vpop.permute.xlu0 %4306
      %4308 = vrot.lane.b32.xlu0 %v4299, 125
      %v4309 = vpop.permute.xlu0 %4308
      %4310 = vrot.lane.b32.xlu0 %v4300, 125
      %v4311 = vpop.permute.xlu0 %4310
      %4312 = vrot.lane.b32.xlu0 %v4301, 125
      %v4313 = vpop.permute.xlu0 %4312
      %4314 = vrot.lane.b32.xlu0 %v4302, 125
      %v4315 = vpop.permute.xlu0 %4314
      %4316 = vrot.lane.b32.xlu0 %v4303, 125
      %v4317 = vpop.permute.xlu0 %4316
      %4318 = vrot.lane.b32.xlu0 %v4304, 125
      %v4319 = vpop.permute.xlu0 %4318
      %4320 = vrot.lane.b32.xlu0 %v4305, 125
      %v4321 = vpop.permute.xlu0 %4320
      %vm4322 = vcmp.ne.s32.totalorder %v4307, 0
      %vm4323 = vcmp.ne.s32.totalorder %v4309, 0
      %vm4324 = vcmp.ne.s32.totalorder %v4311, 0
      %vm4325 = vcmp.ne.s32.totalorder %v4313, 0
      %vm4326 = vcmp.ne.s32.totalorder %v4315, 0
      %vm4327 = vcmp.ne.s32.totalorder %v4317, 0
      %vm4328 = vcmp.ne.s32.totalorder %v4319, 0
      %vm4329 = vcmp.ne.s32.totalorder %v4321, 0
      %vm4330 = vmand %vm4010, %vm4322
      %vm4331 = vmand %vm4011, %vm4323
      %vm4332 = vmand %vm4012, %vm4324
      %vm4333 = vmand %vm4013, %vm4325
      %vm4334 = vmand %vm4014, %vm4326
      %vm4335 = vmand %vm4015, %vm4327
      %vm4336 = vmand %vm4016, %vm4328
      %vm4337 = vmand %vm4017, %vm4329
      %v4338 = vmul.f32 %v3978, %v4139
      %v4339 = vmul.f32 %v3979, %v4141
      %v4340 = vmul.f32 %v3980, %v4143
      %v4341 = vmul.f32 %v3981, %v4145
      %v4342 = vmul.f32 %v3982, %v4147
      %v4343 = vmul.f32 %v3983, %v4149
      %v4344 = vmul.f32 %v3984, %v4151
      %v4345 = vmul.f32 %v3985, %v4153
      %4354 = vrot.lane.b32.xlu0 %v4338, 125
      %v4355 = vpop.permute.xlu0 %4354
      %4356 = vrot.lane.b32.xlu0 %v4339, 125
      %v4357 = vpop.permute.xlu0 %4356
      %4358 = vrot.lane.b32.xlu0 %v4340, 125
      %v4359 = vpop.permute.xlu0 %4358
      %4360 = vrot.lane.b32.xlu0 %v4341, 125
      %v4361 = vpop.permute.xlu0 %4360
      %4362 = vrot.lane.b32.xlu0 %v4342, 125
      %v4363 = vpop.permute.xlu0 %4362
      %4364 = vrot.lane.b32.xlu0 %v4343, 125
      %v4365 = vpop.permute.xlu0 %4364
      %4366 = vrot.lane.b32.xlu0 %v4344, 125
      %v4367 = vpop.permute.xlu0 %4366
      %4368 = vrot.lane.b32.xlu0 %v4345, 125
      %v4369 = vpop.permute.xlu0 %4368
      %v4378 = vsel %vm4330, %v4355, 0.0
      %v4379 = vsel %vm4331, %v4357, 0.0
      %v4380 = vsel %vm4332, %v4359, 0.0
      %v4381 = vsel %vm4333, %v4361, 0.0
      %v4382 = vsel %vm4334, %v4363, 0.0
      %v4383 = vsel %vm4335, %v4365, 0.0
      %v4384 = vsel %vm4336, %v4367, 0.0
      %v4385 = vsel %vm4337, %v4369, 0.0
      %vm4386 = vmand %vm4034, %vm4322
      %vm4387 = vmand %vm4035, %vm4323
      %vm4388 = vmand %vm4036, %vm4324
      %vm4389 = vmand %vm4037, %vm4325
      %vm4390 = vmand %vm4038, %vm4326
      %vm4391 = vmand %vm4039, %vm4327
      %vm4392 = vmand %vm4040, %vm4328
      %vm4393 = vmand %vm4041, %vm4329
      %v4394 = vmul.f32 %v3978, %v4227
      %v4395 = vmul.f32 %v3979, %v4229
      %v4396 = vmul.f32 %v3980, %v4231
      %v4397 = vmul.f32 %v3981, %v4233
      %v4398 = vmul.f32 %v3982, %v4235
      %v4399 = vmul.f32 %v3983, %v4237
      %v4400 = vmul.f32 %v3984, %v4239
      %v4401 = vmul.f32 %v3985, %v4241
      %4410 = vrot.lane.b32.xlu0 %v4394, 125
      %v4411 = vpop.permute.xlu0 %4410
      %4412 = vrot.lane.b32.xlu0 %v4395, 125
      %v4413 = vpop.permute.xlu0 %4412
      %4414 = vrot.lane.b32.xlu0 %v4396, 125
      %v4415 = vpop.permute.xlu0 %4414
      %4416 = vrot.lane.b32.xlu0 %v4397, 125
      %v4417 = vpop.permute.xlu0 %4416
      %4418 = vrot.lane.b32.xlu0 %v4398, 125
      %v4419 = vpop.permute.xlu0 %4418
      %4420 = vrot.lane.b32.xlu0 %v4399, 125
      %v4421 = vpop.permute.xlu0 %4420
      %4422 = vrot.lane.b32.xlu0 %v4400, 125
      %v4423 = vpop.permute.xlu0 %4422
      %4424 = vrot.lane.b32.xlu0 %v4401, 125
      %v4425 = vpop.permute.xlu0 %4424
      %v4434 = vsel %vm4386, %v4411, 0.0
      %v4435 = vsel %vm4387, %v4413, 0.0
      %v4436 = vsel %vm4388, %v4415, 0.0
      %v4437 = vsel %vm4389, %v4417, 0.0
      %v4438 = vsel %vm4390, %v4419, 0.0
      %v4439 = vsel %vm4391, %v4421, 0.0
      %v4440 = vsel %vm4392, %v4423, 0.0
      %v4441 = vsel %vm4393, %v4425, 0.0
      %v4442 = vcvt.f32.s32.to.zero.pseudo %v3954
      %v4443 = vcvt.f32.s32.to.zero.pseudo %v3955
      %v4444 = vcvt.f32.s32.to.zero.pseudo %v3956
      %v4445 = vcvt.f32.s32.to.zero.pseudo %v3957
      %v4446 = vcvt.f32.s32.to.zero.pseudo %v3958
      %v4447 = vcvt.f32.s32.to.zero.pseudo %v3959
      %v4448 = vcvt.f32.s32.to.zero.pseudo %v3960
      %v4449 = vcvt.f32.s32.to.zero.pseudo %v3961
      %v4450 = vmul.u32 %v4442, 8
      %v4451 = vmul.u32 %v4443, 8
      %v4452 = vmul.u32 %v4444, 8
      %v4453 = vmul.u32 %v4445, 8
      %v4454 = vmul.u32 %v4446, 8
      %v4455 = vmul.u32 %v4447, 8
      %v4456 = vmul.u32 %v4448, 8
      %v4457 = vmul.u32 %v4449, 8
      %v4458 = vcvt.f32.s32.to.zero.pseudo %v3946
      %v4459 = vcvt.f32.s32.to.zero.pseudo %v3947
      %v4460 = vcvt.f32.s32.to.zero.pseudo %v3948
      %v4461 = vcvt.f32.s32.to.zero.pseudo %v3949
      %v4462 = vcvt.f32.s32.to.zero.pseudo %v3950
      %v4463 = vcvt.f32.s32.to.zero.pseudo %v3951
      %v4464 = vcvt.f32.s32.to.zero.pseudo %v3952
      %v4465 = vcvt.f32.s32.to.zero.pseudo %v3953
      %4466 = vrot.lane.b32.xlu0 %v4458, 3
      %v4467 = vpop.permute.xlu0 %4466
      %4468 = vrot.lane.b32.xlu0 %v4459, 3
      %v4469 = vpop.permute.xlu0 %4468
      %4470 = vrot.lane.b32.xlu0 %v4460, 3
      %v4471 = vpop.permute.xlu0 %4470
      %4472 = vrot.lane.b32.xlu0 %v4461, 3
      %v4473 = vpop.permute.xlu0 %4472
      %4474 = vrot.lane.b32.xlu0 %v4462, 3
      %v4475 = vpop.permute.xlu0 %4474
      %4476 = vrot.lane.b32.xlu0 %v4463, 3
      %v4477 = vpop.permute.xlu0 %4476
      %4478 = vrot.lane.b32.xlu0 %v4464, 3
      %v4479 = vpop.permute.xlu0 %4478
      %4480 = vrot.lane.b32.xlu0 %v4465, 3
      %v4481 = vpop.permute.xlu0 %4480
      %v4482 = vadd.s32 %v4450, %v4467
      %v4483 = vadd.s32 %v4451, %v4469
      %v4484 = vadd.s32 %v4452, %v4471
      %v4485 = vadd.s32 %v4453, %v4473
      %v4486 = vadd.s32 %v4454, %v4475
      %v4487 = vadd.s32 %v4455, %v4477
      %v4488 = vadd.s32 %v4456, %v4479
      %v4489 = vadd.s32 %v4457, %v4481
      %4490 = vset.pattern.permute.xlu0 15
      %4491 = vperm.xlu0 %4490, %v4482
      %v4492 = vpop.permute.xlu0 %4491
      %4493 = vset.pattern.permute.xlu0 15
      %4494 = vperm.xlu0 %4493, %v4483
      %v4495 = vpop.permute.xlu0 %4494
      %4496 = vset.pattern.permute.xlu0 15
      %4497 = vperm.xlu0 %4496, %v4484
      %v4498 = vpop.permute.xlu0 %4497
      %4499 = vset.pattern.permute.xlu0 15
      %4500 = vperm.xlu0 %4499, %v4485
      %v4501 = vpop.permute.xlu0 %4500
      %4502 = vset.pattern.permute.xlu0 15
      %4503 = vperm.xlu0 %4502, %v4486
      %v4504 = vpop.permute.xlu0 %4503
      %4505 = vset.pattern.permute.xlu0 15
      %4506 = vperm.xlu0 %4505, %v4487
      %v4507 = vpop.permute.xlu0 %4506
      %4508 = vset.pattern.permute.xlu0 15
      %4509 = vperm.xlu0 %4508, %v4488
      %v4510 = vpop.permute.xlu0 %4509
      %4511 = vset.pattern.permute.xlu0 15
      %4512 = vperm.xlu0 %4511, %v4489
      %v4513 = vpop.permute.xlu0 %4512
      %v4514 = vsub.s32 %v1194, %v4492
      %v4515 = vsub.s32 %v1194, %v4495
      %v4516 = vsub.s32 %v1194, %v4498
      %v4517 = vsub.s32 %v1194, %v4501
      %v4518 = vsub.s32 %v1194, %v4504
      %v4519 = vsub.s32 %v1194, %v4507
      %v4520 = vsub.s32 %v1194, %v4510
      %v4521 = vsub.s32 %v1194, %v4513
      %vm4522 = vcmp.eq.s32.totalorder %v4514, 0
      %vm4523 = vcmp.eq.s32.totalorder %v4515, 0
      %vm4524 = vcmp.eq.s32.totalorder %v4516, 0
      %vm4525 = vcmp.eq.s32.totalorder %v4517, 0
      %vm4526 = vcmp.eq.s32.totalorder %v4518, 0
      %vm4527 = vcmp.eq.s32.totalorder %v4519, 0
      %vm4528 = vcmp.eq.s32.totalorder %v4520, 0
      %vm4529 = vcmp.eq.s32.totalorder %v4521, 0
      %4531 = vset.pattern.permute.xlu0 12
      %4532 = vperm.xlu0 %4531, %v4202
      %v4533 = vpop.permute.xlu0 %4532
      %4536 = vset.pattern.permute.xlu0 12
      %4537 = vperm.xlu0 %4536, %v4203
      %v4538 = vpop.permute.xlu0 %4537
      %4541 = vset.pattern.permute.xlu0 12
      %4542 = vperm.xlu0 %4541, %v4204
      %v4543 = vpop.permute.xlu0 %4542
      %4546 = vset.pattern.permute.xlu0 12
      %4547 = vperm.xlu0 %4546, %v4205
      %v4548 = vpop.permute.xlu0 %4547
      %4551 = vset.pattern.permute.xlu0 12
      %4552 = vperm.xlu0 %4551, %v4206
      %v4553 = vpop.permute.xlu0 %4552
      %4556 = vset.pattern.permute.xlu0 12
      %4557 = vperm.xlu0 %4556, %v4207
      %v4558 = vpop.permute.xlu0 %4557
      %4561 = vset.pattern.permute.xlu0 12
      %4562 = vperm.xlu0 %4561, %v4208
      %v4563 = vpop.permute.xlu0 %4562
      %4566 = vset.pattern.permute.xlu0 12
      %4567 = vperm.xlu0 %4566, %v4209
      %v4568 = vpop.permute.xlu0 %4567
      %v4570 = vsel %vm4522, %v4533, 0.0
      %v4571 = vsel %vm4523, %v4538, 0.0
      %v4572 = vsel %vm4524, %v4543, 0.0
      %v4573 = vsel %vm4525, %v4548, 0.0
      %v4574 = vsel %vm4526, %v4553, 0.0
      %v4575 = vsel %vm4527, %v4558, 0.0
      %v4576 = vsel %vm4528, %v4563, 0.0
      %v4577 = vsel %vm4529, %v4568, 0.0
      %vm4578 = vcmp.eq.s32.totalorder %v4514, 1
      %vm4579 = vcmp.eq.s32.totalorder %v4515, 1
      %vm4580 = vcmp.eq.s32.totalorder %v4516, 1
      %vm4581 = vcmp.eq.s32.totalorder %v4517, 1
      %vm4582 = vcmp.eq.s32.totalorder %v4518, 1
      %vm4583 = vcmp.eq.s32.totalorder %v4519, 1
      %vm4584 = vcmp.eq.s32.totalorder %v4520, 1
      %vm4585 = vcmp.eq.s32.totalorder %v4521, 1
      %4587 = vset.pattern.permute.xlu0 12
      %4588 = vperm.xlu0 %4587, %v4290
      %v4589 = vpop.permute.xlu0 %4588
      %4592 = vset.pattern.permute.xlu0 12
      %4593 = vperm.xlu0 %4592, %v4291
      %v4594 = vpop.permute.xlu0 %4593
      %4597 = vset.pattern.permute.xlu0 12
      %4598 = vperm.xlu0 %4597, %v4292
      %v4599 = vpop.permute.xlu0 %4598
      %4602 = vset.pattern.permute.xlu0 12
      %4603 = vperm.xlu0 %4602, %v4293
      %v4604 = vpop.permute.xlu0 %4603
      %4607 = vset.pattern.permute.xlu0 12
      %4608 = vperm.xlu0 %4607, %v4294
      %v4609 = vpop.permute.xlu0 %4608
      %4612 = vset.pattern.permute.xlu0 12
      %4613 = vperm.xlu0 %4612, %v4295
      %v4614 = vpop.permute.xlu0 %4613
      %4617 = vset.pattern.permute.xlu0 12
      %4618 = vperm.xlu0 %4617, %v4296
      %v4619 = vpop.permute.xlu0 %4618
      %4622 = vset.pattern.permute.xlu0 12
      %4623 = vperm.xlu0 %4622, %v4297
      %v4624 = vpop.permute.xlu0 %4623
      %v4626 = vsel %vm4578, %v4589, 0.0
      %v4627 = vsel %vm4579, %v4594, 0.0
      %v4628 = vsel %vm4580, %v4599, 0.0
      %v4629 = vsel %vm4581, %v4604, 0.0
      %v4630 = vsel %vm4582, %v4609, 0.0
      %v4631 = vsel %vm4583, %v4614, 0.0
      %v4632 = vsel %vm4584, %v4619, 0.0
      %v4633 = vsel %vm4585, %v4624, 0.0
      %v4634 = vadd.f32 %v4570, %v4626
      %v4635 = vadd.f32 %v4571, %v4627
      %v4636 = vadd.f32 %v4572, %v4628
      %v4637 = vadd.f32 %v4573, %v4629
      %v4638 = vadd.f32 %v4574, %v4630
      %v4639 = vadd.f32 %v4575, %v4631
      %v4640 = vadd.f32 %v4576, %v4632
      %v4641 = vadd.f32 %v4577, %v4633
      %vm4642 = vcmp.eq.s32.totalorder %v4514, 8
      %vm4643 = vcmp.eq.s32.totalorder %v4515, 8
      %vm4644 = vcmp.eq.s32.totalorder %v4516, 8
      %vm4645 = vcmp.eq.s32.totalorder %v4517, 8
      %vm4646 = vcmp.eq.s32.totalorder %v4518, 8
      %vm4647 = vcmp.eq.s32.totalorder %v4519, 8
      %vm4648 = vcmp.eq.s32.totalorder %v4520, 8
      %vm4649 = vcmp.eq.s32.totalorder %v4521, 8
      %4651 = vset.pattern.permute.xlu0 12
      %4652 = vperm.xlu0 %4651, %v4378
      %v4653 = vpop.permute.xlu0 %4652
      %4656 = vset.pattern.permute.xlu0 12
      %4657 = vperm.xlu0 %4656, %v4379
      %v4658 = vpop.permute.xlu0 %4657
      %4661 = vset.pattern.permute.xlu0 12
      %4662 = vperm.xlu0 %4661, %v4380
      %v4663 = vpop.permute.xlu0 %4662
      %4666 = vset.pattern.permute.xlu0 12
      %4667 = vperm.xlu0 %4666, %v4381
      %v4668 = vpop.permute.xlu0 %4667
      %4671 = vset.pattern.permute.xlu0 12
      %4672 = vperm.xlu0 %4671, %v4382
      %v4673 = vpop.permute.xlu0 %4672
      %4676 = vset.pattern.permute.xlu0 12
      %4677 = vperm.xlu0 %4676, %v4383
      %v4678 = vpop.permute.xlu0 %4677
      %4681 = vset.pattern.permute.xlu0 12
      %4682 = vperm.xlu0 %4681, %v4384
      %v4683 = vpop.permute.xlu0 %4682
      %4686 = vset.pattern.permute.xlu0 12
      %4687 = vperm.xlu0 %4686, %v4385
      %v4688 = vpop.permute.xlu0 %4687
      %v4690 = vsel %vm4642, %v4653, 0.0
      %v4691 = vsel %vm4643, %v4658, 0.0
      %v4692 = vsel %vm4644, %v4663, 0.0
      %v4693 = vsel %vm4645, %v4668, 0.0
      %v4694 = vsel %vm4646, %v4673, 0.0
      %v4695 = vsel %vm4647, %v4678, 0.0
      %v4696 = vsel %vm4648, %v4683, 0.0
      %v4697 = vsel %vm4649, %v4688, 0.0
      %v4698 = vadd.f32 %v4634, %v4690
      %v4699 = vadd.f32 %v4635, %v4691
      %v4700 = vadd.f32 %v4636, %v4692
      %v4701 = vadd.f32 %v4637, %v4693
      %v4702 = vadd.f32 %v4638, %v4694
      %v4703 = vadd.f32 %v4639, %v4695
      %v4704 = vadd.f32 %v4640, %v4696
      %v4705 = vadd.f32 %v4641, %v4697
      %vm4706 = vcmp.eq.s32.totalorder %v4514, 9
      %vm4707 = vcmp.eq.s32.totalorder %v4515, 9
      %vm4708 = vcmp.eq.s32.totalorder %v4516, 9
      %vm4709 = vcmp.eq.s32.totalorder %v4517, 9
      %vm4710 = vcmp.eq.s32.totalorder %v4518, 9
      %vm4711 = vcmp.eq.s32.totalorder %v4519, 9
      %vm4712 = vcmp.eq.s32.totalorder %v4520, 9
      %vm4713 = vcmp.eq.s32.totalorder %v4521, 9
      %4715 = vset.pattern.permute.xlu0 12
      %4716 = vperm.xlu0 %4715, %v4434
      %v4717 = vpop.permute.xlu0 %4716
      %4720 = vset.pattern.permute.xlu0 12
      %4721 = vperm.xlu0 %4720, %v4435
      %v4722 = vpop.permute.xlu0 %4721
      %4725 = vset.pattern.permute.xlu0 12
      %4726 = vperm.xlu0 %4725, %v4436
      %v4727 = vpop.permute.xlu0 %4726
      %4730 = vset.pattern.permute.xlu0 12
      %4731 = vperm.xlu0 %4730, %v4437
      %v4732 = vpop.permute.xlu0 %4731
      %4735 = vset.pattern.permute.xlu0 12
      %4736 = vperm.xlu0 %4735, %v4438
      %v4737 = vpop.permute.xlu0 %4736
      %4740 = vset.pattern.permute.xlu0 12
      %4741 = vperm.xlu0 %4740, %v4439
      %v4742 = vpop.permute.xlu0 %4741
      %4745 = vset.pattern.permute.xlu0 12
      %4746 = vperm.xlu0 %4745, %v4440
      %v4747 = vpop.permute.xlu0 %4746
      %4750 = vset.pattern.permute.xlu0 12
      %4751 = vperm.xlu0 %4750, %v4441
      %v4752 = vpop.permute.xlu0 %4751
      %v4754 = vsel %vm4706, %v4717, 0.0
      %v4755 = vsel %vm4707, %v4722, 0.0
      %v4756 = vsel %vm4708, %v4727, 0.0
      %v4757 = vsel %vm4709, %v4732, 0.0
      %v4758 = vsel %vm4710, %v4737, 0.0
      %v4759 = vsel %vm4711, %v4742, 0.0
      %v4760 = vsel %vm4712, %v4747, 0.0
      %v4761 = vsel %vm4713, %v4752, 0.0
      %v4762 = vadd.f32 %v4698, %v4754
      %v4763 = vadd.f32 %v4699, %v4755
      %v4764 = vadd.f32 %v4700, %v4756
      %v4765 = vadd.f32 %v4701, %v4757
      %v4766 = vadd.f32 %v4702, %v4758
      %v4767 = vadd.f32 %v4703, %v4759
      %v4768 = vadd.f32 %v4704, %v4760
      %v4769 = vadd.f32 %v4705, %v4761
      %vm4770 = vcmp.ge.s32.totalorder %v1194, 4
      %vm4771 = vcmp.lt.s32.totalorder %v1194, 6
      %vm4772 = vmand %vm4770, %vm4771
      %v4773 = vsel %vm4772, 1, 0
      %vm4774 = vcmp.eq.s32.totalorder %v4773, 1
      %vm4775 = vmpackc.low %vm4774, %vm4774
      %v4776 = vsel %vm4775, %v1169, 0
      %v4777 = vsel %vm4775, %v1170, 0
      %v4778 = vsel %vm4775, %v1171, 0
      %v4779 = vsel %vm4775, %v1172, 0
      %v4780 = vsel %vm4775, %v1173, 0
      %v4781 = vsel %vm4775, %v1174, 0
      %v4782 = vsel %vm4775, %v1175, 0
      %v4783 = vsel %vm4775, %v1176, 0
      %v4784 = vpack.c.bf16 %v4763, %v4762
      %v4785 = vpack.c.bf16 %v4765, %v4764
      %v4786 = vpack.c.bf16 %v4767, %v4766
      %v4787 = vpack.c.bf16 %v4769, %v4768
      %v4796 = vunpack.c.l.b16 %v4776
      %v4797 = vunpack.c.l.b16 %v4777
      %v4798 = vunpack.c.l.b16 %v4778
      %v4799 = vunpack.c.l.b16 %v4779
      %v4800 = vunpack.c.l.b16 %v4780
      %v4801 = vunpack.c.l.b16 %v4781
      %v4802 = vunpack.c.l.b16 %v4782
      %v4803 = vunpack.c.l.b16 %v4783
      %v4804 = vpack.c.b16 %v4797, %v4796
      %v4805 = vpack.c.b16 %v4799, %v4798
      %v4806 = vpack.c.b16 %v4801, %v4800
      %v4807 = vpack.c.b16 %v4803, %v4802
      %v4813 = vsel %vm3479, %v4784, 0
      %v4816 = vsel %vm3479, %v4785, 0
      %v4819 = vsel %vm3479, %v4786, 0
      %v4822 = vsel %vm3479, %v4787, 0
      %4824 = vmatprep.subr.bf16.mxu0 0
      %4825 = vmatpush1.bf16.msra.mxu0 0
      %4826 = vmatprep.subr.bf16.mxu0 0
      %4827 = vmatpush1.bf16.msra.mxu0 0
      %4828 = vmatprep.subr.bf16.mxu0 0
      %4829 = vmatpush1.bf16.msra.mxu0 0
      %4830 = vmatprep.subr.bf16.mxu0 0
      %4831 = vmatpush1.bf16.msra.mxu0 0
      %4832 = vmatprep.subr.bf16.mxu0 0
      %4833 = vmatpush1.bf16.msra.mxu0 %v4807
      %4834 = vmatprep.subr.bf16.mxu0 0
      %4835 = vmatpush1.bf16.msra.mxu0 %v4806
      %4836 = vmatprep.subr.bf16.mxu0 0
      %4837 = vmatpush1.bf16.msra.mxu0 %v4805
      %4838 = vmatprep.subr.bf16.mxu0 0
      %4839 = vmatpush1.bf16.msra.mxu0 %v4804
      %4840 = vmatprep.subr.bf16.mxu0 0
      %4841 = vmatpush2.bf16.msra.mxu0 0
      %4842 = vmatprep.subr.bf16.mxu0 0
      %4843 = vmatpush2.bf16.msra.mxu0 0
      %4844 = vmatprep.subr.bf16.mxu0 0
      %4845 = vmatpush2.bf16.msra.mxu0 0
      %4846 = vmatprep.subr.bf16.mxu0 0
      %4847 = vmatpush2.bf16.msra.mxu0 0
      %4848 = vmatprep.subr.bf16.mxu0 0
      %4849 = vmatpush2.bf16.msra.mxu0 0
      %4850 = vmatprep.subr.bf16.mxu0 0
      %4851 = vmatpush2.bf16.msra.mxu0 0
      %4852 = vmatprep.subr.bf16.mxu0 0
      %4853 = vmatpush2.bf16.msra.mxu0 0
      %4854 = vmatprep.subr.bf16.mxu0 0
      %4855 = vmatpush2.bf16.msra.mxu0 0
      %4856 = vmatprep.mubr.bf16.mxu0 0
      %4857 = vmatmul.mubr.bf16.gmra.mxu0 %v4813
      %v4858 = vpop.f32.mrf.mxu0
      %v4859 = vadd.f32 0.0, %v4858
      %v4860 = vpop.f32.mrf.mxu0
      %v4861 = vpop.f32.mrf.mxu0
      %v4862 = vadd.f32 0.0, %v4861
      %v4863 = vpop.f32.mrf.mxu0
      %4864 = vmatprep.mubr.bf16.mxu0 0
      %4865 = vmatmul.mubr.bf16.gmra.mxu0 %v4816
      %v4866 = vpop.f32.mrf.mxu0
      %v4867 = vadd.f32 0.0, %v4866
      %v4868 = vpop.f32.mrf.mxu0
      %v4869 = vpop.f32.mrf.mxu0
      %v4870 = vadd.f32 0.0, %v4869
      %v4871 = vpop.f32.mrf.mxu0
      %4872 = vmatprep.mubr.bf16.mxu0 0
      %4873 = vmatmul.mubr.bf16.gmra.mxu0 %v4819
      %v4874 = vpop.f32.mrf.mxu0
      %v4875 = vadd.f32 0.0, %v4874
      %v4876 = vpop.f32.mrf.mxu0
      %v4877 = vpop.f32.mrf.mxu0
      %v4878 = vadd.f32 0.0, %v4877
      %v4879 = vpop.f32.mrf.mxu0
      %4880 = vmatprep.mubr.bf16.mxu0 0
      %4881 = vmatmul.mubr.bf16.gmra.mxu0 %v4822
      %v4882 = vpop.f32.mrf.mxu0
      %v4883 = vadd.f32 0.0, %v4882
      %v4884 = vpop.f32.mrf.mxu0
      %v4885 = vpop.f32.mrf.mxu0
      %v4886 = vadd.f32 0.0, %v4885
      %v4887 = vpop.f32.mrf.mxu0
      %4888 = vdwg.mxu0
      %v4889 = vadd.f32 %v3628, %v4859
      %v4890 = vadd.f32 %v3631, %v4862
      %v4891 = vadd.f32 %v3636, %v4867
      %v4892 = vadd.f32 %v3639, %v4870
      %v4893 = vadd.f32 %v3644, %v4875
      %v4894 = vadd.f32 %v3647, %v4878
      %v4895 = vadd.f32 %v3652, %v4883
      %v4896 = vadd.f32 %v3655, %v4886
      %4897 = vrot.lane.b32.xlu0 %v1177, 18
      %v4898 = vpop.permute.xlu0 %4897
      %4899 = vrot.lane.b32.xlu0 %v1178, 18
      %v4900 = vpop.permute.xlu0 %4899
      %4901 = vrot.lane.b32.xlu0 %v1179, 18
      %v4902 = vpop.permute.xlu0 %4901
      %4903 = vrot.lane.b32.xlu0 %v1180, 18
      %v4904 = vpop.permute.xlu0 %4903
      %4905 = vrot.lane.b32.xlu0 %v1181, 18
      %v4906 = vpop.permute.xlu0 %4905
      %4907 = vrot.lane.b32.xlu0 %v1182, 18
      %v4908 = vpop.permute.xlu0 %4907
      %4909 = vrot.lane.b32.xlu0 %v1183, 18
      %v4910 = vpop.permute.xlu0 %4909
      %4911 = vrot.lane.b32.xlu0 %v1184, 18
      %v4912 = vpop.permute.xlu0 %4911
      %v4921 = vmul.f32 %v1198, %v4898
      %v4922 = vmul.f32 %v1198, %v4900
      %v4923 = vmul.f32 %v1198, %v4902
      %v4924 = vmul.f32 %v1198, %v4904
      %v4925 = vmul.f32 %v1198, %v4906
      %v4926 = vmul.f32 %v1198, %v4908
      %v4927 = vmul.f32 %v1198, %v4910
      %v4928 = vmul.f32 %v1198, %v4912
      %4929 = vrot.lane.b32.xlu0 %v1185, 19
      %v4930 = vpop.permute.xlu0 %4929
      %4931 = vrot.lane.b32.xlu0 %v1186, 19
      %v4932 = vpop.permute.xlu0 %4931
      %4933 = vrot.lane.b32.xlu0 %v1187, 19
      %v4934 = vpop.permute.xlu0 %4933
      %4935 = vrot.lane.b32.xlu0 %v1188, 19
      %v4936 = vpop.permute.xlu0 %4935
      %4937 = vrot.lane.b32.xlu0 %v1189, 19
      %v4938 = vpop.permute.xlu0 %4937
      %4939 = vrot.lane.b32.xlu0 %v1190, 19
      %v4940 = vpop.permute.xlu0 %4939
      %4941 = vrot.lane.b32.xlu0 %v1191, 19
      %v4942 = vpop.permute.xlu0 %4941
      %4943 = vrot.lane.b32.xlu0 %v1192, 19
      %v4944 = vpop.permute.xlu0 %4943
      %v4953 = vmul.f32 %v1198, %v4930
      %v4954 = vmul.f32 %v1198, %v4932
      %v4955 = vmul.f32 %v1198, %v4934
      %v4956 = vmul.f32 %v1198, %v4936
      %v4957 = vmul.f32 %v1198, %v4938
      %v4958 = vmul.f32 %v1198, %v4940
      %v4959 = vmul.f32 %v1198, %v4942
      %v4960 = vmul.f32 %v1198, %v4944
      %4969 = vrot.lane.b32.xlu0 %v4953, 127
      %v4970 = vpop.permute.xlu0 %4969
      %4971 = vrot.lane.b32.xlu0 %v4954, 127
      %v4972 = vpop.permute.xlu0 %4971
      %4973 = vrot.lane.b32.xlu0 %v4955, 127
      %v4974 = vpop.permute.xlu0 %4973
      %4975 = vrot.lane.b32.xlu0 %v4956, 127
      %v4976 = vpop.permute.xlu0 %4975
      %4977 = vrot.lane.b32.xlu0 %v4957, 127
      %v4978 = vpop.permute.xlu0 %4977
      %4979 = vrot.lane.b32.xlu0 %v4958, 127
      %v4980 = vpop.permute.xlu0 %4979
      %4981 = vrot.lane.b32.xlu0 %v4959, 127
      %v4982 = vpop.permute.xlu0 %4981
      %4983 = vrot.lane.b32.xlu0 %v4960, 127
      %v4984 = vpop.permute.xlu0 %4983
      %v4993 = vadd.f32 %v4921, %v4970
      %v4994 = vadd.f32 %v4922, %v4972
      %v4995 = vadd.f32 %v4923, %v4974
      %v4996 = vadd.f32 %v4924, %v4976
      %v4997 = vadd.f32 %v4925, %v4978
      %v4998 = vadd.f32 %v4926, %v4980
      %v4999 = vadd.f32 %v4927, %v4982
      %v5000 = vadd.f32 %v4928, %v4984
      %v5001 = vadd.f32 %v4993, %v1289
      %v5002 = vadd.f32 %v4994, %v1289
      %v5003 = vadd.f32 %v4995, %v1289
      %v5004 = vadd.f32 %v4996, %v1289
      %v5005 = vadd.f32 %v4997, %v1289
      %v5006 = vadd.f32 %v4998, %v1289
      %v5007 = vadd.f32 %v4999, %v1289
      %v5008 = vadd.f32 %v5000, %v1289
      %5009 = vrot.lane.b32.xlu0 %v1177, 21
      %v5010 = vpop.permute.xlu0 %5009
      %5011 = vrot.lane.b32.xlu0 %v1178, 21
      %v5012 = vpop.permute.xlu0 %5011
      %5013 = vrot.lane.b32.xlu0 %v1179, 21
      %v5014 = vpop.permute.xlu0 %5013
      %5015 = vrot.lane.b32.xlu0 %v1180, 21
      %v5016 = vpop.permute.xlu0 %5015
      %5017 = vrot.lane.b32.xlu0 %v1181, 21
      %v5018 = vpop.permute.xlu0 %5017
      %5019 = vrot.lane.b32.xlu0 %v1182, 21
      %v5020 = vpop.permute.xlu0 %5019
      %5021 = vrot.lane.b32.xlu0 %v1183, 21
      %v5022 = vpop.permute.xlu0 %5021
      %5023 = vrot.lane.b32.xlu0 %v1184, 21
      %v5024 = vpop.permute.xlu0 %5023
      %v5033 = vmul.f32 %v1198, %v5010
      %v5034 = vmul.f32 %v1198, %v5012
      %v5035 = vmul.f32 %v1198, %v5014
      %v5036 = vmul.f32 %v1198, %v5016
      %v5037 = vmul.f32 %v1198, %v5018
      %v5038 = vmul.f32 %v1198, %v5020
      %v5039 = vmul.f32 %v1198, %v5022
      %v5040 = vmul.f32 %v1198, %v5024
      %5041 = vrot.lane.b32.xlu0 %v1185, 22
      %v5042 = vpop.permute.xlu0 %5041
      %5043 = vrot.lane.b32.xlu0 %v1186, 22
      %v5044 = vpop.permute.xlu0 %5043
      %5045 = vrot.lane.b32.xlu0 %v1187, 22
      %v5046 = vpop.permute.xlu0 %5045
      %5047 = vrot.lane.b32.xlu0 %v1188, 22
      %v5048 = vpop.permute.xlu0 %5047
      %5049 = vrot.lane.b32.xlu0 %v1189, 22
      %v5050 = vpop.permute.xlu0 %5049
      %5051 = vrot.lane.b32.xlu0 %v1190, 22
      %v5052 = vpop.permute.xlu0 %5051
      %5053 = vrot.lane.b32.xlu0 %v1191, 22
      %v5054 = vpop.permute.xlu0 %5053
      %5055 = vrot.lane.b32.xlu0 %v1192, 22
      %v5056 = vpop.permute.xlu0 %5055
      %v5065 = vmul.f32 %v1198, %v5042
      %v5066 = vmul.f32 %v1198, %v5044
      %v5067 = vmul.f32 %v1198, %v5046
      %v5068 = vmul.f32 %v1198, %v5048
      %v5069 = vmul.f32 %v1198, %v5050
      %v5070 = vmul.f32 %v1198, %v5052
      %v5071 = vmul.f32 %v1198, %v5054
      %v5072 = vmul.f32 %v1198, %v5056
      %5081 = vrot.lane.b32.xlu0 %v5065, 127
      %v5082 = vpop.permute.xlu0 %5081
      %5083 = vrot.lane.b32.xlu0 %v5066, 127
      %v5084 = vpop.permute.xlu0 %5083
      %5085 = vrot.lane.b32.xlu0 %v5067, 127
      %v5086 = vpop.permute.xlu0 %5085
      %5087 = vrot.lane.b32.xlu0 %v5068, 127
      %v5088 = vpop.permute.xlu0 %5087
      %5089 = vrot.lane.b32.xlu0 %v5069, 127
      %v5090 = vpop.permute.xlu0 %5089
      %5091 = vrot.lane.b32.xlu0 %v5070, 127
      %v5092 = vpop.permute.xlu0 %5091
      %5093 = vrot.lane.b32.xlu0 %v5071, 127
      %v5094 = vpop.permute.xlu0 %5093
      %5095 = vrot.lane.b32.xlu0 %v5072, 127
      %v5096 = vpop.permute.xlu0 %5095
      %v5105 = vadd.f32 %v5033, %v5082
      %v5106 = vadd.f32 %v5034, %v5084
      %v5107 = vadd.f32 %v5035, %v5086
      %v5108 = vadd.f32 %v5036, %v5088
      %v5109 = vadd.f32 %v5037, %v5090
      %v5110 = vadd.f32 %v5038, %v5092
      %v5111 = vadd.f32 %v5039, %v5094
      %v5112 = vadd.f32 %v5040, %v5096
      %v5113 = vadd.f32 %v5105, %v1289
      %v5114 = vadd.f32 %v5106, %v1289
      %v5115 = vadd.f32 %v5107, %v1289
      %v5116 = vadd.f32 %v5108, %v1289
      %v5117 = vadd.f32 %v5109, %v1289
      %v5118 = vadd.f32 %v5110, %v1289
      %v5119 = vadd.f32 %v5111, %v1289
      %v5120 = vadd.f32 %v5112, %v1289
      %v5121 = vadd.f32 %v5001, 1.0
      %v5122 = vadd.f32 %v5002, 1.0
      %v5123 = vadd.f32 %v5003, 1.0
      %v5124 = vadd.f32 %v5004, 1.0
      %v5125 = vadd.f32 %v5005, 1.0
      %v5126 = vadd.f32 %v5006, 1.0
      %v5127 = vadd.f32 %v5007, 1.0
      %v5128 = vadd.f32 %v5008, 1.0
      %v5129 = vmul.f32 %v5121, 8.0
      %v5130 = vmul.f32 %v5122, 8.0
      %v5131 = vmul.f32 %v5123, 8.0
      %v5132 = vmul.f32 %v5124, 8.0
      %v5133 = vmul.f32 %v5125, 8.0
      %v5134 = vmul.f32 %v5126, 8.0
      %v5135 = vmul.f32 %v5127, 8.0
      %v5136 = vmul.f32 %v5128, 8.0
      %v5137 = vsub.f32 %v5129, 1.0
      %v5138 = vsub.f32 %v5130, 1.0
      %v5139 = vsub.f32 %v5131, 1.0
      %v5140 = vsub.f32 %v5132, 1.0
      %v5141 = vsub.f32 %v5133, 1.0
      %v5142 = vsub.f32 %v5134, 1.0
      %v5143 = vsub.f32 %v5135, 1.0
      %v5144 = vsub.f32 %v5136, 1.0
      %v5145 = vmul.f32 %v5137, 0.5
      %v5146 = vmul.f32 %v5138, 0.5
      %v5147 = vmul.f32 %v5139, 0.5
      %v5148 = vmul.f32 %v5140, 0.5
      %v5149 = vmul.f32 %v5141, 0.5
      %v5150 = vmul.f32 %v5142, 0.5
      %v5151 = vmul.f32 %v5143, 0.5
      %v5152 = vmul.f32 %v5144, 0.5
      %v5153 = vadd.f32 %v5113, 1.0
      %v5154 = vadd.f32 %v5114, 1.0
      %v5155 = vadd.f32 %v5115, 1.0
      %v5156 = vadd.f32 %v5116, 1.0
      %v5157 = vadd.f32 %v5117, 1.0
      %v5158 = vadd.f32 %v5118, 1.0
      %v5159 = vadd.f32 %v5119, 1.0
      %v5160 = vadd.f32 %v5120, 1.0
      %v5161 = vmul.f32 %v5153, 8.0
      %v5162 = vmul.f32 %v5154, 8.0
      %v5163 = vmul.f32 %v5155, 8.0
      %v5164 = vmul.f32 %v5156, 8.0
      %v5165 = vmul.f32 %v5157, 8.0
      %v5166 = vmul.f32 %v5158, 8.0
      %v5167 = vmul.f32 %v5159, 8.0
      %v5168 = vmul.f32 %v5160, 8.0
      %v5169 = vsub.f32 %v5161, 1.0
      %v5170 = vsub.f32 %v5162, 1.0
      %v5171 = vsub.f32 %v5163, 1.0
      %v5172 = vsub.f32 %v5164, 1.0
      %v5173 = vsub.f32 %v5165, 1.0
      %v5174 = vsub.f32 %v5166, 1.0
      %v5175 = vsub.f32 %v5167, 1.0
      %v5176 = vsub.f32 %v5168, 1.0
      %v5177 = vmul.f32 %v5169, 0.5
      %v5178 = vmul.f32 %v5170, 0.5
      %v5179 = vmul.f32 %v5171, 0.5
      %v5180 = vmul.f32 %v5172, 0.5
      %v5181 = vmul.f32 %v5173, 0.5
      %v5182 = vmul.f32 %v5174, 0.5
      %v5183 = vmul.f32 %v5175, 0.5
      %v5184 = vmul.f32 %v5176, 0.5
      %v5185 = vfloor.f32 %v5145
      %v5186 = vfloor.f32 %v5146
      %v5187 = vfloor.f32 %v5147
      %v5188 = vfloor.f32 %v5148
      %v5189 = vfloor.f32 %v5149
      %v5190 = vfloor.f32 %v5150
      %v5191 = vfloor.f32 %v5151
      %v5192 = vfloor.f32 %v5152
      %v5193 = vfloor.f32 %v5177
      %v5194 = vfloor.f32 %v5178
      %v5195 = vfloor.f32 %v5179
      %v5196 = vfloor.f32 %v5180
      %v5197 = vfloor.f32 %v5181
      %v5198 = vfloor.f32 %v5182
      %v5199 = vfloor.f32 %v5183
      %v5200 = vfloor.f32 %v5184
      %v5201 = vsub.f32 %v5145, %v5185
      %v5202 = vsub.f32 %v5146, %v5186
      %v5203 = vsub.f32 %v5147, %v5187
      %v5204 = vsub.f32 %v5148, %v5188
      %v5205 = vsub.f32 %v5149, %v5189
      %v5206 = vsub.f32 %v5150, %v5190
      %v5207 = vsub.f32 %v5151, %v5191
      %v5208 = vsub.f32 %v5152, %v5192
      %v5209 = vsub.f32 1.0, %v5201
      %v5210 = vsub.f32 1.0, %v5202
      %v5211 = vsub.f32 1.0, %v5203
      %v5212 = vsub.f32 1.0, %v5204
      %v5213 = vsub.f32 1.0, %v5205
      %v5214 = vsub.f32 1.0, %v5206
      %v5215 = vsub.f32 1.0, %v5207
      %v5216 = vsub.f32 1.0, %v5208
      %v5217 = vsub.f32 %v5177, %v5193
      %v5218 = vsub.f32 %v5178, %v5194
      %v5219 = vsub.f32 %v5179, %v5195
      %v5220 = vsub.f32 %v5180, %v5196
      %v5221 = vsub.f32 %v5181, %v5197
      %v5222 = vsub.f32 %v5182, %v5198
      %v5223 = vsub.f32 %v5183, %v5199
      %v5224 = vsub.f32 %v5184, %v5200
      %v5225 = vsub.f32 1.0, %v5217
      %v5226 = vsub.f32 1.0, %v5218
      %v5227 = vsub.f32 1.0, %v5219
      %v5228 = vsub.f32 1.0, %v5220
      %v5229 = vsub.f32 1.0, %v5221
      %v5230 = vsub.f32 1.0, %v5222
      %v5231 = vsub.f32 1.0, %v5223
      %v5232 = vsub.f32 1.0, %v5224
      %vm5233 = vcmp.ge.f32.partialorder %v5185, 0.0
      %vm5234 = vcmp.ge.f32.partialorder %v5186, 0.0
      %vm5235 = vcmp.ge.f32.partialorder %v5187, 0.0
      %vm5236 = vcmp.ge.f32.partialorder %v5188, 0.0
      %vm5237 = vcmp.ge.f32.partialorder %v5189, 0.0
      %vm5238 = vcmp.ge.f32.partialorder %v5190, 0.0
      %vm5239 = vcmp.ge.f32.partialorder %v5191, 0.0
      %vm5240 = vcmp.ge.f32.partialorder %v5192, 0.0
      %vm5241 = vcmp.le.f32.partialorder %v5185, 7.0
      %vm5242 = vcmp.le.f32.partialorder %v5186, 7.0
      %vm5243 = vcmp.le.f32.partialorder %v5187, 7.0
      %vm5244 = vcmp.le.f32.partialorder %v5188, 7.0
      %vm5245 = vcmp.le.f32.partialorder %v5189, 7.0
      %vm5246 = vcmp.le.f32.partialorder %v5190, 7.0
      %vm5247 = vcmp.le.f32.partialorder %v5191, 7.0
      %vm5248 = vcmp.le.f32.partialorder %v5192, 7.0
      %vm5249 = vmand %vm5233, %vm5241
      %vm5250 = vmand %vm5234, %vm5242
      %vm5251 = vmand %vm5235, %vm5243
      %vm5252 = vmand %vm5236, %vm5244
      %vm5253 = vmand %vm5237, %vm5245
      %vm5254 = vmand %vm5238, %vm5246
      %vm5255 = vmand %vm5239, %vm5247
      %vm5256 = vmand %vm5240, %vm5248
      %vm5257 = vcmp.ge.f32.partialorder %v5185, -1.0
      %vm5258 = vcmp.ge.f32.partialorder %v5186, -1.0
      %vm5259 = vcmp.ge.f32.partialorder %v5187, -1.0
      %vm5260 = vcmp.ge.f32.partialorder %v5188, -1.0
      %vm5261 = vcmp.ge.f32.partialorder %v5189, -1.0
      %vm5262 = vcmp.ge.f32.partialorder %v5190, -1.0
      %vm5263 = vcmp.ge.f32.partialorder %v5191, -1.0
      %vm5264 = vcmp.ge.f32.partialorder %v5192, -1.0
      %vm5265 = vcmp.le.f32.partialorder %v5185, 6.0
      %vm5266 = vcmp.le.f32.partialorder %v5186, 6.0
      %vm5267 = vcmp.le.f32.partialorder %v5187, 6.0
      %vm5268 = vcmp.le.f32.partialorder %v5188, 6.0
      %vm5269 = vcmp.le.f32.partialorder %v5189, 6.0
      %vm5270 = vcmp.le.f32.partialorder %v5190, 6.0
      %vm5271 = vcmp.le.f32.partialorder %v5191, 6.0
      %vm5272 = vcmp.le.f32.partialorder %v5192, 6.0
      %vm5273 = vmand %vm5257, %vm5265
      %vm5274 = vmand %vm5258, %vm5266
      %vm5275 = vmand %vm5259, %vm5267
      %vm5276 = vmand %vm5260, %vm5268
      %vm5277 = vmand %vm5261, %vm5269
      %vm5278 = vmand %vm5262, %vm5270
      %vm5279 = vmand %vm5263, %vm5271
      %vm5280 = vmand %vm5264, %vm5272
      %vm5281 = vcmp.ge.f32.partialorder %v5193, 0.0
      %vm5282 = vcmp.ge.f32.partialorder %v5194, 0.0
      %vm5283 = vcmp.ge.f32.partialorder %v5195, 0.0
      %vm5284 = vcmp.ge.f32.partialorder %v5196, 0.0
      %vm5285 = vcmp.ge.f32.partialorder %v5197, 0.0
      %vm5286 = vcmp.ge.f32.partialorder %v5198, 0.0
      %vm5287 = vcmp.ge.f32.partialorder %v5199, 0.0
      %vm5288 = vcmp.ge.f32.partialorder %v5200, 0.0
      %vm5289 = vcmp.le.f32.partialorder %v5193, 7.0
      %vm5290 = vcmp.le.f32.partialorder %v5194, 7.0
      %vm5291 = vcmp.le.f32.partialorder %v5195, 7.0
      %vm5292 = vcmp.le.f32.partialorder %v5196, 7.0
      %vm5293 = vcmp.le.f32.partialorder %v5197, 7.0
      %vm5294 = vcmp.le.f32.partialorder %v5198, 7.0
      %vm5295 = vcmp.le.f32.partialorder %v5199, 7.0
      %vm5296 = vcmp.le.f32.partialorder %v5200, 7.0
      %vm5297 = vmand %vm5281, %vm5289
      %vm5298 = vmand %vm5282, %vm5290
      %vm5299 = vmand %vm5283, %vm5291
      %vm5300 = vmand %vm5284, %vm5292
      %vm5301 = vmand %vm5285, %vm5293
      %vm5302 = vmand %vm5286, %vm5294
      %vm5303 = vmand %vm5287, %vm5295
      %vm5304 = vmand %vm5288, %vm5296
      %vm5305 = vcmp.ge.f32.partialorder %v5193, -1.0
      %vm5306 = vcmp.ge.f32.partialorder %v5194, -1.0
      %vm5307 = vcmp.ge.f32.partialorder %v5195, -1.0
      %vm5308 = vcmp.ge.f32.partialorder %v5196, -1.0
      %vm5309 = vcmp.ge.f32.partialorder %v5197, -1.0
      %vm5310 = vcmp.ge.f32.partialorder %v5198, -1.0
      %vm5311 = vcmp.ge.f32.partialorder %v5199, -1.0
      %vm5312 = vcmp.ge.f32.partialorder %v5200, -1.0
      %vm5313 = vcmp.le.f32.partialorder %v5193, 6.0
      %vm5314 = vcmp.le.f32.partialorder %v5194, 6.0
      %vm5315 = vcmp.le.f32.partialorder %v5195, 6.0
      %vm5316 = vcmp.le.f32.partialorder %v5196, 6.0
      %vm5317 = vcmp.le.f32.partialorder %v5197, 6.0
      %vm5318 = vcmp.le.f32.partialorder %v5198, 6.0
      %vm5319 = vcmp.le.f32.partialorder %v5199, 6.0
      %vm5320 = vcmp.le.f32.partialorder %v5200, 6.0
      %vm5321 = vmand %vm5305, %vm5313
      %vm5322 = vmand %vm5306, %vm5314
      %vm5323 = vmand %vm5307, %vm5315
      %vm5324 = vmand %vm5308, %vm5316
      %vm5325 = vmand %vm5309, %vm5317
      %vm5326 = vmand %vm5310, %vm5318
      %vm5327 = vmand %vm5311, %vm5319
      %vm5328 = vmand %vm5312, %vm5320
      %v5329 = vsel %vm5297, 1, 0
      %v5330 = vsel %vm5298, 1, 0
      %v5331 = vsel %vm5299, 1, 0
      %v5332 = vsel %vm5300, 1, 0
      %v5333 = vsel %vm5301, 1, 0
      %v5334 = vsel %vm5302, 1, 0
      %v5335 = vsel %vm5303, 1, 0
      %v5336 = vsel %vm5304, 1, 0
      %5337 = vrot.lane.b32.xlu0 %v5329, 125
      %v5338 = vpop.permute.xlu0 %5337
      %5339 = vrot.lane.b32.xlu0 %v5330, 125
      %v5340 = vpop.permute.xlu0 %5339
      %5341 = vrot.lane.b32.xlu0 %v5331, 125
      %v5342 = vpop.permute.xlu0 %5341
      %5343 = vrot.lane.b32.xlu0 %v5332, 125
      %v5344 = vpop.permute.xlu0 %5343
      %5345 = vrot.lane.b32.xlu0 %v5333, 125
      %v5346 = vpop.permute.xlu0 %5345
      %5347 = vrot.lane.b32.xlu0 %v5334, 125
      %v5348 = vpop.permute.xlu0 %5347
      %5349 = vrot.lane.b32.xlu0 %v5335, 125
      %v5350 = vpop.permute.xlu0 %5349
      %5351 = vrot.lane.b32.xlu0 %v5336, 125
      %v5352 = vpop.permute.xlu0 %5351
      %vm5353 = vcmp.ne.s32.totalorder %v5338, 0
      %vm5354 = vcmp.ne.s32.totalorder %v5340, 0
      %vm5355 = vcmp.ne.s32.totalorder %v5342, 0
      %vm5356 = vcmp.ne.s32.totalorder %v5344, 0
      %vm5357 = vcmp.ne.s32.totalorder %v5346, 0
      %vm5358 = vcmp.ne.s32.totalorder %v5348, 0
      %vm5359 = vcmp.ne.s32.totalorder %v5350, 0
      %vm5360 = vcmp.ne.s32.totalorder %v5352, 0
      %vm5361 = vmand %vm5249, %vm5353
      %vm5362 = vmand %vm5250, %vm5354
      %vm5363 = vmand %vm5251, %vm5355
      %vm5364 = vmand %vm5252, %vm5356
      %vm5365 = vmand %vm5253, %vm5357
      %vm5366 = vmand %vm5254, %vm5358
      %vm5367 = vmand %vm5255, %vm5359
      %vm5368 = vmand %vm5256, %vm5360
      %5377 = vrot.lane.b32.xlu0 %v5209, 3
      %v5378 = vpop.permute.xlu0 %5377
      %5379 = vrot.lane.b32.xlu0 %v5210, 3
      %v5380 = vpop.permute.xlu0 %5379
      %5381 = vrot.lane.b32.xlu0 %v5211, 3
      %v5382 = vpop.permute.xlu0 %5381
      %5383 = vrot.lane.b32.xlu0 %v5212, 3
      %v5384 = vpop.permute.xlu0 %5383
      %5385 = vrot.lane.b32.xlu0 %v5213, 3
      %v5386 = vpop.permute.xlu0 %5385
      %5387 = vrot.lane.b32.xlu0 %v5214, 3
      %v5388 = vpop.permute.xlu0 %5387
      %5389 = vrot.lane.b32.xlu0 %v5215, 3
      %v5390 = vpop.permute.xlu0 %5389
      %5391 = vrot.lane.b32.xlu0 %v5216, 3
      %v5392 = vpop.permute.xlu0 %5391
      %v5401 = vmul.f32 %v5225, %v5378
      %v5402 = vmul.f32 %v5226, %v5380
      %v5403 = vmul.f32 %v5227, %v5382
      %v5404 = vmul.f32 %v5228, %v5384
      %v5405 = vmul.f32 %v5229, %v5386
      %v5406 = vmul.f32 %v5230, %v5388
      %v5407 = vmul.f32 %v5231, %v5390
      %v5408 = vmul.f32 %v5232, %v5392
      %5417 = vrot.lane.b32.xlu0 %v5401, 125
      %v5418 = vpop.permute.xlu0 %5417
      %5419 = vrot.lane.b32.xlu0 %v5402, 125
      %v5420 = vpop.permute.xlu0 %5419
      %5421 = vrot.lane.b32.xlu0 %v5403, 125
      %v5422 = vpop.permute.xlu0 %5421
      %5423 = vrot.lane.b32.xlu0 %v5404, 125
      %v5424 = vpop.permute.xlu0 %5423
      %5425 = vrot.lane.b32.xlu0 %v5405, 125
      %v5426 = vpop.permute.xlu0 %5425
      %5427 = vrot.lane.b32.xlu0 %v5406, 125
      %v5428 = vpop.permute.xlu0 %5427
      %5429 = vrot.lane.b32.xlu0 %v5407, 125
      %v5430 = vpop.permute.xlu0 %5429
      %5431 = vrot.lane.b32.xlu0 %v5408, 125
      %v5432 = vpop.permute.xlu0 %5431
      %v5441 = vsel %vm5361, %v5418, 0.0
      %v5442 = vsel %vm5362, %v5420, 0.0
      %v5443 = vsel %vm5363, %v5422, 0.0
      %v5444 = vsel %vm5364, %v5424, 0.0
      %v5445 = vsel %vm5365, %v5426, 0.0
      %v5446 = vsel %vm5366, %v5428, 0.0
      %v5447 = vsel %vm5367, %v5430, 0.0
      %v5448 = vsel %vm5368, %v5432, 0.0
      %vm5449 = vmand %vm5273, %vm5353
      %vm5450 = vmand %vm5274, %vm5354
      %vm5451 = vmand %vm5275, %vm5355
      %vm5452 = vmand %vm5276, %vm5356
      %vm5453 = vmand %vm5277, %vm5357
      %vm5454 = vmand %vm5278, %vm5358
      %vm5455 = vmand %vm5279, %vm5359
      %vm5456 = vmand %vm5280, %vm5360
      %5465 = vrot.lane.b32.xlu0 %v5201, 3
      %v5466 = vpop.permute.xlu0 %5465
      %5467 = vrot.lane.b32.xlu0 %v5202, 3
      %v5468 = vpop.permute.xlu0 %5467
      %5469 = vrot.lane.b32.xlu0 %v5203, 3
      %v5470 = vpop.permute.xlu0 %5469
      %5471 = vrot.lane.b32.xlu0 %v5204, 3
      %v5472 = vpop.permute.xlu0 %5471
      %5473 = vrot.lane.b32.xlu0 %v5205, 3
      %v5474 = vpop.permute.xlu0 %5473
      %5475 = vrot.lane.b32.xlu0 %v5206, 3
      %v5476 = vpop.permute.xlu0 %5475
      %5477 = vrot.lane.b32.xlu0 %v5207, 3
      %v5478 = vpop.permute.xlu0 %5477
      %5479 = vrot.lane.b32.xlu0 %v5208, 3
      %v5480 = vpop.permute.xlu0 %5479
      %v5489 = vmul.f32 %v5225, %v5466
      %v5490 = vmul.f32 %v5226, %v5468
      %v5491 = vmul.f32 %v5227, %v5470
      %v5492 = vmul.f32 %v5228, %v5472
      %v5493 = vmul.f32 %v5229, %v5474
      %v5494 = vmul.f32 %v5230, %v5476
      %v5495 = vmul.f32 %v5231, %v5478
      %v5496 = vmul.f32 %v5232, %v5480
      %5505 = vrot.lane.b32.xlu0 %v5489, 125
      %v5506 = vpop.permute.xlu0 %5505
      %5507 = vrot.lane.b32.xlu0 %v5490, 125
      %v5508 = vpop.permute.xlu0 %5507
      %5509 = vrot.lane.b32.xlu0 %v5491, 125
      %v5510 = vpop.permute.xlu0 %5509
      %5511 = vrot.lane.b32.xlu0 %v5492, 125
      %v5512 = vpop.permute.xlu0 %5511
      %5513 = vrot.lane.b32.xlu0 %v5493, 125
      %v5514 = vpop.permute.xlu0 %5513
      %5515 = vrot.lane.b32.xlu0 %v5494, 125
      %v5516 = vpop.permute.xlu0 %5515
      %5517 = vrot.lane.b32.xlu0 %v5495, 125
      %v5518 = vpop.permute.xlu0 %5517
      %5519 = vrot.lane.b32.xlu0 %v5496, 125
      %v5520 = vpop.permute.xlu0 %5519
      %v5529 = vsel %vm5449, %v5506, 0.0
      %v5530 = vsel %vm5450, %v5508, 0.0
      %v5531 = vsel %vm5451, %v5510, 0.0
      %v5532 = vsel %vm5452, %v5512, 0.0
      %v5533 = vsel %vm5453, %v5514, 0.0
      %v5534 = vsel %vm5454, %v5516, 0.0
      %v5535 = vsel %vm5455, %v5518, 0.0
      %v5536 = vsel %vm5456, %v5520, 0.0
      %v5537 = vsel %vm5321, 1, 0
      %v5538 = vsel %vm5322, 1, 0
      %v5539 = vsel %vm5323, 1, 0
      %v5540 = vsel %vm5324, 1, 0
      %v5541 = vsel %vm5325, 1, 0
      %v5542 = vsel %vm5326, 1, 0
      %v5543 = vsel %vm5327, 1, 0
      %v5544 = vsel %vm5328, 1, 0
      %5545 = vrot.lane.b32.xlu0 %v5537, 125
      %v5546 = vpop.permute.xlu0 %5545
      %5547 = vrot.lane.b32.xlu0 %v5538, 125
      %v5548 = vpop.permute.xlu0 %5547
      %5549 = vrot.lane.b32.xlu0 %v5539, 125
      %v5550 = vpop.permute.xlu0 %5549
      %5551 = vrot.lane.b32.xlu0 %v5540, 125
      %v5552 = vpop.permute.xlu0 %5551
      %5553 = vrot.lane.b32.xlu0 %v5541, 125
      %v5554 = vpop.permute.xlu0 %5553
      %5555 = vrot.lane.b32.xlu0 %v5542, 125
      %v5556 = vpop.permute.xlu0 %5555
      %5557 = vrot.lane.b32.xlu0 %v5543, 125
      %v5558 = vpop.permute.xlu0 %5557
      %5559 = vrot.lane.b32.xlu0 %v5544, 125
      %v5560 = vpop.permute.xlu0 %5559
      %vm5561 = vcmp.ne.s32.totalorder %v5546, 0
      %vm5562 = vcmp.ne.s32.totalorder %v5548, 0
      %vm5563 = vcmp.ne.s32.totalorder %v5550, 0
      %vm5564 = vcmp.ne.s32.totalorder %v5552, 0
      %vm5565 = vcmp.ne.s32.totalorder %v5554, 0
      %vm5566 = vcmp.ne.s32.totalorder %v5556, 0
      %vm5567 = vcmp.ne.s32.totalorder %v5558, 0
      %vm5568 = vcmp.ne.s32.totalorder %v5560, 0
      %vm5569 = vmand %vm5249, %vm5561
      %vm5570 = vmand %vm5250, %vm5562
      %vm5571 = vmand %vm5251, %vm5563
      %vm5572 = vmand %vm5252, %vm5564
      %vm5573 = vmand %vm5253, %vm5565
      %vm5574 = vmand %vm5254, %vm5566
      %vm5575 = vmand %vm5255, %vm5567
      %vm5576 = vmand %vm5256, %vm5568
      %v5577 = vmul.f32 %v5217, %v5378
      %v5578 = vmul.f32 %v5218, %v5380
      %v5579 = vmul.f32 %v5219, %v5382
      %v5580 = vmul.f32 %v5220, %v5384
      %v5581 = vmul.f32 %v5221, %v5386
      %v5582 = vmul.f32 %v5222, %v5388
      %v5583 = vmul.f32 %v5223, %v5390
      %v5584 = vmul.f32 %v5224, %v5392
      %5593 = vrot.lane.b32.xlu0 %v5577, 125
      %v5594 = vpop.permute.xlu0 %5593
      %5595 = vrot.lane.b32.xlu0 %v5578, 125
      %v5596 = vpop.permute.xlu0 %5595
      %5597 = vrot.lane.b32.xlu0 %v5579, 125
      %v5598 = vpop.permute.xlu0 %5597
      %5599 = vrot.lane.b32.xlu0 %v5580, 125
      %v5600 = vpop.permute.xlu0 %5599
      %5601 = vrot.lane.b32.xlu0 %v5581, 125
      %v5602 = vpop.permute.xlu0 %5601
      %5603 = vrot.lane.b32.xlu0 %v5582, 125
      %v5604 = vpop.permute.xlu0 %5603
      %5605 = vrot.lane.b32.xlu0 %v5583, 125
      %v5606 = vpop.permute.xlu0 %5605
      %5607 = vrot.lane.b32.xlu0 %v5584, 125
      %v5608 = vpop.permute.xlu0 %5607
      %v5617 = vsel %vm5569, %v5594, 0.0
      %v5618 = vsel %vm5570, %v5596, 0.0
      %v5619 = vsel %vm5571, %v5598, 0.0
      %v5620 = vsel %vm5572, %v5600, 0.0
      %v5621 = vsel %vm5573, %v5602, 0.0
      %v5622 = vsel %vm5574, %v5604, 0.0
      %v5623 = vsel %vm5575, %v5606, 0.0
      %v5624 = vsel %vm5576, %v5608, 0.0
      %vm5625 = vmand %vm5273, %vm5561
      %vm5626 = vmand %vm5274, %vm5562
      %vm5627 = vmand %vm5275, %vm5563
      %vm5628 = vmand %vm5276, %vm5564
      %vm5629 = vmand %vm5277, %vm5565
      %vm5630 = vmand %vm5278, %vm5566
      %vm5631 = vmand %vm5279, %vm5567
      %vm5632 = vmand %vm5280, %vm5568
      %v5633 = vmul.f32 %v5217, %v5466
      %v5634 = vmul.f32 %v5218, %v5468
      %v5635 = vmul.f32 %v5219, %v5470
      %v5636 = vmul.f32 %v5220, %v5472
      %v5637 = vmul.f32 %v5221, %v5474
      %v5638 = vmul.f32 %v5222, %v5476
      %v5639 = vmul.f32 %v5223, %v5478
      %v5640 = vmul.f32 %v5224, %v5480
      %5649 = vrot.lane.b32.xlu0 %v5633, 125
      %v5650 = vpop.permute.xlu0 %5649
      %5651 = vrot.lane.b32.xlu0 %v5634, 125
      %v5652 = vpop.permute.xlu0 %5651
      %5653 = vrot.lane.b32.xlu0 %v5635, 125
      %v5654 = vpop.permute.xlu0 %5653
      %5655 = vrot.lane.b32.xlu0 %v5636, 125
      %v5656 = vpop.permute.xlu0 %5655
      %5657 = vrot.lane.b32.xlu0 %v5637, 125
      %v5658 = vpop.permute.xlu0 %5657
      %5659 = vrot.lane.b32.xlu0 %v5638, 125
      %v5660 = vpop.permute.xlu0 %5659
      %5661 = vrot.lane.b32.xlu0 %v5639, 125
      %v5662 = vpop.permute.xlu0 %5661
      %5663 = vrot.lane.b32.xlu0 %v5640, 125
      %v5664 = vpop.permute.xlu0 %5663
      %v5673 = vsel %vm5625, %v5650, 0.0
      %v5674 = vsel %vm5626, %v5652, 0.0
      %v5675 = vsel %vm5627, %v5654, 0.0
      %v5676 = vsel %vm5628, %v5656, 0.0
      %v5677 = vsel %vm5629, %v5658, 0.0
      %v5678 = vsel %vm5630, %v5660, 0.0
      %v5679 = vsel %vm5631, %v5662, 0.0
      %v5680 = vsel %vm5632, %v5664, 0.0
      %v5681 = vcvt.f32.s32.to.zero.pseudo %v5193
      %v5682 = vcvt.f32.s32.to.zero.pseudo %v5194
      %v5683 = vcvt.f32.s32.to.zero.pseudo %v5195
      %v5684 = vcvt.f32.s32.to.zero.pseudo %v5196
      %v5685 = vcvt.f32.s32.to.zero.pseudo %v5197
      %v5686 = vcvt.f32.s32.to.zero.pseudo %v5198
      %v5687 = vcvt.f32.s32.to.zero.pseudo %v5199
      %v5688 = vcvt.f32.s32.to.zero.pseudo %v5200
      %v5689 = vmul.u32 %v5681, 8
      %v5690 = vmul.u32 %v5682, 8
      %v5691 = vmul.u32 %v5683, 8
      %v5692 = vmul.u32 %v5684, 8
      %v5693 = vmul.u32 %v5685, 8
      %v5694 = vmul.u32 %v5686, 8
      %v5695 = vmul.u32 %v5687, 8
      %v5696 = vmul.u32 %v5688, 8
      %v5697 = vcvt.f32.s32.to.zero.pseudo %v5185
      %v5698 = vcvt.f32.s32.to.zero.pseudo %v5186
      %v5699 = vcvt.f32.s32.to.zero.pseudo %v5187
      %v5700 = vcvt.f32.s32.to.zero.pseudo %v5188
      %v5701 = vcvt.f32.s32.to.zero.pseudo %v5189
      %v5702 = vcvt.f32.s32.to.zero.pseudo %v5190
      %v5703 = vcvt.f32.s32.to.zero.pseudo %v5191
      %v5704 = vcvt.f32.s32.to.zero.pseudo %v5192
      %5705 = vrot.lane.b32.xlu0 %v5697, 3
      %v5706 = vpop.permute.xlu0 %5705
      %5707 = vrot.lane.b32.xlu0 %v5698, 3
      %v5708 = vpop.permute.xlu0 %5707
      %5709 = vrot.lane.b32.xlu0 %v5699, 3
      %v5710 = vpop.permute.xlu0 %5709
      %5711 = vrot.lane.b32.xlu0 %v5700, 3
      %v5712 = vpop.permute.xlu0 %5711
      %5713 = vrot.lane.b32.xlu0 %v5701, 3
      %v5714 = vpop.permute.xlu0 %5713
      %5715 = vrot.lane.b32.xlu0 %v5702, 3
      %v5716 = vpop.permute.xlu0 %5715
      %5717 = vrot.lane.b32.xlu0 %v5703, 3
      %v5718 = vpop.permute.xlu0 %5717
      %5719 = vrot.lane.b32.xlu0 %v5704, 3
      %v5720 = vpop.permute.xlu0 %5719
      %v5721 = vadd.s32 %v5689, %v5706
      %v5722 = vadd.s32 %v5690, %v5708
      %v5723 = vadd.s32 %v5691, %v5710
      %v5724 = vadd.s32 %v5692, %v5712
      %v5725 = vadd.s32 %v5693, %v5714
      %v5726 = vadd.s32 %v5694, %v5716
      %v5727 = vadd.s32 %v5695, %v5718
      %v5728 = vadd.s32 %v5696, %v5720
      %5729 = vset.pattern.permute.xlu0 21
      %5730 = vperm.xlu0 %5729, %v5721
      %v5731 = vpop.permute.xlu0 %5730
      %5732 = vset.pattern.permute.xlu0 21
      %5733 = vperm.xlu0 %5732, %v5722
      %v5734 = vpop.permute.xlu0 %5733
      %5735 = vset.pattern.permute.xlu0 21
      %5736 = vperm.xlu0 %5735, %v5723
      %v5737 = vpop.permute.xlu0 %5736
      %5738 = vset.pattern.permute.xlu0 21
      %5739 = vperm.xlu0 %5738, %v5724
      %v5740 = vpop.permute.xlu0 %5739
      %5741 = vset.pattern.permute.xlu0 21
      %5742 = vperm.xlu0 %5741, %v5725
      %v5743 = vpop.permute.xlu0 %5742
      %5744 = vset.pattern.permute.xlu0 21
      %5745 = vperm.xlu0 %5744, %v5726
      %v5746 = vpop.permute.xlu0 %5745
      %5747 = vset.pattern.permute.xlu0 21
      %5748 = vperm.xlu0 %5747, %v5727
      %v5749 = vpop.permute.xlu0 %5748
      %5750 = vset.pattern.permute.xlu0 21
      %5751 = vperm.xlu0 %5750, %v5728
      %v5752 = vpop.permute.xlu0 %5751
      %v5753 = vsub.s32 %v1194, %v5731
      %v5754 = vsub.s32 %v1194, %v5734
      %v5755 = vsub.s32 %v1194, %v5737
      %v5756 = vsub.s32 %v1194, %v5740
      %v5757 = vsub.s32 %v1194, %v5743
      %v5758 = vsub.s32 %v1194, %v5746
      %v5759 = vsub.s32 %v1194, %v5749
      %v5760 = vsub.s32 %v1194, %v5752
      %vm5761 = vcmp.eq.s32.totalorder %v5753, 0
      %vm5762 = vcmp.eq.s32.totalorder %v5754, 0
      %vm5763 = vcmp.eq.s32.totalorder %v5755, 0
      %vm5764 = vcmp.eq.s32.totalorder %v5756, 0
      %vm5765 = vcmp.eq.s32.totalorder %v5757, 0
      %vm5766 = vcmp.eq.s32.totalorder %v5758, 0
      %vm5767 = vcmp.eq.s32.totalorder %v5759, 0
      %vm5768 = vcmp.eq.s32.totalorder %v5760, 0
      %5770 = vset.pattern.permute.xlu0 18
      %5771 = vperm.xlu0 %5770, %v5441
      %v5772 = vpop.permute.xlu0 %5771
      %5775 = vset.pattern.permute.xlu0 18
      %5776 = vperm.xlu0 %5775, %v5442
      %v5777 = vpop.permute.xlu0 %5776
      %5780 = vset.pattern.permute.xlu0 18
      %5781 = vperm.xlu0 %5780, %v5443
      %v5782 = vpop.permute.xlu0 %5781
      %5785 = vset.pattern.permute.xlu0 18
      %5786 = vperm.xlu0 %5785, %v5444
      %v5787 = vpop.permute.xlu0 %5786
      %5790 = vset.pattern.permute.xlu0 18
      %5791 = vperm.xlu0 %5790, %v5445
      %v5792 = vpop.permute.xlu0 %5791
      %5795 = vset.pattern.permute.xlu0 18
      %5796 = vperm.xlu0 %5795, %v5446
      %v5797 = vpop.permute.xlu0 %5796
      %5800 = vset.pattern.permute.xlu0 18
      %5801 = vperm.xlu0 %5800, %v5447
      %v5802 = vpop.permute.xlu0 %5801
      %5805 = vset.pattern.permute.xlu0 18
      %5806 = vperm.xlu0 %5805, %v5448
      %v5807 = vpop.permute.xlu0 %5806
      %v5809 = vsel %vm5761, %v5772, 0.0
      %v5810 = vsel %vm5762, %v5777, 0.0
      %v5811 = vsel %vm5763, %v5782, 0.0
      %v5812 = vsel %vm5764, %v5787, 0.0
      %v5813 = vsel %vm5765, %v5792, 0.0
      %v5814 = vsel %vm5766, %v5797, 0.0
      %v5815 = vsel %vm5767, %v5802, 0.0
      %v5816 = vsel %vm5768, %v5807, 0.0
      %vm5817 = vcmp.eq.s32.totalorder %v5753, 1
      %vm5818 = vcmp.eq.s32.totalorder %v5754, 1
      %vm5819 = vcmp.eq.s32.totalorder %v5755, 1
      %vm5820 = vcmp.eq.s32.totalorder %v5756, 1
      %vm5821 = vcmp.eq.s32.totalorder %v5757, 1
      %vm5822 = vcmp.eq.s32.totalorder %v5758, 1
      %vm5823 = vcmp.eq.s32.totalorder %v5759, 1
      %vm5824 = vcmp.eq.s32.totalorder %v5760, 1
      %5826 = vset.pattern.permute.xlu0 18
      %5827 = vperm.xlu0 %5826, %v5529
      %v5828 = vpop.permute.xlu0 %5827
      %5831 = vset.pattern.permute.xlu0 18
      %5832 = vperm.xlu0 %5831, %v5530
      %v5833 = vpop.permute.xlu0 %5832
      %5836 = vset.pattern.permute.xlu0 18
      %5837 = vperm.xlu0 %5836, %v5531
      %v5838 = vpop.permute.xlu0 %5837
      %5841 = vset.pattern.permute.xlu0 18
      %5842 = vperm.xlu0 %5841, %v5532
      %v5843 = vpop.permute.xlu0 %5842
      %5846 = vset.pattern.permute.xlu0 18
      %5847 = vperm.xlu0 %5846, %v5533
      %v5848 = vpop.permute.xlu0 %5847
      %5851 = vset.pattern.permute.xlu0 18
      %5852 = vperm.xlu0 %5851, %v5534
      %v5853 = vpop.permute.xlu0 %5852
      %5856 = vset.pattern.permute.xlu0 18
      %5857 = vperm.xlu0 %5856, %v5535
      %v5858 = vpop.permute.xlu0 %5857
      %5861 = vset.pattern.permute.xlu0 18
      %5862 = vperm.xlu0 %5861, %v5536
      %v5863 = vpop.permute.xlu0 %5862
      %v5865 = vsel %vm5817, %v5828, 0.0
      %v5866 = vsel %vm5818, %v5833, 0.0
      %v5867 = vsel %vm5819, %v5838, 0.0
      %v5868 = vsel %vm5820, %v5843, 0.0
      %v5869 = vsel %vm5821, %v5848, 0.0
      %v5870 = vsel %vm5822, %v5853, 0.0
      %v5871 = vsel %vm5823, %v5858, 0.0
      %v5872 = vsel %vm5824, %v5863, 0.0
      %v5873 = vadd.f32 %v5809, %v5865
      %v5874 = vadd.f32 %v5810, %v5866
      %v5875 = vadd.f32 %v5811, %v5867
      %v5876 = vadd.f32 %v5812, %v5868
      %v5877 = vadd.f32 %v5813, %v5869
      %v5878 = vadd.f32 %v5814, %v5870
      %v5879 = vadd.f32 %v5815, %v5871
      %v5880 = vadd.f32 %v5816, %v5872
      %vm5881 = vcmp.eq.s32.totalorder %v5753, 8
      %vm5882 = vcmp.eq.s32.totalorder %v5754, 8
      %vm5883 = vcmp.eq.s32.totalorder %v5755, 8
      %vm5884 = vcmp.eq.s32.totalorder %v5756, 8
      %vm5885 = vcmp.eq.s32.totalorder %v5757, 8
      %vm5886 = vcmp.eq.s32.totalorder %v5758, 8
      %vm5887 = vcmp.eq.s32.totalorder %v5759, 8
      %vm5888 = vcmp.eq.s32.totalorder %v5760, 8
      %5890 = vset.pattern.permute.xlu0 18
      %5891 = vperm.xlu0 %5890, %v5617
      %v5892 = vpop.permute.xlu0 %5891
      %5895 = vset.pattern.permute.xlu0 18
      %5896 = vperm.xlu0 %5895, %v5618
      %v5897 = vpop.permute.xlu0 %5896
      %5900 = vset.pattern.permute.xlu0 18
      %5901 = vperm.xlu0 %5900, %v5619
      %v5902 = vpop.permute.xlu0 %5901
      %5905 = vset.pattern.permute.xlu0 18
      %5906 = vperm.xlu0 %5905, %v5620
      %v5907 = vpop.permute.xlu0 %5906
      %5910 = vset.pattern.permute.xlu0 18
      %5911 = vperm.xlu0 %5910, %v5621
      %v5912 = vpop.permute.xlu0 %5911
      %5915 = vset.pattern.permute.xlu0 18
      %5916 = vperm.xlu0 %5915, %v5622
      %v5917 = vpop.permute.xlu0 %5916
      %5920 = vset.pattern.permute.xlu0 18
      %5921 = vperm.xlu0 %5920, %v5623
      %v5922 = vpop.permute.xlu0 %5921
      %5925 = vset.pattern.permute.xlu0 18
      %5926 = vperm.xlu0 %5925, %v5624
      %v5927 = vpop.permute.xlu0 %5926
      %v5929 = vsel %vm5881, %v5892, 0.0
      %v5930 = vsel %vm5882, %v5897, 0.0
      %v5931 = vsel %vm5883, %v5902, 0.0
      %v5932 = vsel %vm5884, %v5907, 0.0
      %v5933 = vsel %vm5885, %v5912, 0.0
      %v5934 = vsel %vm5886, %v5917, 0.0
      %v5935 = vsel %vm5887, %v5922, 0.0
      %v5936 = vsel %vm5888, %v5927, 0.0
      %v5937 = vadd.f32 %v5873, %v5929
      %v5938 = vadd.f32 %v5874, %v5930
      %v5939 = vadd.f32 %v5875, %v5931
      %v5940 = vadd.f32 %v5876, %v5932
      %v5941 = vadd.f32 %v5877, %v5933
      %v5942 = vadd.f32 %v5878, %v5934
      %v5943 = vadd.f32 %v5879, %v5935
      %v5944 = vadd.f32 %v5880, %v5936
      %vm5945 = vcmp.eq.s32.totalorder %v5753, 9
      %vm5946 = vcmp.eq.s32.totalorder %v5754, 9
      %vm5947 = vcmp.eq.s32.totalorder %v5755, 9
      %vm5948 = vcmp.eq.s32.totalorder %v5756, 9
      %vm5949 = vcmp.eq.s32.totalorder %v5757, 9
      %vm5950 = vcmp.eq.s32.totalorder %v5758, 9
      %vm5951 = vcmp.eq.s32.totalorder %v5759, 9
      %vm5952 = vcmp.eq.s32.totalorder %v5760, 9
      %5954 = vset.pattern.permute.xlu0 18
      %5955 = vperm.xlu0 %5954, %v5673
      %v5956 = vpop.permute.xlu0 %5955
      %5959 = vset.pattern.permute.xlu0 18
      %5960 = vperm.xlu0 %5959, %v5674
      %v5961 = vpop.permute.xlu0 %5960
      %5964 = vset.pattern.permute.xlu0 18
      %5965 = vperm.xlu0 %5964, %v5675
      %v5966 = vpop.permute.xlu0 %5965
      %5969 = vset.pattern.permute.xlu0 18
      %5970 = vperm.xlu0 %5969, %v5676
      %v5971 = vpop.permute.xlu0 %5970
      %5974 = vset.pattern.permute.xlu0 18
      %5975 = vperm.xlu0 %5974, %v5677
      %v5976 = vpop.permute.xlu0 %5975
      %5979 = vset.pattern.permute.xlu0 18
      %5980 = vperm.xlu0 %5979, %v5678
      %v5981 = vpop.permute.xlu0 %5980
      %5984 = vset.pattern.permute.xlu0 18
      %5985 = vperm.xlu0 %5984, %v5679
      %v5986 = vpop.permute.xlu0 %5985
      %5989 = vset.pattern.permute.xlu0 18
      %5990 = vperm.xlu0 %5989, %v5680
      %v5991 = vpop.permute.xlu0 %5990
      %v5993 = vsel %vm5945, %v5956, 0.0
      %v5994 = vsel %vm5946, %v5961, 0.0
      %v5995 = vsel %vm5947, %v5966, 0.0
      %v5996 = vsel %vm5948, %v5971, 0.0
      %v5997 = vsel %vm5949, %v5976, 0.0
      %v5998 = vsel %vm5950, %v5981, 0.0
      %v5999 = vsel %vm5951, %v5986, 0.0
      %v6000 = vsel %vm5952, %v5991, 0.0
      %v6001 = vadd.f32 %v5937, %v5993
      %v6002 = vadd.f32 %v5938, %v5994
      %v6003 = vadd.f32 %v5939, %v5995
      %v6004 = vadd.f32 %v5940, %v5996
      %v6005 = vadd.f32 %v5941, %v5997
      %v6006 = vadd.f32 %v5942, %v5998
      %v6007 = vadd.f32 %v5943, %v5999
      %v6008 = vadd.f32 %v5944, %v6000
      %vm6009 = vcmp.ge.s32.totalorder %v1194, 6
      %vm6010 = vcmp.lt.s32.totalorder %v1194, 8
      %vm6011 = vmand %vm6009, %vm6010
      %v6012 = vsel %vm6011, 1, 0
      %vm6013 = vcmp.eq.s32.totalorder %v6012, 1
      %vm6014 = vmpackc.low %vm6013, %vm6013
      %v6015 = vsel %vm6014, %v1169, 0
      %v6016 = vsel %vm6014, %v1170, 0
      %v6017 = vsel %vm6014, %v1171, 0
      %v6018 = vsel %vm6014, %v1172, 0
      %v6019 = vsel %vm6014, %v1173, 0
      %v6020 = vsel %vm6014, %v1174, 0
      %v6021 = vsel %vm6014, %v1175, 0
      %v6022 = vsel %vm6014, %v1176, 0
      %v6023 = vpack.c.bf16 %v6002, %v6001
      %v6024 = vpack.c.bf16 %v6004, %v6003
      %v6025 = vpack.c.bf16 %v6006, %v6005
      %v6026 = vpack.c.bf16 %v6008, %v6007
      %v6035 = vunpack.c.l.b16 %v6015
      %v6036 = vunpack.c.l.b16 %v6016
      %v6037 = vunpack.c.l.b16 %v6017
      %v6038 = vunpack.c.l.b16 %v6018
      %v6039 = vunpack.c.l.b16 %v6019
      %v6040 = vunpack.c.l.b16 %v6020
      %v6041 = vunpack.c.l.b16 %v6021
      %v6042 = vunpack.c.l.b16 %v6022
      %v6043 = vpack.c.b16 %v6036, %v6035
      %v6044 = vpack.c.b16 %v6038, %v6037
      %v6045 = vpack.c.b16 %v6040, %v6039
      %v6046 = vpack.c.b16 %v6042, %v6041
      %v6052 = vsel %vm3479, %v6023, 0
      %v6055 = vsel %vm3479, %v6024, 0
      %v6058 = vsel %vm3479, %v6025, 0
      %v6061 = vsel %vm3479, %v6026, 0
      %6063 = vmatprep.subr.bf16.mxu0 0
      %6064 = vmatpush1.bf16.msra.mxu0 0
      %6065 = vmatprep.subr.bf16.mxu0 0
      %6066 = vmatpush1.bf16.msra.mxu0 0
      %6067 = vmatprep.subr.bf16.mxu0 0
      %6068 = vmatpush1.bf16.msra.mxu0 0
      %6069 = vmatprep.subr.bf16.mxu0 0
      %6070 = vmatpush1.bf16.msra.mxu0 0
      %6071 = vmatprep.subr.bf16.mxu0 0
      %6072 = vmatpush1.bf16.msra.mxu0 %v6046
      %6073 = vmatprep.subr.bf16.mxu0 0
      %6074 = vmatpush1.bf16.msra.mxu0 %v6045
      %6075 = vmatprep.subr.bf16.mxu0 0
      %6076 = vmatpush1.bf16.msra.mxu0 %v6044
      %6077 = vmatprep.subr.bf16.mxu0 0
      %6078 = vmatpush1.bf16.msra.mxu0 %v6043
      %6079 = vmatprep.subr.bf16.mxu0 0
      %6080 = vmatpush2.bf16.msra.mxu0 0
      %6081 = vmatprep.subr.bf16.mxu0 0
      %6082 = vmatpush2.bf16.msra.mxu0 0
      %6083 = vmatprep.subr.bf16.mxu0 0
      %6084 = vmatpush2.bf16.msra.mxu0 0
      %6085 = vmatprep.subr.bf16.mxu0 0
      %6086 = vmatpush2.bf16.msra.mxu0 0
      %6087 = vmatprep.subr.bf16.mxu0 0
      %6088 = vmatpush2.bf16.msra.mxu0 0
      %6089 = vmatprep.subr.bf16.mxu0 0
      %6090 = vmatpush2.bf16.msra.mxu0 0
      %6091 = vmatprep.subr.bf16.mxu0 0
      %6092 = vmatpush2.bf16.msra.mxu0 0
      %6093 = vmatprep.subr.bf16.mxu0 0
      %6094 = vmatpush2.bf16.msra.mxu0 0
      %6095 = vmatprep.mubr.bf16.mxu0 0
      %6096 = vmatmul.mubr.bf16.gmra.mxu0 %v6052
      %v6097 = vpop.f32.mrf.mxu0
      %v6098 = vadd.f32 0.0, %v6097
      %v6099 = vpop.f32.mrf.mxu0
      %v6100 = vpop.f32.mrf.mxu0
      %v6101 = vadd.f32 0.0, %v6100
      %v6102 = vpop.f32.mrf.mxu0
      %6103 = vmatprep.mubr.bf16.mxu0 0
      %6104 = vmatmul.mubr.bf16.gmra.mxu0 %v6055
      %v6105 = vpop.f32.mrf.mxu0
      %v6106 = vadd.f32 0.0, %v6105
      %v6107 = vpop.f32.mrf.mxu0
      %v6108 = vpop.f32.mrf.mxu0
      %v6109 = vadd.f32 0.0, %v6108
      %v6110 = vpop.f32.mrf.mxu0
      %6111 = vmatprep.mubr.bf16.mxu0 0
      %6112 = vmatmul.mubr.bf16.gmra.mxu0 %v6058
      %v6113 = vpop.f32.mrf.mxu0
      %v6114 = vadd.f32 0.0, %v6113
      %v6115 = vpop.f32.mrf.mxu0
      %v6116 = vpop.f32.mrf.mxu0
      %v6117 = vadd.f32 0.0, %v6116
      %v6118 = vpop.f32.mrf.mxu0
      %6119 = vmatprep.mubr.bf16.mxu0 0
      %6120 = vmatmul.mubr.bf16.gmra.mxu0 %v6061
      %v6121 = vpop.f32.mrf.mxu0
      %v6122 = vadd.f32 0.0, %v6121
      %v6123 = vpop.f32.mrf.mxu0
      %v6124 = vpop.f32.mrf.mxu0
      %v6125 = vadd.f32 0.0, %v6124
      %v6126 = vpop.f32.mrf.mxu0
      %6127 = vdwg.mxu0
      %v6128 = vadd.f32 %v4889, %v6098
      %v6129 = vadd.f32 %v4890, %v6101
      %v6130 = vadd.f32 %v4891, %v6106
      %v6131 = vadd.f32 %v4892, %v6109
      %v6132 = vadd.f32 %v4893, %v6114
      %v6133 = vadd.f32 %v4894, %v6117
      %v6134 = vadd.f32 %v4895, %v6122
      %v6135 = vadd.f32 %v4896, %v6125
      %v6136 = vpack.c.bf16 %v6129, %v6128
      %v6137 = vpack.c.bf16 %v6131, %v6130
      %v6138 = vpack.c.bf16 %v6133, %v6132
      %v6139 = vpack.c.bf16 %v6135, %v6134
      %v6140 = vld [vmem:[%s15] sm:$0xf]
      %v6141 = vld [vmem:[%s16] sm:$0x1]
      %v6143 = vlaneseq
      %v6144 = vshrl.u32 %v6143, 7
      %v6145 = vsub.s32 0, %v6144
      %v6146 = vrot.slane %v6141, %v6145
      %v6149 = vsel %vm1116, %v6136, 0
      %v6152 = vsel %vm1116, %v6137, 0
      %v6155 = vsel %vm1116, %v6138, 0
      %v6158 = vsel %vm1116, %v6139, 0
      %v6161 = vsel %vm1120, %v6140, 0
      %6163 = vmatprep.subr.bf16.mxu0 0
      %6164 = vmatpush1.bf16.msra.mxu0 0
      %6165 = vmatprep.subr.bf16.mxu0 0
      %6166 = vmatpush1.bf16.msra.mxu0 0
      %6167 = vmatprep.subr.bf16.mxu0 0
      %6168 = vmatpush1.bf16.msra.mxu0 0
      %6169 = vmatprep.subr.bf16.mxu0 0
      %6170 = vmatpush1.bf16.msra.mxu0 0
      %6171 = vmatprep.subr.bf16.mxu0 0
      %6172 = vmatpush1.bf16.msra.mxu0 0
      %6173 = vmatprep.subr.bf16.mxu0 0
      %6174 = vmatpush1.bf16.msra.mxu0 0
      %6175 = vmatprep.subr.bf16.mxu0 0
      %6176 = vmatpush1.bf16.msra.mxu0 0
      %6177 = vmatprep.subr.bf16.mxu0 0
      %6178 = vmatpush1.bf16.msra.mxu0 %v6161
      %6179 = vmatprep.subr.bf16.mxu0 0
      %6180 = vmatpush2.bf16.msra.mxu0 0
      %6181 = vmatprep.subr.bf16.mxu0 0
      %6182 = vmatpush2.bf16.msra.mxu0 0
      %6183 = vmatprep.subr.bf16.mxu0 0
      %6184 = vmatpush2.bf16.msra.mxu0 0
      %6185 = vmatprep.subr.bf16.mxu0 0
      %6186 = vmatpush2.bf16.msra.mxu0 0
      %6187 = vmatprep.subr.bf16.mxu0 0
      %6188 = vmatpush2.bf16.msra.mxu0 0
      %6189 = vmatprep.subr.bf16.mxu0 0
      %6190 = vmatpush2.bf16.msra.mxu0 0
      %6191 = vmatprep.subr.bf16.mxu0 0
      %6192 = vmatpush2.bf16.msra.mxu0 0
      %6193 = vmatprep.subr.bf16.mxu0 0
      %6194 = vmatpush2.bf16.msra.mxu0 0
      %6195 = vmatprep.mubr.bf16.mxu0 0
      %6196 = vmatmul.mubr.bf16.gmra.mxu0 %v6149
      %v6197 = vpop.f32.mrf.mxu0
      %v6198 = vadd.f32 %v6146, %v6197
      %v6199 = vpop.f32.mrf.mxu0
      %v6200 = vpop.f32.mrf.mxu0
      %v6201 = vadd.f32 %v6146, %v6200
      %v6202 = vpop.f32.mrf.mxu0
      %6203 = vmatprep.mubr.bf16.mxu0 0
      %6204 = vmatmul.mubr.bf16.gmra.mxu0 %v6152
      %v6205 = vpop.f32.mrf.mxu0
      %v6206 = vadd.f32 %v6146, %v6205
      %v6207 = vpop.f32.mrf.mxu0
      %v6208 = vpop.f32.mrf.mxu0
      %v6209 = vadd.f32 %v6146, %v6208
      %v6210 = vpop.f32.mrf.mxu0
      %6211 = vmatprep.mubr.bf16.mxu0 0
      %6212 = vmatmul.mubr.bf16.gmra.mxu0 %v6155
      %v6213 = vpop.f32.mrf.mxu0
      %v6214 = vadd.f32 %v6146, %v6213
      %v6215 = vpop.f32.mrf.mxu0
      %v6216 = vpop.f32.mrf.mxu0
      %v6217 = vadd.f32 %v6146, %v6216
      %v6218 = vpop.f32.mrf.mxu0
      %6219 = vmatprep.mubr.bf16.mxu0 0
      %6220 = vmatmul.mubr.bf16.gmra.mxu0 %v6158
      %v6221 = vpop.f32.mrf.mxu0
      %v6222 = vadd.f32 %v6146, %v6221
      %v6223 = vpop.f32.mrf.mxu0
      %v6224 = vpop.f32.mrf.mxu0
      %v6225 = vadd.f32 %v6146, %v6224
      %v6226 = vpop.f32.mrf.mxu0
      %6227 = vdwg.mxu0
      %v6228 = vld [vmem:[%s654] sm:$0xf]
      %v6229 = vld [vmem:[%s654 + $0x4] sm:$0xf]
      %v6230 = vld [vmem:[%s654 + $0x8] sm:$0xf]
      %v6231 = vld [vmem:[%s654 + $0xc] sm:$0xf]
      %v6232 = vld [vmem:[%s654 + $0x10] sm:$0xf]
      %v6233 = vld [vmem:[%s654 + $0x14] sm:$0xf]
      %v6234 = vld [vmem:[%s654 + $0x18] sm:$0xf]
      %v6235 = vld [vmem:[%s654 + $0x1c] sm:$0xf]
      %v6236 = vunpack.c.l.bf16 %v6228
      %v6237 = vunpack.c.l.bf16 %v6229
      %v6238 = vunpack.c.l.bf16 %v6230
      %v6239 = vunpack.c.l.bf16 %v6231
      %v6240 = vunpack.c.l.bf16 %v6232
      %v6241 = vunpack.c.l.bf16 %v6233
      %v6242 = vunpack.c.l.bf16 %v6234
      %v6243 = vunpack.c.l.bf16 %v6235
      %v6244 = vadd.f32 %v6198, %v6236
      %v6245 = vadd.f32 %v6201, %v6237
      %v6246 = vadd.f32 %v6206, %v6238
      %v6247 = vadd.f32 %v6209, %v6239
      %v6248 = vadd.f32 %v6214, %v6240
      %v6249 = vadd.f32 %v6217, %v6241
      %v6250 = vadd.f32 %v6222, %v6242
      %v6251 = vadd.f32 %v6225, %v6243
      %v6252 = vsel %vm1116, %v6244, 0.0
      %6253 = vadd.xlane.f32.xlu0 %v6252
      %v6254 = vpop.xlane.xlu0 %6253
      %v6255 = vsel %vm1116, %v6245, 0.0
      %6256 = vadd.xlane.f32.xlu0 %v6255
      %v6257 = vpop.xlane.xlu0 %6256
      %v6258 = vsel %vm1116, %v6246, 0.0
      %6259 = vadd.xlane.f32.xlu0 %v6258
      %v6260 = vpop.xlane.xlu0 %6259
      %v6261 = vsel %vm1116, %v6247, 0.0
      %6262 = vadd.xlane.f32.xlu0 %v6261
      %v6263 = vpop.xlane.xlu0 %6262
      %v6264 = vsel %vm1116, %v6248, 0.0
      %6265 = vadd.xlane.f32.xlu0 %v6264
      %v6266 = vpop.xlane.xlu0 %6265
      %v6267 = vsel %vm1116, %v6249, 0.0
      %6268 = vadd.xlane.f32.xlu0 %v6267
      %v6269 = vpop.xlane.xlu0 %6268
      %v6270 = vsel %vm1116, %v6250, 0.0
      %6271 = vadd.xlane.f32.xlu0 %v6270
      %v6272 = vpop.xlane.xlu0 %6271
      %v6273 = vsel %vm1116, %v6251, 0.0
      %6274 = vadd.xlane.f32.xlu0 %v6273
      %v6275 = vpop.xlane.xlu0 %6274
      %v6276 = vmul.f32 %v6254, %v1098
      %v6277 = vmul.f32 %v6257, %v1098
      %v6278 = vmul.f32 %v6260, %v1098
      %v6279 = vmul.f32 %v6263, %v1098
      %v6280 = vmul.f32 %v6266, %v1098
      %v6281 = vmul.f32 %v6269, %v1098
      %v6282 = vmul.f32 %v6272, %v1098
      %v6283 = vmul.f32 %v6275, %v1098
      %v6284 = vsub.f32 %v6244, %v6276
      %v6285 = vsub.f32 %v6245, %v6277
      %v6286 = vsub.f32 %v6246, %v6278
      %v6287 = vsub.f32 %v6247, %v6279
      %v6288 = vsub.f32 %v6248, %v6280
      %v6289 = vsub.f32 %v6249, %v6281
      %v6290 = vsub.f32 %v6250, %v6282
      %v6291 = vsub.f32 %v6251, %v6283
      %v6292 = vmul.f32 %v6284, %v6284
      %v6293 = vmul.f32 %v6285, %v6285
      %v6294 = vmul.f32 %v6286, %v6286
      %v6295 = vmul.f32 %v6287, %v6287
      %v6296 = vmul.f32 %v6288, %v6288
      %v6297 = vmul.f32 %v6289, %v6289
      %v6298 = vmul.f32 %v6290, %v6290
      %v6299 = vmul.f32 %v6291, %v6291
      %v6300 = vsel %vm1116, %v6292, 0.0
      %6301 = vadd.xlane.f32.xlu0 %v6300
      %v6302 = vpop.xlane.xlu0 %6301
      %v6303 = vsel %vm1116, %v6293, 0.0
      %6304 = vadd.xlane.f32.xlu0 %v6303
      %v6305 = vpop.xlane.xlu0 %6304
      %v6306 = vsel %vm1116, %v6294, 0.0
      %6307 = vadd.xlane.f32.xlu0 %v6306
      %v6308 = vpop.xlane.xlu0 %6307
      %v6309 = vsel %vm1116, %v6295, 0.0
      %6310 = vadd.xlane.f32.xlu0 %v6309
      %v6311 = vpop.xlane.xlu0 %6310
      %v6312 = vsel %vm1116, %v6296, 0.0
      %6313 = vadd.xlane.f32.xlu0 %v6312
      %v6314 = vpop.xlane.xlu0 %6313
      %v6315 = vsel %vm1116, %v6297, 0.0
      %6316 = vadd.xlane.f32.xlu0 %v6315
      %v6317 = vpop.xlane.xlu0 %6316
      %v6318 = vsel %vm1116, %v6298, 0.0
      %6319 = vadd.xlane.f32.xlu0 %v6318
      %v6320 = vpop.xlane.xlu0 %6319
      %v6321 = vsel %vm1116, %v6299, 0.0
      %6322 = vadd.xlane.f32.xlu0 %v6321
      %v6323 = vpop.xlane.xlu0 %6322
      %v6324 = vmul.f32 %v6302, %v1098
      %v6325 = vmul.f32 %v6305, %v1098
      %v6326 = vmul.f32 %v6308, %v1098
      %v6327 = vmul.f32 %v6311, %v1098
      %v6328 = vmul.f32 %v6314, %v1098
      %v6329 = vmul.f32 %v6317, %v1098
      %v6330 = vmul.f32 %v6320, %v1098
      %v6331 = vmul.f32 %v6323, %v1098
      %v6332 = vadd.f32 %v6324, 1e-05
      %v6333 = vadd.f32 %v6325, 1e-05
      %v6334 = vadd.f32 %v6326, 1e-05
      %v6335 = vadd.f32 %v6327, 1e-05
      %v6336 = vadd.f32 %v6328, 1e-05
      %v6337 = vadd.f32 %v6329, 1e-05
      %v6338 = vadd.f32 %v6330, 1e-05
      %v6339 = vadd.f32 %v6331, 1e-05
      %v6340 = vrsqrt.pop %v6332
      %v6341 = vrsqrt.pop %v6333
      %v6342 = vrsqrt.pop %v6334
      %v6343 = vrsqrt.pop %v6335
      %v6344 = vrsqrt.pop %v6336
      %v6345 = vrsqrt.pop %v6337
      %v6346 = vrsqrt.pop %v6338
      %v6347 = vrsqrt.pop %v6339
      %v6348 = vmul.f32 %v6284, %v6340
      %v6349 = vmul.f32 %v6285, %v6341
      %v6350 = vmul.f32 %v6286, %v6342
      %v6351 = vmul.f32 %v6287, %v6343
      %v6352 = vmul.f32 %v6288, %v6344
      %v6353 = vmul.f32 %v6289, %v6345
      %v6354 = vmul.f32 %v6290, %v6346
      %v6355 = vmul.f32 %v6291, %v6347
      %v6356 = vld [vmem:[%s17] sm:$0x1]
      %v6358 = vlaneseq
      %v6359 = vshrl.u32 %v6358, 7
      %v6360 = vsub.s32 0, %v6359
      %v6361 = vrot.slane %v6356, %v6360
      %v6363 = vmul.f32 %v6348, %v6361
      %v6364 = vmul.f32 %v6349, %v6361
      %v6365 = vmul.f32 %v6350, %v6361
      %v6366 = vmul.f32 %v6351, %v6361
      %v6367 = vmul.f32 %v6352, %v6361
      %v6368 = vmul.f32 %v6353, %v6361
      %v6369 = vmul.f32 %v6354, %v6361
      %v6370 = vmul.f32 %v6355, %v6361
      %v6371 = vld [vmem:[%s18] sm:$0x1]
      %v6373 = vlaneseq
      %v6374 = vshrl.u32 %v6373, 7
      %v6375 = vsub.s32 0, %v6374
      %v6376 = vrot.slane %v6371, %v6375
      %v6378 = vadd.f32 %v6363, %v6376
      %v6379 = vadd.f32 %v6364, %v6376
      %v6380 = vadd.f32 %v6365, %v6376
      %v6381 = vadd.f32 %v6366, %v6376
      %v6382 = vadd.f32 %v6367, %v6376
      %v6383 = vadd.f32 %v6368, %v6376
      %v6384 = vadd.f32 %v6369, %v6376
      %v6385 = vadd.f32 %v6370, %v6376
      %v6386 = vpack.c.bf16 %v6379, %v6378
      %v6387 = vpack.c.bf16 %v6381, %v6380
      %v6388 = vpack.c.bf16 %v6383, %v6382
      %v6389 = vpack.c.bf16 %v6385, %v6384
      %v6390 = vld [vmem:[%s19] sm:$0xf]
      %v6392 = vsel %vm1116, %v6386, 0
      %v6395 = vsel %vm1116, %v6387, 0
      %v6398 = vsel %vm1116, %v6388, 0
      %v6401 = vsel %vm1116, %v6389, 0
      %v6404 = vsel %vm1120, %v6390, 0
      %6406 = vmatprep.subr.bf16.mxu0 0
      %6407 = vmatpush1.bf16.msra.mxu0 0
      %6408 = vmatprep.subr.bf16.mxu0 0
      %6409 = vmatpush1.bf16.msra.mxu0 0
      %6410 = vmatprep.subr.bf16.mxu0 0
      %6411 = vmatpush1.bf16.msra.mxu0 0
      %6412 = vmatprep.subr.bf16.mxu0 0
      %6413 = vmatpush1.bf16.msra.mxu0 0
      %6414 = vmatprep.subr.bf16.mxu0 0
      %6415 = vmatpush1.bf16.msra.mxu0 0
      %6416 = vmatprep.subr.bf16.mxu0 0
      %6417 = vmatpush1.bf16.msra.mxu0 0
      %6418 = vmatprep.subr.bf16.mxu0 0
      %6419 = vmatpush1.bf16.msra.mxu0 0
      %6420 = vmatprep.subr.bf16.mxu0 0
      %6421 = vmatpush1.bf16.msra.mxu0 %v6404
      %6422 = vmatprep.subr.bf16.mxu0 0
      %6423 = vmatpush2.bf16.msra.mxu0 0
      %6424 = vmatprep.subr.bf16.mxu0 0
      %6425 = vmatpush2.bf16.msra.mxu0 0
      %6426 = vmatprep.subr.bf16.mxu0 0
      %6427 = vmatpush2.bf16.msra.mxu0 0
      %6428 = vmatprep.subr.bf16.mxu0 0
      %6429 = vmatpush2.bf16.msra.mxu0 0
      %6430 = vmatprep.subr.bf16.mxu0 0
      %6431 = vmatpush2.bf16.msra.mxu0 0
      %6432 = vmatprep.subr.bf16.mxu0 0
      %6433 = vmatpush2.bf16.msra.mxu0 0
      %6434 = vmatprep.subr.bf16.mxu0 0
      %6435 = vmatpush2.bf16.msra.mxu0 0
      %6436 = vmatprep.subr.bf16.mxu0 0
      %6437 = vmatpush2.bf16.msra.mxu0 0
      %6438 = vmatprep.mubr.bf16.mxu0 0
      %6439 = vmatmul.mubr.bf16.gmra.mxu0 %v6392
      %v6440 = vpop.f32.mrf.mxu0
      %v6441 = vadd.f32 0.0, %v6440
      %v6442 = vpop.f32.mrf.mxu0
      %v6443 = vpop.f32.mrf.mxu0
      %v6444 = vadd.f32 0.0, %v6443
      %v6445 = vpop.f32.mrf.mxu0
      %6446 = vmatprep.mubr.bf16.mxu0 0
      %6447 = vmatmul.mubr.bf16.gmra.mxu0 %v6395
      %v6448 = vpop.f32.mrf.mxu0
      %v6449 = vadd.f32 0.0, %v6448
      %v6450 = vpop.f32.mrf.mxu0
      %v6451 = vpop.f32.mrf.mxu0
      %v6452 = vadd.f32 0.0, %v6451
      %v6453 = vpop.f32.mrf.mxu0
      %6454 = vmatprep.mubr.bf16.mxu0 0
      %6455 = vmatmul.mubr.bf16.gmra.mxu0 %v6398
      %v6456 = vpop.f32.mrf.mxu0
      %v6457 = vadd.f32 0.0, %v6456
      %v6458 = vpop.f32.mrf.mxu0
      %v6459 = vpop.f32.mrf.mxu0
      %v6460 = vadd.f32 0.0, %v6459
      %v6461 = vpop.f32.mrf.mxu0
      %6462 = vmatprep.mubr.bf16.mxu0 0
      %6463 = vmatmul.mubr.bf16.gmra.mxu0 %v6401
      %v6464 = vpop.f32.mrf.mxu0
      %v6465 = vadd.f32 0.0, %v6464
      %v6466 = vpop.f32.mrf.mxu0
      %v6467 = vpop.f32.mrf.mxu0
      %v6468 = vadd.f32 0.0, %v6467
      %v6469 = vpop.f32.mrf.mxu0
      %6470 = vdwg.mxu0
      %6471 = vst [vmem:[%s670] sm:$0xff] %v6441
      %6472 = vst [vmem:[%s670 + $0x8] sm:$0xff] %v6444
      %6473 = vst [vmem:[%s670 + $0x10] sm:$0xff] %v6449
      %6474 = vst [vmem:[%s670 + $0x18] sm:$0xff] %v6452
      %6475 = vst [vmem:[%s670 + $0x20] sm:$0xff] %v6457
      %6476 = vst [vmem:[%s670 + $0x28] sm:$0xff] %v6460
      %6477 = vst [vmem:[%s670 + $0x30] sm:$0xff] %v6465
      %6478 = vst [vmem:[%s670 + $0x38] sm:$0xff] %v6468
      %s6479 = smul.u32 8, %s31
      %p6480 = scmp.lt.s32.totalorder %s6479, 15
      %s6481 = scalar_select %p6480, %s6479, 15
      %s6482 = smul.addr %s6481, 8
      %s6483 = scalar_lea.vmem %s20, %s6482
      // Predicated region
      $region101: #{stt_forward.3} parent=99 // pred_check
        %p6484 = pneg %p484
      $region102: #{stt_forward.3} parent=99 // pred_check_branch
        %6486 = sbr.rel (%p6484) target = $region104
      $region103: #{stt_forward.3} parent=99 // pred_region
        %s6487 = smul.u32 8, %s31
      $region104: #{stt_forward.3} parent=99 // pred_fallthru
        _
    $region100: #{stt_forward.3} parent=5 // pred_fallthru
      _
    %p6488 = scmp.le.s32.totalorder 2, %s26
    // Predicated region
    $region105: #{stt_forward.3} parent=5 // pred_check
      %p6489 = pneg %p6488
    $region106: #{stt_forward.3} parent=5 // pred_check_branch
      %6491 = sbr.rel (%p6489) target = $region108
    $region107: #{stt_forward.3} parent=5 // pred_region
      %s6492 = ssub.s32 %s26, 2
      // Predicated region
      $region109: #{stt_forward.3} parent=107 // pred_check
        %p6493 = pneg %p490
      $region110: #{stt_forward.3} parent=107 // pred_check_branch
        %6495 = sbr.rel (%p6493) target = $region112
      $region111: #{stt_forward.3} parent=107 // pred_region
        %s6496 = smul.u32 8, %s32
        %p6497 = scmp.lt.s32.totalorder %s6496, 15
        %s6498 = scalar_select %p6497, %s6496, 15
        %s6499 = smul.addr %s6498, 8
        %s6500 = scalar_lea.vmem %s20, %s6499
      $region112: #{stt_forward.3} parent=107 // pred_fallthru
        _
    $region108: #{stt_forward.3} parent=5 // pred_fallthru
      _
  $region6: #{stt_forward.3} parent=0 // loop_footer
    %s30 = sadd.s32 1, %s26
  $region7: #{stt_forward.3} parent=0 // loop_footer_branch
    %25 = sbr.rel target = $region3
  $region8: #{stt_forward.3} parent=0 // loop_exit
    _

</llo_original>
